<compile_context>
chip_gen: v7x
topology: tpu7x:2x2x1
jax: 0.10.0
libtpu: 0.0.40
codegen_flags: <defaults>
</compile_context>

<pallas_src>
import math

import jax
import jax.numpy as jnp
from jax.experimental import pallas as pl
from jax.experimental.pallas import tpu as pltpu

EMBED = 2 ** 10                       # embedding_size = 1024
N_HEAD = 2 ** 3                       # 8
HEAD_SIZE = EMBED // N_HEAD           # 128
HEADS_PER_STEP = 2                    # 2 heads / grid step -> 768-wide QKV matmul
N_GROUPS = N_HEAD // HEADS_PER_STEP   # 4 attention grid steps
GROUP_OUT = HEADS_PER_STEP * HEAD_SIZE    # 256 output lanes per step
GROUP_QKV = 3 * GROUP_OUT                 # 768 fused QKV columns per step
FFN_HIDDEN = 4 * EMBED                # 4096
FFN_SLABS = 2                         # hidden-dim split (v7x megacore partials)
LN_EPS = 1e-5
SCORE_SCALE = float(HEAD_SIZE) ** 0.5     # reference multiplies by sqrt(head_size)

# float32 -> bit-identical to the f32 PyTorch module.  jnp.bfloat16 halves the HBM
# weight stream (~2x end-to-end, block is weight-bound) at ~1e-3 relative error.
WEIGHT_DTYPE = jnp.float32


def _layernorm(x, gamma, beta):
    mean = jnp.mean(x, axis=-1, keepdims=True)
    cent = x - mean
    var = jnp.mean(cent * cent, axis=-1, keepdims=True)      # biased, like torch
    return cent * jax.lax.rsqrt(var + LN_EPS) * gamma + beta


# ------------- Fused LN1 + 2-heads-per-step QKV + attention + residual -------------
def _attn_kernel(x_ref, xres_ref, g_ref, b_ref, wqkv_ref, o_ref):
    # x_ref:    (B, T, E)      full activation (for LayerNorm)
    # xres_ref: (B, T, 2H)     residual slice for this head-pair
    # g/b_ref:  (1, E)         ln1 gamma/beta
    # wqkv_ref: (E, 6H)        [Wq|Wk|Wv] for head 2g then head 2g+1
    # o_ref:    (B, T, 2H)     output slice for this head-pair
    B, T, E = x_ref.shape
    H = HEAD_SIZE

    # LayerNorm (ln1), recomputed per step: cheap VPU/XLU work hidden under weight DMA.
    ln = _layernorm(x_ref[...].reshape(B * T, E), g_ref[...], b_ref[...])

    # Fused QKV for 2 heads: one (B*T, E) @ (E, 768) MXU pass, split in-register.
    qkv = jnp.dot(ln.astype(wqkv_ref.dtype), wqkv_ref[...],
                  preferred_element_type=jnp.float32)          # (B*T, 6H)

    outs = []
    for hh in range(HEADS_PER_STEP):
        base = hh * 3 * H
        q = qkv[:, base:base + H].reshape(B, T, H)
        k = qkv[:, base + H:base + 2 * H].reshape(B, T, H)
        v = qkv[:, base + 2 * H:base + 3 * H].reshape(B, T, H)

        # reference: Q @ K^T * sqrt(head_size)   (multiplied, as written)
        s = jnp.einsum('bth,bsh->bts', q, k,
                       preferred_element_type=jnp.float32) * SCORE_SCALE
        # F.softmax with no dim on a 3-D tensor -> softmax over dim 0 (batch)
        m = jnp.max(s, axis=0, keepdims=True)
        e = jnp.exp(s - m)
        w = e / jnp.sum(e, axis=0, keepdims=True)
        # dropout(0.2): identity in eval mode
        outs.append(jnp.einsum('bts,bsh->bth', w, v,
                               preferred_element_type=jnp.float32))

    att = jnp.concatenate(outs, axis=-1)                       # (B, T, 2H)
    # fused residual add + lane-dense 256-wide store at this head-pair's offset
    o_ref[...] = (xres_ref[...] + att).astype(o_ref.dtype)


def fused_attention(x, ln_g, ln_b, wqkv):
    """x: (B,T,E); wqkv: (N_GROUPS, E, 6*HEAD_SIZE) -> x + MHA(LN(x)), shape (B,T,E)."""
    B, T, E = x.shape
    wbytes = jnp.dtype(wqkv.dtype).itemsize
    cost = pl.CostEstimate(
        flops=int(2 * B * T * E * 3 * HEAD_SIZE * N_HEAD
                  + 4 * N_HEAD * B * T * T * HEAD_SIZE),
        transcendentals=int(N_HEAD * B * T * T),
        bytes_accessed=int(wqkv.size * wbytes + 3 * B * T * E * 4),
    )
    return pl.pallas_call(
        _attn_kernel,
        out_shape=jax.ShapeDtypeStruct((B, T, E), x.dtype),
        grid_spec=pltpu.PrefetchScalarGridSpec(
            num_scalar_prefetch=0,
            grid=(N_GROUPS,),
            in_specs=[
                pl.BlockSpec((B, T, E), lambda g: (0, 0, 0)),          # x (LayerNorm)
                pl.BlockSpec((B, T, GROUP_OUT), lambda g: (0, 0, g)),  # residual slice
                pl.BlockSpec((1, E), lambda g: (0, 0)),                # ln1 gamma
                pl.BlockSpec((1, E), lambda g: (0, 0)),                # ln1 beta
                pl.BlockSpec((None, E, GROUP_QKV), lambda g: (g, 0, 0)),  # fused QKV W
            ],
            out_specs=pl.BlockSpec((B, T, GROUP_OUT), lambda g: (0, 0, g)),
        ),
        compiler_params=pltpu.CompilerParams(
            dimension_semantics=("parallel",)),
        cost_estimate=cost,
    )(x, x, ln_g.reshape(1, E), ln_b.reshape(1, E), wqkv)


# ----------------- Fused LN2 + FeedForward + residual (hidden-dim split) -----------------
def _ffn_kernel(x_ref, g_ref, beta_ref, w1_ref, b1_ref, w2_ref, b2_ref, o_ref, ln_ref):
    # x_ref: (R, E) activation (LN input AND residual)
    # o_ref: (R, E) partial-slab accumulator for hidden-slab c = program_id(0)
    c = pl.program_id(0)
    k = pl.program_id(1)

    @pl.when(k == 0)
    def _():
        x = x_ref[...]
        ln_ref[...] = _layernorm(x, g_ref[...], beta_ref[...])
        # slab 0 carries residual + fc2 bias exactly once; other slab starts at zero
        res = x + b2_ref[...]
        o_ref[...] = jnp.where(c == 0, res, jnp.zeros_like(res))

    h = jnp.dot(ln_ref[...].astype(w1_ref.dtype), w1_ref[...],
                preferred_element_type=jnp.float32) + b1_ref[...]
    h = jnp.maximum(h, 0.0)                   # ReLU
    # dropout(0.2): identity in eval mode
    o_ref[...] += jnp.dot(h.astype(w2_ref.dtype), w2_ref[...],
                          preferred_element_type=jnp.float32)


def _default_ffn_tile_h():
    # 128 MiB VMEM parts (v5e/v6e/v5p) afford 2048-wide hidden tiles (bigger DMAs,
    # fewer steps); v7x (64 MiB per TC) and unknown chips keep the safe 1024.
    try:
        kind = jax.devices()[0].device_kind.lower()
    except Exception:
        return 1024
    if "v5" in kind or "v6" in kind:
        return 2048
    return 1024


def fused_feedforward(x2d, ln_g, ln_b, w1, b1, w2, b2, *, tile_h=None):
    """x2d: (R, E) -> x2d + FFN(LN(x2d)), shape (R, E)."""
    R, E = x2d.shape
    Hh = w1.shape[1]
    if tile_h is None:
        tile_h = _default_ffn_tile_h()
    assert Hh % (tile_h * FFN_SLABS) == 0
    kpc = Hh // tile_h // FFN_SLABS           # hidden tiles per slab
    wbytes = jnp.dtype(w1.dtype).itemsize
    cost = pl.CostEstimate(
        flops=int(4 * R * E * Hh),
        transcendentals=0,
        bytes_accessed=int((w1.size + w2.size) * wbytes + 6 * R * E * 4),
    )
    # double-buffered w1+w2 tiles dominate: ~17 MiB (tile_h=1024) / ~33 MiB (tile_h=2048)
    vmem_limit = (40 if tile_h >= 2048 else 32) * 1024 * 1024

    partials = pl.pallas_call(
        _ffn_kernel,
        out_shape=jax.ShapeDtypeStruct((FFN_SLABS, R, E), x2d.dtype),
        grid_spec=pltpu.PrefetchScalarGridSpec(
            num_scalar_prefetch=0,
            grid=(FFN_SLABS, kpc),
            in_specs=[
                pl.BlockSpec((R, E), lambda c, k: (0, 0)),       # x (LN input + residual)
                pl.BlockSpec((1, E), lambda c, k: (0, 0)),       # ln2 gamma
                pl.BlockSpec((1, E), lambda c, k: (0, 0)),       # ln2 beta
                pl.BlockSpec((E, tile_h),
                             lambda c, k, kpc=kpc: (0, c * kpc + k)),   # w1 tile
                pl.BlockSpec((1, tile_h),
                             lambda c, k, kpc=kpc: (0, c * kpc + k)),   # b1 tile
                pl.BlockSpec((tile_h, E),
                             lambda c, k, kpc=kpc: (c * kpc + k, 0)),   # w2 tile
                pl.BlockSpec((1, E), lambda c, k: (0, 0)),       # b2
            ],
            out_specs=pl.BlockSpec((None, R, E), lambda c, k: (c, 0, 0)),
            scratch_shapes=[pltpu.VMEM((R, E), jnp.float32)],    # ln2(x), per-core
        ),
        compiler_params=pltpu.CompilerParams(
            dimension_semantics=("parallel", "arbitrary"),
            vmem_limit_bytes=vmem_limit,
        ),
        cost_estimate=cost,
    )(x2d, ln_g.reshape(1, E), ln_b.reshape(1, E),
      w1, b1.reshape(1, Hh), w2, b2.reshape(1, E))

    # sum the two per-slab partials (128 KiB XLA add, negligible)
    return partials[0] + partials[1]


# --------------------------------- Block -------------------------------------
def block_forward(x, p):
    B, T, E = x.shape
    # x = x + sa(ln1(x))     (one fused kernel)
    x = fused_attention(x, p['ln1_g'], p['ln1_b'], p['wqkv'])
    # x = x + ffwd(ln2(x))   (one fused kernel + tiny partial-slab add)
    x = fused_feedforward(x.reshape(B * T, E), p['ln2_g'], p['ln2_b'],
                          p['w1'], p['b1'], p['w2'], p['b2']).reshape(B, T, E)
    return x


def init_params(key):
    ks = jax.random.split(key, 5)

    def lin(k, fan_in, shape):
        bound = 1.0 / math.sqrt(fan_in)
        return jax.random.uniform(k, shape, jnp.float32, -bound, bound)

    return {
        # fused per-head-pair projection: for group g, columns
        # [0:H]=Wq(head 2g), [H:2H]=Wk(2g), [2H:3H]=Wv(2g), [3H:6H]=same for head 2g+1
        'wqkv': lin(ks[0], EMBED, (N_GROUPS, EMBED, GROUP_QKV)).astype(WEIGHT_DTYPE),
        'ln1_g': jnp.ones((EMBED,), jnp.float32),
        'ln1_b': jnp.zeros((EMBED,), jnp.float32),
        'ln2_g': jnp.ones((EMBED,), jnp.float32),
        'ln2_b': jnp.zeros((EMBED,), jnp.float32),
        'w1': lin(ks[1], EMBED, (EMBED, FFN_HIDDEN)).astype(WEIGHT_DTYPE),
        'b1': lin(ks[2], EMBED, (FFN_HIDDEN,)),
        'w2': lin(ks[3], FFN_HIDDEN, (FFN_HIDDEN, EMBED)).astype(WEIGHT_DTYPE),
        'b2': lin(ks[4], FFN_HIDDEN, (EMBED,)),
    }


if __name__ == "__main__":
    key = jax.random.PRNGKey(0)
    k_x, k_p = jax.random.split(key)
    B, T = 2, 16
    x = jax.random.normal(k_x, (B, T, EMBED), jnp.float32)
    params = init_params(k_p)

    out = jax.jit(block_forward)(x, params)
    out = jax.block_until_ready(out)
    assert out.shape == (B, T, EMBED) and out.dtype == jnp.float32
    assert bool(jnp.all(jnp.isfinite(out)))
    print("KERNEL_OK")
</pallas_src>

<mosaic_0001>
module attributes {stable_mosaic.version = 11 : i64} {
  func.func @_attn_kernel(%arg0: i32, %arg1: memref<2x16x1024xf32, #tpu.memory_space<vmem>>, %arg2: memref<2x16x256xf32, #tpu.memory_space<vmem>>, %arg3: memref<1x1024xf32, #tpu.memory_space<vmem>>, %arg4: memref<1x1024xf32, #tpu.memory_space<vmem>>, %arg5: memref<1x1024x768xf32, #tpu.memory_space<vmem>>, %arg6: memref<2x16x256xf32, #tpu.memory_space<vmem>>) attributes {dimension_semantics = [#tpu.dimension_semantics<parallel>], iteration_bounds = array<i64: 4>, scalar_prefetch = 0 : i64, scratch_operands = 0 : i64, tpu.core_type = #tpu.core_type<tc>, window_params = [{pipeline_mode = #tpu.pipeline_mode<synchronous>, transform_indices = @transform_0, window_bounds = array<i64: 2, 16, 1024>}, {transform_indices = @transform_1, window_bounds = array<i64: 2, 16, 256>}, {pipeline_mode = #tpu.pipeline_mode<synchronous>, transform_indices = @transform_2, window_bounds = array<i64: 1, 1024>}, {pipeline_mode = #tpu.pipeline_mode<synchronous>, transform_indices = @transform_3, window_bounds = array<i64: 1, 1024>}, {transform_indices = @transform_4, window_bounds = array<i64: 1, 1024, 768>}, {transform_indices = @transform_5, window_bounds = array<i64: 2, 16, 256>}]} {
    %c0 = arith.constant 0 : index
    %c0_0 = arith.constant 0 : index
    %c0_1 = arith.constant 0 : index
    %0 = vector.load %arg1[%c0, %c0_0, %c0_1] : memref<2x16x1024xf32, #tpu.memory_space<vmem>>, vector<2x16x1024xf32>
    %1 = vector.shape_cast %0 : vector<2x16x1024xf32> to vector<32x1024xf32>
    %c0_2 = arith.constant 0 : index
    %c0_3 = arith.constant 0 : index
    %2 = vector.load %arg3[%c0_2, %c0_3] : memref<1x1024xf32, #tpu.memory_space<vmem>>, vector<1x1024xf32>
    %c0_4 = arith.constant 0 : index
    %c0_5 = arith.constant 0 : index
    %3 = vector.load %arg4[%c0_4, %c0_5] : memref<1x1024xf32, #tpu.memory_space<vmem>>, vector<1x1024xf32>
    %cst = arith.constant dense<0.000000e+00> : vector<32xf32>
    %4 = vector.multi_reduction <add>, %1, %cst [1] : vector<32x1024xf32> to vector<32xf32>
    %5 = vector.shape_cast %4 : vector<32xf32> to vector<32x1xf32>
    %cst_6 = arith.constant 1.024000e+03 : f32
    %6 = vector.broadcast %cst_6 : f32 to vector<32x1xf32>
    %7 = arith.divf %5, %6 : vector<32x1xf32>
    %8 = vector.broadcast %7 : vector<32x1xf32> to vector<32x1024xf32>
    %9 = arith.subf %1, %8 : vector<32x1024xf32>
    %10 = arith.mulf %9, %9 : vector<32x1024xf32>
    %cst_7 = arith.constant dense<0.000000e+00> : vector<32xf32>
    %11 = vector.multi_reduction <add>, %10, %cst_7 [1] : vector<32x1024xf32> to vector<32xf32>
    %12 = vector.shape_cast %11 : vector<32xf32> to vector<32x1xf32>
    %cst_8 = arith.constant 1.024000e+03 : f32
    %13 = vector.broadcast %cst_8 : f32 to vector<32x1xf32>
    %14 = arith.divf %12, %13 : vector<32x1xf32>
    %cst_9 = arith.constant 9.99999974E-6 : f32
    %15 = vector.broadcast %cst_9 : f32 to vector<32x1xf32>
    %16 = arith.addf %14, %15 : vector<32x1xf32>
    %17 = math.rsqrt %16 : vector<32x1xf32>
    %18 = vector.broadcast %17 : vector<32x1xf32> to vector<32x1024xf32>
    %19 = arith.mulf %9, %18 : vector<32x1024xf32>
    %20 = vector.broadcast %2 : vector<1x1024xf32> to vector<32x1024xf32>
    %21 = arith.mulf %19, %20 : vector<32x1024xf32>
    %22 = vector.broadcast %3 : vector<1x1024xf32> to vector<32x1024xf32>
    %23 = arith.addf %21, %22 : vector<32x1024xf32>
    %c0_10 = arith.constant 0 : index
    %c0_11 = arith.constant 0 : index
    %c0_12 = arith.constant 0 : index
    %24 = vector.load %arg5[%c0_10, %c0_11, %c0_12] : memref<1x1024x768xf32, #tpu.memory_space<vmem>>, vector<1x1024x768xf32>
    %25 = vector.shape_cast %24 : vector<1x1024x768xf32> to vector<1024x768xf32>
    %cst_13 = arith.constant dense<0.000000e+00> : vector<32x768xf32>
    %26 = tpu.matmul %23, %25, %cst_13 {dimension_numbers = #tpu.dot_dimension_numbers<[1], [0], [0], [1], [0, 0, 1, 1], [], []>} : vector<32x1024xf32>, vector<1024x768xf32>, vector<32x768xf32> -> vector<32x768xf32>
    %27 = vector.extract_strided_slice %26 {offsets = [0, 0], sizes = [32, 128], strides = [1, 1]} : vector<32x768xf32> to vector<32x128xf32>
    %28 = vector.shape_cast %27 : vector<32x128xf32> to vector<2x16x128xf32>
    %29 = vector.extract_strided_slice %26 {offsets = [0, 128], sizes = [32, 128], strides = [1, 1]} : vector<32x768xf32> to vector<32x128xf32>
    %30 = vector.shape_cast %29 : vector<32x128xf32> to vector<2x16x128xf32>
    %31 = vector.extract_strided_slice %26 {offsets = [0, 256], sizes = [32, 128], strides = [1, 1]} : vector<32x768xf32> to vector<32x128xf32>
    %32 = vector.shape_cast %31 : vector<32x128xf32> to vector<2x16x128xf32>
    "tpu.trace_start"() <{level = 10 : i32, message = "bth,bsh->bts"}> : () -> ()
    %cst_14 = arith.constant dense<0.000000e+00> : vector<2x16x16xf32>
    %33 = tpu.matmul %28, %30, %cst_14 {dimension_numbers = #tpu.dot_dimension_numbers<[2], [2], [1], [1], [0, 0, 0, 1, 1, 1], [0], [0]>} : vector<2x16x128xf32>, vector<2x16x128xf32>, vector<2x16x16xf32> -> vector<2x16x16xf32>
    "tpu.trace_stop"() : () -> ()
    %cst_15 = arith.constant 11.3137083 : f32
    %34 = vector.broadcast %cst_15 : f32 to vector<2x16x16xf32>
    %35 = arith.mulf %33, %34 : vector<2x16x16xf32>
    %cst_16 = arith.constant dense<0xFF800000> : vector<16x16xf32>
    %36 = vector.multi_reduction <maximumf>, %35, %cst_16 [0] : vector<2x16x16xf32> to vector<16x16xf32>
    %37 = vector.shape_cast %36 : vector<16x16xf32> to vector<1x16x16xf32>
    %38 = vector.broadcast %37 : vector<1x16x16xf32> to vector<2x16x16xf32>
    %39 = arith.subf %35, %38 : vector<2x16x16xf32>
    %40 = math.exp %39 : vector<2x16x16xf32>
    %cst_17 = arith.constant dense<0.000000e+00> : vector<16x16xf32>
    %41 = vector.multi_reduction <add>, %40, %cst_17 [0] : vector<2x16x16xf32> to vector<16x16xf32>
    %42 = vector.shape_cast %41 : vector<16x16xf32> to vector<1x16x16xf32>
    %43 = vector.broadcast %42 : vector<1x16x16xf32> to vector<2x16x16xf32>
    %44 = arith.divf %40, %43 : vector<2x16x16xf32>
    "tpu.trace_start"() <{level = 10 : i32, message = "bts,bsh->bth"}> : () -> ()
    %cst_18 = arith.constant dense<0.000000e+00> : vector<2x16x128xf32>
    %45 = tpu.matmul %44, %32, %cst_18 {dimension_numbers = #tpu.dot_dimension_numbers<[2], [1], [1], [2], [0, 0, 0, 1, 1, 2], [0], [0]>} : vector<2x16x16xf32>, vector<2x16x128xf32>, vector<2x16x128xf32> -> vector<2x16x128xf32>
    "tpu.trace_stop"() : () -> ()
    %46 = vector.extract_strided_slice %26 {offsets = [0, 384], sizes = [32, 128], strides = [1, 1]} : vector<32x768xf32> to vector<32x128xf32>
    %47 = vector.shape_cast %46 : vector<32x128xf32> to vector<2x16x128xf32>
    %48 = vector.extract_strided_slice %26 {offsets = [0, 512], sizes = [32, 128], strides = [1, 1]} : vector<32x768xf32> to vector<32x128xf32>
    %49 = vector.shape_cast %48 : vector<32x128xf32> to vector<2x16x128xf32>
    %50 = vector.extract_strided_slice %26 {offsets = [0, 640], sizes = [32, 128], strides = [1, 1]} : vector<32x768xf32> to vector<32x128xf32>
    %51 = vector.shape_cast %50 : vector<32x128xf32> to vector<2x16x128xf32>
    "tpu.trace_start"() <{level = 10 : i32, message = "bth,bsh->bts"}> : () -> ()
    %cst_19 = arith.constant dense<0.000000e+00> : vector<2x16x16xf32>
    %52 = tpu.matmul %47, %49, %cst_19 {dimension_numbers = #tpu.dot_dimension_numbers<[2], [2], [1], [1], [0, 0, 0, 1, 1, 1], [0], [0]>} : vector<2x16x128xf32>, vector<2x16x128xf32>, vector<2x16x16xf32> -> vector<2x16x16xf32>
    "tpu.trace_stop"() : () -> ()
    %cst_20 = arith.constant 11.3137083 : f32
    %53 = vector.broadcast %cst_20 : f32 to vector<2x16x16xf32>
    %54 = arith.mulf %52, %53 : vector<2x16x16xf32>
    %cst_21 = arith.constant dense<0xFF800000> : vector<16x16xf32>
    %55 = vector.multi_reduction <maximumf>, %54, %cst_21 [0] : vector<2x16x16xf32> to vector<16x16xf32>
    %56 = vector.shape_cast %55 : vector<16x16xf32> to vector<1x16x16xf32>
    %57 = vector.broadcast %56 : vector<1x16x16xf32> to vector<2x16x16xf32>
    %58 = arith.subf %54, %57 : vector<2x16x16xf32>
    %59 = math.exp %58 : vector<2x16x16xf32>
    %cst_22 = arith.constant dense<0.000000e+00> : vector<16x16xf32>
    %60 = vector.multi_reduction <add>, %59, %cst_22 [0] : vector<2x16x16xf32> to vector<16x16xf32>
    %61 = vector.shape_cast %60 : vector<16x16xf32> to vector<1x16x16xf32>
    %62 = vector.broadcast %61 : vector<1x16x16xf32> to vector<2x16x16xf32>
    %63 = arith.divf %59, %62 : vector<2x16x16xf32>
    "tpu.trace_start"() <{level = 10 : i32, message = "bts,bsh->bth"}> : () -> ()
    %cst_23 = arith.constant dense<0.000000e+00> : vector<2x16x128xf32>
    %64 = tpu.matmul %63, %51, %cst_23 {dimension_numbers = #tpu.dot_dimension_numbers<[2], [1], [1], [2], [0, 0, 0, 1, 1, 2], [0], [0]>} : vector<2x16x16xf32>, vector<2x16x128xf32>, vector<2x16x128xf32> -> vector<2x16x128xf32>
    "tpu.trace_stop"() : () -> ()
    %65 = tpu.concatenate %45, %64 in 2 : vector<2x16x128xf32>, vector<2x16x128xf32> -> vector<2x16x256xf32>
    %c0_24 = arith.constant 0 : index
    %c0_25 = arith.constant 0 : index
    %c0_26 = arith.constant 0 : index
    %66 = vector.load %arg2[%c0_24, %c0_25, %c0_26] : memref<2x16x256xf32, #tpu.memory_space<vmem>>, vector<2x16x256xf32>
    %67 = arith.addf %66, %65 : vector<2x16x256xf32>
    %c0_27 = arith.constant 0 : index
    %c0_28 = arith.constant 0 : index
    %c0_29 = arith.constant 0 : index
    %68 = vector.load %arg6[%c0_27, %c0_28, %c0_29] : memref<2x16x256xf32, #tpu.memory_space<vmem>>, vector<2x16x256xf32>
    tpu.vector_store %arg6[%c0_27, %c0_28, %c0_29], %67 {strides = array<i32>} : memref<2x16x256xf32, #tpu.memory_space<vmem>>, vector<2x16x256xf32>,
    return
  }
  func.func @transform_0(%arg0: i32) -> (i32, i32, i32) {
    %c0_i32 = arith.constant 0 : i32
    %c0_i32_0 = arith.constant 0 : i32
    %c0_i32_1 = arith.constant 0 : i32
    %c0_i32_2 = arith.constant 0 : i32
    return %c0_i32, %c0_i32_0, %c0_i32_1 : i32, i32, i32
  }
  func.func @transform_1(%arg0: i32) -> (i32, i32, i32) {
    %c0_i32 = arith.constant 0 : i32
    %c0_i32_0 = arith.constant 0 : i32
    %c0_i32_1 = arith.constant 0 : i32
    return %c0_i32, %c0_i32_0, %arg0 : i32, i32, i32
  }
  func.func @transform_2(%arg0: i32) -> (i32, i32) {
    %c0_i32 = arith.constant 0 : i32
    %c0_i32_0 = arith.constant 0 : i32
    %c0_i32_1 = arith.constant 0 : i32
    return %c0_i32, %c0_i32_0 : i32, i32
  }
  func.func @transform_3(%arg0: i32) -> (i32, i32) {
    %c0_i32 = arith.constant 0 : i32
    %c0_i32_0 = arith.constant 0 : i32
    %c0_i32_1 = arith.constant 0 : i32
    return %c0_i32, %c0_i32_0 : i32, i32
  }
  func.func @transform_4(%arg0: i32) -> (i32, i32, i32) {
    %c0_i32 = arith.constant 0 : i32
    %c0_i32_0 = arith.constant 0 : i32
    %c0_i32_1 = arith.constant 0 : i32
    return %arg0, %c0_i32, %c0_i32_0 : i32, i32, i32
  }
  func.func @transform_5(%arg0: i32) -> (i32, i32, i32) {
    %c0_i32 = arith.constant 0 : i32
    %c0_i32_0 = arith.constant 0 : i32
    %c0_i32_1 = arith.constant 0 : i32
    return %c0_i32, %c0_i32_0, %arg0 : i32, i32, i32
  }
}

module attributes {stable_mosaic.version = 11 : i64} {
  func.func @_ffn_kernel(%arg0: i32, %arg1: i32, %arg2: memref<32x1024xf32, #tpu.memory_space<vmem>>, %arg3: memref<1x1024xf32, #tpu.memory_space<vmem>>, %arg4: memref<1x1024xf32, #tpu.memory_space<vmem>>, %arg5: memref<1024x1024xf32, #tpu.memory_space<vmem>>, %arg6: memref<1x1024xf32, #tpu.memory_space<vmem>>, %arg7: memref<1024x1024xf32, #tpu.memory_space<vmem>>, %arg8: memref<1x1024xf32, #tpu.memory_space<vmem>>, %arg9: memref<1x32x1024xf32, #tpu.memory_space<vmem>>, %arg10: memref<32x1024xf32, #tpu.memory_space<vmem>>) attributes {dimension_semantics = [#tpu.dimension_semantics<parallel>, #tpu.dimension_semantics<arbitrary>], iteration_bounds = array<i64: 2, 2>, scalar_prefetch = 0 : i64, scratch_operands = 1 : i64, tpu.core_type = #tpu.core_type<tc>, window_params = [{pipeline_mode = #tpu.pipeline_mode<synchronous>, transform_indices = @transform_0, window_bounds = array<i64: 32, 1024>}, {pipeline_mode = #tpu.pipeline_mode<synchronous>, transform_indices = @transform_1, window_bounds = array<i64: 1, 1024>}, {pipeline_mode = #tpu.pipeline_mode<synchronous>, transform_indices = @transform_2, window_bounds = array<i64: 1, 1024>}, {transform_indices = @transform_3, window_bounds = array<i64: 1024, 1024>}, {transform_indices = @transform_4, window_bounds = array<i64: 1, 1024>}, {transform_indices = @transform_5, window_bounds = array<i64: 1024, 1024>}, {pipeline_mode = #tpu.pipeline_mode<synchronous>, transform_indices = @transform_6, window_bounds = array<i64: 1, 1024>}, {transform_indices = @transform_7, window_bounds = array<i64: 1, 32, 1024>}]} {
    %c0_i32 = arith.constant 0 : i32
    %0 = arith.cmpi eq, %arg1, %c0_i32 : i32
    %1 = arith.extui %0 : i1 to i32
    %c0_i32_0 = arith.constant 0 : i32
    %2 = arith.cmpi ne, %1, %c0_i32_0 : i32
    scf.if %2 {
      %c0_16 = arith.constant 0 : index
      %c0_17 = arith.constant 0 : index
      %19 = vector.load %arg2[%c0_16, %c0_17] : memref<32x1024xf32, #tpu.memory_space<vmem>>, vector<32x1024xf32>
      %c0_18 = arith.constant 0 : index
      %c0_19 = arith.constant 0 : index
      %20 = vector.load %arg3[%c0_18, %c0_19] : memref<1x1024xf32, #tpu.memory_space<vmem>>, vector<1x1024xf32>
      %c0_20 = arith.constant 0 : index
      %c0_21 = arith.constant 0 : index
      %21 = vector.load %arg4[%c0_20, %c0_21] : memref<1x1024xf32, #tpu.memory_space<vmem>>, vector<1x1024xf32>
      %cst_22 = arith.constant dense<0.000000e+00> : vector<32xf32>
      %22 = vector.multi_reduction <add>, %19, %cst_22 [1] : vector<32x1024xf32> to vector<32xf32>
      %23 = vector.shape_cast %22 : vector<32xf32> to vector<32x1xf32>
      %cst_23 = arith.constant 1.024000e+03 : f32
      %24 = vector.broadcast %cst_23 : f32 to vector<32x1xf32>
      %25 = arith.divf %23, %24 : vector<32x1xf32>
      %26 = vector.broadcast %25 : vector<32x1xf32> to vector<32x1024xf32>
      %27 = arith.subf %19, %26 : vector<32x1024xf32>
      %28 = arith.mulf %27, %27 : vector<32x1024xf32>
      %cst_24 = arith.constant dense<0.000000e+00> : vector<32xf32>
      %29 = vector.multi_reduction <add>, %28, %cst_24 [1] : vector<32x1024xf32> to vector<32xf32>
      %30 = vector.shape_cast %29 : vector<32xf32> to vector<32x1xf32>
      %cst_25 = arith.constant 1.024000e+03 : f32
      %31 = vector.broadcast %cst_25 : f32 to vector<32x1xf32>
      %32 = arith.divf %30, %31 : vector<32x1xf32>
      %cst_26 = arith.constant 9.99999974E-6 : f32
      %33 = vector.broadcast %cst_26 : f32 to vector<32x1xf32>
      %34 = arith.addf %32, %33 : vector<32x1xf32>
      %35 = math.rsqrt %34 : vector<32x1xf32>
      %36 = vector.broadcast %35 : vector<32x1xf32> to vector<32x1024xf32>
      %37 = arith.mulf %27, %36 : vector<32x1024xf32>
      %38 = vector.broadcast %20 : vector<1x1024xf32> to vector<32x1024xf32>
      %39 = arith.mulf %37, %38 : vector<32x1024xf32>
      %40 = vector.broadcast %21 : vector<1x1024xf32> to vector<32x1024xf32>
      %41 = arith.addf %39, %40 : vector<32x1024xf32>
      %c0_27 = arith.constant 0 : index
      %c0_28 = arith.constant 0 : index
      %42 = vector.load %arg10[%c0_27, %c0_28] : memref<32x1024xf32, #tpu.memory_space<vmem>>, vector<32x1024xf32>
      tpu.vector_store %arg10[%c0_27, %c0_28], %41 {strides = array<i32>} : memref<32x1024xf32, #tpu.memory_space<vmem>>, vector<32x1024xf32>,
      %c0_29 = arith.constant 0 : index
      %c0_30 = arith.constant 0 : index
      %43 = vector.load %arg8[%c0_29, %c0_30] : memref<1x1024xf32, #tpu.memory_space<vmem>>, vector<1x1024xf32>
      %44 = vector.broadcast %43 : vector<1x1024xf32> to vector<32x1024xf32>
      %45 = arith.addf %19, %44 : vector<32x1024xf32>
      %c0_i32_31 = arith.constant 0 : i32
      %46 = arith.cmpi eq, %arg0, %c0_i32_31 : i32
      %cst_32 = arith.constant 0.000000e+00 : f32
      %47 = vector.broadcast %cst_32 : f32 to vector<32x1024xf32>
      %48 = arith.select %46, %45, %47 : vector<32x1024xf32>
      %c0_33 = arith.constant 0 : index
      %c0_34 = arith.constant 0 : index
      %c0_35 = arith.constant 0 : index
      %49 = vector.load %arg9[%c0_33, %c0_34, %c0_35] : memref<1x32x1024xf32, #tpu.memory_space<vmem>>, vector<1x32x1024xf32>
      %50 = vector.shape_cast %49 : vector<1x32x1024xf32> to vector<32x1024xf32>
      %51 = vector.shape_cast %48 : vector<32x1024xf32> to vector<1x32x1024xf32>
      tpu.vector_store %arg9[%c0_33, %c0_34, %c0_35], %51 {strides = array<i32>} : memref<1x32x1024xf32, #tpu.memory_space<vmem>>, vector<1x32x1024xf32>,
    } else {
    }
    %c0 = arith.constant 0 : index
    %c0_1 = arith.constant 0 : index
    %3 = vector.load %arg10[%c0, %c0_1] : memref<32x1024xf32, #tpu.memory_space<vmem>>, vector<32x1024xf32>
    %c0_2 = arith.constant 0 : index
    %c0_3 = arith.constant 0 : index
    %4 = vector.load %arg5[%c0_2, %c0_3] : memref<1024x1024xf32, #tpu.memory_space<vmem>>, vector<1024x1024xf32>
    %cst = arith.constant dense<0.000000e+00> : vector<32x1024xf32>
    %5 = tpu.matmul %3, %4, %cst {dimension_numbers = #tpu.dot_dimension_numbers<[1], [0], [0], [1], [0, 0, 1, 1], [], []>} : vector<32x1024xf32>, vector<1024x1024xf32>, vector<32x1024xf32> -> vector<32x1024xf32>
    %c0_4 = arith.constant 0 : index
    %c0_5 = arith.constant 0 : index
    %6 = vector.load %arg6[%c0_4, %c0_5] : memref<1x1024xf32, #tpu.memory_space<vmem>>, vector<1x1024xf32>
    %7 = vector.broadcast %6 : vector<1x1024xf32> to vector<32x1024xf32>
    %8 = arith.addf %5, %7 : vector<32x1024xf32>
    %cst_6 = arith.constant 0.000000e+00 : f32
    %9 = vector.broadcast %cst_6 : f32 to vector<32x1024xf32>
    %10 = arith.maximumf %8, %9 : vector<32x1024xf32>
    %c0_7 = arith.constant 0 : index
    %c0_8 = arith.constant 0 : index
    %c0_9 = arith.constant 0 : index
    %11 = vector.load %arg9[%c0_7, %c0_8, %c0_9] : memref<1x32x1024xf32, #tpu.memory_space<vmem>>, vector<1x32x1024xf32>
    %12 = vector.shape_cast %11 : vector<1x32x1024xf32> to vector<32x1024xf32>
    %c0_10 = arith.constant 0 : index
    %c0_11 = arith.constant 0 : index
    %13 = vector.load %arg7[%c0_10, %c0_11] : memref<1024x1024xf32, #tpu.memory_space<vmem>>, vector<1024x1024xf32>
    %cst_12 = arith.constant dense<0.000000e+00> : vector<32x1024xf32>
    %14 = tpu.matmul %10, %13, %cst_12 {dimension_numbers = #tpu.dot_dimension_numbers<[1], [0], [0], [1], [0, 0, 1, 1], [], []>} : vector<32x1024xf32>, vector<1024x1024xf32>, vector<32x1024xf32> -> vector<32x1024xf32>
    %15 = arith.addf %12, %14 : vector<32x1024xf32>
    %c0_13 = arith.constant 0 : index
    %c0_14 = arith.constant 0 : index
    %c0_15 = arith.constant 0 : index
    %16 = vector.load %arg9[%c0_13, %c0_14, %c0_15] : memref<1x32x1024xf32, #tpu.memory_space<vmem>>, vector<1x32x1024xf32>
    %17 = vector.shape_cast %16 : vector<1x32x1024xf32> to vector<32x1024xf32>
    %18 = vector.shape_cast %15 : vector<32x1024xf32> to vector<1x32x1024xf32>
    tpu.vector_store %arg9[%c0_13, %c0_14, %c0_15], %18 {strides = array<i32>} : memref<1x32x1024xf32, #tpu.memory_space<vmem>>, vector<1x32x1024xf32>,
    return
  }
  func.func @transform_0(%arg0: i32, %arg1: i32) -> (i32, i32) {
    %c0_i32 = arith.constant 0 : i32
    %c0_i32_0 = arith.constant 0 : i32
    %c0_i32_1 = arith.constant 0 : i32
    return %c0_i32, %c0_i32_0 : i32, i32
  }
  func.func @transform_1(%arg0: i32, %arg1: i32) -> (i32, i32) {
    %c0_i32 = arith.constant 0 : i32
    %c0_i32_0 = arith.constant 0 : i32
    %c0_i32_1 = arith.constant 0 : i32
    return %c0_i32, %c0_i32_0 : i32, i32
  }
  func.func @transform_2(%arg0: i32, %arg1: i32) -> (i32, i32) {
    %c0_i32 = arith.constant 0 : i32
    %c0_i32_0 = arith.constant 0 : i32
    %c0_i32_1 = arith.constant 0 : i32
    return %c0_i32, %c0_i32_0 : i32, i32
  }
  func.func @transform_3(%arg0: i32, %arg1: i32) -> (i32, i32) {
    %c2_i32 = arith.constant 2 : i32
    %0 = arith.muli %arg0, %c2_i32 : i32
    %1 = arith.addi %0, %arg1 : i32
    %c0_i32 = arith.constant 0 : i32
    %c0_i32_0 = arith.constant 0 : i32
    return %c0_i32, %1 : i32, i32
  }
  func.func @transform_4(%arg0: i32, %arg1: i32) -> (i32, i32) {
    %c2_i32 = arith.constant 2 : i32
    %0 = arith.muli %arg0, %c2_i32 : i32
    %1 = arith.addi %0, %arg1 : i32
    %c0_i32 = arith.constant 0 : i32
    %c0_i32_0 = arith.constant 0 : i32
    return %c0_i32, %1 : i32, i32
  }
  func.func @transform_5(%arg0: i32, %arg1: i32) -> (i32, i32) {
    %c2_i32 = arith.constant 2 : i32
    %0 = arith.muli %arg0, %c2_i32 : i32
    %1 = arith.addi %0, %arg1 : i32
    %c0_i32 = arith.constant 0 : i32
    %c0_i32_0 = arith.constant 0 : i32
    return %1, %c0_i32 : i32, i32
  }
  func.func @transform_6(%arg0: i32, %arg1: i32) -> (i32, i32) {
    %c0_i32 = arith.constant 0 : i32
    %c0_i32_0 = arith.constant 0 : i32
    %c0_i32_1 = arith.constant 0 : i32
    return %c0_i32, %c0_i32_0 : i32, i32
  }
  func.func @transform_7(%arg0: i32, %arg1: i32) -> (i32, i32, i32) {
    %c0_i32 = arith.constant 0 : i32
    %c0_i32_0 = arith.constant 0 : i32
    %c0_i32_1 = arith.constant 0 : i32
    return %arg0, %c0_i32, %c0_i32_0 : i32, i32, i32
  }
}

</mosaic_0001>

<llo_original>
// kernel: block_forward.2
$region0: #{block_forward.2}
  #allocation0 [shape = 'u32[]', space=smem, size = 0x4, offset = 0x4, fixed_abs, tag = 'smem constant byte address 0x4 - core index']
  #allocation1 [shape = 'u32[144,128]{1,0:T(1,128)}', space=vmem, size = 0x12000, scoped, tag = 'internal scratch']
  %s0 = inlined_call_operand.hbm [shape: f32[2,16,1024], index: 0, kind: input, shape index: {}, may-alias: {0,1}]
  %s1 = inlined_call_operand.hbm [shape: f32[2,16,1024], index: 1, kind: input, shape index: {}, may-alias: {0,1}]
  %s2 = inlined_call_operand.hbm [shape: f32[1,1024], index: 2, kind: input, shape index: {}]
  %s3 = inlined_call_operand.hbm [shape: f32[1,1024], index: 3, kind: input, shape index: {}]
  %s4 = inlined_call_operand.hbm [shape: f32[4,1024,768], index: 4, kind: input, shape index: {}]
  %s5 = inlined_call_operand.vmem [shape: f32[2,16,1024], index: 5, kind: output, shape index: {}]
  %s6 = sld [smem:[#allocation0]]
  $region92: #{block_forward.2} parent=0
    _
  %s8 = ssub.s32 1, %s6
  %s9 = scalar_select 0, %s8, %s6
  $region1: #{block_forward.2} parent=0
    #allocation2 [shape = 'u8[131072]{0}', space=vmem, size = 0x20000, scoped, tag = 'input window, operand 0, single buffered']
    #allocation3 [shape = 's32[2]{0}', space=sflag, size = 0x8, scoped, tag = 'scoped memory for block_forward.2']
    #allocation4 [shape = 'u8[65536]{0}', space=vmem, size = 0x10000, scoped, tag = 'input window, operand 1']
    #allocation5 [shape = 's32[2]{0}', space=sflag, size = 0x8, scoped, tag = 'scoped memory for block_forward.2']
    #allocation6 [shape = 'u8[4096]{0}', space=vmem, size = 0x1000, scoped, tag = 'input window, operand 2, single buffered']
    #allocation7 [shape = 'u8[4096]{0}', space=vmem, size = 0x1000, scoped, tag = 'input window, operand 3, single buffered']
    #allocation8 [shape = 's32[1]{0}', space=sflag, size = 0x4, scoped, tag = 'scoped memory for block_forward.2']
    #allocation9 [shape = 'u8[6291456]{0}', space=vmem, size = 0x600000, scoped, tag = 'input window, operand 4']
    #allocation10 [shape = 'u8[65536]{0}', space=vmem, size = 0x10000, scoped, tag = 'output window, operand 0']
    %10 = vsyncpa [#allocation3], 0
    %11 = vsyncpa [#allocation5], 0
    %s12 = scalar_lea.sflag [#allocation5], 1
    %13 = vsyncpa %s12, 0
    %14 = vsyncpa [#allocation8], 0
    loop: start=0, step=1, limit=6
    $region2: #{block_forward.2} parent=1 // loop_pre_header
      _
    $region3: #{block_forward.2} parent=1 // loop_header
      %s16 = sphi 0, %s20
      %p17 = scmp.ge.s32.totalorder %s16, 6
      %s24 = sphi 0, %s24
      %s26 = sphi 0, %s24
      %s27 = sphi 0, %s26
      %s41 = sphi 0, %s27
      %s47 = sphi 0, %s49
      %s50 = sphi 0, %s47
      %s51 = sphi 0, %s50
      %s67 = sphi 0, %s51
      %s71 = sphi 0, %s71
      %s73 = sphi 0, %s71
      %s74 = sphi 0, %s73
      %s88 = sphi 0, %s74
      %s92 = sphi 0, %s92
      %s94 = sphi 0, %s92
      %s95 = sphi 0, %s94
      %s109 = sphi 0, %s95
      %s115 = sphi 0, %s117
      %s118 = sphi 0, %s115
      %s119 = sphi 0, %s118
      %s135 = sphi 0, %s119
      %s141 = sphi 0, %s143
      %s144 = sphi 0, %s141
      %s145 = sphi 0, %s144
      %s161 = sphi 0, %s145
    $region4: #{block_forward.2} parent=1 // loop_header_branch
      %19 = sbr.rel (%p17) target = $region8
    $region5: #{block_forward.2} parent=1 // loop_body
      %s21 = ssub.s32 %s16, 1
      %s22 = ssub.s32 %s16, 2
      %s23 = sadd.s32 %s16, 1
      %s25 = sadd.s32 %s24, 1
      %p28 = scmp.eq.s32.totalorder %s16, 3
      %p29 = scmp.ne.s32.totalorder %s24, %s26
      %p30 = scmp.eq.s32.totalorder %s16, 0
      %p31 = por %p29, %p30
      %p32 = scmp.ne.s32.totalorder %s24, %s26
      %p33 = scmp.eq.s32.totalorder %s21, 3
      %p34 = por %p32, %p33
      %p35 = scmp.ne.s32.totalorder %s26, %s27
      %p36 = scmp.eq.s32.totalorder %s21, 0
      %p37 = por %p35, %p36
      %p38 = scmp.ne.s32.totalorder %s26, %s27
      %p39 = scmp.eq.s32.totalorder %s22, 3
      %p40 = por %p38, %p39
      %p42 = scmp.ne.s32.totalorder %s27, %s41
      %p43 = scmp.eq.s32.totalorder %s22, 0
      %p44 = por %p42, %p43
      %s45 = ssub.s32 %s16, %s23
      %p46 = scmp.eq.s32.totalorder %s45, 0
      %s48 = sadd.s32 %s47, 1
      %s49 = scalar_select %p46, %s47, %s48
      %p52 = pneg %p46
      %p53 = scmp.eq.s32.totalorder %s16, 3
      %p54 = por %p52, %p53
      %p55 = scmp.ne.s32.totalorder %s47, %s50
      %p56 = scmp.eq.s32.totalorder %s16, 0
      %p57 = por %p55, %p56
      %p58 = scmp.ne.s32.totalorder %s47, %s50
      %p59 = scmp.eq.s32.totalorder %s21, 3
      %p60 = por %p58, %p59
      %p61 = scmp.ne.s32.totalorder %s50, %s51
      %p62 = scmp.eq.s32.totalorder %s21, 0
      %p63 = por %p61, %p62
      %p64 = scmp.ne.s32.totalorder %s50, %s51
      %p65 = scmp.eq.s32.totalorder %s22, 3
      %p66 = por %p64, %p65
      %p68 = scmp.ne.s32.totalorder %s51, %s67
      %p69 = scmp.eq.s32.totalorder %s22, 0
      %p70 = por %p68, %p69
      %s72 = sadd.s32 %s71, 1
      %p75 = scmp.eq.s32.totalorder %s16, 3
      %p76 = scmp.ne.s32.totalorder %s71, %s73
      %p77 = scmp.eq.s32.totalorder %s16, 0
      %p78 = por %p76, %p77
      %p79 = scmp.ne.s32.totalorder %s71, %s73
      %p80 = scmp.eq.s32.totalorder %s21, 3
      %p81 = por %p79, %p80
      %p82 = scmp.ne.s32.totalorder %s73, %s74
      %p83 = scmp.eq.s32.totalorder %s21, 0
      %p84 = por %p82, %p83
      %p85 = scmp.ne.s32.totalorder %s73, %s74
      %p86 = scmp.eq.s32.totalorder %s22, 3
      %p87 = por %p85, %p86
      %p89 = scmp.ne.s32.totalorder %s74, %s88
      %p90 = scmp.eq.s32.totalorder %s22, 0
      %p91 = por %p89, %p90
      %s93 = sadd.s32 %s92, 1
      %p96 = scmp.eq.s32.totalorder %s16, 3
      %p97 = scmp.ne.s32.totalorder %s92, %s94
      %p98 = scmp.eq.s32.totalorder %s16, 0
      %p99 = por %p97, %p98
      %p100 = scmp.ne.s32.totalorder %s92, %s94
      %p101 = scmp.eq.s32.totalorder %s21, 3
      %p102 = por %p100, %p101
      %p103 = scmp.ne.s32.totalorder %s94, %s95
      %p104 = scmp.eq.s32.totalorder %s21, 0
      %p105 = por %p103, %p104
      %p106 = scmp.ne.s32.totalorder %s94, %s95
      %p107 = scmp.eq.s32.totalorder %s22, 3
      %p108 = por %p106, %p107
      %p110 = scmp.ne.s32.totalorder %s95, %s109
      %p111 = scmp.eq.s32.totalorder %s22, 0
      %p112 = por %p110, %p111
      %s113 = ssub.s32 %s16, %s23
      %p114 = scmp.eq.s32.totalorder %s113, 0
      %s116 = sadd.s32 %s115, 1
      %s117 = scalar_select %p114, %s115, %s116
      %p120 = pneg %p114
      %p121 = scmp.eq.s32.totalorder %s16, 3
      %p122 = por %p120, %p121
      %p123 = scmp.ne.s32.totalorder %s115, %s118
      %p124 = scmp.eq.s32.totalorder %s16, 0
      %p125 = por %p123, %p124
      %p126 = scmp.ne.s32.totalorder %s115, %s118
      %p127 = scmp.eq.s32.totalorder %s21, 3
      %p128 = por %p126, %p127
      %p129 = scmp.ne.s32.totalorder %s118, %s119
      %p130 = scmp.eq.s32.totalorder %s21, 0
      %p131 = por %p129, %p130
      %p132 = scmp.ne.s32.totalorder %s118, %s119
      %p133 = scmp.eq.s32.totalorder %s22, 3
      %p134 = por %p132, %p133
      %p136 = scmp.ne.s32.totalorder %s119, %s135
      %p137 = scmp.eq.s32.totalorder %s22, 0
      %p138 = por %p136, %p137
      %s139 = ssub.s32 %s16, %s23
      %p140 = scmp.eq.s32.totalorder %s139, 0
      %s142 = sadd.s32 %s141, 1
      %s143 = scalar_select %p140, %s141, %s142
      %p146 = pneg %p140
      %p147 = scmp.eq.s32.totalorder %s16, 3
      %p148 = por %p146, %p147
      %p149 = scmp.ne.s32.totalorder %s141, %s144
      %p150 = scmp.eq.s32.totalorder %s16, 0
      %p151 = por %p149, %p150
      %p152 = scmp.ne.s32.totalorder %s141, %s144
      %p153 = scmp.eq.s32.totalorder %s21, 3
      %p154 = por %p152, %p153
      %p155 = scmp.ne.s32.totalorder %s144, %s145
      %p156 = scmp.eq.s32.totalorder %s21, 0
      %p157 = por %p155, %p156
      %p158 = scmp.ne.s32.totalorder %s144, %s145
      %p159 = scmp.eq.s32.totalorder %s22, 3
      %p160 = por %p158, %p159
      %p162 = scmp.ne.s32.totalorder %s145, %s161
      %p163 = scmp.eq.s32.totalorder %s22, 0
      %p164 = por %p162, %p163
      %p165 = scmp.le.s32.totalorder 1, %s16
      %p166 = scmp.lt.s32.totalorder %s16, 5
      %p167 = pnand %p165, %p166
      %p168 = pneg %p167
      // Predicated region
      $region9: #{block_forward.2} parent=5 // pred_check
        _
      $region10: #{block_forward.2} parent=5 // pred_check_branch
        %170 = sbr.rel (%p167) target = $region12
      $region11: #{block_forward.2} parent=5 // pred_region
        %s171 = ssub.s32 %s16, 1
        // Predicated region
        $region13: #{block_forward.2} parent=11 // pred_check
          %p172 = pneg %p37
        $region14: #{block_forward.2} parent=11 // pred_check_branch
          %174 = sbr.rel (%p172) target = $region16
        $region15: #{block_forward.2} parent=11 // pred_region
          %s176 = ssub.s32 4096, 4096
          %177 = vsyncadd [#allocation3], %s176
          %s178 = sshll.u32 [#allocation2], 4
          %s179 = int_to_ptr.vmem [resolvable:$true] %s178
          %184 = dma.hbm_to_vmem [thread:$0]  %s0, 4096, %s179, [#allocation3], 1024, 1024, 64
        $region16: #{block_forward.2} parent=11 // pred_fallthru
          _
        // Predicated region
        $region17: #{block_forward.2} parent=11 // pred_check
          %p185 = pneg %p84
        $region18: #{block_forward.2} parent=11 // pred_check_branch
          %187 = sbr.rel (%p185) target = $region20
        $region19: #{block_forward.2} parent=11 // pred_region
          %s189 = ssub.s32 128, 128
          %190 = vsyncadd [#allocation5], %s189
          %s192 = sshll.u32 [#allocation6], 4
          %s193 = int_to_ptr.vmem [resolvable:$true] %s192
          %195 = dma.hbm_to_vmem [thread:$0]  %s2, 128, %s193, [#allocation5]
        $region20: #{block_forward.2} parent=11 // pred_fallthru
          _
        // Predicated region
        $region21: #{block_forward.2} parent=11 // pred_check
          %p196 = pneg %p105
        $region22: #{block_forward.2} parent=11 // pred_check_branch
          %198 = sbr.rel (%p196) target = $region24
        $region23: #{block_forward.2} parent=11 // pred_region
          %s200 = ssub.s32 128, 128
          %201 = vsyncadd [#allocation8], %s200
          %s203 = sshll.u32 [#allocation7], 4
          %s204 = int_to_ptr.vmem [resolvable:$true] %s203
          %206 = dma.hbm_to_vmem [thread:$0]  %s3, 128, %s204, [#allocation8]
        $region24: #{block_forward.2} parent=11 // pred_fallthru
          _
      $region12: #{block_forward.2} parent=5 // pred_fallthru
        _
      %p207 = scmp.lt.s32.totalorder %s16, 4
      // Predicated region
      $region25: #{block_forward.2} parent=5 // pred_check
        %p208 = pneg %p207
      $region26: #{block_forward.2} parent=5 // pred_check_branch
        %210 = sbr.rel (%p208) target = $region28
      $region27: #{block_forward.2} parent=5 // pred_region
        // Predicated region
        $region29: #{block_forward.2} parent=27 // pred_check
          %p211 = pneg %p57
        $region30: #{block_forward.2} parent=27 // pred_check_branch
          %213 = sbr.rel (%p211) target = $region32
        $region31: #{block_forward.2} parent=27 // pred_region
          %s214 = sand.u32 %s16, 1
          %s215 = scalar_lea.sflag [#allocation5], %s214
          %s216 = sand.u32 %s47, 1
          %s217 = smul.addr %s216, 64
          %s218 = scalar_lea.vmem [#allocation4], %s217
          %s219 = smul.u32 2, %s16
          %s221 = ssub.s32 1024, 1024
          %222 = vsyncadd %s215, %s221
          %s223 = smul.addr %s219, 128
          %s224 = scalar_lea.hbm %s1, %s223
          %s225 = sshll.u32 %s218, 4
          %s226 = int_to_ptr.vmem [resolvable:$true] %s225
          %231 = dma.hbm_to_vmem [thread:$0]  %s224, 1024, %s226, %s215, 1024, 256, 16
        $region32: #{block_forward.2} parent=27 // pred_fallthru
          _
        // Predicated region
        $region33: #{block_forward.2} parent=27 // pred_check
          %p232 = pneg %p125
        $region34: #{block_forward.2} parent=27 // pred_check_branch
          %234 = sbr.rel (%p232) target = $region36
        $region35: #{block_forward.2} parent=27 // pred_region
          %s235 = sand.u32 %s16, 1
          %s236 = scalar_lea.sflag [#allocation3], %s235
          %s237 = sand.u32 %s115, 1
          %s238 = smul.addr %s237, 6144
          %s239 = scalar_lea.vmem [#allocation9], %s238
          %s241 = ssub.s32 98304, 98304
          %242 = vsyncadd %s236, %s241
          %s243 = smul.addr %s16, 768
          %s244 = smul.addr %s243, 128
          %s245 = scalar_lea.hbm %s4, %s244
          %s246 = sshll.u32 %s239, 4
          %s247 = int_to_ptr.vmem [resolvable:$true] %s246
          %252 = dma.hbm_to_vmem [thread:$0]  %s245, 98304, %s247, %s236, 768, 768, 48
        $region36: #{block_forward.2} parent=27 // pred_fallthru
          _
      $region28: #{block_forward.2} parent=5 // pred_fallthru
        _
      %p253 = scmp.le.s32.totalorder 1, %s16
      %p254 = scmp.lt.s32.totalorder %s16, 5
      %p255 = pnand %p253, %p254
      %p256 = pneg %p255
      // Predicated region
      $region37: #{block_forward.2} parent=5 // pred_check
        _
      $region38: #{block_forward.2} parent=5 // pred_check_branch
        %258 = sbr.rel (%p255) target = $region40
      $region39: #{block_forward.2} parent=5 // pred_region
        %s259 = ssub.s32 %s16, 1
        // Predicated region
        $region41: #{block_forward.2} parent=39 // pred_check
          %p260 = pneg %p37
        $region42: #{block_forward.2} parent=39 // pred_check_branch
          %262 = sbr.rel (%p260) target = $region44
        $region43: #{block_forward.2} parent=39 // pred_region
          %263 = dma.done [#allocation3], 4096
        $region44: #{block_forward.2} parent=39 // pred_fallthru
          _
        %s264 = sand.u32 %s21, 1
        %s265 = scalar_lea.sflag [#allocation5], %s264
        %s266 = sand.u32 %s50, 1
        %s267 = smul.addr %s266, 64
        %s268 = scalar_lea.vmem [#allocation4], %s267
        // Predicated region
        $region45: #{block_forward.2} parent=39 // pred_check
          %p269 = pneg %p63
        $region46: #{block_forward.2} parent=39 // pred_check_branch
          %271 = sbr.rel (%p269) target = $region48
        $region47: #{block_forward.2} parent=39 // pred_region
          %272 = dma.done %s265, 1024
        $region48: #{block_forward.2} parent=39 // pred_fallthru
          _
        // Predicated region
        $region49: #{block_forward.2} parent=39 // pred_check
          %p273 = pneg %p84
        $region50: #{block_forward.2} parent=39 // pred_check_branch
          %275 = sbr.rel (%p273) target = $region52
        $region51: #{block_forward.2} parent=39 // pred_region
          %276 = dma.done [#allocation5], 128
        $region52: #{block_forward.2} parent=39 // pred_fallthru
          _
        // Predicated region
        $region53: #{block_forward.2} parent=39 // pred_check
          %p277 = pneg %p105
        $region54: #{block_forward.2} parent=39 // pred_check_branch
          %279 = sbr.rel (%p277) target = $region56
        $region55: #{block_forward.2} parent=39 // pred_region
          %280 = dma.done [#allocation8], 128
        $region56: #{block_forward.2} parent=39 // pred_fallthru
          _
        %s281 = sand.u32 %s21, 1
        %s282 = scalar_lea.sflag [#allocation3], %s281
        %s283 = sand.u32 %s118, 1
        %s284 = smul.addr %s283, 6144
        %s285 = scalar_lea.vmem [#allocation9], %s284
        // Predicated region
        $region57: #{block_forward.2} parent=39 // pred_check
          %p286 = pneg %p131
        $region58: #{block_forward.2} parent=39 // pred_check_branch
          %288 = sbr.rel (%p286) target = $region60
        $region59: #{block_forward.2} parent=39 // pred_region
          %289 = dma.done %s282, 98304
        $region60: #{block_forward.2} parent=39 // pred_fallthru
          _
        %p290 = pneg %p37
        %p291 = pneg %p34
        %s292 = sand.u32 %s21, 1
        %s293 = scalar_lea.sflag [#allocation5], %s292
        %s294 = sand.u32 %s50, 1
        %s295 = smul.addr %s294, 64
        %s296 = scalar_lea.vmem [#allocation4], %s295
        %p297 = pneg %p63
        %p298 = pneg %p60
        %p299 = pneg %p84
        %p300 = pneg %p81
        %p301 = pneg %p105
        %p302 = pneg %p102
        %s303 = sand.u32 %s21, 1
        %s304 = scalar_lea.sflag [#allocation3], %s303
        %s305 = sand.u32 %s118, 1
        %s306 = smul.addr %s305, 6144
        %s307 = scalar_lea.vmem [#allocation9], %s306
        %p308 = pneg %p131
        %p309 = pneg %p128
        %p310 = pneg %p157
        %p311 = pneg %p154
        %s312 = sand.u32 %s144, 1
        %s313 = sand.u32 %s144, 1
        %s314 = smul.addr %s313, 64
        %s315 = scalar_lea.vmem [#allocation10], %s314
        %s316 = smul.u32 2, %s21
        %s317 = smul.u32 2, %s21
        %v318 = vld [vmem:[#allocation2] sm:$0xff]
        %v319 = vld [vmem:[#allocation2 + $0x8] sm:$0xff]
        %v320 = vld [vmem:[#allocation2 + $0x10] sm:$0xff]
        %v321 = vld [vmem:[#allocation2 + $0x18] sm:$0xff]
        %v322 = vld [vmem:[#allocation2 + $0x20] sm:$0xff]
        %v323 = vld [vmem:[#allocation2 + $0x28] sm:$0xff]
        %v324 = vld [vmem:[#allocation2 + $0x30] sm:$0xff]
        %v325 = vld [vmem:[#allocation2 + $0x38] sm:$0xff]
        %v326 = vld [vmem:[#allocation2 + $0x40] sm:$0xff]
        %v327 = vld [vmem:[#allocation2 + $0x48] sm:$0xff]
        %v328 = vld [vmem:[#allocation2 + $0x50] sm:$0xff]
        %v329 = vld [vmem:[#allocation2 + $0x58] sm:$0xff]
        %v330 = vld [vmem:[#allocation2 + $0x60] sm:$0xff]
        %v331 = vld [vmem:[#allocation2 + $0x68] sm:$0xff]
        %v332 = vld [vmem:[#allocation2 + $0x70] sm:$0xff]
        %v333 = vld [vmem:[#allocation2 + $0x78] sm:$0xff]
        %v334 = vld [vmem:[#allocation2 + $0x80] sm:$0xff]
        %v335 = vld [vmem:[#allocation2 + $0x88] sm:$0xff]
        %v336 = vld [vmem:[#allocation2 + $0x90] sm:$0xff]
        %v337 = vld [vmem:[#allocation2 + $0x98] sm:$0xff]
        %v338 = vld [vmem:[#allocation2 + $0xa0] sm:$0xff]
        %v339 = vld [vmem:[#allocation2 + $0xa8] sm:$0xff]
        %v340 = vld [vmem:[#allocation2 + $0xb0] sm:$0xff]
        %v341 = vld [vmem:[#allocation2 + $0xb8] sm:$0xff]
        %v342 = vld [vmem:[#allocation2 + $0xc0] sm:$0xff]
        %v343 = vld [vmem:[#allocation2 + $0xc8] sm:$0xff]
        %v344 = vld [vmem:[#allocation2 + $0xd0] sm:$0xff]
        %v345 = vld [vmem:[#allocation2 + $0xd8] sm:$0xff]
        %v346 = vld [vmem:[#allocation2 + $0xe0] sm:$0xff]
        %v347 = vld [vmem:[#allocation2 + $0xe8] sm:$0xff]
        %v348 = vld [vmem:[#allocation2 + $0xf0] sm:$0xff]
        %v349 = vld [vmem:[#allocation2 + $0xf8] sm:$0xff]
        %v350 = vld [vmem:[#allocation6] sm:$0xff]
        %v351 = vld [vmem:[#allocation7] sm:$0xff]
        %v352 = vadd.f32 %v318, %v319
        %v353 = vadd.f32 %v352, %v320
        %v354 = vadd.f32 %v353, %v321
        %v355 = vadd.f32 %v354, %v322
        %v356 = vadd.f32 %v355, %v323
        %v357 = vadd.f32 %v356, %v324
        %v358 = vadd.f32 %v357, %v325
        %359 = vadd.xlane.f32.xlu0 %v358
        %v360 = vpop.xlane.xlu0 %359
        %v361 = vadd.f32 %v326, %v327
        %v362 = vadd.f32 %v361, %v328
        %v363 = vadd.f32 %v362, %v329
        %v364 = vadd.f32 %v363, %v330
        %v365 = vadd.f32 %v364, %v331
        %v366 = vadd.f32 %v365, %v332
        %v367 = vadd.f32 %v366, %v333
        %368 = vadd.xlane.f32.xlu0 %v367
        %v369 = vpop.xlane.xlu0 %368
        %v370 = vadd.f32 %v334, %v335
        %v371 = vadd.f32 %v370, %v336
        %v372 = vadd.f32 %v371, %v337
        %v373 = vadd.f32 %v372, %v338
        %v374 = vadd.f32 %v373, %v339
        %v375 = vadd.f32 %v374, %v340
        %v376 = vadd.f32 %v375, %v341
        %377 = vadd.xlane.f32.xlu0 %v376
        %v378 = vpop.xlane.xlu0 %377
        %v379 = vadd.f32 %v342, %v343
        %v380 = vadd.f32 %v379, %v344
        %v381 = vadd.f32 %v380, %v345
        %v382 = vadd.f32 %v381, %v346
        %v383 = vadd.f32 %v382, %v347
        %v384 = vadd.f32 %v383, %v348
        %v385 = vadd.f32 %v384, %v349
        %386 = vadd.xlane.f32.xlu0 %v385
        %v387 = vpop.xlane.xlu0 %386
        %v388 = vrcp.pop 1024.0
        %v389 = vmul.f32 %v360, %v388
        %v390 = vmul.f32 %v369, %v388
        %v391 = vmul.f32 %v378, %v388
        %v392 = vmul.f32 %v387, %v388
        %v393 = vsub.f32 %v318, %v389
        %v394 = vsub.f32 %v319, %v389
        %v395 = vsub.f32 %v320, %v389
        %v396 = vsub.f32 %v321, %v389
        %v397 = vsub.f32 %v322, %v389
        %v398 = vsub.f32 %v323, %v389
        %v399 = vsub.f32 %v324, %v389
        %v400 = vsub.f32 %v325, %v389
        %v401 = vsub.f32 %v326, %v390
        %v402 = vsub.f32 %v327, %v390
        %v403 = vsub.f32 %v328, %v390
        %v404 = vsub.f32 %v329, %v390
        %v405 = vsub.f32 %v330, %v390
        %v406 = vsub.f32 %v331, %v390
        %v407 = vsub.f32 %v332, %v390
        %v408 = vsub.f32 %v333, %v390
        %v409 = vsub.f32 %v334, %v391
        %v410 = vsub.f32 %v335, %v391
        %v411 = vsub.f32 %v336, %v391
        %v412 = vsub.f32 %v337, %v391
        %v413 = vsub.f32 %v338, %v391
        %v414 = vsub.f32 %v339, %v391
        %v415 = vsub.f32 %v340, %v391
        %v416 = vsub.f32 %v341, %v391
        %v417 = vsub.f32 %v342, %v392
        %v418 = vsub.f32 %v343, %v392
        %v419 = vsub.f32 %v344, %v392
        %v420 = vsub.f32 %v345, %v392
        %v421 = vsub.f32 %v346, %v392
        %v422 = vsub.f32 %v347, %v392
        %v423 = vsub.f32 %v348, %v392
        %v424 = vsub.f32 %v349, %v392
        %v425 = vmul.f32 %v393, %v393
        %v426 = vmul.f32 %v394, %v394
        %v427 = vmul.f32 %v395, %v395
        %v428 = vmul.f32 %v396, %v396
        %v429 = vmul.f32 %v397, %v397
        %v430 = vmul.f32 %v398, %v398
        %v431 = vmul.f32 %v399, %v399
        %v432 = vmul.f32 %v400, %v400
        %v433 = vmul.f32 %v401, %v401
        %v434 = vmul.f32 %v402, %v402
        %v435 = vmul.f32 %v403, %v403
        %v436 = vmul.f32 %v404, %v404
        %v437 = vmul.f32 %v405, %v405
        %v438 = vmul.f32 %v406, %v406
        %v439 = vmul.f32 %v407, %v407
        %v440 = vmul.f32 %v408, %v408
        %v441 = vmul.f32 %v409, %v409
        %v442 = vmul.f32 %v410, %v410
        %v443 = vmul.f32 %v411, %v411
        %v444 = vmul.f32 %v412, %v412
        %v445 = vmul.f32 %v413, %v413
        %v446 = vmul.f32 %v414, %v414
        %v447 = vmul.f32 %v415, %v415
        %v448 = vmul.f32 %v416, %v416
        %v449 = vmul.f32 %v417, %v417
        %v450 = vmul.f32 %v418, %v418
        %v451 = vmul.f32 %v419, %v419
        %v452 = vmul.f32 %v420, %v420
        %v453 = vmul.f32 %v421, %v421
        %v454 = vmul.f32 %v422, %v422
        %v455 = vmul.f32 %v423, %v423
        %v456 = vmul.f32 %v424, %v424
        %v457 = vadd.f32 %v425, %v426
        %v458 = vadd.f32 %v457, %v427
        %v459 = vadd.f32 %v458, %v428
        %v460 = vadd.f32 %v459, %v429
        %v461 = vadd.f32 %v460, %v430
        %v462 = vadd.f32 %v461, %v431
        %v463 = vadd.f32 %v462, %v432
        %464 = vadd.xlane.f32.xlu0 %v463
        %v465 = vpop.xlane.xlu0 %464
        %v466 = vadd.f32 %v433, %v434
        %v467 = vadd.f32 %v466, %v435
        %v468 = vadd.f32 %v467, %v436
        %v469 = vadd.f32 %v468, %v437
        %v470 = vadd.f32 %v469, %v438
        %v471 = vadd.f32 %v470, %v439
        %v472 = vadd.f32 %v471, %v440
        %473 = vadd.xlane.f32.xlu0 %v472
        %v474 = vpop.xlane.xlu0 %473
        %v475 = vadd.f32 %v441, %v442
        %v476 = vadd.f32 %v475, %v443
        %v477 = vadd.f32 %v476, %v444
        %v478 = vadd.f32 %v477, %v445
        %v479 = vadd.f32 %v478, %v446
        %v480 = vadd.f32 %v479, %v447
        %v481 = vadd.f32 %v480, %v448
        %482 = vadd.xlane.f32.xlu0 %v481
        %v483 = vpop.xlane.xlu0 %482
        %v484 = vadd.f32 %v449, %v450
        %v485 = vadd.f32 %v484, %v451
        %v486 = vadd.f32 %v485, %v452
        %v487 = vadd.f32 %v486, %v453
        %v488 = vadd.f32 %v487, %v454
        %v489 = vadd.f32 %v488, %v455
        %v490 = vadd.f32 %v489, %v456
        %491 = vadd.xlane.f32.xlu0 %v490
        %v492 = vpop.xlane.xlu0 %491
        %v493 = vmul.f32 %v465, %v388
        %v494 = vmul.f32 %v474, %v388
        %v495 = vmul.f32 %v483, %v388
        %v496 = vmul.f32 %v492, %v388
        %v497 = vadd.f32 %v493, 1e-05
        %v498 = vadd.f32 %v494, 1e-05
        %v499 = vadd.f32 %v495, 1e-05
        %v500 = vadd.f32 %v496, 1e-05
        %v501 = vrsqrt.pop %v497
        %v502 = vrsqrt.pop %v498
        %v503 = vrsqrt.pop %v499
        %v504 = vrsqrt.pop %v500
        %v505 = vmul.f32 %v393, %v501
        %v506 = vmul.f32 %v394, %v501
        %v507 = vmul.f32 %v395, %v501
        %v508 = vmul.f32 %v396, %v501
        %v509 = vmul.f32 %v397, %v501
        %v510 = vmul.f32 %v398, %v501
        %v511 = vmul.f32 %v399, %v501
        %v512 = vmul.f32 %v400, %v501
        %v513 = vmul.f32 %v401, %v502
        %v514 = vmul.f32 %v402, %v502
        %v515 = vmul.f32 %v403, %v502
        %v516 = vmul.f32 %v404, %v502
        %v517 = vmul.f32 %v405, %v502
        %v518 = vmul.f32 %v406, %v502
        %v519 = vmul.f32 %v407, %v502
        %v520 = vmul.f32 %v408, %v502
        %v521 = vmul.f32 %v409, %v503
        %v522 = vmul.f32 %v410, %v503
        %v523 = vmul.f32 %v411, %v503
        %v524 = vmul.f32 %v412, %v503
        %v525 = vmul.f32 %v413, %v503
        %v526 = vmul.f32 %v414, %v503
        %v527 = vmul.f32 %v415, %v503
        %v528 = vmul.f32 %v416, %v503
        %v529 = vmul.f32 %v417, %v504
        %v530 = vmul.f32 %v418, %v504
        %v531 = vmul.f32 %v419, %v504
        %v532 = vmul.f32 %v420, %v504
        %v533 = vmul.f32 %v421, %v504
        %v534 = vmul.f32 %v422, %v504
        %v535 = vmul.f32 %v423, %v504
        %v536 = vmul.f32 %v424, %v504
        %v538 = vlaneseq
        %v539 = vshrl.u32 %v538, 7
        %v540 = vsub.s32 0, %v539
        %v541 = vrot.slane %v350, %v540
        %v542 = vlaneseq
        %v543 = vshrl.u32 %v542, 7
        %v544 = vsub.s32 1, %v543
        %v545 = vrot.slane %v350, %v544
        %v546 = vlaneseq
        %v547 = vshrl.u32 %v546, 7
        %v548 = vsub.s32 2, %v547
        %v549 = vrot.slane %v350, %v548
        %v550 = vlaneseq
        %v551 = vshrl.u32 %v550, 7
        %v552 = vsub.s32 3, %v551
        %v553 = vrot.slane %v350, %v552
        %v554 = vlaneseq
        %v555 = vshrl.u32 %v554, 7
        %v556 = vsub.s32 4, %v555
        %v557 = vrot.slane %v350, %v556
        %v558 = vlaneseq
        %v559 = vshrl.u32 %v558, 7
        %v560 = vsub.s32 5, %v559
        %v561 = vrot.slane %v350, %v560
        %v562 = vlaneseq
        %v563 = vshrl.u32 %v562, 7
        %v564 = vsub.s32 6, %v563
        %v565 = vrot.slane %v350, %v564
        %v566 = vlaneseq
        %v567 = vshrl.u32 %v566, 7
        %v568 = vsub.s32 7, %v567
        %v569 = vrot.slane %v350, %v568
        %v578 = vmul.f32 %v505, %v541
        %v579 = vmul.f32 %v506, %v545
        %v580 = vmul.f32 %v507, %v549
        %v581 = vmul.f32 %v508, %v553
        %v582 = vmul.f32 %v509, %v557
        %v583 = vmul.f32 %v510, %v561
        %v584 = vmul.f32 %v511, %v565
        %v585 = vmul.f32 %v512, %v569
        %v586 = vmul.f32 %v513, %v541
        %v587 = vmul.f32 %v514, %v545
        %v588 = vmul.f32 %v515, %v549
        %v589 = vmul.f32 %v516, %v553
        %v590 = vmul.f32 %v517, %v557
        %v591 = vmul.f32 %v518, %v561
        %v592 = vmul.f32 %v519, %v565
        %v593 = vmul.f32 %v520, %v569
        %v594 = vmul.f32 %v521, %v541
        %v595 = vmul.f32 %v522, %v545
        %v596 = vmul.f32 %v523, %v549
        %v597 = vmul.f32 %v524, %v553
        %v598 = vmul.f32 %v525, %v557
        %v599 = vmul.f32 %v526, %v561
        %v600 = vmul.f32 %v527, %v565
        %v601 = vmul.f32 %v528, %v569
        %v602 = vmul.f32 %v529, %v541
        %v603 = vmul.f32 %v530, %v545
        %v604 = vmul.f32 %v531, %v549
        %v605 = vmul.f32 %v532, %v553
        %v606 = vmul.f32 %v533, %v557
        %v607 = vmul.f32 %v534, %v561
        %v608 = vmul.f32 %v535, %v565
        %v609 = vmul.f32 %v536, %v569
        %v611 = vlaneseq
        %v612 = vshrl.u32 %v611, 7
        %v613 = vsub.s32 0, %v612
        %v614 = vrot.slane %v351, %v613
        %v615 = vlaneseq
        %v616 = vshrl.u32 %v615, 7
        %v617 = vsub.s32 1, %v616
        %v618 = vrot.slane %v351, %v617
        %v619 = vlaneseq
        %v620 = vshrl.u32 %v619, 7
        %v621 = vsub.s32 2, %v620
        %v622 = vrot.slane %v351, %v621
        %v623 = vlaneseq
        %v624 = vshrl.u32 %v623, 7
        %v625 = vsub.s32 3, %v624
        %v626 = vrot.slane %v351, %v625
        %v627 = vlaneseq
        %v628 = vshrl.u32 %v627, 7
        %v629 = vsub.s32 4, %v628
        %v630 = vrot.slane %v351, %v629
        %v631 = vlaneseq
        %v632 = vshrl.u32 %v631, 7
        %v633 = vsub.s32 5, %v632
        %v634 = vrot.slane %v351, %v633
        %v635 = vlaneseq
        %v636 = vshrl.u32 %v635, 7
        %v637 = vsub.s32 6, %v636
        %v638 = vrot.slane %v351, %v637
        %v639 = vlaneseq
        %v640 = vshrl.u32 %v639, 7
        %v641 = vsub.s32 7, %v640
        %v642 = vrot.slane %v351, %v641
        %v651 = vadd.f32 %v578, %v614
        %v652 = vadd.f32 %v579, %v618
        %v653 = vadd.f32 %v580, %v622
        %v654 = vadd.f32 %v581, %v626
        %v655 = vadd.f32 %v582, %v630
        %v656 = vadd.f32 %v583, %v634
        %v657 = vadd.f32 %v584, %v638
        %v658 = vadd.f32 %v585, %v642
        %v659 = vadd.f32 %v586, %v614
        %v660 = vadd.f32 %v587, %v618
        %v661 = vadd.f32 %v588, %v622
        %v662 = vadd.f32 %v589, %v626
        %v663 = vadd.f32 %v590, %v630
        %v664 = vadd.f32 %v591, %v634
        %v665 = vadd.f32 %v592, %v638
        %v666 = vadd.f32 %v593, %v642
        %v667 = vadd.f32 %v594, %v614
        %v668 = vadd.f32 %v595, %v618
        %v669 = vadd.f32 %v596, %v622
        %v670 = vadd.f32 %v597, %v626
        %v671 = vadd.f32 %v598, %v630
        %v672 = vadd.f32 %v599, %v634
        %v673 = vadd.f32 %v600, %v638
        %v674 = vadd.f32 %v601, %v642
        %v675 = vadd.f32 %v602, %v614
        %v676 = vadd.f32 %v603, %v618
        %v677 = vadd.f32 %v604, %v622
        %v678 = vadd.f32 %v605, %v626
        %v679 = vadd.f32 %v606, %v630
        %v680 = vadd.f32 %v607, %v634
        %v681 = vadd.f32 %v608, %v638
        %v682 = vadd.f32 %v609, %v642
        %v683 = vld [vmem:[%s285] sm:$0xff]
        %v684 = vld [vmem:[%s285 + $0x8] sm:$0xff]
        %v685 = vld [vmem:[%s285 + $0x10] sm:$0xff]
        %v686 = vld [vmem:[%s285 + $0x18] sm:$0xff]
        %v687 = vld [vmem:[%s285 + $0x20] sm:$0xff]
        %v688 = vld [vmem:[%s285 + $0x28] sm:$0xff]
        %v689 = vld [vmem:[%s285 + $0x30] sm:$0xff]
        %v690 = vld [vmem:[%s285 + $0x38] sm:$0xff]
        %v691 = vld [vmem:[%s285 + $0x40] sm:$0xff]
        %v692 = vld [vmem:[%s285 + $0x48] sm:$0xff]
        %v693 = vld [vmem:[%s285 + $0x50] sm:$0xff]
        %v694 = vld [vmem:[%s285 + $0x58] sm:$0xff]
        %v695 = vld [vmem:[%s285 + $0x60] sm:$0xff]
        %v696 = vld [vmem:[%s285 + $0x68] sm:$0xff]
        %v697 = vld [vmem:[%s285 + $0x70] sm:$0xff]
        %v698 = vld [vmem:[%s285 + $0x78] sm:$0xff]
        %v699 = vld [vmem:[%s285 + $0x80] sm:$0xff]
        %v700 = vld [vmem:[%s285 + $0x88] sm:$0xff]
        %v701 = vld [vmem:[%s285 + $0x90] sm:$0xff]
        %v702 = vld [vmem:[%s285 + $0x98] sm:$0xff]
        %v703 = vld [vmem:[%s285 + $0xa0] sm:$0xff]
        %v704 = vld [vmem:[%s285 + $0xa8] sm:$0xff]
        %v705 = vld [vmem:[%s285 + $0xb0] sm:$0xff]
        %v706 = vld [vmem:[%s285 + $0xb8] sm:$0xff]
        %v707 = vld [vmem:[%s285 + $0xc0] sm:$0xff]
        %v708 = vld [vmem:[%s285 + $0xc8] sm:$0xff]
        %v709 = vld [vmem:[%s285 + $0xd0] sm:$0xff]
        %v710 = vld [vmem:[%s285 + $0xd8] sm:$0xff]
        %v711 = vld [vmem:[%s285 + $0xe0] sm:$0xff]
        %v712 = vld [vmem:[%s285 + $0xe8] sm:$0xff]
        %v713 = vld [vmem:[%s285 + $0xf0] sm:$0xff]
        %v714 = vld [vmem:[%s285 + $0xf8] sm:$0xff]
        %v715 = vld [vmem:[%s285 + $0x100] sm:$0xff]
        %v716 = vld [vmem:[%s285 + $0x108] sm:$0xff]
        %v717 = vld [vmem:[%s285 + $0x110] sm:$0xff]
        %v718 = vld [vmem:[%s285 + $0x118] sm:$0xff]
        %v719 = vld [vmem:[%s285 + $0x120] sm:$0xff]
        %v720 = vld [vmem:[%s285 + $0x128] sm:$0xff]
        %v721 = vld [vmem:[%s285 + $0x130] sm:$0xff]
        %v722 = vld [vmem:[%s285 + $0x138] sm:$0xff]
        %v723 = vld [vmem:[%s285 + $0x140] sm:$0xff]
        %v724 = vld [vmem:[%s285 + $0x148] sm:$0xff]
        %v725 = vld [vmem:[%s285 + $0x150] sm:$0xff]
        %v726 = vld [vmem:[%s285 + $0x158] sm:$0xff]
        %v727 = vld [vmem:[%s285 + $0x160] sm:$0xff]
        %v728 = vld [vmem:[%s285 + $0x168] sm:$0xff]
        %v729 = vld [vmem:[%s285 + $0x170] sm:$0xff]
        %v730 = vld [vmem:[%s285 + $0x178] sm:$0xff]
        %v731 = vld [vmem:[%s285 + $0x180] sm:$0xff]
        %v732 = vld [vmem:[%s285 + $0x188] sm:$0xff]
        %v733 = vld [vmem:[%s285 + $0x190] sm:$0xff]
        %v734 = vld [vmem:[%s285 + $0x198] sm:$0xff]
        %v735 = vld [vmem:[%s285 + $0x1a0] sm:$0xff]
        %v736 = vld [vmem:[%s285 + $0x1a8] sm:$0xff]
        %v737 = vld [vmem:[%s285 + $0x1b0] sm:$0xff]
        %v738 = vld [vmem:[%s285 + $0x1b8] sm:$0xff]
        %v739 = vld [vmem:[%s285 + $0x1c0] sm:$0xff]
        %v740 = vld [vmem:[%s285 + $0x1c8] sm:$0xff]
        %v741 = vld [vmem:[%s285 + $0x1d0] sm:$0xff]
        %v742 = vld [vmem:[%s285 + $0x1d8] sm:$0xff]
        %v743 = vld [vmem:[%s285 + $0x1e0] sm:$0xff]
        %v744 = vld [vmem:[%s285 + $0x1e8] sm:$0xff]
        %v745 = vld [vmem:[%s285 + $0x1f0] sm:$0xff]
        %v746 = vld [vmem:[%s285 + $0x1f8] sm:$0xff]
        %v747 = vld [vmem:[%s285 + $0x200] sm:$0xff]
        %v748 = vld [vmem:[%s285 + $0x208] sm:$0xff]
        %v749 = vld [vmem:[%s285 + $0x210] sm:$0xff]
        %v750 = vld [vmem:[%s285 + $0x218] sm:$0xff]
        %v751 = vld [vmem:[%s285 + $0x220] sm:$0xff]
        %v752 = vld [vmem:[%s285 + $0x228] sm:$0xff]
        %v753 = vld [vmem:[%s285 + $0x230] sm:$0xff]
        %v754 = vld [vmem:[%s285 + $0x238] sm:$0xff]
        %v755 = vld [vmem:[%s285 + $0x240] sm:$0xff]
        %v756 = vld [vmem:[%s285 + $0x248] sm:$0xff]
        %v757 = vld [vmem:[%s285 + $0x250] sm:$0xff]
        %v758 = vld [vmem:[%s285 + $0x258] sm:$0xff]
        %v759 = vld [vmem:[%s285 + $0x260] sm:$0xff]
        %v760 = vld [vmem:[%s285 + $0x268] sm:$0xff]
        %v761 = vld [vmem:[%s285 + $0x270] sm:$0xff]
        %v762 = vld [vmem:[%s285 + $0x278] sm:$0xff]
        %v763 = vld [vmem:[%s285 + $0x280] sm:$0xff]
        %v764 = vld [vmem:[%s285 + $0x288] sm:$0xff]
        %v765 = vld [vmem:[%s285 + $0x290] sm:$0xff]
        %v766 = vld [vmem:[%s285 + $0x298] sm:$0xff]
        %v767 = vld [vmem:[%s285 + $0x2a0] sm:$0xff]
        %v768 = vld [vmem:[%s285 + $0x2a8] sm:$0xff]
        %v769 = vld [vmem:[%s285 + $0x2b0] sm:$0xff]
        %v770 = vld [vmem:[%s285 + $0x2b8] sm:$0xff]
        %v771 = vld [vmem:[%s285 + $0x2c0] sm:$0xff]
        %v772 = vld [vmem:[%s285 + $0x2c8] sm:$0xff]
        %v773 = vld [vmem:[%s285 + $0x2d0] sm:$0xff]
        %v774 = vld [vmem:[%s285 + $0x2d8] sm:$0xff]
        %v775 = vld [vmem:[%s285 + $0x2e0] sm:$0xff]
        %v776 = vld [vmem:[%s285 + $0x2e8] sm:$0xff]
        %v777 = vld [vmem:[%s285 + $0x2f0] sm:$0xff]
        %v778 = vld [vmem:[%s285 + $0x2f8] sm:$0xff]
        %v779 = vld [vmem:[%s285 + $0x300] sm:$0xff]
        %v780 = vld [vmem:[%s285 + $0x308] sm:$0xff]
        %v781 = vld [vmem:[%s285 + $0x310] sm:$0xff]
        %v782 = vld [vmem:[%s285 + $0x318] sm:$0xff]
        %v783 = vld [vmem:[%s285 + $0x320] sm:$0xff]
        %v784 = vld [vmem:[%s285 + $0x328] sm:$0xff]
        %v785 = vld [vmem:[%s285 + $0x330] sm:$0xff]
        %v786 = vld [vmem:[%s285 + $0x338] sm:$0xff]
        %v787 = vld [vmem:[%s285 + $0x340] sm:$0xff]
        %v788 = vld [vmem:[%s285 + $0x348] sm:$0xff]
        %v789 = vld [vmem:[%s285 + $0x350] sm:$0xff]
        %v790 = vld [vmem:[%s285 + $0x358] sm:$0xff]
        %v791 = vld [vmem:[%s285 + $0x360] sm:$0xff]
        %v792 = vld [vmem:[%s285 + $0x368] sm:$0xff]
        %v793 = vld [vmem:[%s285 + $0x370] sm:$0xff]
        %v794 = vld [vmem:[%s285 + $0x378] sm:$0xff]
        %v795 = vld [vmem:[%s285 + $0x380] sm:$0xff]
        %v796 = vld [vmem:[%s285 + $0x388] sm:$0xff]
        %v797 = vld [vmem:[%s285 + $0x390] sm:$0xff]
        %v798 = vld [vmem:[%s285 + $0x398] sm:$0xff]
        %v799 = vld [vmem:[%s285 + $0x3a0] sm:$0xff]
        %v800 = vld [vmem:[%s285 + $0x3a8] sm:$0xff]
        %v801 = vld [vmem:[%s285 + $0x3b0] sm:$0xff]
        %v802 = vld [vmem:[%s285 + $0x3b8] sm:$0xff]
        %v803 = vld [vmem:[%s285 + $0x3c0] sm:$0xff]
        %v804 = vld [vmem:[%s285 + $0x3c8] sm:$0xff]
        %v805 = vld [vmem:[%s285 + $0x3d0] sm:$0xff]
        %v806 = vld [vmem:[%s285 + $0x3d8] sm:$0xff]
        %v807 = vld [vmem:[%s285 + $0x3e0] sm:$0xff]
        %v808 = vld [vmem:[%s285 + $0x3e8] sm:$0xff]
        %v809 = vld [vmem:[%s285 + $0x3f0] sm:$0xff]
        %v810 = vld [vmem:[%s285 + $0x3f8] sm:$0xff]
        %v811 = vld [vmem:[%s285 + $0x400] sm:$0xff]
        %v812 = vld [vmem:[%s285 + $0x408] sm:$0xff]
        %v813 = vld [vmem:[%s285 + $0x410] sm:$0xff]
        %v814 = vld [vmem:[%s285 + $0x418] sm:$0xff]
        %v815 = vld [vmem:[%s285 + $0x420] sm:$0xff]
        %v816 = vld [vmem:[%s285 + $0x428] sm:$0xff]
        %v817 = vld [vmem:[%s285 + $0x430] sm:$0xff]
        %v818 = vld [vmem:[%s285 + $0x438] sm:$0xff]
        %v819 = vld [vmem:[%s285 + $0x440] sm:$0xff]
        %v820 = vld [vmem:[%s285 + $0x448] sm:$0xff]
        %v821 = vld [vmem:[%s285 + $0x450] sm:$0xff]
        %v822 = vld [vmem:[%s285 + $0x458] sm:$0xff]
        %v823 = vld [vmem:[%s285 + $0x460] sm:$0xff]
        %v824 = vld [vmem:[%s285 + $0x468] sm:$0xff]
        %v825 = vld [vmem:[%s285 + $0x470] sm:$0xff]
        %v826 = vld [vmem:[%s285 + $0x478] sm:$0xff]
        %v827 = vld [vmem:[%s285 + $0x480] sm:$0xff]
        %v828 = vld [vmem:[%s285 + $0x488] sm:$0xff]
        %v829 = vld [vmem:[%s285 + $0x490] sm:$0xff]
        %v830 = vld [vmem:[%s285 + $0x498] sm:$0xff]
        %v831 = vld [vmem:[%s285 + $0x4a0] sm:$0xff]
        %v832 = vld [vmem:[%s285 + $0x4a8] sm:$0xff]
        %v833 = vld [vmem:[%s285 + $0x4b0] sm:$0xff]
        %v834 = vld [vmem:[%s285 + $0x4b8] sm:$0xff]
        %v835 = vld [vmem:[%s285 + $0x4c0] sm:$0xff]
        %v836 = vld [vmem:[%s285 + $0x4c8] sm:$0xff]
        %v837 = vld [vmem:[%s285 + $0x4d0] sm:$0xff]
        %v838 = vld [vmem:[%s285 + $0x4d8] sm:$0xff]
        %v839 = vld [vmem:[%s285 + $0x4e0] sm:$0xff]
        %v840 = vld [vmem:[%s285 + $0x4e8] sm:$0xff]
        %v841 = vld [vmem:[%s285 + $0x4f0] sm:$0xff]
        %v842 = vld [vmem:[%s285 + $0x4f8] sm:$0xff]
        %v843 = vld [vmem:[%s285 + $0x500] sm:$0xff]
        %v844 = vld [vmem:[%s285 + $0x508] sm:$0xff]
        %v845 = vld [vmem:[%s285 + $0x510] sm:$0xff]
        %v846 = vld [vmem:[%s285 + $0x518] sm:$0xff]
        %v847 = vld [vmem:[%s285 + $0x520] sm:$0xff]
        %v848 = vld [vmem:[%s285 + $0x528] sm:$0xff]
        %v849 = vld [vmem:[%s285 + $0x530] sm:$0xff]
        %v850 = vld [vmem:[%s285 + $0x538] sm:$0xff]
        %v851 = vld [vmem:[%s285 + $0x540] sm:$0xff]
        %v852 = vld [vmem:[%s285 + $0x548] sm:$0xff]
        %v853 = vld [vmem:[%s285 + $0x550] sm:$0xff]
        %v854 = vld [vmem:[%s285 + $0x558] sm:$0xff]
        %v855 = vld [vmem:[%s285 + $0x560] sm:$0xff]
        %v856 = vld [vmem:[%s285 + $0x568] sm:$0xff]
        %v857 = vld [vmem:[%s285 + $0x570] sm:$0xff]
        %v858 = vld [vmem:[%s285 + $0x578] sm:$0xff]
        %v859 = vld [vmem:[%s285 + $0x580] sm:$0xff]
        %v860 = vld [vmem:[%s285 + $0x588] sm:$0xff]
        %v861 = vld [vmem:[%s285 + $0x590] sm:$0xff]
        %v862 = vld [vmem:[%s285 + $0x598] sm:$0xff]
        %v863 = vld [vmem:[%s285 + $0x5a0] sm:$0xff]
        %v864 = vld [vmem:[%s285 + $0x5a8] sm:$0xff]
        %v865 = vld [vmem:[%s285 + $0x5b0] sm:$0xff]
        %v866 = vld [vmem:[%s285 + $0x5b8] sm:$0xff]
        %v867 = vld [vmem:[%s285 + $0x5c0] sm:$0xff]
        %v868 = vld [vmem:[%s285 + $0x5c8] sm:$0xff]
        %v869 = vld [vmem:[%s285 + $0x5d0] sm:$0xff]
        %v870 = vld [vmem:[%s285 + $0x5d8] sm:$0xff]
        %v871 = vld [vmem:[%s285 + $0x5e0] sm:$0xff]
        %v872 = vld [vmem:[%s285 + $0x5e8] sm:$0xff]
        %v873 = vld [vmem:[%s285 + $0x5f0] sm:$0xff]
        %v874 = vld [vmem:[%s285 + $0x5f8] sm:$0xff]
        %v875 = vld [vmem:[%s285 + $0x600] sm:$0xff]
        %v876 = vld [vmem:[%s285 + $0x608] sm:$0xff]
        %v877 = vld [vmem:[%s285 + $0x610] sm:$0xff]
        %v878 = vld [vmem:[%s285 + $0x618] sm:$0xff]
        %v879 = vld [vmem:[%s285 + $0x620] sm:$0xff]
        %v880 = vld [vmem:[%s285 + $0x628] sm:$0xff]
        %v881 = vld [vmem:[%s285 + $0x630] sm:$0xff]
        %v882 = vld [vmem:[%s285 + $0x638] sm:$0xff]
        %v883 = vld [vmem:[%s285 + $0x640] sm:$0xff]
        %v884 = vld [vmem:[%s285 + $0x648] sm:$0xff]
        %v885 = vld [vmem:[%s285 + $0x650] sm:$0xff]
        %v886 = vld [vmem:[%s285 + $0x658] sm:$0xff]
        %v887 = vld [vmem:[%s285 + $0x660] sm:$0xff]
        %v888 = vld [vmem:[%s285 + $0x668] sm:$0xff]
        %v889 = vld [vmem:[%s285 + $0x670] sm:$0xff]
        %v890 = vld [vmem:[%s285 + $0x678] sm:$0xff]
        %v891 = vld [vmem:[%s285 + $0x680] sm:$0xff]
        %v892 = vld [vmem:[%s285 + $0x688] sm:$0xff]
        %v893 = vld [vmem:[%s285 + $0x690] sm:$0xff]
        %v894 = vld [vmem:[%s285 + $0x698] sm:$0xff]
        %v895 = vld [vmem:[%s285 + $0x6a0] sm:$0xff]
        %v896 = vld [vmem:[%s285 + $0x6a8] sm:$0xff]
        %v897 = vld [vmem:[%s285 + $0x6b0] sm:$0xff]
        %v898 = vld [vmem:[%s285 + $0x6b8] sm:$0xff]
        %v899 = vld [vmem:[%s285 + $0x6c0] sm:$0xff]
        %v900 = vld [vmem:[%s285 + $0x6c8] sm:$0xff]
        %v901 = vld [vmem:[%s285 + $0x6d0] sm:$0xff]
        %v902 = vld [vmem:[%s285 + $0x6d8] sm:$0xff]
        %v903 = vld [vmem:[%s285 + $0x6e0] sm:$0xff]
        %v904 = vld [vmem:[%s285 + $0x6e8] sm:$0xff]
        %v905 = vld [vmem:[%s285 + $0x6f0] sm:$0xff]
        %v906 = vld [vmem:[%s285 + $0x6f8] sm:$0xff]
        %v907 = vld [vmem:[%s285 + $0x700] sm:$0xff]
        %v908 = vld [vmem:[%s285 + $0x708] sm:$0xff]
        %v909 = vld [vmem:[%s285 + $0x710] sm:$0xff]
        %v910 = vld [vmem:[%s285 + $0x718] sm:$0xff]
        %v911 = vld [vmem:[%s285 + $0x720] sm:$0xff]
        %v912 = vld [vmem:[%s285 + $0x728] sm:$0xff]
        %v913 = vld [vmem:[%s285 + $0x730] sm:$0xff]
        %v914 = vld [vmem:[%s285 + $0x738] sm:$0xff]
        %v915 = vld [vmem:[%s285 + $0x740] sm:$0xff]
        %v916 = vld [vmem:[%s285 + $0x748] sm:$0xff]
        %v917 = vld [vmem:[%s285 + $0x750] sm:$0xff]
        %v918 = vld [vmem:[%s285 + $0x758] sm:$0xff]
        %v919 = vld [vmem:[%s285 + $0x760] sm:$0xff]
        %v920 = vld [vmem:[%s285 + $0x768] sm:$0xff]
        %v921 = vld [vmem:[%s285 + $0x770] sm:$0xff]
        %v922 = vld [vmem:[%s285 + $0x778] sm:$0xff]
        %v923 = vld [vmem:[%s285 + $0x780] sm:$0xff]
        %v924 = vld [vmem:[%s285 + $0x788] sm:$0xff]
        %v925 = vld [vmem:[%s285 + $0x790] sm:$0xff]
        %v926 = vld [vmem:[%s285 + $0x798] sm:$0xff]
        %v927 = vld [vmem:[%s285 + $0x7a0] sm:$0xff]
        %v928 = vld [vmem:[%s285 + $0x7a8] sm:$0xff]
        %v929 = vld [vmem:[%s285 + $0x7b0] sm:$0xff]
        %v930 = vld [vmem:[%s285 + $0x7b8] sm:$0xff]
        %v931 = vld [vmem:[%s285 + $0x7c0] sm:$0xff]
        %v932 = vld [vmem:[%s285 + $0x7c8] sm:$0xff]
        %v933 = vld [vmem:[%s285 + $0x7d0] sm:$0xff]
        %v934 = vld [vmem:[%s285 + $0x7d8] sm:$0xff]
        %v935 = vld [vmem:[%s285 + $0x7e0] sm:$0xff]
        %v936 = vld [vmem:[%s285 + $0x7e8] sm:$0xff]
        %v937 = vld [vmem:[%s285 + $0x7f0] sm:$0xff]
        %v938 = vld [vmem:[%s285 + $0x7f8] sm:$0xff]
        %v939 = vld [vmem:[%s285 + $0x800] sm:$0xff]
        %v940 = vld [vmem:[%s285 + $0x808] sm:$0xff]
        %v941 = vld [vmem:[%s285 + $0x810] sm:$0xff]
        %v942 = vld [vmem:[%s285 + $0x818] sm:$0xff]
        %v943 = vld [vmem:[%s285 + $0x820] sm:$0xff]
        %v944 = vld [vmem:[%s285 + $0x828] sm:$0xff]
        %v945 = vld [vmem:[%s285 + $0x830] sm:$0xff]
        %v946 = vld [vmem:[%s285 + $0x838] sm:$0xff]
        %v947 = vld [vmem:[%s285 + $0x840] sm:$0xff]
        %v948 = vld [vmem:[%s285 + $0x848] sm:$0xff]
        %v949 = vld [vmem:[%s285 + $0x850] sm:$0xff]
        %v950 = vld [vmem:[%s285 + $0x858] sm:$0xff]
        %v951 = vld [vmem:[%s285 + $0x860] sm:$0xff]
        %v952 = vld [vmem:[%s285 + $0x868] sm:$0xff]
        %v953 = vld [vmem:[%s285 + $0x870] sm:$0xff]
        %v954 = vld [vmem:[%s285 + $0x878] sm:$0xff]
        %v955 = vld [vmem:[%s285 + $0x880] sm:$0xff]
        %v956 = vld [vmem:[%s285 + $0x888] sm:$0xff]
        %v957 = vld [vmem:[%s285 + $0x890] sm:$0xff]
        %v958 = vld [vmem:[%s285 + $0x898] sm:$0xff]
        %v959 = vld [vmem:[%s285 + $0x8a0] sm:$0xff]
        %v960 = vld [vmem:[%s285 + $0x8a8] sm:$0xff]
        %v961 = vld [vmem:[%s285 + $0x8b0] sm:$0xff]
        %v962 = vld [vmem:[%s285 + $0x8b8] sm:$0xff]
        %v963 = vld [vmem:[%s285 + $0x8c0] sm:$0xff]
        %v964 = vld [vmem:[%s285 + $0x8c8] sm:$0xff]
        %v965 = vld [vmem:[%s285 + $0x8d0] sm:$0xff]
        %v966 = vld [vmem:[%s285 + $0x8d8] sm:$0xff]
        %v967 = vld [vmem:[%s285 + $0x8e0] sm:$0xff]
        %v968 = vld [vmem:[%s285 + $0x8e8] sm:$0xff]
        %v969 = vld [vmem:[%s285 + $0x8f0] sm:$0xff]
        %v970 = vld [vmem:[%s285 + $0x8f8] sm:$0xff]
        %v971 = vld [vmem:[%s285 + $0x900] sm:$0xff]
        %v972 = vld [vmem:[%s285 + $0x908] sm:$0xff]
        %v973 = vld [vmem:[%s285 + $0x910] sm:$0xff]
        %v974 = vld [vmem:[%s285 + $0x918] sm:$0xff]
        %v975 = vld [vmem:[%s285 + $0x920] sm:$0xff]
        %v976 = vld [vmem:[%s285 + $0x928] sm:$0xff]
        %v977 = vld [vmem:[%s285 + $0x930] sm:$0xff]
        %v978 = vld [vmem:[%s285 + $0x938] sm:$0xff]
        %v979 = vld [vmem:[%s285 + $0x940] sm:$0xff]
        %v980 = vld [vmem:[%s285 + $0x948] sm:$0xff]
        %v981 = vld [vmem:[%s285 + $0x950] sm:$0xff]
        %v982 = vld [vmem:[%s285 + $0x958] sm:$0xff]
        %v983 = vld [vmem:[%s285 + $0x960] sm:$0xff]
        %v984 = vld [vmem:[%s285 + $0x968] sm:$0xff]
        %v985 = vld [vmem:[%s285 + $0x970] sm:$0xff]
        %v986 = vld [vmem:[%s285 + $0x978] sm:$0xff]
        %v987 = vld [vmem:[%s285 + $0x980] sm:$0xff]
        %v988 = vld [vmem:[%s285 + $0x988] sm:$0xff]
        %v989 = vld [vmem:[%s285 + $0x990] sm:$0xff]
        %v990 = vld [vmem:[%s285 + $0x998] sm:$0xff]
        %v991 = vld [vmem:[%s285 + $0x9a0] sm:$0xff]
        %v992 = vld [vmem:[%s285 + $0x9a8] sm:$0xff]
        %v993 = vld [vmem:[%s285 + $0x9b0] sm:$0xff]
        %v994 = vld [vmem:[%s285 + $0x9b8] sm:$0xff]
        %v995 = vld [vmem:[%s285 + $0x9c0] sm:$0xff]
        %v996 = vld [vmem:[%s285 + $0x9c8] sm:$0xff]
        %v997 = vld [vmem:[%s285 + $0x9d0] sm:$0xff]
        %v998 = vld [vmem:[%s285 + $0x9d8] sm:$0xff]
        %v999 = vld [vmem:[%s285 + $0x9e0] sm:$0xff]
        %v1000 = vld [vmem:[%s285 + $0x9e8] sm:$0xff]
        %v1001 = vld [vmem:[%s285 + $0x9f0] sm:$0xff]
        %v1002 = vld [vmem:[%s285 + $0x9f8] sm:$0xff]
        %v1003 = vld [vmem:[%s285 + $0xa00] sm:$0xff]
        %v1004 = vld [vmem:[%s285 + $0xa08] sm:$0xff]
        %v1005 = vld [vmem:[%s285 + $0xa10] sm:$0xff]
        %v1006 = vld [vmem:[%s285 + $0xa18] sm:$0xff]
        %v1007 = vld [vmem:[%s285 + $0xa20] sm:$0xff]
        %v1008 = vld [vmem:[%s285 + $0xa28] sm:$0xff]
        %v1009 = vld [vmem:[%s285 + $0xa30] sm:$0xff]
        %v1010 = vld [vmem:[%s285 + $0xa38] sm:$0xff]
        %v1011 = vld [vmem:[%s285 + $0xa40] sm:$0xff]
        %v1012 = vld [vmem:[%s285 + $0xa48] sm:$0xff]
        %v1013 = vld [vmem:[%s285 + $0xa50] sm:$0xff]
        %v1014 = vld [vmem:[%s285 + $0xa58] sm:$0xff]
        %v1015 = vld [vmem:[%s285 + $0xa60] sm:$0xff]
        %v1016 = vld [vmem:[%s285 + $0xa68] sm:$0xff]
        %v1017 = vld [vmem:[%s285 + $0xa70] sm:$0xff]
        %v1018 = vld [vmem:[%s285 + $0xa78] sm:$0xff]
        %v1019 = vld [vmem:[%s285 + $0xa80] sm:$0xff]
        %v1020 = vld [vmem:[%s285 + $0xa88] sm:$0xff]
        %v1021 = vld [vmem:[%s285 + $0xa90] sm:$0xff]
        %v1022 = vld [vmem:[%s285 + $0xa98] sm:$0xff]
        %v1023 = vld [vmem:[%s285 + $0xaa0] sm:$0xff]
        %v1024 = vld [vmem:[%s285 + $0xaa8] sm:$0xff]
        %v1025 = vld [vmem:[%s285 + $0xab0] sm:$0xff]
        %v1026 = vld [vmem:[%s285 + $0xab8] sm:$0xff]
        %v1027 = vld [vmem:[%s285 + $0xac0] sm:$0xff]
        %v1028 = vld [vmem:[%s285 + $0xac8] sm:$0xff]
        %v1029 = vld [vmem:[%s285 + $0xad0] sm:$0xff]
        %v1030 = vld [vmem:[%s285 + $0xad8] sm:$0xff]
        %v1031 = vld [vmem:[%s285 + $0xae0] sm:$0xff]
        %v1032 = vld [vmem:[%s285 + $0xae8] sm:$0xff]
        %v1033 = vld [vmem:[%s285 + $0xaf0] sm:$0xff]
        %v1034 = vld [vmem:[%s285 + $0xaf8] sm:$0xff]
        %v1035 = vld [vmem:[%s285 + $0xb00] sm:$0xff]
        %v1036 = vld [vmem:[%s285 + $0xb08] sm:$0xff]
        %v1037 = vld [vmem:[%s285 + $0xb10] sm:$0xff]
        %v1038 = vld [vmem:[%s285 + $0xb18] sm:$0xff]
        %v1039 = vld [vmem:[%s285 + $0xb20] sm:$0xff]
        %v1040 = vld [vmem:[%s285 + $0xb28] sm:$0xff]
        %v1041 = vld [vmem:[%s285 + $0xb30] sm:$0xff]
        %v1042 = vld [vmem:[%s285 + $0xb38] sm:$0xff]
        %v1043 = vld [vmem:[%s285 + $0xb40] sm:$0xff]
        %v1044 = vld [vmem:[%s285 + $0xb48] sm:$0xff]
        %v1045 = vld [vmem:[%s285 + $0xb50] sm:$0xff]
        %v1046 = vld [vmem:[%s285 + $0xb58] sm:$0xff]
        %v1047 = vld [vmem:[%s285 + $0xb60] sm:$0xff]
        %v1048 = vld [vmem:[%s285 + $0xb68] sm:$0xff]
        %v1049 = vld [vmem:[%s285 + $0xb70] sm:$0xff]
        %v1050 = vld [vmem:[%s285 + $0xb78] sm:$0xff]
        %v1051 = vld [vmem:[%s285 + $0xb80] sm:$0xff]
        %v1052 = vld [vmem:[%s285 + $0xb88] sm:$0xff]
        %v1053 = vld [vmem:[%s285 + $0xb90] sm:$0xff]
        %v1054 = vld [vmem:[%s285 + $0xb98] sm:$0xff]
        %v1055 = vld [vmem:[%s285 + $0xba0] sm:$0xff]
        %v1056 = vld [vmem:[%s285 + $0xba8] sm:$0xff]
        %v1057 = vld [vmem:[%s285 + $0xbb0] sm:$0xff]
        %v1058 = vld [vmem:[%s285 + $0xbb8] sm:$0xff]
        %v1059 = vld [vmem:[%s285 + $0xbc0] sm:$0xff]
        %v1060 = vld [vmem:[%s285 + $0xbc8] sm:$0xff]
        %v1061 = vld [vmem:[%s285 + $0xbd0] sm:$0xff]
        %v1062 = vld [vmem:[%s285 + $0xbd8] sm:$0xff]
        %v1063 = vld [vmem:[%s285 + $0xbe0] sm:$0xff]
        %v1064 = vld [vmem:[%s285 + $0xbe8] sm:$0xff]
        %v1065 = vld [vmem:[%s285 + $0xbf0] sm:$0xff]
        %v1066 = vld [vmem:[%s285 + $0xbf8] sm:$0xff]
        %v1067 = vld [vmem:[%s285 + $0xc00] sm:$0xff]
        %v1068 = vld [vmem:[%s285 + $0xc08] sm:$0xff]
        %v1069 = vld [vmem:[%s285 + $0xc10] sm:$0xff]
        %v1070 = vld [vmem:[%s285 + $0xc18] sm:$0xff]
        %v1071 = vld [vmem:[%s285 + $0xc20] sm:$0xff]
        %v1072 = vld [vmem:[%s285 + $0xc28] sm:$0xff]
        %v1073 = vld [vmem:[%s285 + $0xc30] sm:$0xff]
        %v1074 = vld [vmem:[%s285 + $0xc38] sm:$0xff]
        %v1075 = vld [vmem:[%s285 + $0xc40] sm:$0xff]
        %v1076 = vld [vmem:[%s285 + $0xc48] sm:$0xff]
        %v1077 = vld [vmem:[%s285 + $0xc50] sm:$0xff]
        %v1078 = vld [vmem:[%s285 + $0xc58] sm:$0xff]
        %v1079 = vld [vmem:[%s285 + $0xc60] sm:$0xff]
        %v1080 = vld [vmem:[%s285 + $0xc68] sm:$0xff]
        %v1081 = vld [vmem:[%s285 + $0xc70] sm:$0xff]
        %v1082 = vld [vmem:[%s285 + $0xc78] sm:$0xff]
        %v1083 = vld [vmem:[%s285 + $0xc80] sm:$0xff]
        %v1084 = vld [vmem:[%s285 + $0xc88] sm:$0xff]
        %v1085 = vld [vmem:[%s285 + $0xc90] sm:$0xff]
        %v1086 = vld [vmem:[%s285 + $0xc98] sm:$0xff]
        %v1087 = vld [vmem:[%s285 + $0xca0] sm:$0xff]
        %v1088 = vld [vmem:[%s285 + $0xca8] sm:$0xff]
        %v1089 = vld [vmem:[%s285 + $0xcb0] sm:$0xff]
        %v1090 = vld [vmem:[%s285 + $0xcb8] sm:$0xff]
        %v1091 = vld [vmem:[%s285 + $0xcc0] sm:$0xff]
        %v1092 = vld [vmem:[%s285 + $0xcc8] sm:$0xff]
        %v1093 = vld [vmem:[%s285 + $0xcd0] sm:$0xff]
        %v1094 = vld [vmem:[%s285 + $0xcd8] sm:$0xff]
        %v1095 = vld [vmem:[%s285 + $0xce0] sm:$0xff]
        %v1096 = vld [vmem:[%s285 + $0xce8] sm:$0xff]
        %v1097 = vld [vmem:[%s285 + $0xcf0] sm:$0xff]
        %v1098 = vld [vmem:[%s285 + $0xcf8] sm:$0xff]
        %v1099 = vld [vmem:[%s285 + $0xd00] sm:$0xff]
        %v1100 = vld [vmem:[%s285 + $0xd08] sm:$0xff]
        %v1101 = vld [vmem:[%s285 + $0xd10] sm:$0xff]
        %v1102 = vld [vmem:[%s285 + $0xd18] sm:$0xff]
        %v1103 = vld [vmem:[%s285 + $0xd20] sm:$0xff]
        %v1104 = vld [vmem:[%s285 + $0xd28] sm:$0xff]
        %v1105 = vld [vmem:[%s285 + $0xd30] sm:$0xff]
        %v1106 = vld [vmem:[%s285 + $0xd38] sm:$0xff]
        %v1107 = vld [vmem:[%s285 + $0xd40] sm:$0xff]
        %v1108 = vld [vmem:[%s285 + $0xd48] sm:$0xff]
        %v1109 = vld [vmem:[%s285 + $0xd50] sm:$0xff]
        %v1110 = vld [vmem:[%s285 + $0xd58] sm:$0xff]
        %v1111 = vld [vmem:[%s285 + $0xd60] sm:$0xff]
        %v1112 = vld [vmem:[%s285 + $0xd68] sm:$0xff]
        %v1113 = vld [vmem:[%s285 + $0xd70] sm:$0xff]
        %v1114 = vld [vmem:[%s285 + $0xd78] sm:$0xff]
        %v1115 = vld [vmem:[%s285 + $0xd80] sm:$0xff]
        %v1116 = vld [vmem:[%s285 + $0xd88] sm:$0xff]
        %v1117 = vld [vmem:[%s285 + $0xd90] sm:$0xff]
        %v1118 = vld [vmem:[%s285 + $0xd98] sm:$0xff]
        %v1119 = vld [vmem:[%s285 + $0xda0] sm:$0xff]
        %v1120 = vld [vmem:[%s285 + $0xda8] sm:$0xff]
        %v1121 = vld [vmem:[%s285 + $0xdb0] sm:$0xff]
        %v1122 = vld [vmem:[%s285 + $0xdb8] sm:$0xff]
        %v1123 = vld [vmem:[%s285 + $0xdc0] sm:$0xff]
        %v1124 = vld [vmem:[%s285 + $0xdc8] sm:$0xff]
        %v1125 = vld [vmem:[%s285 + $0xdd0] sm:$0xff]
        %v1126 = vld [vmem:[%s285 + $0xdd8] sm:$0xff]
        %v1127 = vld [vmem:[%s285 + $0xde0] sm:$0xff]
        %v1128 = vld [vmem:[%s285 + $0xde8] sm:$0xff]
        %v1129 = vld [vmem:[%s285 + $0xdf0] sm:$0xff]
        %v1130 = vld [vmem:[%s285 + $0xdf8] sm:$0xff]
        %v1131 = vld [vmem:[%s285 + $0xe00] sm:$0xff]
        %v1132 = vld [vmem:[%s285 + $0xe08] sm:$0xff]
        %v1133 = vld [vmem:[%s285 + $0xe10] sm:$0xff]
        %v1134 = vld [vmem:[%s285 + $0xe18] sm:$0xff]
        %v1135 = vld [vmem:[%s285 + $0xe20] sm:$0xff]
        %v1136 = vld [vmem:[%s285 + $0xe28] sm:$0xff]
        %v1137 = vld [vmem:[%s285 + $0xe30] sm:$0xff]
        %v1138 = vld [vmem:[%s285 + $0xe38] sm:$0xff]
        %v1139 = vld [vmem:[%s285 + $0xe40] sm:$0xff]
        %v1140 = vld [vmem:[%s285 + $0xe48] sm:$0xff]
        %v1141 = vld [vmem:[%s285 + $0xe50] sm:$0xff]
        %v1142 = vld [vmem:[%s285 + $0xe58] sm:$0xff]
        %v1143 = vld [vmem:[%s285 + $0xe60] sm:$0xff]
        %v1144 = vld [vmem:[%s285 + $0xe68] sm:$0xff]
        %v1145 = vld [vmem:[%s285 + $0xe70] sm:$0xff]
        %v1146 = vld [vmem:[%s285 + $0xe78] sm:$0xff]
        %v1147 = vld [vmem:[%s285 + $0xe80] sm:$0xff]
        %v1148 = vld [vmem:[%s285 + $0xe88] sm:$0xff]
        %v1149 = vld [vmem:[%s285 + $0xe90] sm:$0xff]
        %v1150 = vld [vmem:[%s285 + $0xe98] sm:$0xff]
        %v1151 = vld [vmem:[%s285 + $0xea0] sm:$0xff]
        %v1152 = vld [vmem:[%s285 + $0xea8] sm:$0xff]
        %v1153 = vld [vmem:[%s285 + $0xeb0] sm:$0xff]
        %v1154 = vld [vmem:[%s285 + $0xeb8] sm:$0xff]
        %v1155 = vld [vmem:[%s285 + $0xec0] sm:$0xff]
        %v1156 = vld [vmem:[%s285 + $0xec8] sm:$0xff]
        %v1157 = vld [vmem:[%s285 + $0xed0] sm:$0xff]
        %v1158 = vld [vmem:[%s285 + $0xed8] sm:$0xff]
        %v1159 = vld [vmem:[%s285 + $0xee0] sm:$0xff]
        %v1160 = vld [vmem:[%s285 + $0xee8] sm:$0xff]
        %v1161 = vld [vmem:[%s285 + $0xef0] sm:$0xff]
        %v1162 = vld [vmem:[%s285 + $0xef8] sm:$0xff]
        %v1163 = vld [vmem:[%s285 + $0xf00] sm:$0xff]
        %v1164 = vld [vmem:[%s285 + $0xf08] sm:$0xff]
        %v1165 = vld [vmem:[%s285 + $0xf10] sm:$0xff]
        %v1166 = vld [vmem:[%s285 + $0xf18] sm:$0xff]
        %v1167 = vld [vmem:[%s285 + $0xf20] sm:$0xff]
        %v1168 = vld [vmem:[%s285 + $0xf28] sm:$0xff]
        %v1169 = vld [vmem:[%s285 + $0xf30] sm:$0xff]
        %v1170 = vld [vmem:[%s285 + $0xf38] sm:$0xff]
        %v1171 = vld [vmem:[%s285 + $0xf40] sm:$0xff]
        %v1172 = vld [vmem:[%s285 + $0xf48] sm:$0xff]
        %v1173 = vld [vmem:[%s285 + $0xf50] sm:$0xff]
        %v1174 = vld [vmem:[%s285 + $0xf58] sm:$0xff]
        %v1175 = vld [vmem:[%s285 + $0xf60] sm:$0xff]
        %v1176 = vld [vmem:[%s285 + $0xf68] sm:$0xff]
        %v1177 = vld [vmem:[%s285 + $0xf70] sm:$0xff]
        %v1178 = vld [vmem:[%s285 + $0xf78] sm:$0xff]
        %v1179 = vld [vmem:[%s285 + $0xf80] sm:$0xff]
        %v1180 = vld [vmem:[%s285 + $0xf88] sm:$0xff]
        %v1181 = vld [vmem:[%s285 + $0xf90] sm:$0xff]
        %v1182 = vld [vmem:[%s285 + $0xf98] sm:$0xff]
        %v1183 = vld [vmem:[%s285 + $0xfa0] sm:$0xff]
        %v1184 = vld [vmem:[%s285 + $0xfa8] sm:$0xff]
        %v1185 = vld [vmem:[%s285 + $0xfb0] sm:$0xff]
        %v1186 = vld [vmem:[%s285 + $0xfb8] sm:$0xff]
        %v1187 = vld [vmem:[%s285 + $0xfc0] sm:$0xff]
        %v1188 = vld [vmem:[%s285 + $0xfc8] sm:$0xff]
        %v1189 = vld [vmem:[%s285 + $0xfd0] sm:$0xff]
        %v1190 = vld [vmem:[%s285 + $0xfd8] sm:$0xff]
        %v1191 = vld [vmem:[%s285 + $0xfe0] sm:$0xff]
        %v1192 = vld [vmem:[%s285 + $0xfe8] sm:$0xff]
        %v1193 = vld [vmem:[%s285 + $0xff0] sm:$0xff]
        %v1194 = vld [vmem:[%s285 + $0xff8] sm:$0xff]
        %v1195 = vld [vmem:[%s285 + $0x1000] sm:$0xff]
        %v1196 = vld [vmem:[%s285 + $0x1008] sm:$0xff]
        %v1197 = vld [vmem:[%s285 + $0x1010] sm:$0xff]
        %v1198 = vld [vmem:[%s285 + $0x1018] sm:$0xff]
        %v1199 = vld [vmem:[%s285 + $0x1020] sm:$0xff]
        %v1200 = vld [vmem:[%s285 + $0x1028] sm:$0xff]
        %v1201 = vld [vmem:[%s285 + $0x1030] sm:$0xff]
        %v1202 = vld [vmem:[%s285 + $0x1038] sm:$0xff]
        %v1203 = vld [vmem:[%s285 + $0x1040] sm:$0xff]
        %v1204 = vld [vmem:[%s285 + $0x1048] sm:$0xff]
        %v1205 = vld [vmem:[%s285 + $0x1050] sm:$0xff]
        %v1206 = vld [vmem:[%s285 + $0x1058] sm:$0xff]
        %v1207 = vld [vmem:[%s285 + $0x1060] sm:$0xff]
        %v1208 = vld [vmem:[%s285 + $0x1068] sm:$0xff]
        %v1209 = vld [vmem:[%s285 + $0x1070] sm:$0xff]
        %v1210 = vld [vmem:[%s285 + $0x1078] sm:$0xff]
        %v1211 = vld [vmem:[%s285 + $0x1080] sm:$0xff]
        %v1212 = vld [vmem:[%s285 + $0x1088] sm:$0xff]
        %v1213 = vld [vmem:[%s285 + $0x1090] sm:$0xff]
        %v1214 = vld [vmem:[%s285 + $0x1098] sm:$0xff]
        %v1215 = vld [vmem:[%s285 + $0x10a0] sm:$0xff]
        %v1216 = vld [vmem:[%s285 + $0x10a8] sm:$0xff]
        %v1217 = vld [vmem:[%s285 + $0x10b0] sm:$0xff]
        %v1218 = vld [vmem:[%s285 + $0x10b8] sm:$0xff]
        %v1219 = vld [vmem:[%s285 + $0x10c0] sm:$0xff]
        %v1220 = vld [vmem:[%s285 + $0x10c8] sm:$0xff]
        %v1221 = vld [vmem:[%s285 + $0x10d0] sm:$0xff]
        %v1222 = vld [vmem:[%s285 + $0x10d8] sm:$0xff]
        %v1223 = vld [vmem:[%s285 + $0x10e0] sm:$0xff]
        %v1224 = vld [vmem:[%s285 + $0x10e8] sm:$0xff]
        %v1225 = vld [vmem:[%s285 + $0x10f0] sm:$0xff]
        %v1226 = vld [vmem:[%s285 + $0x10f8] sm:$0xff]
        %v1227 = vld [vmem:[%s285 + $0x1100] sm:$0xff]
        %v1228 = vld [vmem:[%s285 + $0x1108] sm:$0xff]
        %v1229 = vld [vmem:[%s285 + $0x1110] sm:$0xff]
        %v1230 = vld [vmem:[%s285 + $0x1118] sm:$0xff]
        %v1231 = vld [vmem:[%s285 + $0x1120] sm:$0xff]
        %v1232 = vld [vmem:[%s285 + $0x1128] sm:$0xff]
        %v1233 = vld [vmem:[%s285 + $0x1130] sm:$0xff]
        %v1234 = vld [vmem:[%s285 + $0x1138] sm:$0xff]
        %v1235 = vld [vmem:[%s285 + $0x1140] sm:$0xff]
        %v1236 = vld [vmem:[%s285 + $0x1148] sm:$0xff]
        %v1237 = vld [vmem:[%s285 + $0x1150] sm:$0xff]
        %v1238 = vld [vmem:[%s285 + $0x1158] sm:$0xff]
        %v1239 = vld [vmem:[%s285 + $0x1160] sm:$0xff]
        %v1240 = vld [vmem:[%s285 + $0x1168] sm:$0xff]
        %v1241 = vld [vmem:[%s285 + $0x1170] sm:$0xff]
        %v1242 = vld [vmem:[%s285 + $0x1178] sm:$0xff]
        %v1243 = vld [vmem:[%s285 + $0x1180] sm:$0xff]
        %v1244 = vld [vmem:[%s285 + $0x1188] sm:$0xff]
        %v1245 = vld [vmem:[%s285 + $0x1190] sm:$0xff]
        %v1246 = vld [vmem:[%s285 + $0x1198] sm:$0xff]
        %v1247 = vld [vmem:[%s285 + $0x11a0] sm:$0xff]
        %v1248 = vld [vmem:[%s285 + $0x11a8] sm:$0xff]
        %v1249 = vld [vmem:[%s285 + $0x11b0] sm:$0xff]
        %v1250 = vld [vmem:[%s285 + $0x11b8] sm:$0xff]
        %v1251 = vld [vmem:[%s285 + $0x11c0] sm:$0xff]
        %v1252 = vld [vmem:[%s285 + $0x11c8] sm:$0xff]
        %v1253 = vld [vmem:[%s285 + $0x11d0] sm:$0xff]
        %v1254 = vld [vmem:[%s285 + $0x11d8] sm:$0xff]
        %v1255 = vld [vmem:[%s285 + $0x11e0] sm:$0xff]
        %v1256 = vld [vmem:[%s285 + $0x11e8] sm:$0xff]
        %v1257 = vld [vmem:[%s285 + $0x11f0] sm:$0xff]
        %v1258 = vld [vmem:[%s285 + $0x11f8] sm:$0xff]
        %v1259 = vld [vmem:[%s285 + $0x1200] sm:$0xff]
        %v1260 = vld [vmem:[%s285 + $0x1208] sm:$0xff]
        %v1261 = vld [vmem:[%s285 + $0x1210] sm:$0xff]
        %v1262 = vld [vmem:[%s285 + $0x1218] sm:$0xff]
        %v1263 = vld [vmem:[%s285 + $0x1220] sm:$0xff]
        %v1264 = vld [vmem:[%s285 + $0x1228] sm:$0xff]
        %v1265 = vld [vmem:[%s285 + $0x1230] sm:$0xff]
        %v1266 = vld [vmem:[%s285 + $0x1238] sm:$0xff]
        %v1267 = vld [vmem:[%s285 + $0x1240] sm:$0xff]
        %v1268 = vld [vmem:[%s285 + $0x1248] sm:$0xff]
        %v1269 = vld [vmem:[%s285 + $0x1250] sm:$0xff]
        %v1270 = vld [vmem:[%s285 + $0x1258] sm:$0xff]
        %v1271 = vld [vmem:[%s285 + $0x1260] sm:$0xff]
        %v1272 = vld [vmem:[%s285 + $0x1268] sm:$0xff]
        %v1273 = vld [vmem:[%s285 + $0x1270] sm:$0xff]
        %v1274 = vld [vmem:[%s285 + $0x1278] sm:$0xff]
        %v1275 = vld [vmem:[%s285 + $0x1280] sm:$0xff]
        %v1276 = vld [vmem:[%s285 + $0x1288] sm:$0xff]
        %v1277 = vld [vmem:[%s285 + $0x1290] sm:$0xff]
        %v1278 = vld [vmem:[%s285 + $0x1298] sm:$0xff]
        %v1279 = vld [vmem:[%s285 + $0x12a0] sm:$0xff]
        %v1280 = vld [vmem:[%s285 + $0x12a8] sm:$0xff]
        %v1281 = vld [vmem:[%s285 + $0x12b0] sm:$0xff]
        %v1282 = vld [vmem:[%s285 + $0x12b8] sm:$0xff]
        %v1283 = vld [vmem:[%s285 + $0x12c0] sm:$0xff]
        %v1284 = vld [vmem:[%s285 + $0x12c8] sm:$0xff]
        %v1285 = vld [vmem:[%s285 + $0x12d0] sm:$0xff]
        %v1286 = vld [vmem:[%s285 + $0x12d8] sm:$0xff]
        %v1287 = vld [vmem:[%s285 + $0x12e0] sm:$0xff]
        %v1288 = vld [vmem:[%s285 + $0x12e8] sm:$0xff]
        %v1289 = vld [vmem:[%s285 + $0x12f0] sm:$0xff]
        %v1290 = vld [vmem:[%s285 + $0x12f8] sm:$0xff]
        %v1291 = vld [vmem:[%s285 + $0x1300] sm:$0xff]
        %v1292 = vld [vmem:[%s285 + $0x1308] sm:$0xff]
        %v1293 = vld [vmem:[%s285 + $0x1310] sm:$0xff]
        %v1294 = vld [vmem:[%s285 + $0x1318] sm:$0xff]
        %v1295 = vld [vmem:[%s285 + $0x1320] sm:$0xff]
        %v1296 = vld [vmem:[%s285 + $0x1328] sm:$0xff]
        %v1297 = vld [vmem:[%s285 + $0x1330] sm:$0xff]
        %v1298 = vld [vmem:[%s285 + $0x1338] sm:$0xff]
        %v1299 = vld [vmem:[%s285 + $0x1340] sm:$0xff]
        %v1300 = vld [vmem:[%s285 + $0x1348] sm:$0xff]
        %v1301 = vld [vmem:[%s285 + $0x1350] sm:$0xff]
        %v1302 = vld [vmem:[%s285 + $0x1358] sm:$0xff]
        %v1303 = vld [vmem:[%s285 + $0x1360] sm:$0xff]
        %v1304 = vld [vmem:[%s285 + $0x1368] sm:$0xff]
        %v1305 = vld [vmem:[%s285 + $0x1370] sm:$0xff]
        %v1306 = vld [vmem:[%s285 + $0x1378] sm:$0xff]
        %v1307 = vld [vmem:[%s285 + $0x1380] sm:$0xff]
        %v1308 = vld [vmem:[%s285 + $0x1388] sm:$0xff]
        %v1309 = vld [vmem:[%s285 + $0x1390] sm:$0xff]
        %v1310 = vld [vmem:[%s285 + $0x1398] sm:$0xff]
        %v1311 = vld [vmem:[%s285 + $0x13a0] sm:$0xff]
        %v1312 = vld [vmem:[%s285 + $0x13a8] sm:$0xff]
        %v1313 = vld [vmem:[%s285 + $0x13b0] sm:$0xff]
        %v1314 = vld [vmem:[%s285 + $0x13b8] sm:$0xff]
        %v1315 = vld [vmem:[%s285 + $0x13c0] sm:$0xff]
        %v1316 = vld [vmem:[%s285 + $0x13c8] sm:$0xff]
        %v1317 = vld [vmem:[%s285 + $0x13d0] sm:$0xff]
        %v1318 = vld [vmem:[%s285 + $0x13d8] sm:$0xff]
        %v1319 = vld [vmem:[%s285 + $0x13e0] sm:$0xff]
        %v1320 = vld [vmem:[%s285 + $0x13e8] sm:$0xff]
        %v1321 = vld [vmem:[%s285 + $0x13f0] sm:$0xff]
        %v1322 = vld [vmem:[%s285 + $0x13f8] sm:$0xff]
        %v1323 = vld [vmem:[%s285 + $0x1400] sm:$0xff]
        %v1324 = vld [vmem:[%s285 + $0x1408] sm:$0xff]
        %v1325 = vld [vmem:[%s285 + $0x1410] sm:$0xff]
        %v1326 = vld [vmem:[%s285 + $0x1418] sm:$0xff]
        %v1327 = vld [vmem:[%s285 + $0x1420] sm:$0xff]
        %v1328 = vld [vmem:[%s285 + $0x1428] sm:$0xff]
        %v1329 = vld [vmem:[%s285 + $0x1430] sm:$0xff]
        %v1330 = vld [vmem:[%s285 + $0x1438] sm:$0xff]
        %v1331 = vld [vmem:[%s285 + $0x1440] sm:$0xff]
        %v1332 = vld [vmem:[%s285 + $0x1448] sm:$0xff]
        %v1333 = vld [vmem:[%s285 + $0x1450] sm:$0xff]
        %v1334 = vld [vmem:[%s285 + $0x1458] sm:$0xff]
        %v1335 = vld [vmem:[%s285 + $0x1460] sm:$0xff]
        %v1336 = vld [vmem:[%s285 + $0x1468] sm:$0xff]
        %v1337 = vld [vmem:[%s285 + $0x1470] sm:$0xff]
        %v1338 = vld [vmem:[%s285 + $0x1478] sm:$0xff]
        %v1339 = vld [vmem:[%s285 + $0x1480] sm:$0xff]
        %v1340 = vld [vmem:[%s285 + $0x1488] sm:$0xff]
        %v1341 = vld [vmem:[%s285 + $0x1490] sm:$0xff]
        %v1342 = vld [vmem:[%s285 + $0x1498] sm:$0xff]
        %v1343 = vld [vmem:[%s285 + $0x14a0] sm:$0xff]
        %v1344 = vld [vmem:[%s285 + $0x14a8] sm:$0xff]
        %v1345 = vld [vmem:[%s285 + $0x14b0] sm:$0xff]
        %v1346 = vld [vmem:[%s285 + $0x14b8] sm:$0xff]
        %v1347 = vld [vmem:[%s285 + $0x14c0] sm:$0xff]
        %v1348 = vld [vmem:[%s285 + $0x14c8] sm:$0xff]
        %v1349 = vld [vmem:[%s285 + $0x14d0] sm:$0xff]
        %v1350 = vld [vmem:[%s285 + $0x14d8] sm:$0xff]
        %v1351 = vld [vmem:[%s285 + $0x14e0] sm:$0xff]
        %v1352 = vld [vmem:[%s285 + $0x14e8] sm:$0xff]
        %v1353 = vld [vmem:[%s285 + $0x14f0] sm:$0xff]
        %v1354 = vld [vmem:[%s285 + $0x14f8] sm:$0xff]
        %v1355 = vld [vmem:[%s285 + $0x1500] sm:$0xff]
        %v1356 = vld [vmem:[%s285 + $0x1508] sm:$0xff]
        %v1357 = vld [vmem:[%s285 + $0x1510] sm:$0xff]
        %v1358 = vld [vmem:[%s285 + $0x1518] sm:$0xff]
        %v1359 = vld [vmem:[%s285 + $0x1520] sm:$0xff]
        %v1360 = vld [vmem:[%s285 + $0x1528] sm:$0xff]
        %v1361 = vld [vmem:[%s285 + $0x1530] sm:$0xff]
        %v1362 = vld [vmem:[%s285 + $0x1538] sm:$0xff]
        %v1363 = vld [vmem:[%s285 + $0x1540] sm:$0xff]
        %v1364 = vld [vmem:[%s285 + $0x1548] sm:$0xff]
        %v1365 = vld [vmem:[%s285 + $0x1550] sm:$0xff]
        %v1366 = vld [vmem:[%s285 + $0x1558] sm:$0xff]
        %v1367 = vld [vmem:[%s285 + $0x1560] sm:$0xff]
        %v1368 = vld [vmem:[%s285 + $0x1568] sm:$0xff]
        %v1369 = vld [vmem:[%s285 + $0x1570] sm:$0xff]
        %v1370 = vld [vmem:[%s285 + $0x1578] sm:$0xff]
        %v1371 = vld [vmem:[%s285 + $0x1580] sm:$0xff]
        %v1372 = vld [vmem:[%s285 + $0x1588] sm:$0xff]
        %v1373 = vld [vmem:[%s285 + $0x1590] sm:$0xff]
        %v1374 = vld [vmem:[%s285 + $0x1598] sm:$0xff]
        %v1375 = vld [vmem:[%s285 + $0x15a0] sm:$0xff]
        %v1376 = vld [vmem:[%s285 + $0x15a8] sm:$0xff]
        %v1377 = vld [vmem:[%s285 + $0x15b0] sm:$0xff]
        %v1378 = vld [vmem:[%s285 + $0x15b8] sm:$0xff]
        %v1379 = vld [vmem:[%s285 + $0x15c0] sm:$0xff]
        %v1380 = vld [vmem:[%s285 + $0x15c8] sm:$0xff]
        %v1381 = vld [vmem:[%s285 + $0x15d0] sm:$0xff]
        %v1382 = vld [vmem:[%s285 + $0x15d8] sm:$0xff]
        %v1383 = vld [vmem:[%s285 + $0x15e0] sm:$0xff]
        %v1384 = vld [vmem:[%s285 + $0x15e8] sm:$0xff]
        %v1385 = vld [vmem:[%s285 + $0x15f0] sm:$0xff]
        %v1386 = vld [vmem:[%s285 + $0x15f8] sm:$0xff]
        %v1387 = vld [vmem:[%s285 + $0x1600] sm:$0xff]
        %v1388 = vld [vmem:[%s285 + $0x1608] sm:$0xff]
        %v1389 = vld [vmem:[%s285 + $0x1610] sm:$0xff]
        %v1390 = vld [vmem:[%s285 + $0x1618] sm:$0xff]
        %v1391 = vld [vmem:[%s285 + $0x1620] sm:$0xff]
        %v1392 = vld [vmem:[%s285 + $0x1628] sm:$0xff]
        %v1393 = vld [vmem:[%s285 + $0x1630] sm:$0xff]
        %v1394 = vld [vmem:[%s285 + $0x1638] sm:$0xff]
        %v1395 = vld [vmem:[%s285 + $0x1640] sm:$0xff]
        %v1396 = vld [vmem:[%s285 + $0x1648] sm:$0xff]
        %v1397 = vld [vmem:[%s285 + $0x1650] sm:$0xff]
        %v1398 = vld [vmem:[%s285 + $0x1658] sm:$0xff]
        %v1399 = vld [vmem:[%s285 + $0x1660] sm:$0xff]
        %v1400 = vld [vmem:[%s285 + $0x1668] sm:$0xff]
        %v1401 = vld [vmem:[%s285 + $0x1670] sm:$0xff]
        %v1402 = vld [vmem:[%s285 + $0x1678] sm:$0xff]
        %v1403 = vld [vmem:[%s285 + $0x1680] sm:$0xff]
        %v1404 = vld [vmem:[%s285 + $0x1688] sm:$0xff]
        %v1405 = vld [vmem:[%s285 + $0x1690] sm:$0xff]
        %v1406 = vld [vmem:[%s285 + $0x1698] sm:$0xff]
        %v1407 = vld [vmem:[%s285 + $0x16a0] sm:$0xff]
        %v1408 = vld [vmem:[%s285 + $0x16a8] sm:$0xff]
        %v1409 = vld [vmem:[%s285 + $0x16b0] sm:$0xff]
        %v1410 = vld [vmem:[%s285 + $0x16b8] sm:$0xff]
        %v1411 = vld [vmem:[%s285 + $0x16c0] sm:$0xff]
        %v1412 = vld [vmem:[%s285 + $0x16c8] sm:$0xff]
        %v1413 = vld [vmem:[%s285 + $0x16d0] sm:$0xff]
        %v1414 = vld [vmem:[%s285 + $0x16d8] sm:$0xff]
        %v1415 = vld [vmem:[%s285 + $0x16e0] sm:$0xff]
        %v1416 = vld [vmem:[%s285 + $0x16e8] sm:$0xff]
        %v1417 = vld [vmem:[%s285 + $0x16f0] sm:$0xff]
        %v1418 = vld [vmem:[%s285 + $0x16f8] sm:$0xff]
        %v1419 = vld [vmem:[%s285 + $0x1700] sm:$0xff]
        %v1420 = vld [vmem:[%s285 + $0x1708] sm:$0xff]
        %v1421 = vld [vmem:[%s285 + $0x1710] sm:$0xff]
        %v1422 = vld [vmem:[%s285 + $0x1718] sm:$0xff]
        %v1423 = vld [vmem:[%s285 + $0x1720] sm:$0xff]
        %v1424 = vld [vmem:[%s285 + $0x1728] sm:$0xff]
        %v1425 = vld [vmem:[%s285 + $0x1730] sm:$0xff]
        %v1426 = vld [vmem:[%s285 + $0x1738] sm:$0xff]
        %v1427 = vld [vmem:[%s285 + $0x1740] sm:$0xff]
        %v1428 = vld [vmem:[%s285 + $0x1748] sm:$0xff]
        %v1429 = vld [vmem:[%s285 + $0x1750] sm:$0xff]
        %v1430 = vld [vmem:[%s285 + $0x1758] sm:$0xff]
        %v1431 = vld [vmem:[%s285 + $0x1760] sm:$0xff]
        %v1432 = vld [vmem:[%s285 + $0x1768] sm:$0xff]
        %v1433 = vld [vmem:[%s285 + $0x1770] sm:$0xff]
        %v1434 = vld [vmem:[%s285 + $0x1778] sm:$0xff]
        %v1435 = vld [vmem:[%s285 + $0x1780] sm:$0xff]
        %v1436 = vld [vmem:[%s285 + $0x1788] sm:$0xff]
        %v1437 = vld [vmem:[%s285 + $0x1790] sm:$0xff]
        %v1438 = vld [vmem:[%s285 + $0x1798] sm:$0xff]
        %v1439 = vld [vmem:[%s285 + $0x17a0] sm:$0xff]
        %v1440 = vld [vmem:[%s285 + $0x17a8] sm:$0xff]
        %v1441 = vld [vmem:[%s285 + $0x17b0] sm:$0xff]
        %v1442 = vld [vmem:[%s285 + $0x17b8] sm:$0xff]
        %v1443 = vld [vmem:[%s285 + $0x17c0] sm:$0xff]
        %v1444 = vld [vmem:[%s285 + $0x17c8] sm:$0xff]
        %v1445 = vld [vmem:[%s285 + $0x17d0] sm:$0xff]
        %v1446 = vld [vmem:[%s285 + $0x17d8] sm:$0xff]
        %v1447 = vld [vmem:[%s285 + $0x17e0] sm:$0xff]
        %v1448 = vld [vmem:[%s285 + $0x17e8] sm:$0xff]
        %v1449 = vld [vmem:[%s285 + $0x17f0] sm:$0xff]
        %v1450 = vld [vmem:[%s285 + $0x17f8] sm:$0xff]
        %1451 = vmatprep.subr.mxu0 %v684
        %1452 = vmatpush1.msra.mxu0 %v683
        %1453 = vmatprep.subr.mxu0 %v690
        %1454 = vmatpush1.msra.mxu0 %v689
        %1455 = vmatprep.subr.mxu0 %v696
        %1456 = vmatpush1.msra.mxu0 %v695
        %1457 = vmatprep.subr.mxu0 %v702
        %1458 = vmatpush1.msra.mxu0 %v701
        %1459 = vmatprep.subr.mxu0 %v708
        %1460 = vmatpush1.msra.mxu0 %v707
        %1461 = vmatprep.subr.mxu0 %v714
        %1462 = vmatpush1.msra.mxu0 %v713
        %1463 = vmatprep.subr.mxu0 %v720
        %1464 = vmatpush1.msra.mxu0 %v719
        %1465 = vmatprep.subr.mxu0 %v726
        %1466 = vmatpush1.msra.mxu0 %v725
        %1467 = vmatprep.subr.mxu0 %v732
        %1468 = vmatpush1.msra.mxu0 %v731
        %1469 = vmatprep.subr.mxu0 %v738
        %1470 = vmatpush1.msra.mxu0 %v737
        %1471 = vmatprep.subr.mxu0 %v744
        %1472 = vmatpush1.msra.mxu0 %v743
        %1473 = vmatprep.subr.mxu0 %v750
        %1474 = vmatpush1.msra.mxu0 %v749
        %1475 = vmatprep.subr.mxu0 %v756
        %1476 = vmatpush1.msra.mxu0 %v755
        %1477 = vmatprep.subr.mxu0 %v762
        %1478 = vmatpush1.msra.mxu0 %v761
        %1479 = vmatprep.subr.mxu0 %v768
        %1480 = vmatpush1.msra.mxu0 %v767
        %1481 = vmatprep.subr.mxu0 %v774
        %1482 = vmatpush1.msra.mxu0 %v773
        %1483 = vmatprep.subr.mxu0 %v780
        %1484 = vmatpush1.msra.mxu0 %v779
        %1485 = vmatprep.subr.mxu0 %v786
        %1486 = vmatpush1.msra.mxu0 %v785
        %1487 = vmatprep.subr.mxu0 %v792
        %1488 = vmatpush1.msra.mxu0 %v791
        %1489 = vmatprep.subr.mxu0 %v798
        %1490 = vmatpush1.msra.mxu0 %v797
        %1491 = vmatprep.subr.mxu0 %v804
        %1492 = vmatpush1.msra.mxu0 %v803
        %1493 = vmatprep.subr.mxu0 %v810
        %1494 = vmatpush1.msra.mxu0 %v809
        %1495 = vmatprep.subr.mxu0 %v816
        %1496 = vmatpush1.msra.mxu0 %v815
        %1497 = vmatprep.subr.mxu0 %v822
        %1498 = vmatpush1.msra.mxu0 %v821
        %1499 = vmatprep.subr.mxu0 %v828
        %1500 = vmatpush1.msra.mxu0 %v827
        %1501 = vmatprep.subr.mxu0 %v834
        %1502 = vmatpush1.msra.mxu0 %v833
        %1503 = vmatprep.subr.mxu0 %v840
        %1504 = vmatpush1.msra.mxu0 %v839
        %1505 = vmatprep.subr.mxu0 %v846
        %1506 = vmatpush1.msra.mxu0 %v845
        %1507 = vmatprep.subr.mxu0 %v852
        %1508 = vmatpush1.msra.mxu0 %v851
        %1509 = vmatprep.subr.mxu0 %v858
        %1510 = vmatpush1.msra.mxu0 %v857
        %1511 = vmatprep.subr.mxu0 %v864
        %1512 = vmatpush1.msra.mxu0 %v863
        %1513 = vmatprep.subr.mxu0 %v870
        %1514 = vmatpush1.msra.mxu0 %v869
        %1515 = vmatprep.mubr.f32.mxu0 %v652
        %1516 = vmatmul.mubr.f32.gmra.mrb[0].mxu0 %v651
        %v1517 = vpop.f32.mrb[0].mxu0
        %v1518 = vadd.f32 0.0, %v1517
        %v1519 = vpop.f32.mrb[0].mxu0
        %v1520 = vadd.f32 0.0, %v1519
        %1521 = vmatprep.mubr.f32.mxu0 %v660
        %1522 = vmatmul.mubr.f32.gmra.mrb[0].mxu0 %v659
        %v1523 = vpop.f32.mrb[0].mxu0
        %v1524 = vadd.f32 0.0, %v1523
        %v1525 = vpop.f32.mrb[0].mxu0
        %v1526 = vadd.f32 0.0, %v1525
        %1527 = vmatprep.mubr.f32.mxu0 %v668
        %1528 = vmatmul.mubr.f32.gmra.mrb[0].mxu0 %v667
        %v1529 = vpop.f32.mrb[0].mxu0
        %v1530 = vadd.f32 0.0, %v1529
        %v1531 = vpop.f32.mrb[0].mxu0
        %v1532 = vadd.f32 0.0, %v1531
        %1533 = vmatprep.mubr.f32.mxu0 %v676
        %1534 = vmatmul.mubr.f32.gmra.mrb[0].mxu0 %v675
        %v1535 = vpop.f32.mrb[0].mxu0
        %v1536 = vadd.f32 0.0, %v1535
        %v1537 = vpop.f32.mrb[0].mxu0
        %v1538 = vadd.f32 0.0, %v1537
        %1539 = vdwg.mxu0
        %1540 = vmatprep.subr.mxu0 %v876
        %1541 = vmatpush1.msra.mxu0 %v875
        %1542 = vmatprep.subr.mxu0 %v882
        %1543 = vmatpush1.msra.mxu0 %v881
        %1544 = vmatprep.subr.mxu0 %v888
        %1545 = vmatpush1.msra.mxu0 %v887
        %1546 = vmatprep.subr.mxu0 %v894
        %1547 = vmatpush1.msra.mxu0 %v893
        %1548 = vmatprep.subr.mxu0 %v900
        %1549 = vmatpush1.msra.mxu0 %v899
        %1550 = vmatprep.subr.mxu0 %v906
        %1551 = vmatpush1.msra.mxu0 %v905
        %1552 = vmatprep.subr.mxu0 %v912
        %1553 = vmatpush1.msra.mxu0 %v911
        %1554 = vmatprep.subr.mxu0 %v918
        %1555 = vmatpush1.msra.mxu0 %v917
        %1556 = vmatprep.subr.mxu0 %v924
        %1557 = vmatpush1.msra.mxu0 %v923
        %1558 = vmatprep.subr.mxu0 %v930
        %1559 = vmatpush1.msra.mxu0 %v929
        %1560 = vmatprep.subr.mxu0 %v936
        %1561 = vmatpush1.msra.mxu0 %v935
        %1562 = vmatprep.subr.mxu0 %v942
        %1563 = vmatpush1.msra.mxu0 %v941
        %1564 = vmatprep.subr.mxu0 %v948
        %1565 = vmatpush1.msra.mxu0 %v947
        %1566 = vmatprep.subr.mxu0 %v954
        %1567 = vmatpush1.msra.mxu0 %v953
        %1568 = vmatprep.subr.mxu0 %v960
        %1569 = vmatpush1.msra.mxu0 %v959
        %1570 = vmatprep.subr.mxu0 %v966
        %1571 = vmatpush1.msra.mxu0 %v965
        %1572 = vmatprep.subr.mxu0 %v972
        %1573 = vmatpush1.msra.mxu0 %v971
        %1574 = vmatprep.subr.mxu0 %v978
        %1575 = vmatpush1.msra.mxu0 %v977
        %1576 = vmatprep.subr.mxu0 %v984
        %1577 = vmatpush1.msra.mxu0 %v983
        %1578 = vmatprep.subr.mxu0 %v990
        %1579 = vmatpush1.msra.mxu0 %v989
        %1580 = vmatprep.subr.mxu0 %v996
        %1581 = vmatpush1.msra.mxu0 %v995
        %1582 = vmatprep.subr.mxu0 %v1002
        %1583 = vmatpush1.msra.mxu0 %v1001
        %1584 = vmatprep.subr.mxu0 %v1008
        %1585 = vmatpush1.msra.mxu0 %v1007
        %1586 = vmatprep.subr.mxu0 %v1014
        %1587 = vmatpush1.msra.mxu0 %v1013
        %1588 = vmatprep.subr.mxu0 %v1020
        %1589 = vmatpush1.msra.mxu0 %v1019
        %1590 = vmatprep.subr.mxu0 %v1026
        %1591 = vmatpush1.msra.mxu0 %v1025
        %1592 = vmatprep.subr.mxu0 %v1032
        %1593 = vmatpush1.msra.mxu0 %v1031
        %1594 = vmatprep.subr.mxu0 %v1038
        %1595 = vmatpush1.msra.mxu0 %v1037
        %1596 = vmatprep.subr.mxu0 %v1044
        %1597 = vmatpush1.msra.mxu0 %v1043
        %1598 = vmatprep.subr.mxu0 %v1050
        %1599 = vmatpush1.msra.mxu0 %v1049
        %1600 = vmatprep.subr.mxu0 %v1056
        %1601 = vmatpush1.msra.mxu0 %v1055
        %1602 = vmatprep.subr.mxu0 %v1062
        %1603 = vmatpush1.msra.mxu0 %v1061
        %1604 = vmatprep.mubr.f32.mxu0 %v654
        %1605 = vmatmul.mubr.f32.gmra.mrb[0].mxu0 %v653
        %v1606 = vpop.f32.mrb[0].mxu0
        %v1607 = vadd.f32 %v1518, %v1606
        %v1608 = vpop.f32.mrb[0].mxu0
        %v1609 = vadd.f32 %v1520, %v1608
        %1610 = vmatprep.mubr.f32.mxu0 %v662
        %1611 = vmatmul.mubr.f32.gmra.mrb[0].mxu0 %v661
        %v1612 = vpop.f32.mrb[0].mxu0
        %v1613 = vadd.f32 %v1524, %v1612
        %v1614 = vpop.f32.mrb[0].mxu0
        %v1615 = vadd.f32 %v1526, %v1614
        %1616 = vmatprep.mubr.f32.mxu0 %v670
        %1617 = vmatmul.mubr.f32.gmra.mrb[0].mxu0 %v669
        %v1618 = vpop.f32.mrb[0].mxu0
        %v1619 = vadd.f32 %v1530, %v1618
        %v1620 = vpop.f32.mrb[0].mxu0
        %v1621 = vadd.f32 %v1532, %v1620
        %1622 = vmatprep.mubr.f32.mxu0 %v678
        %1623 = vmatmul.mubr.f32.gmra.mrb[0].mxu0 %v677
        %v1624 = vpop.f32.mrb[0].mxu0
        %v1625 = vadd.f32 %v1536, %v1624
        %v1626 = vpop.f32.mrb[0].mxu0
        %v1627 = vadd.f32 %v1538, %v1626
        %1628 = vdwg.mxu0
        %1629 = vmatprep.subr.mxu0 %v1068
        %1630 = vmatpush1.msra.mxu0 %v1067
        %1631 = vmatprep.subr.mxu0 %v1074
        %1632 = vmatpush1.msra.mxu0 %v1073
        %1633 = vmatprep.subr.mxu0 %v1080
        %1634 = vmatpush1.msra.mxu0 %v1079
        %1635 = vmatprep.subr.mxu0 %v1086
        %1636 = vmatpush1.msra.mxu0 %v1085
        %1637 = vmatprep.subr.mxu0 %v1092
        %1638 = vmatpush1.msra.mxu0 %v1091
        %1639 = vmatprep.subr.mxu0 %v1098
        %1640 = vmatpush1.msra.mxu0 %v1097
        %1641 = vmatprep.subr.mxu0 %v1104
        %1642 = vmatpush1.msra.mxu0 %v1103
        %1643 = vmatprep.subr.mxu0 %v1110
        %1644 = vmatpush1.msra.mxu0 %v1109
        %1645 = vmatprep.subr.mxu0 %v1116
        %1646 = vmatpush1.msra.mxu0 %v1115
        %1647 = vmatprep.subr.mxu0 %v1122
        %1648 = vmatpush1.msra.mxu0 %v1121
        %1649 = vmatprep.subr.mxu0 %v1128
        %1650 = vmatpush1.msra.mxu0 %v1127
        %1651 = vmatprep.subr.mxu0 %v1134
        %1652 = vmatpush1.msra.mxu0 %v1133
        %1653 = vmatprep.subr.mxu0 %v1140
        %1654 = vmatpush1.msra.mxu0 %v1139
        %1655 = vmatprep.subr.mxu0 %v1146
        %1656 = vmatpush1.msra.mxu0 %v1145
        %1657 = vmatprep.subr.mxu0 %v1152
        %1658 = vmatpush1.msra.mxu0 %v1151
        %1659 = vmatprep.subr.mxu0 %v1158
        %1660 = vmatpush1.msra.mxu0 %v1157
        %1661 = vmatprep.subr.mxu0 %v1164
        %1662 = vmatpush1.msra.mxu0 %v1163
        %1663 = vmatprep.subr.mxu0 %v1170
        %1664 = vmatpush1.msra.mxu0 %v1169
        %1665 = vmatprep.subr.mxu0 %v1176
        %1666 = vmatpush1.msra.mxu0 %v1175
        %1667 = vmatprep.subr.mxu0 %v1182
        %1668 = vmatpush1.msra.mxu0 %v1181
        %1669 = vmatprep.subr.mxu0 %v1188
        %1670 = vmatpush1.msra.mxu0 %v1187
        %1671 = vmatprep.subr.mxu0 %v1194
        %1672 = vmatpush1.msra.mxu0 %v1193
        %1673 = vmatprep.subr.mxu0 %v1200
        %1674 = vmatpush1.msra.mxu0 %v1199
        %1675 = vmatprep.subr.mxu0 %v1206
        %1676 = vmatpush1.msra.mxu0 %v1205
        %1677 = vmatprep.subr.mxu0 %v1212
        %1678 = vmatpush1.msra.mxu0 %v1211
        %1679 = vmatprep.subr.mxu0 %v1218
        %1680 = vmatpush1.msra.mxu0 %v1217
        %1681 = vmatprep.subr.mxu0 %v1224
        %1682 = vmatpush1.msra.mxu0 %v1223
        %1683 = vmatprep.subr.mxu0 %v1230
        %1684 = vmatpush1.msra.mxu0 %v1229
        %1685 = vmatprep.subr.mxu0 %v1236
        %1686 = vmatpush1.msra.mxu0 %v1235
        %1687 = vmatprep.subr.mxu0 %v1242
        %1688 = vmatpush1.msra.mxu0 %v1241
        %1689 = vmatprep.subr.mxu0 %v1248
        %1690 = vmatpush1.msra.mxu0 %v1247
        %1691 = vmatprep.subr.mxu0 %v1254
        %1692 = vmatpush1.msra.mxu0 %v1253
        %1693 = vmatprep.mubr.f32.mxu0 %v656
        %1694 = vmatmul.mubr.f32.gmra.mrb[0].mxu0 %v655
        %v1695 = vpop.f32.mrb[0].mxu0
        %v1696 = vadd.f32 %v1607, %v1695
        %v1697 = vpop.f32.mrb[0].mxu0
        %v1698 = vadd.f32 %v1609, %v1697
        %1699 = vmatprep.mubr.f32.mxu0 %v664
        %1700 = vmatmul.mubr.f32.gmra.mrb[0].mxu0 %v663
        %v1701 = vpop.f32.mrb[0].mxu0
        %v1702 = vadd.f32 %v1613, %v1701
        %v1703 = vpop.f32.mrb[0].mxu0
        %v1704 = vadd.f32 %v1615, %v1703
        %1705 = vmatprep.mubr.f32.mxu0 %v672
        %1706 = vmatmul.mubr.f32.gmra.mrb[0].mxu0 %v671
        %v1707 = vpop.f32.mrb[0].mxu0
        %v1708 = vadd.f32 %v1619, %v1707
        %v1709 = vpop.f32.mrb[0].mxu0
        %v1710 = vadd.f32 %v1621, %v1709
        %1711 = vmatprep.mubr.f32.mxu0 %v680
        %1712 = vmatmul.mubr.f32.gmra.mrb[0].mxu0 %v679
        %v1713 = vpop.f32.mrb[0].mxu0
        %v1714 = vadd.f32 %v1625, %v1713
        %v1715 = vpop.f32.mrb[0].mxu0
        %v1716 = vadd.f32 %v1627, %v1715
        %1717 = vdwg.mxu0
        %1718 = vmatprep.subr.mxu0 %v1260
        %1719 = vmatpush1.msra.mxu0 %v1259
        %1720 = vmatprep.subr.mxu0 %v1266
        %1721 = vmatpush1.msra.mxu0 %v1265
        %1722 = vmatprep.subr.mxu0 %v1272
        %1723 = vmatpush1.msra.mxu0 %v1271
        %1724 = vmatprep.subr.mxu0 %v1278
        %1725 = vmatpush1.msra.mxu0 %v1277
        %1726 = vmatprep.subr.mxu0 %v1284
        %1727 = vmatpush1.msra.mxu0 %v1283
        %1728 = vmatprep.subr.mxu0 %v1290
        %1729 = vmatpush1.msra.mxu0 %v1289
        %1730 = vmatprep.subr.mxu0 %v1296
        %1731 = vmatpush1.msra.mxu0 %v1295
        %1732 = vmatprep.subr.mxu0 %v1302
        %1733 = vmatpush1.msra.mxu0 %v1301
        %1734 = vmatprep.subr.mxu0 %v1308
        %1735 = vmatpush1.msra.mxu0 %v1307
        %1736 = vmatprep.subr.mxu0 %v1314
        %1737 = vmatpush1.msra.mxu0 %v1313
        %1738 = vmatprep.subr.mxu0 %v1320
        %1739 = vmatpush1.msra.mxu0 %v1319
        %1740 = vmatprep.subr.mxu0 %v1326
        %1741 = vmatpush1.msra.mxu0 %v1325
        %1742 = vmatprep.subr.mxu0 %v1332
        %1743 = vmatpush1.msra.mxu0 %v1331
        %1744 = vmatprep.subr.mxu0 %v1338
        %1745 = vmatpush1.msra.mxu0 %v1337
        %1746 = vmatprep.subr.mxu0 %v1344
        %1747 = vmatpush1.msra.mxu0 %v1343
        %1748 = vmatprep.subr.mxu0 %v1350
        %1749 = vmatpush1.msra.mxu0 %v1349
        %1750 = vmatprep.subr.mxu0 %v1356
        %1751 = vmatpush1.msra.mxu0 %v1355
        %1752 = vmatprep.subr.mxu0 %v1362
        %1753 = vmatpush1.msra.mxu0 %v1361
        %1754 = vmatprep.subr.mxu0 %v1368
        %1755 = vmatpush1.msra.mxu0 %v1367
        %1756 = vmatprep.subr.mxu0 %v1374
        %1757 = vmatpush1.msra.mxu0 %v1373
        %1758 = vmatprep.subr.mxu0 %v1380
        %1759 = vmatpush1.msra.mxu0 %v1379
        %1760 = vmatprep.subr.mxu0 %v1386
        %1761 = vmatpush1.msra.mxu0 %v1385
        %1762 = vmatprep.subr.mxu0 %v1392
        %1763 = vmatpush1.msra.mxu0 %v1391
        %1764 = vmatprep.subr.mxu0 %v1398
        %1765 = vmatpush1.msra.mxu0 %v1397
        %1766 = vmatprep.subr.mxu0 %v1404
        %1767 = vmatpush1.msra.mxu0 %v1403
        %1768 = vmatprep.subr.mxu0 %v1410
        %1769 = vmatpush1.msra.mxu0 %v1409
        %1770 = vmatprep.subr.mxu0 %v1416
        %1771 = vmatpush1.msra.mxu0 %v1415
        %1772 = vmatprep.subr.mxu0 %v1422
        %1773 = vmatpush1.msra.mxu0 %v1421
        %1774 = vmatprep.subr.mxu0 %v1428
        %1775 = vmatpush1.msra.mxu0 %v1427
        %1776 = vmatprep.subr.mxu0 %v1434
        %1777 = vmatpush1.msra.mxu0 %v1433
        %1778 = vmatprep.subr.mxu0 %v1440
        %1779 = vmatpush1.msra.mxu0 %v1439
        %1780 = vmatprep.subr.mxu0 %v1446
        %1781 = vmatpush1.msra.mxu0 %v1445
        %1782 = vmatprep.mubr.f32.mxu0 %v658
        %1783 = vmatmul.mubr.f32.gmra.mrb[0].mxu0 %v657
        %v1784 = vpop.f32.mrb[0].mxu0
        %v1785 = vadd.f32 %v1696, %v1784
        %v1786 = vpop.f32.mrb[0].mxu0
        %v1787 = vadd.f32 %v1698, %v1786
        %1788 = vmatprep.mubr.f32.mxu0 %v666
        %1789 = vmatmul.mubr.f32.gmra.mrb[0].mxu0 %v665
        %v1790 = vpop.f32.mrb[0].mxu0
        %v1791 = vadd.f32 %v1702, %v1790
        %v1792 = vpop.f32.mrb[0].mxu0
        %v1793 = vadd.f32 %v1704, %v1792
        %1794 = vmatprep.mubr.f32.mxu0 %v674
        %1795 = vmatmul.mubr.f32.gmra.mrb[0].mxu0 %v673
        %v1796 = vpop.f32.mrb[0].mxu0
        %v1797 = vadd.f32 %v1708, %v1796
        %v1798 = vpop.f32.mrb[0].mxu0
        %v1799 = vadd.f32 %v1710, %v1798
        %1800 = vmatprep.mubr.f32.mxu0 %v682
        %1801 = vmatmul.mubr.f32.gmra.mrb[0].mxu0 %v681
        %v1802 = vpop.f32.mrb[0].mxu0
        %v1803 = vadd.f32 %v1714, %v1802
        %v1804 = vpop.f32.mrb[0].mxu0
        %v1805 = vadd.f32 %v1716, %v1804
        %1806 = vdwg.mxu0
        %1807 = vmatprep.subr.mxu0 %v686
        %1808 = vmatpush1.msra.mxu0 %v685
        %1809 = vmatprep.subr.mxu0 %v692
        %1810 = vmatpush1.msra.mxu0 %v691
        %1811 = vmatprep.subr.mxu0 %v698
        %1812 = vmatpush1.msra.mxu0 %v697
        %1813 = vmatprep.subr.mxu0 %v704
        %1814 = vmatpush1.msra.mxu0 %v703
        %1815 = vmatprep.subr.mxu0 %v710
        %1816 = vmatpush1.msra.mxu0 %v709
        %1817 = vmatprep.subr.mxu0 %v716
        %1818 = vmatpush1.msra.mxu0 %v715
        %1819 = vmatprep.subr.mxu0 %v722
        %1820 = vmatpush1.msra.mxu0 %v721
        %1821 = vmatprep.subr.mxu0 %v728
        %1822 = vmatpush1.msra.mxu0 %v727
        %1823 = vmatprep.subr.mxu0 %v734
        %1824 = vmatpush1.msra.mxu0 %v733
        %1825 = vmatprep.subr.mxu0 %v740
        %1826 = vmatpush1.msra.mxu0 %v739
        %1827 = vmatprep.subr.mxu0 %v746
        %1828 = vmatpush1.msra.mxu0 %v745
        %1829 = vmatprep.subr.mxu0 %v752
        %1830 = vmatpush1.msra.mxu0 %v751
        %1831 = vmatprep.subr.mxu0 %v758
        %1832 = vmatpush1.msra.mxu0 %v757
        %1833 = vmatprep.subr.mxu0 %v764
        %1834 = vmatpush1.msra.mxu0 %v763
        %1835 = vmatprep.subr.mxu0 %v770
        %1836 = vmatpush1.msra.mxu0 %v769
        %1837 = vmatprep.subr.mxu0 %v776
        %1838 = vmatpush1.msra.mxu0 %v775
        %1839 = vmatprep.subr.mxu0 %v782
        %1840 = vmatpush1.msra.mxu0 %v781
        %1841 = vmatprep.subr.mxu0 %v788
        %1842 = vmatpush1.msra.mxu0 %v787
        %1843 = vmatprep.subr.mxu0 %v794
        %1844 = vmatpush1.msra.mxu0 %v793
        %1845 = vmatprep.subr.mxu0 %v800
        %1846 = vmatpush1.msra.mxu0 %v799
        %1847 = vmatprep.subr.mxu0 %v806
        %1848 = vmatpush1.msra.mxu0 %v805
        %1849 = vmatprep.subr.mxu0 %v812
        %1850 = vmatpush1.msra.mxu0 %v811
        %1851 = vmatprep.subr.mxu0 %v818
        %1852 = vmatpush1.msra.mxu0 %v817
        %1853 = vmatprep.subr.mxu0 %v824
        %1854 = vmatpush1.msra.mxu0 %v823
        %1855 = vmatprep.subr.mxu0 %v830
        %1856 = vmatpush1.msra.mxu0 %v829
        %1857 = vmatprep.subr.mxu0 %v836
        %1858 = vmatpush1.msra.mxu0 %v835
        %1859 = vmatprep.subr.mxu0 %v842
        %1860 = vmatpush1.msra.mxu0 %v841
        %1861 = vmatprep.subr.mxu0 %v848
        %1862 = vmatpush1.msra.mxu0 %v847
        %1863 = vmatprep.subr.mxu0 %v854
        %1864 = vmatpush1.msra.mxu0 %v853
        %1865 = vmatprep.subr.mxu0 %v860
        %1866 = vmatpush1.msra.mxu0 %v859
        %1867 = vmatprep.subr.mxu0 %v866
        %1868 = vmatpush1.msra.mxu0 %v865
        %1869 = vmatprep.subr.mxu0 %v872
        %1870 = vmatpush1.msra.mxu0 %v871
        %1871 = vmatprep.mubr.f32.mxu0 %v652
        %1872 = vmatmul.mubr.f32.gmra.mrb[0].mxu0 %v651
        %v1873 = vpop.f32.mrb[0].mxu0
        %v1874 = vadd.f32 0.0, %v1873
        %v1875 = vpop.f32.mrb[0].mxu0
        %v1876 = vadd.f32 0.0, %v1875
        %1877 = vmatprep.mubr.f32.mxu0 %v660
        %1878 = vmatmul.mubr.f32.gmra.mrb[0].mxu0 %v659
        %v1879 = vpop.f32.mrb[0].mxu0
        %v1880 = vadd.f32 0.0, %v1879
        %v1881 = vpop.f32.mrb[0].mxu0
        %v1882 = vadd.f32 0.0, %v1881
        %1883 = vmatprep.mubr.f32.mxu0 %v668
        %1884 = vmatmul.mubr.f32.gmra.mrb[0].mxu0 %v667
        %v1885 = vpop.f32.mrb[0].mxu0
        %v1886 = vadd.f32 0.0, %v1885
        %v1887 = vpop.f32.mrb[0].mxu0
        %v1888 = vadd.f32 0.0, %v1887
        %1889 = vmatprep.mubr.f32.mxu0 %v676
        %1890 = vmatmul.mubr.f32.gmra.mrb[0].mxu0 %v675
        %v1891 = vpop.f32.mrb[0].mxu0
        %v1892 = vadd.f32 0.0, %v1891
        %v1893 = vpop.f32.mrb[0].mxu0
        %v1894 = vadd.f32 0.0, %v1893
        %1895 = vdwg.mxu0
        %1896 = vmatprep.subr.mxu0 %v878
        %1897 = vmatpush1.msra.mxu0 %v877
        %1898 = vmatprep.subr.mxu0 %v884
        %1899 = vmatpush1.msra.mxu0 %v883
        %1900 = vmatprep.subr.mxu0 %v890
        %1901 = vmatpush1.msra.mxu0 %v889
        %1902 = vmatprep.subr.mxu0 %v896
        %1903 = vmatpush1.msra.mxu0 %v895
        %1904 = vmatprep.subr.mxu0 %v902
        %1905 = vmatpush1.msra.mxu0 %v901
        %1906 = vmatprep.subr.mxu0 %v908
        %1907 = vmatpush1.msra.mxu0 %v907
        %1908 = vmatprep.subr.mxu0 %v914
        %1909 = vmatpush1.msra.mxu0 %v913
        %1910 = vmatprep.subr.mxu0 %v920
        %1911 = vmatpush1.msra.mxu0 %v919
        %1912 = vmatprep.subr.mxu0 %v926
        %1913 = vmatpush1.msra.mxu0 %v925
        %1914 = vmatprep.subr.mxu0 %v932
        %1915 = vmatpush1.msra.mxu0 %v931
        %1916 = vmatprep.subr.mxu0 %v938
        %1917 = vmatpush1.msra.mxu0 %v937
        %1918 = vmatprep.subr.mxu0 %v944
        %1919 = vmatpush1.msra.mxu0 %v943
        %1920 = vmatprep.subr.mxu0 %v950
        %1921 = vmatpush1.msra.mxu0 %v949
        %1922 = vmatprep.subr.mxu0 %v956
        %1923 = vmatpush1.msra.mxu0 %v955
        %1924 = vmatprep.subr.mxu0 %v962
        %1925 = vmatpush1.msra.mxu0 %v961
        %1926 = vmatprep.subr.mxu0 %v968
        %1927 = vmatpush1.msra.mxu0 %v967
        %1928 = vmatprep.subr.mxu0 %v974
        %1929 = vmatpush1.msra.mxu0 %v973
        %1930 = vmatprep.subr.mxu0 %v980
        %1931 = vmatpush1.msra.mxu0 %v979
        %1932 = vmatprep.subr.mxu0 %v986
        %1933 = vmatpush1.msra.mxu0 %v985
        %1934 = vmatprep.subr.mxu0 %v992
        %1935 = vmatpush1.msra.mxu0 %v991
        %1936 = vmatprep.subr.mxu0 %v998
        %1937 = vmatpush1.msra.mxu0 %v997
        %1938 = vmatprep.subr.mxu0 %v1004
        %1939 = vmatpush1.msra.mxu0 %v1003
        %1940 = vmatprep.subr.mxu0 %v1010
        %1941 = vmatpush1.msra.mxu0 %v1009
        %1942 = vmatprep.subr.mxu0 %v1016
        %1943 = vmatpush1.msra.mxu0 %v1015
        %1944 = vmatprep.subr.mxu0 %v1022
        %1945 = vmatpush1.msra.mxu0 %v1021
        %1946 = vmatprep.subr.mxu0 %v1028
        %1947 = vmatpush1.msra.mxu0 %v1027
        %1948 = vmatprep.subr.mxu0 %v1034
        %1949 = vmatpush1.msra.mxu0 %v1033
        %1950 = vmatprep.subr.mxu0 %v1040
        %1951 = vmatpush1.msra.mxu0 %v1039
        %1952 = vmatprep.subr.mxu0 %v1046
        %1953 = vmatpush1.msra.mxu0 %v1045
        %1954 = vmatprep.subr.mxu0 %v1052
        %1955 = vmatpush1.msra.mxu0 %v1051
        %1956 = vmatprep.subr.mxu0 %v1058
        %1957 = vmatpush1.msra.mxu0 %v1057
        %1958 = vmatprep.subr.mxu0 %v1064
        %1959 = vmatpush1.msra.mxu0 %v1063
        %1960 = vmatprep.mubr.f32.mxu0 %v654
        %1961 = vmatmul.mubr.f32.gmra.mrb[0].mxu0 %v653
        %v1962 = vpop.f32.mrb[0].mxu0
        %v1963 = vadd.f32 %v1874, %v1962
        %v1964 = vpop.f32.mrb[0].mxu0
        %v1965 = vadd.f32 %v1876, %v1964
        %1966 = vmatprep.mubr.f32.mxu0 %v662
        %1967 = vmatmul.mubr.f32.gmra.mrb[0].mxu0 %v661
        %v1968 = vpop.f32.mrb[0].mxu0
        %v1969 = vadd.f32 %v1880, %v1968
        %v1970 = vpop.f32.mrb[0].mxu0
        %v1971 = vadd.f32 %v1882, %v1970
        %1972 = vmatprep.mubr.f32.mxu0 %v670
        %1973 = vmatmul.mubr.f32.gmra.mrb[0].mxu0 %v669
        %v1974 = vpop.f32.mrb[0].mxu0
        %v1975 = vadd.f32 %v1886, %v1974
        %v1976 = vpop.f32.mrb[0].mxu0
        %v1977 = vadd.f32 %v1888, %v1976
        %1978 = vmatprep.mubr.f32.mxu0 %v678
        %1979 = vmatmul.mubr.f32.gmra.mrb[0].mxu0 %v677
        %v1980 = vpop.f32.mrb[0].mxu0
        %v1981 = vadd.f32 %v1892, %v1980
        %v1982 = vpop.f32.mrb[0].mxu0
        %v1983 = vadd.f32 %v1894, %v1982
        %1984 = vdwg.mxu0
        %1985 = vmatprep.subr.mxu0 %v1070
        %1986 = vmatpush1.msra.mxu0 %v1069
        %1987 = vmatprep.subr.mxu0 %v1076
        %1988 = vmatpush1.msra.mxu0 %v1075
        %1989 = vmatprep.subr.mxu0 %v1082
        %1990 = vmatpush1.msra.mxu0 %v1081
        %1991 = vmatprep.subr.mxu0 %v1088
        %1992 = vmatpush1.msra.mxu0 %v1087
        %1993 = vmatprep.subr.mxu0 %v1094
        %1994 = vmatpush1.msra.mxu0 %v1093
        %1995 = vmatprep.subr.mxu0 %v1100
        %1996 = vmatpush1.msra.mxu0 %v1099
        %1997 = vmatprep.subr.mxu0 %v1106
        %1998 = vmatpush1.msra.mxu0 %v1105
        %1999 = vmatprep.subr.mxu0 %v1112
        %2000 = vmatpush1.msra.mxu0 %v1111
        %2001 = vmatprep.subr.mxu0 %v1118
        %2002 = vmatpush1.msra.mxu0 %v1117
        %2003 = vmatprep.subr.mxu0 %v1124
        %2004 = vmatpush1.msra.mxu0 %v1123
        %2005 = vmatprep.subr.mxu0 %v1130
        %2006 = vmatpush1.msra.mxu0 %v1129
        %2007 = vmatprep.subr.mxu0 %v1136
        %2008 = vmatpush1.msra.mxu0 %v1135
        %2009 = vmatprep.subr.mxu0 %v1142
        %2010 = vmatpush1.msra.mxu0 %v1141
        %2011 = vmatprep.subr.mxu0 %v1148
        %2012 = vmatpush1.msra.mxu0 %v1147
        %2013 = vmatprep.subr.mxu0 %v1154
        %2014 = vmatpush1.msra.mxu0 %v1153
        %2015 = vmatprep.subr.mxu0 %v1160
        %2016 = vmatpush1.msra.mxu0 %v1159
        %2017 = vmatprep.subr.mxu0 %v1166
        %2018 = vmatpush1.msra.mxu0 %v1165
        %2019 = vmatprep.subr.mxu0 %v1172
        %2020 = vmatpush1.msra.mxu0 %v1171
        %2021 = vmatprep.subr.mxu0 %v1178
        %2022 = vmatpush1.msra.mxu0 %v1177
        %2023 = vmatprep.subr.mxu0 %v1184
        %2024 = vmatpush1.msra.mxu0 %v1183
        %2025 = vmatprep.subr.mxu0 %v1190
        %2026 = vmatpush1.msra.mxu0 %v1189
        %2027 = vmatprep.subr.mxu0 %v1196
        %2028 = vmatpush1.msra.mxu0 %v1195
        %2029 = vmatprep.subr.mxu0 %v1202
        %2030 = vmatpush1.msra.mxu0 %v1201
        %2031 = vmatprep.subr.mxu0 %v1208
        %2032 = vmatpush1.msra.mxu0 %v1207
        %2033 = vmatprep.subr.mxu0 %v1214
        %2034 = vmatpush1.msra.mxu0 %v1213
        %2035 = vmatprep.subr.mxu0 %v1220
        %2036 = vmatpush1.msra.mxu0 %v1219
        %2037 = vmatprep.subr.mxu0 %v1226
        %2038 = vmatpush1.msra.mxu0 %v1225
        %2039 = vmatprep.subr.mxu0 %v1232
        %2040 = vmatpush1.msra.mxu0 %v1231
        %2041 = vmatprep.subr.mxu0 %v1238
        %2042 = vmatpush1.msra.mxu0 %v1237
        %2043 = vmatprep.subr.mxu0 %v1244
        %2044 = vmatpush1.msra.mxu0 %v1243
        %2045 = vmatprep.subr.mxu0 %v1250
        %2046 = vmatpush1.msra.mxu0 %v1249
        %2047 = vmatprep.subr.mxu0 %v1256
        %2048 = vmatpush1.msra.mxu0 %v1255
        %2049 = vmatprep.mubr.f32.mxu0 %v656
        %2050 = vmatmul.mubr.f32.gmra.mrb[0].mxu0 %v655
        %v2051 = vpop.f32.mrb[0].mxu0
        %v2052 = vadd.f32 %v1963, %v2051
        %v2053 = vpop.f32.mrb[0].mxu0
        %v2054 = vadd.f32 %v1965, %v2053
        %2055 = vmatprep.mubr.f32.mxu0 %v664
        %2056 = vmatmul.mubr.f32.gmra.mrb[0].mxu0 %v663
        %v2057 = vpop.f32.mrb[0].mxu0
        %v2058 = vadd.f32 %v1969, %v2057
        %v2059 = vpop.f32.mrb[0].mxu0
        %v2060 = vadd.f32 %v1971, %v2059
        %2061 = vmatprep.mubr.f32.mxu0 %v672
        %2062 = vmatmul.mubr.f32.gmra.mrb[0].mxu0 %v671
        %v2063 = vpop.f32.mrb[0].mxu0
        %v2064 = vadd.f32 %v1975, %v2063
        %v2065 = vpop.f32.mrb[0].mxu0
        %v2066 = vadd.f32 %v1977, %v2065
        %2067 = vmatprep.mubr.f32.mxu0 %v680
        %2068 = vmatmul.mubr.f32.gmra.mrb[0].mxu0 %v679
        %v2069 = vpop.f32.mrb[0].mxu0
        %v2070 = vadd.f32 %v1981, %v2069
        %v2071 = vpop.f32.mrb[0].mxu0
        %v2072 = vadd.f32 %v1983, %v2071
        %2073 = vdwg.mxu0
        %2074 = vmatprep.subr.mxu0 %v1262
        %2075 = vmatpush1.msra.mxu0 %v1261
        %2076 = vmatprep.subr.mxu0 %v1268
        %2077 = vmatpush1.msra.mxu0 %v1267
        %2078 = vmatprep.subr.mxu0 %v1274
        %2079 = vmatpush1.msra.mxu0 %v1273
        %2080 = vmatprep.subr.mxu0 %v1280
        %2081 = vmatpush1.msra.mxu0 %v1279
        %2082 = vmatprep.subr.mxu0 %v1286
        %2083 = vmatpush1.msra.mxu0 %v1285
        %2084 = vmatprep.subr.mxu0 %v1292
        %2085 = vmatpush1.msra.mxu0 %v1291
        %2086 = vmatprep.subr.mxu0 %v1298
        %2087 = vmatpush1.msra.mxu0 %v1297
        %2088 = vmatprep.subr.mxu0 %v1304
        %2089 = vmatpush1.msra.mxu0 %v1303
        %2090 = vmatprep.subr.mxu0 %v1310
        %2091 = vmatpush1.msra.mxu0 %v1309
        %2092 = vmatprep.subr.mxu0 %v1316
        %2093 = vmatpush1.msra.mxu0 %v1315
        %2094 = vmatprep.subr.mxu0 %v1322
        %2095 = vmatpush1.msra.mxu0 %v1321
        %2096 = vmatprep.subr.mxu0 %v1328
        %2097 = vmatpush1.msra.mxu0 %v1327
        %2098 = vmatprep.subr.mxu0 %v1334
        %2099 = vmatpush1.msra.mxu0 %v1333
        %2100 = vmatprep.subr.mxu0 %v1340
        %2101 = vmatpush1.msra.mxu0 %v1339
        %2102 = vmatprep.subr.mxu0 %v1346
        %2103 = vmatpush1.msra.mxu0 %v1345
        %2104 = vmatprep.subr.mxu0 %v1352
        %2105 = vmatpush1.msra.mxu0 %v1351
        %2106 = vmatprep.subr.mxu0 %v1358
        %2107 = vmatpush1.msra.mxu0 %v1357
        %2108 = vmatprep.subr.mxu0 %v1364
        %2109 = vmatpush1.msra.mxu0 %v1363
        %2110 = vmatprep.subr.mxu0 %v1370
        %2111 = vmatpush1.msra.mxu0 %v1369
        %2112 = vmatprep.subr.mxu0 %v1376
        %2113 = vmatpush1.msra.mxu0 %v1375
        %2114 = vmatprep.subr.mxu0 %v1382
        %2115 = vmatpush1.msra.mxu0 %v1381
        %2116 = vmatprep.subr.mxu0 %v1388
        %2117 = vmatpush1.msra.mxu0 %v1387
        %2118 = vmatprep.subr.mxu0 %v1394
        %2119 = vmatpush1.msra.mxu0 %v1393
        %2120 = vmatprep.subr.mxu0 %v1400
        %2121 = vmatpush1.msra.mxu0 %v1399
        %2122 = vmatprep.subr.mxu0 %v1406
        %2123 = vmatpush1.msra.mxu0 %v1405
        %2124 = vmatprep.subr.mxu0 %v1412
        %2125 = vmatpush1.msra.mxu0 %v1411
        %2126 = vmatprep.subr.mxu0 %v1418
        %2127 = vmatpush1.msra.mxu0 %v1417
        %2128 = vmatprep.subr.mxu0 %v1424
        %2129 = vmatpush1.msra.mxu0 %v1423
        %2130 = vmatprep.subr.mxu0 %v1430
        %2131 = vmatpush1.msra.mxu0 %v1429
        %2132 = vmatprep.subr.mxu0 %v1436
        %2133 = vmatpush1.msra.mxu0 %v1435
        %2134 = vmatprep.subr.mxu0 %v1442
        %2135 = vmatpush1.msra.mxu0 %v1441
        %2136 = vmatprep.subr.mxu0 %v1448
        %2137 = vmatpush1.msra.mxu0 %v1447
        %2138 = vmatprep.mubr.f32.mxu0 %v658
        %2139 = vmatmul.mubr.f32.gmra.mrb[0].mxu0 %v657
        %v2140 = vpop.f32.mrb[0].mxu0
        %v2141 = vadd.f32 %v2052, %v2140
        %v2142 = vpop.f32.mrb[0].mxu0
        %v2143 = vadd.f32 %v2054, %v2142
        %2144 = vmatprep.mubr.f32.mxu0 %v666
        %2145 = vmatmul.mubr.f32.gmra.mrb[0].mxu0 %v665
        %v2146 = vpop.f32.mrb[0].mxu0
        %v2147 = vadd.f32 %v2058, %v2146
        %v2148 = vpop.f32.mrb[0].mxu0
        %v2149 = vadd.f32 %v2060, %v2148
        %2150 = vmatprep.mubr.f32.mxu0 %v674
        %2151 = vmatmul.mubr.f32.gmra.mrb[0].mxu0 %v673
        %v2152 = vpop.f32.mrb[0].mxu0
        %v2153 = vadd.f32 %v2064, %v2152
        %v2154 = vpop.f32.mrb[0].mxu0
        %v2155 = vadd.f32 %v2066, %v2154
        %2156 = vmatprep.mubr.f32.mxu0 %v682
        %2157 = vmatmul.mubr.f32.gmra.mrb[0].mxu0 %v681
        %v2158 = vpop.f32.mrb[0].mxu0
        %v2159 = vadd.f32 %v2070, %v2158
        %v2160 = vpop.f32.mrb[0].mxu0
        %v2161 = vadd.f32 %v2072, %v2160
        %2162 = vdwg.mxu0
        %2163 = vmatprep.subr.mxu0 %v688
        %2164 = vmatpush1.msra.mxu0 %v687
        %2165 = vmatprep.subr.mxu0 %v694
        %2166 = vmatpush1.msra.mxu0 %v693
        %2167 = vmatprep.subr.mxu0 %v700
        %2168 = vmatpush1.msra.mxu0 %v699
        %2169 = vmatprep.subr.mxu0 %v706
        %2170 = vmatpush1.msra.mxu0 %v705
        %2171 = vmatprep.subr.mxu0 %v712
        %2172 = vmatpush1.msra.mxu0 %v711
        %2173 = vmatprep.subr.mxu0 %v718
        %2174 = vmatpush1.msra.mxu0 %v717
        %2175 = vmatprep.subr.mxu0 %v724
        %2176 = vmatpush1.msra.mxu0 %v723
        %2177 = vmatprep.subr.mxu0 %v730
        %2178 = vmatpush1.msra.mxu0 %v729
        %2179 = vmatprep.subr.mxu0 %v736
        %2180 = vmatpush1.msra.mxu0 %v735
        %2181 = vmatprep.subr.mxu0 %v742
        %2182 = vmatpush1.msra.mxu0 %v741
        %2183 = vmatprep.subr.mxu0 %v748
        %2184 = vmatpush1.msra.mxu0 %v747
        %2185 = vmatprep.subr.mxu0 %v754
        %2186 = vmatpush1.msra.mxu0 %v753
        %2187 = vmatprep.subr.mxu0 %v760
        %2188 = vmatpush1.msra.mxu0 %v759
        %2189 = vmatprep.subr.mxu0 %v766
        %2190 = vmatpush1.msra.mxu0 %v765
        %2191 = vmatprep.subr.mxu0 %v772
        %2192 = vmatpush1.msra.mxu0 %v771
        %2193 = vmatprep.subr.mxu0 %v778
        %2194 = vmatpush1.msra.mxu0 %v777
        %2195 = vmatprep.subr.mxu0 %v784
        %2196 = vmatpush1.msra.mxu0 %v783
        %2197 = vmatprep.subr.mxu0 %v790
        %2198 = vmatpush1.msra.mxu0 %v789
        %2199 = vmatprep.subr.mxu0 %v796
        %2200 = vmatpush1.msra.mxu0 %v795
        %2201 = vmatprep.subr.mxu0 %v802
        %2202 = vmatpush1.msra.mxu0 %v801
        %2203 = vmatprep.subr.mxu0 %v808
        %2204 = vmatpush1.msra.mxu0 %v807
        %2205 = vmatprep.subr.mxu0 %v814
        %2206 = vmatpush1.msra.mxu0 %v813
        %2207 = vmatprep.subr.mxu0 %v820
        %2208 = vmatpush1.msra.mxu0 %v819
        %2209 = vmatprep.subr.mxu0 %v826
        %2210 = vmatpush1.msra.mxu0 %v825
        %2211 = vmatprep.subr.mxu0 %v832
        %2212 = vmatpush1.msra.mxu0 %v831
        %2213 = vmatprep.subr.mxu0 %v838
        %2214 = vmatpush1.msra.mxu0 %v837
        %2215 = vmatprep.subr.mxu0 %v844
        %2216 = vmatpush1.msra.mxu0 %v843
        %2217 = vmatprep.subr.mxu0 %v850
        %2218 = vmatpush1.msra.mxu0 %v849
        %2219 = vmatprep.subr.mxu0 %v856
        %2220 = vmatpush1.msra.mxu0 %v855
        %2221 = vmatprep.subr.mxu0 %v862
        %2222 = vmatpush1.msra.mxu0 %v861
        %2223 = vmatprep.subr.mxu0 %v868
        %2224 = vmatpush1.msra.mxu0 %v867
        %2225 = vmatprep.subr.mxu0 %v874
        %2226 = vmatpush1.msra.mxu0 %v873
        %2227 = vmatprep.mubr.f32.mxu0 %v652
        %2228 = vmatmul.mubr.f32.gmra.mrb[0].mxu0 %v651
        %v2229 = vpop.f32.mrb[0].mxu0
        %v2230 = vadd.f32 0.0, %v2229
        %v2231 = vpop.f32.mrb[0].mxu0
        %v2232 = vadd.f32 0.0, %v2231
        %2233 = vmatprep.mubr.f32.mxu0 %v660
        %2234 = vmatmul.mubr.f32.gmra.mrb[0].mxu0 %v659
        %v2235 = vpop.f32.mrb[0].mxu0
        %v2236 = vadd.f32 0.0, %v2235
        %v2237 = vpop.f32.mrb[0].mxu0
        %v2238 = vadd.f32 0.0, %v2237
        %2239 = vmatprep.mubr.f32.mxu0 %v668
        %2240 = vmatmul.mubr.f32.gmra.mrb[0].mxu0 %v667
        %v2241 = vpop.f32.mrb[0].mxu0
        %v2242 = vadd.f32 0.0, %v2241
        %v2243 = vpop.f32.mrb[0].mxu0
        %v2244 = vadd.f32 0.0, %v2243
        %2245 = vmatprep.mubr.f32.mxu0 %v676
        %2246 = vmatmul.mubr.f32.gmra.mrb[0].mxu0 %v675
        %v2247 = vpop.f32.mrb[0].mxu0
        %v2248 = vadd.f32 0.0, %v2247
        %v2249 = vpop.f32.mrb[0].mxu0
        %v2250 = vadd.f32 0.0, %v2249
        %2251 = vdwg.mxu0
        %2252 = vmatprep.subr.mxu0 %v880
        %2253 = vmatpush1.msra.mxu0 %v879
        %2254 = vmatprep.subr.mxu0 %v886
        %2255 = vmatpush1.msra.mxu0 %v885
        %2256 = vmatprep.subr.mxu0 %v892
        %2257 = vmatpush1.msra.mxu0 %v891
        %2258 = vmatprep.subr.mxu0 %v898
        %2259 = vmatpush1.msra.mxu0 %v897
        %2260 = vmatprep.subr.mxu0 %v904
        %2261 = vmatpush1.msra.mxu0 %v903
        %2262 = vmatprep.subr.mxu0 %v910
        %2263 = vmatpush1.msra.mxu0 %v909
        %2264 = vmatprep.subr.mxu0 %v916
        %2265 = vmatpush1.msra.mxu0 %v915
        %2266 = vmatprep.subr.mxu0 %v922
        %2267 = vmatpush1.msra.mxu0 %v921
        %2268 = vmatprep.subr.mxu0 %v928
        %2269 = vmatpush1.msra.mxu0 %v927
        %2270 = vmatprep.subr.mxu0 %v934
        %2271 = vmatpush1.msra.mxu0 %v933
        %2272 = vmatprep.subr.mxu0 %v940
        %2273 = vmatpush1.msra.mxu0 %v939
        %2274 = vmatprep.subr.mxu0 %v946
        %2275 = vmatpush1.msra.mxu0 %v945
        %2276 = vmatprep.subr.mxu0 %v952
        %2277 = vmatpush1.msra.mxu0 %v951
        %2278 = vmatprep.subr.mxu0 %v958
        %2279 = vmatpush1.msra.mxu0 %v957
        %2280 = vmatprep.subr.mxu0 %v964
        %2281 = vmatpush1.msra.mxu0 %v963
        %2282 = vmatprep.subr.mxu0 %v970
        %2283 = vmatpush1.msra.mxu0 %v969
        %2284 = vmatprep.subr.mxu0 %v976
        %2285 = vmatpush1.msra.mxu0 %v975
        %2286 = vmatprep.subr.mxu0 %v982
        %2287 = vmatpush1.msra.mxu0 %v981
        %2288 = vmatprep.subr.mxu0 %v988
        %2289 = vmatpush1.msra.mxu0 %v987
        %2290 = vmatprep.subr.mxu0 %v994
        %2291 = vmatpush1.msra.mxu0 %v993
        %2292 = vmatprep.subr.mxu0 %v1000
        %2293 = vmatpush1.msra.mxu0 %v999
        %2294 = vmatprep.subr.mxu0 %v1006
        %2295 = vmatpush1.msra.mxu0 %v1005
        %2296 = vmatprep.subr.mxu0 %v1012
        %2297 = vmatpush1.msra.mxu0 %v1011
        %2298 = vmatprep.subr.mxu0 %v1018
        %2299 = vmatpush1.msra.mxu0 %v1017
        %2300 = vmatprep.subr.mxu0 %v1024
        %2301 = vmatpush1.msra.mxu0 %v1023
        %2302 = vmatprep.subr.mxu0 %v1030
        %2303 = vmatpush1.msra.mxu0 %v1029
        %2304 = vmatprep.subr.mxu0 %v1036
        %2305 = vmatpush1.msra.mxu0 %v1035
        %2306 = vmatprep.subr.mxu0 %v1042
        %2307 = vmatpush1.msra.mxu0 %v1041
        %2308 = vmatprep.subr.mxu0 %v1048
        %2309 = vmatpush1.msra.mxu0 %v1047
        %2310 = vmatprep.subr.mxu0 %v1054
        %2311 = vmatpush1.msra.mxu0 %v1053
        %2312 = vmatprep.subr.mxu0 %v1060
        %2313 = vmatpush1.msra.mxu0 %v1059
        %2314 = vmatprep.subr.mxu0 %v1066
        %2315 = vmatpush1.msra.mxu0 %v1065
        %2316 = vmatprep.mubr.f32.mxu0 %v654
        %2317 = vmatmul.mubr.f32.gmra.mrb[0].mxu0 %v653
        %v2318 = vpop.f32.mrb[0].mxu0
        %v2319 = vadd.f32 %v2230, %v2318
        %v2320 = vpop.f32.mrb[0].mxu0
        %v2321 = vadd.f32 %v2232, %v2320
        %2322 = vmatprep.mubr.f32.mxu0 %v662
        %2323 = vmatmul.mubr.f32.gmra.mrb[0].mxu0 %v661
        %v2324 = vpop.f32.mrb[0].mxu0
        %v2325 = vadd.f32 %v2236, %v2324
        %v2326 = vpop.f32.mrb[0].mxu0
        %v2327 = vadd.f32 %v2238, %v2326
        %2328 = vmatprep.mubr.f32.mxu0 %v670
        %2329 = vmatmul.mubr.f32.gmra.mrb[0].mxu0 %v669
        %v2330 = vpop.f32.mrb[0].mxu0
        %v2331 = vadd.f32 %v2242, %v2330
        %v2332 = vpop.f32.mrb[0].mxu0
        %v2333 = vadd.f32 %v2244, %v2332
        %2334 = vmatprep.mubr.f32.mxu0 %v678
        %2335 = vmatmul.mubr.f32.gmra.mrb[0].mxu0 %v677
        %v2336 = vpop.f32.mrb[0].mxu0
        %v2337 = vadd.f32 %v2248, %v2336
        %v2338 = vpop.f32.mrb[0].mxu0
        %v2339 = vadd.f32 %v2250, %v2338
        %2340 = vdwg.mxu0
        %2341 = vmatprep.subr.mxu0 %v1072
        %2342 = vmatpush1.msra.mxu0 %v1071
        %2343 = vmatprep.subr.mxu0 %v1078
        %2344 = vmatpush1.msra.mxu0 %v1077
        %2345 = vmatprep.subr.mxu0 %v1084
        %2346 = vmatpush1.msra.mxu0 %v1083
        %2347 = vmatprep.subr.mxu0 %v1090
        %2348 = vmatpush1.msra.mxu0 %v1089
        %2349 = vmatprep.subr.mxu0 %v1096
        %2350 = vmatpush1.msra.mxu0 %v1095
        %2351 = vmatprep.subr.mxu0 %v1102
        %2352 = vmatpush1.msra.mxu0 %v1101
        %2353 = vmatprep.subr.mxu0 %v1108
        %2354 = vmatpush1.msra.mxu0 %v1107
        %2355 = vmatprep.subr.mxu0 %v1114
        %2356 = vmatpush1.msra.mxu0 %v1113
        %2357 = vmatprep.subr.mxu0 %v1120
        %2358 = vmatpush1.msra.mxu0 %v1119
        %2359 = vmatprep.subr.mxu0 %v1126
        %2360 = vmatpush1.msra.mxu0 %v1125
        %2361 = vmatprep.subr.mxu0 %v1132
        %2362 = vmatpush1.msra.mxu0 %v1131
        %2363 = vmatprep.subr.mxu0 %v1138
        %2364 = vmatpush1.msra.mxu0 %v1137
        %2365 = vmatprep.subr.mxu0 %v1144
        %2366 = vmatpush1.msra.mxu0 %v1143
        %2367 = vmatprep.subr.mxu0 %v1150
        %2368 = vmatpush1.msra.mxu0 %v1149
        %2369 = vmatprep.subr.mxu0 %v1156
        %2370 = vmatpush1.msra.mxu0 %v1155
        %2371 = vmatprep.subr.mxu0 %v1162
        %2372 = vmatpush1.msra.mxu0 %v1161
        %2373 = vmatprep.subr.mxu0 %v1168
        %2374 = vmatpush1.msra.mxu0 %v1167
        %2375 = vmatprep.subr.mxu0 %v1174
        %2376 = vmatpush1.msra.mxu0 %v1173
        %2377 = vmatprep.subr.mxu0 %v1180
        %2378 = vmatpush1.msra.mxu0 %v1179
        %2379 = vmatprep.subr.mxu0 %v1186
        %2380 = vmatpush1.msra.mxu0 %v1185
        %2381 = vmatprep.subr.mxu0 %v1192
        %2382 = vmatpush1.msra.mxu0 %v1191
        %2383 = vmatprep.subr.mxu0 %v1198
        %2384 = vmatpush1.msra.mxu0 %v1197
        %2385 = vmatprep.subr.mxu0 %v1204
        %2386 = vmatpush1.msra.mxu0 %v1203
        %2387 = vmatprep.subr.mxu0 %v1210
        %2388 = vmatpush1.msra.mxu0 %v1209
        %2389 = vmatprep.subr.mxu0 %v1216
        %2390 = vmatpush1.msra.mxu0 %v1215
        %2391 = vmatprep.subr.mxu0 %v1222
        %2392 = vmatpush1.msra.mxu0 %v1221
        %2393 = vmatprep.subr.mxu0 %v1228
        %2394 = vmatpush1.msra.mxu0 %v1227
        %2395 = vmatprep.subr.mxu0 %v1234
        %2396 = vmatpush1.msra.mxu0 %v1233
        %2397 = vmatprep.subr.mxu0 %v1240
        %2398 = vmatpush1.msra.mxu0 %v1239
        %2399 = vmatprep.subr.mxu0 %v1246
        %2400 = vmatpush1.msra.mxu0 %v1245
        %2401 = vmatprep.subr.mxu0 %v1252
        %2402 = vmatpush1.msra.mxu0 %v1251
        %2403 = vmatprep.subr.mxu0 %v1258
        %2404 = vmatpush1.msra.mxu0 %v1257
        %2405 = vmatprep.mubr.f32.mxu0 %v656
        %2406 = vmatmul.mubr.f32.gmra.mrb[0].mxu0 %v655
        %v2407 = vpop.f32.mrb[0].mxu0
        %v2408 = vadd.f32 %v2319, %v2407
        %v2409 = vpop.f32.mrb[0].mxu0
        %v2410 = vadd.f32 %v2321, %v2409
        %2411 = vmatprep.mubr.f32.mxu0 %v664
        %2412 = vmatmul.mubr.f32.gmra.mrb[0].mxu0 %v663
        %v2413 = vpop.f32.mrb[0].mxu0
        %v2414 = vadd.f32 %v2325, %v2413
        %v2415 = vpop.f32.mrb[0].mxu0
        %v2416 = vadd.f32 %v2327, %v2415
        %2417 = vmatprep.mubr.f32.mxu0 %v672
        %2418 = vmatmul.mubr.f32.gmra.mrb[0].mxu0 %v671
        %v2419 = vpop.f32.mrb[0].mxu0
        %v2420 = vadd.f32 %v2331, %v2419
        %v2421 = vpop.f32.mrb[0].mxu0
        %v2422 = vadd.f32 %v2333, %v2421
        %2423 = vmatprep.mubr.f32.mxu0 %v680
        %2424 = vmatmul.mubr.f32.gmra.mrb[0].mxu0 %v679
        %v2425 = vpop.f32.mrb[0].mxu0
        %v2426 = vadd.f32 %v2337, %v2425
        %v2427 = vpop.f32.mrb[0].mxu0
        %v2428 = vadd.f32 %v2339, %v2427
        %2429 = vdwg.mxu0
        %2430 = vmatprep.subr.mxu0 %v1264
        %2431 = vmatpush1.msra.mxu0 %v1263
        %2432 = vmatprep.subr.mxu0 %v1270
        %2433 = vmatpush1.msra.mxu0 %v1269
        %2434 = vmatprep.subr.mxu0 %v1276
        %2435 = vmatpush1.msra.mxu0 %v1275
        %2436 = vmatprep.subr.mxu0 %v1282
        %2437 = vmatpush1.msra.mxu0 %v1281
        %2438 = vmatprep.subr.mxu0 %v1288
        %2439 = vmatpush1.msra.mxu0 %v1287
        %2440 = vmatprep.subr.mxu0 %v1294
        %2441 = vmatpush1.msra.mxu0 %v1293
        %2442 = vmatprep.subr.mxu0 %v1300
        %2443 = vmatpush1.msra.mxu0 %v1299
        %2444 = vmatprep.subr.mxu0 %v1306
        %2445 = vmatpush1.msra.mxu0 %v1305
        %2446 = vmatprep.subr.mxu0 %v1312
        %2447 = vmatpush1.msra.mxu0 %v1311
        %2448 = vmatprep.subr.mxu0 %v1318
        %2449 = vmatpush1.msra.mxu0 %v1317
        %2450 = vmatprep.subr.mxu0 %v1324
        %2451 = vmatpush1.msra.mxu0 %v1323
        %2452 = vmatprep.subr.mxu0 %v1330
        %2453 = vmatpush1.msra.mxu0 %v1329
        %2454 = vmatprep.subr.mxu0 %v1336
        %2455 = vmatpush1.msra.mxu0 %v1335
        %2456 = vmatprep.subr.mxu0 %v1342
        %2457 = vmatpush1.msra.mxu0 %v1341
        %2458 = vmatprep.subr.mxu0 %v1348
        %2459 = vmatpush1.msra.mxu0 %v1347
        %2460 = vmatprep.subr.mxu0 %v1354
        %2461 = vmatpush1.msra.mxu0 %v1353
        %2462 = vmatprep.subr.mxu0 %v1360
        %2463 = vmatpush1.msra.mxu0 %v1359
        %2464 = vmatprep.subr.mxu0 %v1366
        %2465 = vmatpush1.msra.mxu0 %v1365
        %2466 = vmatprep.subr.mxu0 %v1372
        %2467 = vmatpush1.msra.mxu0 %v1371
        %2468 = vmatprep.subr.mxu0 %v1378
        %2469 = vmatpush1.msra.mxu0 %v1377
        %2470 = vmatprep.subr.mxu0 %v1384
        %2471 = vmatpush1.msra.mxu0 %v1383
        %2472 = vmatprep.subr.mxu0 %v1390
        %2473 = vmatpush1.msra.mxu0 %v1389
        %2474 = vmatprep.subr.mxu0 %v1396
        %2475 = vmatpush1.msra.mxu0 %v1395
        %2476 = vmatprep.subr.mxu0 %v1402
        %2477 = vmatpush1.msra.mxu0 %v1401
        %2478 = vmatprep.subr.mxu0 %v1408
        %2479 = vmatpush1.msra.mxu0 %v1407
        %2480 = vmatprep.subr.mxu0 %v1414
        %2481 = vmatpush1.msra.mxu0 %v1413
        %2482 = vmatprep.subr.mxu0 %v1420
        %2483 = vmatpush1.msra.mxu0 %v1419
        %2484 = vmatprep.subr.mxu0 %v1426
        %2485 = vmatpush1.msra.mxu0 %v1425
        %2486 = vmatprep.subr.mxu0 %v1432
        %2487 = vmatpush1.msra.mxu0 %v1431
        %2488 = vmatprep.subr.mxu0 %v1438
        %2489 = vmatpush1.msra.mxu0 %v1437
        %2490 = vmatprep.subr.mxu0 %v1444
        %2491 = vmatpush1.msra.mxu0 %v1443
        %2492 = vmatprep.subr.mxu0 %v1450
        %2493 = vmatpush1.msra.mxu0 %v1449
        %2494 = vmatprep.mubr.f32.mxu0 %v658
        %2495 = vmatmul.mubr.f32.gmra.mrb[0].mxu0 %v657
        %v2496 = vpop.f32.mrb[0].mxu0
        %v2497 = vadd.f32 %v2408, %v2496
        %v2498 = vpop.f32.mrb[0].mxu0
        %v2499 = vadd.f32 %v2410, %v2498
        %2500 = vmatprep.mubr.f32.mxu0 %v666
        %2501 = vmatmul.mubr.f32.gmra.mrb[0].mxu0 %v665
        %v2502 = vpop.f32.mrb[0].mxu0
        %v2503 = vadd.f32 %v2414, %v2502
        %v2504 = vpop.f32.mrb[0].mxu0
        %v2505 = vadd.f32 %v2416, %v2504
        %2506 = vmatprep.mubr.f32.mxu0 %v674
        %2507 = vmatmul.mubr.f32.gmra.mrb[0].mxu0 %v673
        %v2508 = vpop.f32.mrb[0].mxu0
        %v2509 = vadd.f32 %v2420, %v2508
        %v2510 = vpop.f32.mrb[0].mxu0
        %v2511 = vadd.f32 %v2422, %v2510
        %2512 = vmatprep.mubr.f32.mxu0 %v682
        %2513 = vmatmul.mubr.f32.gmra.mrb[0].mxu0 %v681
        %v2514 = vpop.f32.mrb[0].mxu0
        %v2515 = vadd.f32 %v2426, %v2514
        %v2516 = vpop.f32.mrb[0].mxu0
        %v2517 = vadd.f32 %v2428, %v2516
        %2518 = vdwg.mxu0
        %2519 = vmatprep.subr.mxu0 0.0
        %2520 = vmatpush1.xpose.msra.mxu0 %v1787
        %2521 = vmatprep.subr.mxu0 0.0
        %2522 = vmatpush1.xpose.msra.mxu0 %v1793
        %2523 = vmatprep.subr.mxu0 0.0
        %2524 = vmatpush1.xpose.msra.mxu0 0.0
        %2525 = vmatprep.subr.mxu0 0.0
        %2526 = vmatpush1.xpose.msra.mxu0 0.0
        %2527 = vmatprep.subr.mxu0 0.0
        %2528 = vmatpush1.xpose.msra.mxu0 0.0
        %2529 = vmatprep.subr.mxu0 0.0
        %2530 = vmatpush1.xpose.msra.mxu0 0.0
        %2531 = vmatprep.subr.mxu0 0.0
        %2532 = vmatpush1.xpose.msra.mxu0 0.0
        %2533 = vmatprep.subr.mxu0 0.0
        %2534 = vmatpush1.xpose.msra.mxu0 0.0
        %2535 = vmatprep.subr.mxu0 0.0
        %2536 = vmatpush1.xpose.msra.mxu0 0.0
        %2537 = vmatprep.subr.mxu0 0.0
        %2538 = vmatpush1.xpose.msra.mxu0 0.0
        %2539 = vmatprep.subr.mxu0 0.0
        %2540 = vmatpush1.xpose.msra.mxu0 0.0
        %2541 = vmatprep.subr.mxu0 0.0
        %2542 = vmatpush1.xpose.msra.mxu0 0.0
        %2543 = vmatprep.subr.mxu0 0.0
        %2544 = vmatpush1.xpose.msra.mxu0 0.0
        %2545 = vmatprep.subr.mxu0 0.0
        %2546 = vmatpush1.xpose.msra.mxu0 0.0
        %2547 = vmatprep.subr.mxu0 0.0
        %2548 = vmatpush1.xpose.msra.mxu0 0.0
        %2549 = vmatprep.subr.mxu0 0.0
        %2550 = vmatpush1.xpose.msra.mxu0 0.0
        %2551 = vmatprep.subr.mxu0 0.0
        %2552 = vmatpush1.xpose.msra.mxu0 0.0
        %2553 = vmatprep.subr.mxu0 0.0
        %2554 = vmatpush1.xpose.msra.mxu0 0.0
        %2555 = vmatprep.subr.mxu0 0.0
        %2556 = vmatpush1.xpose.msra.mxu0 0.0
        %2557 = vmatprep.subr.mxu0 0.0
        %2558 = vmatpush1.xpose.msra.mxu0 0.0
        %2559 = vmatprep.subr.mxu0 0.0
        %2560 = vmatpush1.xpose.msra.mxu0 0.0
        %2561 = vmatprep.subr.mxu0 0.0
        %2562 = vmatpush1.xpose.msra.mxu0 0.0
        %2563 = vmatprep.subr.mxu0 0.0
        %2564 = vmatpush1.xpose.msra.mxu0 0.0
        %2565 = vmatprep.subr.mxu0 0.0
        %2566 = vmatpush1.xpose.msra.mxu0 0.0
        %2567 = vmatprep.subr.mxu0 0.0
        %2568 = vmatpush1.xpose.msra.mxu0 0.0
        %2569 = vmatprep.subr.mxu0 0.0
        %2570 = vmatpush1.xpose.msra.mxu0 0.0
        %2571 = vmatprep.subr.mxu0 0.0
        %2572 = vmatpush1.xpose.msra.mxu0 0.0
        %2573 = vmatprep.subr.mxu0 0.0
        %2574 = vmatpush1.xpose.msra.mxu0 0.0
        %2575 = vmatprep.subr.mxu0 0.0
        %2576 = vmatpush1.xpose.msra.mxu0 0.0
        %2577 = vmatprep.subr.mxu0 0.0
        %2578 = vmatpush1.xpose.msra.mxu0 0.0
        %2579 = vmatprep.subr.mxu0 0.0
        %2580 = vmatpush1.xpose.msra.mxu0 0.0
        %2581 = vmatprep.subr.mxu0 0.0
        %2582 = vmatpush1.xpose.msra.mxu0 0.0
        %2583 = vmatprep.mubr.f32.mxu0 0.0
        %2584 = vmatmul.mubr.f32.gmra.mrb[0].mxu0 %v1785
        %v2585 = vpop.f32.mrb[0].mxu0
        %v2586 = vadd.f32 0.0, %v2585
        %v2587 = vpop.f32.mrb[0].mxu0
        %2588 = vmatprep.mubr.f32.mxu0 0.0
        %2589 = vmatmul.mubr.f32.gmra.mrb[0].mxu0 %v1791
        %v2590 = vpop.f32.mrb[0].mxu0
        %v2591 = vadd.f32 0.0, %v2590
        %v2592 = vpop.f32.mrb[0].mxu0
        %2593 = vdwg.mxu0
        %2594 = vmatprep.subr.mxu0 0.0
        %2595 = vmatpush1.xpose.msra.mxu0 %v1799
        %2596 = vmatprep.subr.mxu0 0.0
        %2597 = vmatpush1.xpose.msra.mxu0 %v1805
        %2598 = vmatprep.subr.mxu0 0.0
        %2599 = vmatpush1.xpose.msra.mxu0 0.0
        %2600 = vmatprep.subr.mxu0 0.0
        %2601 = vmatpush1.xpose.msra.mxu0 0.0
        %2602 = vmatprep.subr.mxu0 0.0
        %2603 = vmatpush1.xpose.msra.mxu0 0.0
        %2604 = vmatprep.subr.mxu0 0.0
        %2605 = vmatpush1.xpose.msra.mxu0 0.0
        %2606 = vmatprep.subr.mxu0 0.0
        %2607 = vmatpush1.xpose.msra.mxu0 0.0
        %2608 = vmatprep.subr.mxu0 0.0
        %2609 = vmatpush1.xpose.msra.mxu0 0.0
        %2610 = vmatprep.subr.mxu0 0.0
        %2611 = vmatpush1.xpose.msra.mxu0 0.0
        %2612 = vmatprep.subr.mxu0 0.0
        %2613 = vmatpush1.xpose.msra.mxu0 0.0
        %2614 = vmatprep.subr.mxu0 0.0
        %2615 = vmatpush1.xpose.msra.mxu0 0.0
        %2616 = vmatprep.subr.mxu0 0.0
        %2617 = vmatpush1.xpose.msra.mxu0 0.0
        %2618 = vmatprep.subr.mxu0 0.0
        %2619 = vmatpush1.xpose.msra.mxu0 0.0
        %2620 = vmatprep.subr.mxu0 0.0
        %2621 = vmatpush1.xpose.msra.mxu0 0.0
        %2622 = vmatprep.subr.mxu0 0.0
        %2623 = vmatpush1.xpose.msra.mxu0 0.0
        %2624 = vmatprep.subr.mxu0 0.0
        %2625 = vmatpush1.xpose.msra.mxu0 0.0
        %2626 = vmatprep.subr.mxu0 0.0
        %2627 = vmatpush1.xpose.msra.mxu0 0.0
        %2628 = vmatprep.subr.mxu0 0.0
        %2629 = vmatpush1.xpose.msra.mxu0 0.0
        %2630 = vmatprep.subr.mxu0 0.0
        %2631 = vmatpush1.xpose.msra.mxu0 0.0
        %2632 = vmatprep.subr.mxu0 0.0
        %2633 = vmatpush1.xpose.msra.mxu0 0.0
        %2634 = vmatprep.subr.mxu0 0.0
        %2635 = vmatpush1.xpose.msra.mxu0 0.0
        %2636 = vmatprep.subr.mxu0 0.0
        %2637 = vmatpush1.xpose.msra.mxu0 0.0
        %2638 = vmatprep.subr.mxu0 0.0
        %2639 = vmatpush1.xpose.msra.mxu0 0.0
        %2640 = vmatprep.subr.mxu0 0.0
        %2641 = vmatpush1.xpose.msra.mxu0 0.0
        %2642 = vmatprep.subr.mxu0 0.0
        %2643 = vmatpush1.xpose.msra.mxu0 0.0
        %2644 = vmatprep.subr.mxu0 0.0
        %2645 = vmatpush1.xpose.msra.mxu0 0.0
        %2646 = vmatprep.subr.mxu0 0.0
        %2647 = vmatpush1.xpose.msra.mxu0 0.0
        %2648 = vmatprep.subr.mxu0 0.0
        %2649 = vmatpush1.xpose.msra.mxu0 0.0
        %2650 = vmatprep.subr.mxu0 0.0
        %2651 = vmatpush1.xpose.msra.mxu0 0.0
        %2652 = vmatprep.subr.mxu0 0.0
        %2653 = vmatpush1.xpose.msra.mxu0 0.0
        %2654 = vmatprep.subr.mxu0 0.0
        %2655 = vmatpush1.xpose.msra.mxu0 0.0
        %2656 = vmatprep.subr.mxu0 0.0
        %2657 = vmatpush1.xpose.msra.mxu0 0.0
        %2658 = vmatprep.mubr.f32.mxu0 0.0
        %2659 = vmatmul.mubr.f32.gmra.mrb[0].mxu0 %v1797
        %v2660 = vpop.f32.mrb[0].mxu0
        %v2661 = vadd.f32 0.0, %v2660
        %v2662 = vpop.f32.mrb[0].mxu0
        %2663 = vmatprep.mubr.f32.mxu0 0.0
        %2664 = vmatmul.mubr.f32.gmra.mrb[0].mxu0 %v1803
        %v2665 = vpop.f32.mrb[0].mxu0
        %v2666 = vadd.f32 0.0, %v2665
        %v2667 = vpop.f32.mrb[0].mxu0
        %2668 = vdwg.mxu0
        %v2669 = vmul.f32 %v2586, 11.313708
        %v2670 = vmul.f32 %v2591, 11.313708
        %v2671 = vmul.f32 %v2661, 11.313708
        %v2672 = vmul.f32 %v2666, 11.313708
        %vm2673 = vcmask 130048
        %v2674 = vsel %vm2673, %v2669, -inf
        %v2675 = vsel %vm2673, %v2671, -inf
        %v2676 = vmax.f32 %v2674, %v2675
        %v2677 = vsel %vm2673, %v2670, -inf
        %v2678 = vsel %vm2673, %v2672, -inf
        %v2679 = vmax.f32 %v2677, %v2678
        %v2680 = vsub.f32 %v2669, %v2676
        %v2681 = vsub.f32 %v2670, %v2679
        %v2682 = vsub.f32 %v2671, %v2676
        %v2683 = vsub.f32 %v2672, %v2679
        %v2684 = vmul.f32 %v2680, 1.442695
        %v2685 = vpow.pop %v2684
        %v2686 = vmul.f32 %v2681, 1.442695
        %v2687 = vpow.pop %v2686
        %v2688 = vmul.f32 %v2682, 1.442695
        %v2689 = vpow.pop %v2688
        %v2690 = vmul.f32 %v2683, 1.442695
        %v2691 = vpow.pop %v2690
        %v2692 = vsel %vm2673, %v2685, 0.0
        %v2693 = vsel %vm2673, %v2689, 0.0
        %v2694 = vadd.f32 %v2692, %v2693
        %v2695 = vsel %vm2673, %v2687, 0.0
        %v2696 = vsel %vm2673, %v2691, 0.0
        %v2697 = vadd.f32 %v2695, %v2696
        %v2698 = vrcp.pop %v2694
        %v2699 = vmul.f32 %v2685, %v2698
        %v2700 = vrcp.pop %v2697
        %v2701 = vmul.f32 %v2687, %v2700
        %v2702 = vmul.f32 %v2689, %v2698
        %v2703 = vmul.f32 %v2691, %v2700
        %v2705 = vsel %vm2673, %v2699, 0
        %v2708 = vsel %vm2673, %v2701, 0
        %2710 = vmatprep.subr.mxu0 0.0
        %2711 = vmatpush1.msra.mxu0 %v2141
        %2712 = vmatprep.subr.mxu0 0.0
        %2713 = vmatpush1.msra.mxu0 %v2147
        %2714 = vmatprep.subr.mxu0 0.0
        %2715 = vmatpush1.msra.mxu0 0.0
        %2716 = vmatprep.subr.mxu0 0.0
        %2717 = vmatpush1.msra.mxu0 0.0
        %2718 = vmatprep.subr.mxu0 0.0
        %2719 = vmatpush1.msra.mxu0 0.0
        %2720 = vmatprep.subr.mxu0 0.0
        %2721 = vmatpush1.msra.mxu0 0.0
        %2722 = vmatprep.subr.mxu0 0.0
        %2723 = vmatpush1.msra.mxu0 0.0
        %2724 = vmatprep.subr.mxu0 0.0
        %2725 = vmatpush1.msra.mxu0 0.0
        %2726 = vmatprep.subr.mxu0 0.0
        %2727 = vmatpush1.msra.mxu0 0.0
        %2728 = vmatprep.subr.mxu0 0.0
        %2729 = vmatpush1.msra.mxu0 0.0
        %2730 = vmatprep.subr.mxu0 0.0
        %2731 = vmatpush1.msra.mxu0 0.0
        %2732 = vmatprep.subr.mxu0 0.0
        %2733 = vmatpush1.msra.mxu0 0.0
        %2734 = vmatprep.subr.mxu0 0.0
        %2735 = vmatpush1.msra.mxu0 0.0
        %2736 = vmatprep.subr.mxu0 0.0
        %2737 = vmatpush1.msra.mxu0 0.0
        %2738 = vmatprep.subr.mxu0 0.0
        %2739 = vmatpush1.msra.mxu0 0.0
        %2740 = vmatprep.subr.mxu0 0.0
        %2741 = vmatpush1.msra.mxu0 0.0
        %2742 = vmatprep.subr.mxu0 0.0
        %2743 = vmatpush1.msra.mxu0 0.0
        %2744 = vmatprep.subr.mxu0 0.0
        %2745 = vmatpush1.msra.mxu0 0.0
        %2746 = vmatprep.subr.mxu0 0.0
        %2747 = vmatpush1.msra.mxu0 0.0
        %2748 = vmatprep.subr.mxu0 0.0
        %2749 = vmatpush1.msra.mxu0 0.0
        %2750 = vmatprep.subr.mxu0 0.0
        %2751 = vmatpush1.msra.mxu0 0.0
        %2752 = vmatprep.subr.mxu0 0.0
        %2753 = vmatpush1.msra.mxu0 0.0
        %2754 = vmatprep.subr.mxu0 0.0
        %2755 = vmatpush1.msra.mxu0 0.0
        %2756 = vmatprep.subr.mxu0 0.0
        %2757 = vmatpush1.msra.mxu0 0.0
        %2758 = vmatprep.subr.mxu0 0.0
        %2759 = vmatpush1.msra.mxu0 0.0
        %2760 = vmatprep.subr.mxu0 0.0
        %2761 = vmatpush1.msra.mxu0 0.0
        %2762 = vmatprep.subr.mxu0 0.0
        %2763 = vmatpush1.msra.mxu0 0.0
        %2764 = vmatprep.subr.mxu0 0.0
        %2765 = vmatpush1.msra.mxu0 0.0
        %2766 = vmatprep.subr.mxu0 0.0
        %2767 = vmatpush1.msra.mxu0 0.0
        %2768 = vmatprep.subr.mxu0 0.0
        %2769 = vmatpush1.msra.mxu0 0.0
        %2770 = vmatprep.subr.mxu0 0.0
        %2771 = vmatpush1.msra.mxu0 0.0
        %2772 = vmatprep.subr.mxu0 0.0
        %2773 = vmatpush1.msra.mxu0 0.0
        %2774 = vmatprep.mubr.f32.mxu0 0.0
        %2775 = vmatmul.mubr.f32.gmra.mrb[0].mxu0 %v2705
        %v2776 = vpop.f32.mrb[0].mxu0
        %v2777 = vadd.f32 0.0, %v2776
        %v2778 = vpop.f32.mrb[0].mxu0
        %2779 = vmatprep.mubr.f32.mxu0 0.0
        %2780 = vmatmul.mubr.f32.gmra.mrb[0].mxu0 %v2708
        %v2781 = vpop.f32.mrb[0].mxu0
        %v2782 = vadd.f32 0.0, %v2781
        %v2783 = vpop.f32.mrb[0].mxu0
        %2784 = vdwg.mxu0
        %v2786 = vsel %vm2673, %v2702, 0
        %v2789 = vsel %vm2673, %v2703, 0
        %2791 = vmatprep.subr.mxu0 0.0
        %2792 = vmatpush1.msra.mxu0 %v2153
        %2793 = vmatprep.subr.mxu0 0.0
        %2794 = vmatpush1.msra.mxu0 %v2159
        %2795 = vmatprep.subr.mxu0 0.0
        %2796 = vmatpush1.msra.mxu0 0.0
        %2797 = vmatprep.subr.mxu0 0.0
        %2798 = vmatpush1.msra.mxu0 0.0
        %2799 = vmatprep.subr.mxu0 0.0
        %2800 = vmatpush1.msra.mxu0 0.0
        %2801 = vmatprep.subr.mxu0 0.0
        %2802 = vmatpush1.msra.mxu0 0.0
        %2803 = vmatprep.subr.mxu0 0.0
        %2804 = vmatpush1.msra.mxu0 0.0
        %2805 = vmatprep.subr.mxu0 0.0
        %2806 = vmatpush1.msra.mxu0 0.0
        %2807 = vmatprep.subr.mxu0 0.0
        %2808 = vmatpush1.msra.mxu0 0.0
        %2809 = vmatprep.subr.mxu0 0.0
        %2810 = vmatpush1.msra.mxu0 0.0
        %2811 = vmatprep.subr.mxu0 0.0
        %2812 = vmatpush1.msra.mxu0 0.0
        %2813 = vmatprep.subr.mxu0 0.0
        %2814 = vmatpush1.msra.mxu0 0.0
        %2815 = vmatprep.subr.mxu0 0.0
        %2816 = vmatpush1.msra.mxu0 0.0
        %2817 = vmatprep.subr.mxu0 0.0
        %2818 = vmatpush1.msra.mxu0 0.0
        %2819 = vmatprep.subr.mxu0 0.0
        %2820 = vmatpush1.msra.mxu0 0.0
        %2821 = vmatprep.subr.mxu0 0.0
        %2822 = vmatpush1.msra.mxu0 0.0
        %2823 = vmatprep.subr.mxu0 0.0
        %2824 = vmatpush1.msra.mxu0 0.0
        %2825 = vmatprep.subr.mxu0 0.0
        %2826 = vmatpush1.msra.mxu0 0.0
        %2827 = vmatprep.subr.mxu0 0.0
        %2828 = vmatpush1.msra.mxu0 0.0
        %2829 = vmatprep.subr.mxu0 0.0
        %2830 = vmatpush1.msra.mxu0 0.0
        %2831 = vmatprep.subr.mxu0 0.0
        %2832 = vmatpush1.msra.mxu0 0.0
        %2833 = vmatprep.subr.mxu0 0.0
        %2834 = vmatpush1.msra.mxu0 0.0
        %2835 = vmatprep.subr.mxu0 0.0
        %2836 = vmatpush1.msra.mxu0 0.0
        %2837 = vmatprep.subr.mxu0 0.0
        %2838 = vmatpush1.msra.mxu0 0.0
        %2839 = vmatprep.subr.mxu0 0.0
        %2840 = vmatpush1.msra.mxu0 0.0
        %2841 = vmatprep.subr.mxu0 0.0
        %2842 = vmatpush1.msra.mxu0 0.0
        %2843 = vmatprep.subr.mxu0 0.0
        %2844 = vmatpush1.msra.mxu0 0.0
        %2845 = vmatprep.subr.mxu0 0.0
        %2846 = vmatpush1.msra.mxu0 0.0
        %2847 = vmatprep.subr.mxu0 0.0
        %2848 = vmatpush1.msra.mxu0 0.0
        %2849 = vmatprep.subr.mxu0 0.0
        %2850 = vmatpush1.msra.mxu0 0.0
        %2851 = vmatprep.subr.mxu0 0.0
        %2852 = vmatpush1.msra.mxu0 0.0
        %2853 = vmatprep.subr.mxu0 0.0
        %2854 = vmatpush1.msra.mxu0 0.0
        %2855 = vmatprep.mubr.f32.mxu0 0.0
        %2856 = vmatmul.mubr.f32.gmra.mrb[0].mxu0 %v2786
        %v2857 = vpop.f32.mrb[0].mxu0
        %v2858 = vadd.f32 0.0, %v2857
        %v2859 = vpop.f32.mrb[0].mxu0
        %2860 = vmatprep.mubr.f32.mxu0 0.0
        %2861 = vmatmul.mubr.f32.gmra.mrb[0].mxu0 %v2789
        %v2862 = vpop.f32.mrb[0].mxu0
        %v2863 = vadd.f32 0.0, %v2862
        %v2864 = vpop.f32.mrb[0].mxu0
        %2865 = vdwg.mxu0
        %2866 = vmatprep.subr.mxu0 0.0
        %2867 = vmatpush1.xpose.msra.mxu0 %v2497
        %2868 = vmatprep.subr.mxu0 0.0
        %2869 = vmatpush1.xpose.msra.mxu0 %v2503
        %2870 = vmatprep.subr.mxu0 0.0
        %2871 = vmatpush1.xpose.msra.mxu0 0.0
        %2872 = vmatprep.subr.mxu0 0.0
        %2873 = vmatpush1.xpose.msra.mxu0 0.0
        %2874 = vmatprep.subr.mxu0 0.0
        %2875 = vmatpush1.xpose.msra.mxu0 0.0
        %2876 = vmatprep.subr.mxu0 0.0
        %2877 = vmatpush1.xpose.msra.mxu0 0.0
        %2878 = vmatprep.subr.mxu0 0.0
        %2879 = vmatpush1.xpose.msra.mxu0 0.0
        %2880 = vmatprep.subr.mxu0 0.0
        %2881 = vmatpush1.xpose.msra.mxu0 0.0
        %2882 = vmatprep.subr.mxu0 0.0
        %2883 = vmatpush1.xpose.msra.mxu0 0.0
        %2884 = vmatprep.subr.mxu0 0.0
        %2885 = vmatpush1.xpose.msra.mxu0 0.0
        %2886 = vmatprep.subr.mxu0 0.0
        %2887 = vmatpush1.xpose.msra.mxu0 0.0
        %2888 = vmatprep.subr.mxu0 0.0
        %2889 = vmatpush1.xpose.msra.mxu0 0.0
        %2890 = vmatprep.subr.mxu0 0.0
        %2891 = vmatpush1.xpose.msra.mxu0 0.0
        %2892 = vmatprep.subr.mxu0 0.0
        %2893 = vmatpush1.xpose.msra.mxu0 0.0
        %2894 = vmatprep.subr.mxu0 0.0
        %2895 = vmatpush1.xpose.msra.mxu0 0.0
        %2896 = vmatprep.subr.mxu0 0.0
        %2897 = vmatpush1.xpose.msra.mxu0 0.0
        %2898 = vmatprep.subr.mxu0 0.0
        %2899 = vmatpush1.xpose.msra.mxu0 0.0
        %2900 = vmatprep.subr.mxu0 0.0
        %2901 = vmatpush1.xpose.msra.mxu0 0.0
        %2902 = vmatprep.subr.mxu0 0.0
        %2903 = vmatpush1.xpose.msra.mxu0 0.0
        %2904 = vmatprep.subr.mxu0 0.0
        %2905 = vmatpush1.xpose.msra.mxu0 0.0
        %2906 = vmatprep.subr.mxu0 0.0
        %2907 = vmatpush1.xpose.msra.mxu0 0.0
        %2908 = vmatprep.subr.mxu0 0.0
        %2909 = vmatpush1.xpose.msra.mxu0 0.0
        %2910 = vmatprep.subr.mxu0 0.0
        %2911 = vmatpush1.xpose.msra.mxu0 0.0
        %2912 = vmatprep.subr.mxu0 0.0
        %2913 = vmatpush1.xpose.msra.mxu0 0.0
        %2914 = vmatprep.subr.mxu0 0.0
        %2915 = vmatpush1.xpose.msra.mxu0 0.0
        %2916 = vmatprep.subr.mxu0 0.0
        %2917 = vmatpush1.xpose.msra.mxu0 0.0
        %2918 = vmatprep.subr.mxu0 0.0
        %2919 = vmatpush1.xpose.msra.mxu0 0.0
        %2920 = vmatprep.subr.mxu0 0.0
        %2921 = vmatpush1.xpose.msra.mxu0 0.0
        %2922 = vmatprep.subr.mxu0 0.0
        %2923 = vmatpush1.xpose.msra.mxu0 0.0
        %2924 = vmatprep.subr.mxu0 0.0
        %2925 = vmatpush1.xpose.msra.mxu0 0.0
        %2926 = vmatprep.subr.mxu0 0.0
        %2927 = vmatpush1.xpose.msra.mxu0 0.0
        %2928 = vmatprep.subr.mxu0 0.0
        %2929 = vmatpush1.xpose.msra.mxu0 0.0
        %2930 = vmatprep.mubr.f32.mxu0 0.0
        %2931 = vmatmul.mubr.f32.gmra.mrb[0].mxu0 %v2143
        %v2932 = vpop.f32.mrb[0].mxu0
        %v2933 = vadd.f32 0.0, %v2932
        %v2934 = vpop.f32.mrb[0].mxu0
        %2935 = vmatprep.mubr.f32.mxu0 0.0
        %2936 = vmatmul.mubr.f32.gmra.mrb[0].mxu0 %v2149
        %v2937 = vpop.f32.mrb[0].mxu0
        %v2938 = vadd.f32 0.0, %v2937
        %v2939 = vpop.f32.mrb[0].mxu0
        %2940 = vdwg.mxu0
        %2941 = vmatprep.subr.mxu0 0.0
        %2942 = vmatpush1.xpose.msra.mxu0 %v2509
        %2943 = vmatprep.subr.mxu0 0.0
        %2944 = vmatpush1.xpose.msra.mxu0 %v2515
        %2945 = vmatprep.subr.mxu0 0.0
        %2946 = vmatpush1.xpose.msra.mxu0 0.0
        %2947 = vmatprep.subr.mxu0 0.0
        %2948 = vmatpush1.xpose.msra.mxu0 0.0
        %2949 = vmatprep.subr.mxu0 0.0
        %2950 = vmatpush1.xpose.msra.mxu0 0.0
        %2951 = vmatprep.subr.mxu0 0.0
        %2952 = vmatpush1.xpose.msra.mxu0 0.0
        %2953 = vmatprep.subr.mxu0 0.0
        %2954 = vmatpush1.xpose.msra.mxu0 0.0
        %2955 = vmatprep.subr.mxu0 0.0
        %2956 = vmatpush1.xpose.msra.mxu0 0.0
        %2957 = vmatprep.subr.mxu0 0.0
        %2958 = vmatpush1.xpose.msra.mxu0 0.0
        %2959 = vmatprep.subr.mxu0 0.0
        %2960 = vmatpush1.xpose.msra.mxu0 0.0
        %2961 = vmatprep.subr.mxu0 0.0
        %2962 = vmatpush1.xpose.msra.mxu0 0.0
        %2963 = vmatprep.subr.mxu0 0.0
        %2964 = vmatpush1.xpose.msra.mxu0 0.0
        %2965 = vmatprep.subr.mxu0 0.0
        %2966 = vmatpush1.xpose.msra.mxu0 0.0
        %2967 = vmatprep.subr.mxu0 0.0
        %2968 = vmatpush1.xpose.msra.mxu0 0.0
        %2969 = vmatprep.subr.mxu0 0.0
        %2970 = vmatpush1.xpose.msra.mxu0 0.0
        %2971 = vmatprep.subr.mxu0 0.0
        %2972 = vmatpush1.xpose.msra.mxu0 0.0
        %2973 = vmatprep.subr.mxu0 0.0
        %2974 = vmatpush1.xpose.msra.mxu0 0.0
        %2975 = vmatprep.subr.mxu0 0.0
        %2976 = vmatpush1.xpose.msra.mxu0 0.0
        %2977 = vmatprep.subr.mxu0 0.0
        %2978 = vmatpush1.xpose.msra.mxu0 0.0
        %2979 = vmatprep.subr.mxu0 0.0
        %2980 = vmatpush1.xpose.msra.mxu0 0.0
        %2981 = vmatprep.subr.mxu0 0.0
        %2982 = vmatpush1.xpose.msra.mxu0 0.0
        %2983 = vmatprep.subr.mxu0 0.0
        %2984 = vmatpush1.xpose.msra.mxu0 0.0
        %2985 = vmatprep.subr.mxu0 0.0
        %2986 = vmatpush1.xpose.msra.mxu0 0.0
        %2987 = vmatprep.subr.mxu0 0.0
        %2988 = vmatpush1.xpose.msra.mxu0 0.0
        %2989 = vmatprep.subr.mxu0 0.0
        %2990 = vmatpush1.xpose.msra.mxu0 0.0
        %2991 = vmatprep.subr.mxu0 0.0
        %2992 = vmatpush1.xpose.msra.mxu0 0.0
        %2993 = vmatprep.subr.mxu0 0.0
        %2994 = vmatpush1.xpose.msra.mxu0 0.0
        %2995 = vmatprep.subr.mxu0 0.0
        %2996 = vmatpush1.xpose.msra.mxu0 0.0
        %2997 = vmatprep.subr.mxu0 0.0
        %2998 = vmatpush1.xpose.msra.mxu0 0.0
        %2999 = vmatprep.subr.mxu0 0.0
        %3000 = vmatpush1.xpose.msra.mxu0 0.0
        %3001 = vmatprep.subr.mxu0 0.0
        %3002 = vmatpush1.xpose.msra.mxu0 0.0
        %3003 = vmatprep.subr.mxu0 0.0
        %3004 = vmatpush1.xpose.msra.mxu0 0.0
        %3005 = vmatprep.mubr.f32.mxu0 0.0
        %3006 = vmatmul.mubr.f32.gmra.mrb[0].mxu0 %v2155
        %v3007 = vpop.f32.mrb[0].mxu0
        %v3008 = vadd.f32 0.0, %v3007
        %v3009 = vpop.f32.mrb[0].mxu0
        %3010 = vmatprep.mubr.f32.mxu0 0.0
        %3011 = vmatmul.mubr.f32.gmra.mrb[0].mxu0 %v2161
        %v3012 = vpop.f32.mrb[0].mxu0
        %v3013 = vadd.f32 0.0, %v3012
        %v3014 = vpop.f32.mrb[0].mxu0
        %3015 = vdwg.mxu0
        %v3016 = vmul.f32 %v2933, 11.313708
        %v3017 = vmul.f32 %v2938, 11.313708
        %v3018 = vmul.f32 %v3008, 11.313708
        %v3019 = vmul.f32 %v3013, 11.313708
        %v3020 = vsel %vm2673, %v3016, -inf
        %v3021 = vsel %vm2673, %v3018, -inf
        %v3022 = vmax.f32 %v3020, %v3021
        %v3023 = vsel %vm2673, %v3017, -inf
        %v3024 = vsel %vm2673, %v3019, -inf
        %v3025 = vmax.f32 %v3023, %v3024
        %v3026 = vsub.f32 %v3016, %v3022
        %v3027 = vsub.f32 %v3017, %v3025
        %v3028 = vsub.f32 %v3018, %v3022
        %v3029 = vsub.f32 %v3019, %v3025
        %v3030 = vmul.f32 %v3026, 1.442695
        %v3031 = vpow.pop %v3030
        %v3032 = vmul.f32 %v3027, 1.442695
        %v3033 = vpow.pop %v3032
        %v3034 = vmul.f32 %v3028, 1.442695
        %v3035 = vpow.pop %v3034
        %v3036 = vmul.f32 %v3029, 1.442695
        %v3037 = vpow.pop %v3036
        %v3038 = vsel %vm2673, %v3031, 0.0
        %v3039 = vsel %vm2673, %v3035, 0.0
        %v3040 = vadd.f32 %v3038, %v3039
        %v3041 = vsel %vm2673, %v3033, 0.0
        %v3042 = vsel %vm2673, %v3037, 0.0
        %v3043 = vadd.f32 %v3041, %v3042
        %v3044 = vrcp.pop %v3040
        %v3045 = vmul.f32 %v3031, %v3044
        %v3046 = vrcp.pop %v3043
        %v3047 = vmul.f32 %v3033, %v3046
        %v3048 = vmul.f32 %v3035, %v3044
        %v3049 = vmul.f32 %v3037, %v3046
        %v3051 = vsel %vm2673, %v3045, 0
        %v3054 = vsel %vm2673, %v3047, 0
        %3056 = vmatprep.subr.mxu0 0.0
        %3057 = vmatpush1.msra.mxu0 %v2499
        %3058 = vmatprep.subr.mxu0 0.0
        %3059 = vmatpush1.msra.mxu0 %v2505
        %3060 = vmatprep.subr.mxu0 0.0
        %3061 = vmatpush1.msra.mxu0 0.0
        %3062 = vmatprep.subr.mxu0 0.0
        %3063 = vmatpush1.msra.mxu0 0.0
        %3064 = vmatprep.subr.mxu0 0.0
        %3065 = vmatpush1.msra.mxu0 0.0
        %3066 = vmatprep.subr.mxu0 0.0
        %3067 = vmatpush1.msra.mxu0 0.0
        %3068 = vmatprep.subr.mxu0 0.0
        %3069 = vmatpush1.msra.mxu0 0.0
        %3070 = vmatprep.subr.mxu0 0.0
        %3071 = vmatpush1.msra.mxu0 0.0
        %3072 = vmatprep.subr.mxu0 0.0
        %3073 = vmatpush1.msra.mxu0 0.0
        %3074 = vmatprep.subr.mxu0 0.0
        %3075 = vmatpush1.msra.mxu0 0.0
        %3076 = vmatprep.subr.mxu0 0.0
        %3077 = vmatpush1.msra.mxu0 0.0
        %3078 = vmatprep.subr.mxu0 0.0
        %3079 = vmatpush1.msra.mxu0 0.0
        %3080 = vmatprep.subr.mxu0 0.0
        %3081 = vmatpush1.msra.mxu0 0.0
        %3082 = vmatprep.subr.mxu0 0.0
        %3083 = vmatpush1.msra.mxu0 0.0
        %3084 = vmatprep.subr.mxu0 0.0
        %3085 = vmatpush1.msra.mxu0 0.0
        %3086 = vmatprep.subr.mxu0 0.0
        %3087 = vmatpush1.msra.mxu0 0.0
        %3088 = vmatprep.subr.mxu0 0.0
        %3089 = vmatpush1.msra.mxu0 0.0
        %3090 = vmatprep.subr.mxu0 0.0
        %3091 = vmatpush1.msra.mxu0 0.0
        %3092 = vmatprep.subr.mxu0 0.0
        %3093 = vmatpush1.msra.mxu0 0.0
        %3094 = vmatprep.subr.mxu0 0.0
        %3095 = vmatpush1.msra.mxu0 0.0
        %3096 = vmatprep.subr.mxu0 0.0
        %3097 = vmatpush1.msra.mxu0 0.0
        %3098 = vmatprep.subr.mxu0 0.0
        %3099 = vmatpush1.msra.mxu0 0.0
        %3100 = vmatprep.subr.mxu0 0.0
        %3101 = vmatpush1.msra.mxu0 0.0
        %3102 = vmatprep.subr.mxu0 0.0
        %3103 = vmatpush1.msra.mxu0 0.0
        %3104 = vmatprep.subr.mxu0 0.0
        %3105 = vmatpush1.msra.mxu0 0.0
        %3106 = vmatprep.subr.mxu0 0.0
        %3107 = vmatpush1.msra.mxu0 0.0
        %3108 = vmatprep.subr.mxu0 0.0
        %3109 = vmatpush1.msra.mxu0 0.0
        %3110 = vmatprep.subr.mxu0 0.0
        %3111 = vmatpush1.msra.mxu0 0.0
        %3112 = vmatprep.subr.mxu0 0.0
        %3113 = vmatpush1.msra.mxu0 0.0
        %3114 = vmatprep.subr.mxu0 0.0
        %3115 = vmatpush1.msra.mxu0 0.0
        %3116 = vmatprep.subr.mxu0 0.0
        %3117 = vmatpush1.msra.mxu0 0.0
        %3118 = vmatprep.subr.mxu0 0.0
        %3119 = vmatpush1.msra.mxu0 0.0
        %3120 = vmatprep.mubr.f32.mxu0 0.0
        %3121 = vmatmul.mubr.f32.gmra.mrb[0].mxu0 %v3051
        %v3122 = vpop.f32.mrb[0].mxu0
        %v3123 = vadd.f32 0.0, %v3122
        %v3124 = vpop.f32.mrb[0].mxu0
        %3125 = vmatprep.mubr.f32.mxu0 0.0
        %3126 = vmatmul.mubr.f32.gmra.mrb[0].mxu0 %v3054
        %v3127 = vpop.f32.mrb[0].mxu0
        %v3128 = vadd.f32 0.0, %v3127
        %v3129 = vpop.f32.mrb[0].mxu0
        %3130 = vdwg.mxu0
        %v3132 = vsel %vm2673, %v3048, 0
        %v3135 = vsel %vm2673, %v3049, 0
        %3137 = vmatprep.subr.mxu0 0.0
        %3138 = vmatpush1.msra.mxu0 %v2511
        %3139 = vmatprep.subr.mxu0 0.0
        %3140 = vmatpush1.msra.mxu0 %v2517
        %3141 = vmatprep.subr.mxu0 0.0
        %3142 = vmatpush1.msra.mxu0 0.0
        %3143 = vmatprep.subr.mxu0 0.0
        %3144 = vmatpush1.msra.mxu0 0.0
        %3145 = vmatprep.subr.mxu0 0.0
        %3146 = vmatpush1.msra.mxu0 0.0
        %3147 = vmatprep.subr.mxu0 0.0
        %3148 = vmatpush1.msra.mxu0 0.0
        %3149 = vmatprep.subr.mxu0 0.0
        %3150 = vmatpush1.msra.mxu0 0.0
        %3151 = vmatprep.subr.mxu0 0.0
        %3152 = vmatpush1.msra.mxu0 0.0
        %3153 = vmatprep.subr.mxu0 0.0
        %3154 = vmatpush1.msra.mxu0 0.0
        %3155 = vmatprep.subr.mxu0 0.0
        %3156 = vmatpush1.msra.mxu0 0.0
        %3157 = vmatprep.subr.mxu0 0.0
        %3158 = vmatpush1.msra.mxu0 0.0
        %3159 = vmatprep.subr.mxu0 0.0
        %3160 = vmatpush1.msra.mxu0 0.0
        %3161 = vmatprep.subr.mxu0 0.0
        %3162 = vmatpush1.msra.mxu0 0.0
        %3163 = vmatprep.subr.mxu0 0.0
        %3164 = vmatpush1.msra.mxu0 0.0
        %3165 = vmatprep.subr.mxu0 0.0
        %3166 = vmatpush1.msra.mxu0 0.0
        %3167 = vmatprep.subr.mxu0 0.0
        %3168 = vmatpush1.msra.mxu0 0.0
        %3169 = vmatprep.subr.mxu0 0.0
        %3170 = vmatpush1.msra.mxu0 0.0
        %3171 = vmatprep.subr.mxu0 0.0
        %3172 = vmatpush1.msra.mxu0 0.0
        %3173 = vmatprep.subr.mxu0 0.0
        %3174 = vmatpush1.msra.mxu0 0.0
        %3175 = vmatprep.subr.mxu0 0.0
        %3176 = vmatpush1.msra.mxu0 0.0
        %3177 = vmatprep.subr.mxu0 0.0
        %3178 = vmatpush1.msra.mxu0 0.0
        %3179 = vmatprep.subr.mxu0 0.0
        %3180 = vmatpush1.msra.mxu0 0.0
        %3181 = vmatprep.subr.mxu0 0.0
        %3182 = vmatpush1.msra.mxu0 0.0
        %3183 = vmatprep.subr.mxu0 0.0
        %3184 = vmatpush1.msra.mxu0 0.0
        %3185 = vmatprep.subr.mxu0 0.0
        %3186 = vmatpush1.msra.mxu0 0.0
        %3187 = vmatprep.subr.mxu0 0.0
        %3188 = vmatpush1.msra.mxu0 0.0
        %3189 = vmatprep.subr.mxu0 0.0
        %3190 = vmatpush1.msra.mxu0 0.0
        %3191 = vmatprep.subr.mxu0 0.0
        %3192 = vmatpush1.msra.mxu0 0.0
        %3193 = vmatprep.subr.mxu0 0.0
        %3194 = vmatpush1.msra.mxu0 0.0
        %3195 = vmatprep.subr.mxu0 0.0
        %3196 = vmatpush1.msra.mxu0 0.0
        %3197 = vmatprep.subr.mxu0 0.0
        %3198 = vmatpush1.msra.mxu0 0.0
        %3199 = vmatprep.subr.mxu0 0.0
        %3200 = vmatpush1.msra.mxu0 0.0
        %3201 = vmatprep.mubr.f32.mxu0 0.0
        %3202 = vmatmul.mubr.f32.gmra.mrb[0].mxu0 %v3132
        %v3203 = vpop.f32.mrb[0].mxu0
        %v3204 = vadd.f32 0.0, %v3203
        %v3205 = vpop.f32.mrb[0].mxu0
        %3206 = vmatprep.mubr.f32.mxu0 0.0
        %3207 = vmatmul.mubr.f32.gmra.mrb[0].mxu0 %v3135
        %v3208 = vpop.f32.mrb[0].mxu0
        %v3209 = vadd.f32 0.0, %v3208
        %v3210 = vpop.f32.mrb[0].mxu0
        %3211 = vdwg.mxu0
        %v3212 = vld [vmem:[%s268] sm:$0xff]
        %v3213 = vld [vmem:[%s268 + $0x8] sm:$0xff]
        %v3214 = vld [vmem:[%s268 + $0x10] sm:$0xff]
        %v3215 = vld [vmem:[%s268 + $0x18] sm:$0xff]
        %v3216 = vld [vmem:[%s268 + $0x20] sm:$0xff]
        %v3217 = vld [vmem:[%s268 + $0x28] sm:$0xff]
        %v3218 = vld [vmem:[%s268 + $0x30] sm:$0xff]
        %v3219 = vld [vmem:[%s268 + $0x38] sm:$0xff]
        %v3220 = vadd.f32 %v3212, %v2777
        %v3221 = vadd.f32 %v3213, %v3123
        %v3222 = vadd.f32 %v3214, %v2782
        %v3223 = vadd.f32 %v3215, %v3128
        %v3224 = vadd.f32 %v3216, %v2858
        %v3225 = vadd.f32 %v3217, %v3204
        %v3226 = vadd.f32 %v3218, %v2863
        %v3227 = vadd.f32 %v3219, %v3209
        %3228 = vst [vmem:[%s315] sm:$0xff] %v3220
        %3229 = vst [vmem:[%s315 + $0x8] sm:$0xff] %v3221
        %3230 = vst [vmem:[%s315 + $0x10] sm:$0xff] %v3222
        %3231 = vst [vmem:[%s315 + $0x18] sm:$0xff] %v3223
        %3232 = vst [vmem:[%s315 + $0x20] sm:$0xff] %v3224
        %3233 = vst [vmem:[%s315 + $0x28] sm:$0xff] %v3225
        %3234 = vst [vmem:[%s315 + $0x30] sm:$0xff] %v3226
        %3235 = vst [vmem:[%s315 + $0x38] sm:$0xff] %v3227
        %s3236 = sand.u32 %s144, 1
        %s3237 = sand.u32 %s144, 1
        %s3238 = smul.addr %s3237, 64
        %s3239 = scalar_lea.vmem [#allocation10], %s3238
        // Predicated region
        $region61: #{block_forward.2} parent=39 // pred_check
          %p3240 = pneg %p154
        $region62: #{block_forward.2} parent=39 // pred_check_branch
          %3242 = sbr.rel (%p3240) target = $region64
        $region63: #{block_forward.2} parent=39 // pred_region
          %s3243 = smul.u32 2, %s21
          %s3244 = smul.addr %s3243, 8
          %s3245 = scalar_lea.vmem %s5, %s3244
          // Predicated region
          $region65: #{block_forward.2} parent=63 // pred_check
            _
          $region66: #{block_forward.2} parent=63 // pred_check_branch
            %3247 = sbr.rel (0) target = $region68
          $region67: #{block_forward.2} parent=63 // pred_region
            // Predicated region
            $region69: #{block_forward.2} parent=67 // pred_check
              _
            $region70: #{block_forward.2} parent=67 // pred_check_branch
              %3249 = sbr.rel (0) target = $region72
            $region71: #{block_forward.2} parent=67 // pred_region
              loop: start=0, step=1, limit=1
              $region73: #{block_forward.2} parent=71 // loop_pre_header
                _
              $region74: #{block_forward.2} parent=71 // loop_header
                %s3251 = sphi 0, %s3255
                %p3252 = scmp.ge.s32.totalorder %s3251, 1
                %s3256 = sphi %s3239, %s3239
                %s3257 = sphi %s3245, %s3245
              $region75: #{block_forward.2} parent=71 // loop_header_branch
                %3254 = sbr.rel (%p3252) target = $region79
              $region76: #{block_forward.2} parent=71 // loop_body
                %v3258 = vld [vmem:[%s3256] sm:$0xff]
                %3259 = vst [vmem:[%s3257] sm:$0xff] %v3258
                %v3260 = vld [vmem:[%s3256 + $0x8] sm:$0xff]
                %3261 = vst [vmem:[%s3257 + $0x8] sm:$0xff] %v3260
                %v3262 = vld [vmem:[%s3256 + $0x10] sm:$0xff]
                %3263 = vst [vmem:[%s3257 + $0x40] sm:$0xff] %v3262
                %v3264 = vld [vmem:[%s3256 + $0x18] sm:$0xff]
                %3265 = vst [vmem:[%s3257 + $0x48] sm:$0xff] %v3264
                %v3266 = vld [vmem:[%s3256 + $0x20] sm:$0xff]
                %3267 = vst [vmem:[%s3257 + $0x80] sm:$0xff] %v3266
                %v3268 = vld [vmem:[%s3256 + $0x28] sm:$0xff]
                %3269 = vst [vmem:[%s3257 + $0x88] sm:$0xff] %v3268
                %v3270 = vld [vmem:[%s3256 + $0x30] sm:$0xff]
                %3271 = vst [vmem:[%s3257 + $0xc0] sm:$0xff] %v3270
                %v3272 = vld [vmem:[%s3256 + $0x38] sm:$0xff]
                %3273 = vst [vmem:[%s3257 + $0xc8] sm:$0xff] %v3272
              $region77: #{block_forward.2} parent=71 // loop_footer
                %s3255 = sadd.s32 1, %s3251
              $region78: #{block_forward.2} parent=71 // loop_footer_branch
                %3250 = sbr.rel target = $region74
              $region79: #{block_forward.2} parent=71 // loop_exit
                _
            $region72: #{block_forward.2} parent=67 // pred_fallthru
              _
            // Predicated region
            $region80: #{block_forward.2} parent=67 // pred_check
              _
            $region81: #{block_forward.2} parent=67 // pred_check_branch
              %3275 = sbr.rel target = $region83
            $region82: #{block_forward.2} parent=67 // pred_region
              _
            $region83: #{block_forward.2} parent=67 // pred_fallthru
              _
          $region68: #{block_forward.2} parent=63 // pred_fallthru
            _
          %3276 = vnop
        $region64: #{block_forward.2} parent=39 // pred_fallthru
          _
      $region40: #{block_forward.2} parent=5 // pred_fallthru
        _
      %p3277 = scmp.le.s32.totalorder 2, %s16
      // Predicated region
      $region84: #{block_forward.2} parent=5 // pred_check
        %p3278 = pneg %p3277
      $region85: #{block_forward.2} parent=5 // pred_check_branch
        %3280 = sbr.rel (%p3278) target = $region87
      $region86: #{block_forward.2} parent=5 // pred_region
        %s3281 = ssub.s32 %s16, 2
        // Predicated region
        $region88: #{block_forward.2} parent=86 // pred_check
          %p3282 = pneg %p160
        $region89: #{block_forward.2} parent=86 // pred_check_branch
          %3284 = sbr.rel (%p3282) target = $region91
        $region90: #{block_forward.2} parent=86 // pred_region
          %s3285 = sand.u32 %s145, 1
          %s3286 = sand.u32 %s145, 1
          %s3287 = smul.addr %s3286, 64
          %s3288 = scalar_lea.vmem [#allocation10], %s3287
        $region91: #{block_forward.2} parent=86 // pred_fallthru
          _
      $region87: #{block_forward.2} parent=5 // pred_fallthru
        _
    $region6: #{block_forward.2} parent=1 // loop_footer
      %s20 = sadd.s32 1, %s16
    $region7: #{block_forward.2} parent=1 // loop_footer_branch
      %15 = sbr.rel target = $region3
    $region8: #{block_forward.2} parent=1 // loop_exit
      _
    %3289 = vsyncpa [#allocation3], 1
    %s3290 = scalar_lea.sflag [#allocation3], 1
    %3291 = vsyncpa %s3290, 1
    %3292 = vsyncpa [#allocation5], 1
    %s3293 = scalar_lea.sflag [#allocation5], 1
    %3294 = vsyncpa %s3293, 1
    %3295 = vsyncpa [#allocation8], 1

// kernel: block_forward.3
$region0: #{block_forward.3}
  #allocation0 [shape = 'u32[]', space=smem, size = 0x4, offset = 0x4, fixed_abs, tag = 'smem constant byte address 0x4 - core index']
  #allocation1 [shape = 'u32[144,128]{1,0:T(1,128)}', space=vmem, size = 0x12000, scoped, tag = 'internal scratch']
  #allocation2 [shape = 'f32[32,1024]{1,0:T(8,128)}', space=vmem, size = 0x20000, scoped, tag = 'scratch operand']
  %s0 = inlined_call_operand.vmem [shape: f32[32,1024], index: 0, kind: input, shape index: {}]
  %s1 = inlined_call_operand.hbm [shape: f32[1,1024], index: 1, kind: input, shape index: {}]
  %s2 = inlined_call_operand.hbm [shape: f32[1,1024], index: 2, kind: input, shape index: {}]
  %s3 = inlined_call_operand.hbm [shape: f32[1024,4096], index: 3, kind: input, shape index: {}]
  %s4 = inlined_call_operand.hbm [shape: f32[1,4096], index: 4, kind: input, shape index: {}]
  %s5 = inlined_call_operand.hbm [shape: f32[4096,1024], index: 5, kind: input, shape index: {}]
  %s6 = inlined_call_operand.hbm [shape: f32[1,1024], index: 6, kind: input, shape index: {}]
  %s7 = inlined_call_operand.vmem [shape: f32[2,32,1024], index: 7, kind: output, shape index: {}]
  %s8 = sld [smem:[#allocation0]]
  $region89: #{block_forward.3} parent=0
    _
  %s10 = ssub.s32 1, %s8
  %s11 = scalar_select 0, %s10, %s8
  $region1: #{block_forward.3} parent=0
    #allocation3 [shape = 'u8[4096]{0}', space=vmem, size = 0x1000, scoped, tag = 'input window, operand 1, single buffered']
    #allocation4 [shape = 's32[2]{0}', space=sflag, size = 0x8, scoped, tag = 'scoped memory for block_forward.3']
    #allocation5 [shape = 'u8[4096]{0}', space=vmem, size = 0x1000, scoped, tag = 'input window, operand 2, single buffered']
    #allocation6 [shape = 's32[1]{0}', space=sflag, size = 0x4, scoped, tag = 'scoped memory for block_forward.3']
    #allocation7 [shape = 'u8[8388608]{0}', space=vmem, size = 0x800000, scoped, tag = 'input window, operand 3']
    #allocation8 [shape = 'u8[8192]{0}', space=vmem, size = 0x2000, scoped, tag = 'input window, operand 4']
    #allocation9 [shape = 'u8[8388608]{0}', space=vmem, size = 0x800000, scoped, tag = 'input window, operand 5']
    #allocation10 [shape = 'u8[4096]{0}', space=vmem, size = 0x1000, scoped, tag = 'input window, operand 6, single buffered']
    %12 = vsyncpa [#allocation4], 0
    %13 = vsyncpa [#allocation6], 0
    loop: start=0, step=1, limit=6
    $region2: #{block_forward.3} parent=1 // loop_pre_header
      _
    $region3: #{block_forward.3} parent=1 // loop_header
      %s15 = sphi 0, %s19
      %p16 = scmp.ge.s32.totalorder %s15, 6
      %s22 = sphi 0, %s34
      %s23 = sphi 0, %s30
      %s24 = sphi 0, %s22
      %s25 = sphi 0, %s23
      %s26 = sphi 0, %s24
      %s27 = sphi 0, %s25
      %s35 = sphi 0, %s35
      %s37 = sphi 0, %s35
      %s38 = sphi 0, %s37
      %s52 = sphi 0, %s38
      %s56 = sphi 0, %s56
      %s58 = sphi 0, %s56
      %s59 = sphi 0, %s58
      %s73 = sphi 0, %s59
      %s77 = sphi 0, %s77
      %s79 = sphi 0, %s77
      %s80 = sphi 0, %s79
      %s94 = sphi 0, %s80
      %s104 = sphi 0, %s106
      %s107 = sphi 0, %s104
      %s108 = sphi 0, %s107
      %s124 = sphi 0, %s108
      %s134 = sphi 0, %s136
      %s137 = sphi 0, %s134
      %s138 = sphi 0, %s137
      %s154 = sphi 0, %s138
      %s164 = sphi 0, %s166
      %s167 = sphi 0, %s164
      %s168 = sphi 0, %s167
      %s184 = sphi 0, %s168
      %s188 = sphi 0, %s188
      %s190 = sphi 0, %s188
      %s191 = sphi 0, %s190
      %s205 = sphi 0, %s191
      %s211 = sphi 0, %s213
      %s214 = sphi 0, %s211
      %s215 = sphi 0, %s214
      %s231 = sphi 0, %s215
    $region4: #{block_forward.3} parent=1 // loop_header_branch
      %18 = sbr.rel (%p16) target = $region8
    $region5: #{block_forward.3} parent=1 // loop_body
      %s20 = ssub.s32 %s15, 1
      %s21 = ssub.s32 %s15, 2
      %s28 = sadd.s32 1, %s23
      %p29 = scmp.ge.s32.totalorder %s28, 2
      %s30 = scalar_select %p29, 0, %s28
      %s31 = sadd.s32 1, %s22
      %s32 = scalar_select %p29, %s31, %s22
      %p33 = scmp.ge.s32.totalorder %s32, 2
      %s34 = scalar_select %p33, 0, %s32
      %s36 = sadd.s32 %s35, 1
      %p39 = scmp.eq.s32.totalorder %s15, 3
      %p40 = scmp.ne.s32.totalorder %s35, %s37
      %p41 = scmp.eq.s32.totalorder %s15, 0
      %p42 = por %p40, %p41
      %p43 = scmp.ne.s32.totalorder %s35, %s37
      %p44 = scmp.eq.s32.totalorder %s20, 3
      %p45 = por %p43, %p44
      %p46 = scmp.ne.s32.totalorder %s37, %s38
      %p47 = scmp.eq.s32.totalorder %s20, 0
      %p48 = por %p46, %p47
      %p49 = scmp.ne.s32.totalorder %s37, %s38
      %p50 = scmp.eq.s32.totalorder %s21, 3
      %p51 = por %p49, %p50
      %p53 = scmp.ne.s32.totalorder %s38, %s52
      %p54 = scmp.eq.s32.totalorder %s21, 0
      %p55 = por %p53, %p54
      %s57 = sadd.s32 %s56, 1
      %p60 = scmp.eq.s32.totalorder %s15, 3
      %p61 = scmp.ne.s32.totalorder %s56, %s58
      %p62 = scmp.eq.s32.totalorder %s15, 0
      %p63 = por %p61, %p62
      %p64 = scmp.ne.s32.totalorder %s56, %s58
      %p65 = scmp.eq.s32.totalorder %s20, 3
      %p66 = por %p64, %p65
      %p67 = scmp.ne.s32.totalorder %s58, %s59
      %p68 = scmp.eq.s32.totalorder %s20, 0
      %p69 = por %p67, %p68
      %p70 = scmp.ne.s32.totalorder %s58, %s59
      %p71 = scmp.eq.s32.totalorder %s21, 3
      %p72 = por %p70, %p71
      %p74 = scmp.ne.s32.totalorder %s59, %s73
      %p75 = scmp.eq.s32.totalorder %s21, 0
      %p76 = por %p74, %p75
      %s78 = sadd.s32 %s77, 1
      %p81 = scmp.eq.s32.totalorder %s15, 3
      %p82 = scmp.ne.s32.totalorder %s77, %s79
      %p83 = scmp.eq.s32.totalorder %s15, 0
      %p84 = por %p82, %p83
      %p85 = scmp.ne.s32.totalorder %s77, %s79
      %p86 = scmp.eq.s32.totalorder %s20, 3
      %p87 = por %p85, %p86
      %p88 = scmp.ne.s32.totalorder %s79, %s80
      %p89 = scmp.eq.s32.totalorder %s20, 0
      %p90 = por %p88, %p89
      %p91 = scmp.ne.s32.totalorder %s79, %s80
      %p92 = scmp.eq.s32.totalorder %s21, 3
      %p93 = por %p91, %p92
      %p95 = scmp.ne.s32.totalorder %s80, %s94
      %p96 = scmp.eq.s32.totalorder %s21, 0
      %p97 = por %p95, %p96
      %s98 = smul.u32 %s22, 2
      %s99 = sadd.s32 %s98, %s23
      %s100 = smul.u32 %s34, 2
      %s101 = sadd.s32 %s100, %s30
      %s102 = ssub.s32 %s99, %s101
      %p103 = scmp.eq.s32.totalorder %s102, 0
      %s105 = sadd.s32 %s104, 1
      %s106 = scalar_select %p103, %s104, %s105
      %p109 = pneg %p103
      %p110 = scmp.eq.s32.totalorder %s15, 3
      %p111 = por %p109, %p110
      %p112 = scmp.ne.s32.totalorder %s104, %s107
      %p113 = scmp.eq.s32.totalorder %s15, 0
      %p114 = por %p112, %p113
      %p115 = scmp.ne.s32.totalorder %s104, %s107
      %p116 = scmp.eq.s32.totalorder %s20, 3
      %p117 = por %p115, %p116
      %p118 = scmp.ne.s32.totalorder %s107, %s108
      %p119 = scmp.eq.s32.totalorder %s20, 0
      %p120 = por %p118, %p119
      %p121 = scmp.ne.s32.totalorder %s107, %s108
      %p122 = scmp.eq.s32.totalorder %s21, 3
      %p123 = por %p121, %p122
      %p125 = scmp.ne.s32.totalorder %s108, %s124
      %p126 = scmp.eq.s32.totalorder %s21, 0
      %p127 = por %p125, %p126
      %s128 = smul.u32 %s22, 2
      %s129 = sadd.s32 %s128, %s23
      %s130 = smul.u32 %s34, 2
      %s131 = sadd.s32 %s130, %s30
      %s132 = ssub.s32 %s129, %s131
      %p133 = scmp.eq.s32.totalorder %s132, 0
      %s135 = sadd.s32 %s134, 1
      %s136 = scalar_select %p133, %s134, %s135
      %p139 = pneg %p133
      %p140 = scmp.eq.s32.totalorder %s15, 3
      %p141 = por %p139, %p140
      %p142 = scmp.ne.s32.totalorder %s134, %s137
      %p143 = scmp.eq.s32.totalorder %s15, 0
      %p144 = por %p142, %p143
      %p145 = scmp.ne.s32.totalorder %s134, %s137
      %p146 = scmp.eq.s32.totalorder %s20, 3
      %p147 = por %p145, %p146
      %p148 = scmp.ne.s32.totalorder %s137, %s138
      %p149 = scmp.eq.s32.totalorder %s20, 0
      %p150 = por %p148, %p149
      %p151 = scmp.ne.s32.totalorder %s137, %s138
      %p152 = scmp.eq.s32.totalorder %s21, 3
      %p153 = por %p151, %p152
      %p155 = scmp.ne.s32.totalorder %s138, %s154
      %p156 = scmp.eq.s32.totalorder %s21, 0
      %p157 = por %p155, %p156
      %s158 = smul.u32 %s22, 2
      %s159 = sadd.s32 %s158, %s23
      %s160 = smul.u32 %s34, 2
      %s161 = sadd.s32 %s160, %s30
      %s162 = ssub.s32 %s159, %s161
      %p163 = scmp.eq.s32.totalorder %s162, 0
      %s165 = sadd.s32 %s164, 1
      %s166 = scalar_select %p163, %s164, %s165
      %p169 = pneg %p163
      %p170 = scmp.eq.s32.totalorder %s15, 3
      %p171 = por %p169, %p170
      %p172 = scmp.ne.s32.totalorder %s164, %s167
      %p173 = scmp.eq.s32.totalorder %s15, 0
      %p174 = por %p172, %p173
      %p175 = scmp.ne.s32.totalorder %s164, %s167
      %p176 = scmp.eq.s32.totalorder %s20, 3
      %p177 = por %p175, %p176
      %p178 = scmp.ne.s32.totalorder %s167, %s168
      %p179 = scmp.eq.s32.totalorder %s20, 0
      %p180 = por %p178, %p179
      %p181 = scmp.ne.s32.totalorder %s167, %s168
      %p182 = scmp.eq.s32.totalorder %s21, 3
      %p183 = por %p181, %p182
      %p185 = scmp.ne.s32.totalorder %s168, %s184
      %p186 = scmp.eq.s32.totalorder %s21, 0
      %p187 = por %p185, %p186
      %s189 = sadd.s32 %s188, 1
      %p192 = scmp.eq.s32.totalorder %s15, 3
      %p193 = scmp.ne.s32.totalorder %s188, %s190
      %p194 = scmp.eq.s32.totalorder %s15, 0
      %p195 = por %p193, %p194
      %p196 = scmp.ne.s32.totalorder %s188, %s190
      %p197 = scmp.eq.s32.totalorder %s20, 3
      %p198 = por %p196, %p197
      %p199 = scmp.ne.s32.totalorder %s190, %s191
      %p200 = scmp.eq.s32.totalorder %s20, 0
      %p201 = por %p199, %p200
      %p202 = scmp.ne.s32.totalorder %s190, %s191
      %p203 = scmp.eq.s32.totalorder %s21, 3
      %p204 = por %p202, %p203
      %p206 = scmp.ne.s32.totalorder %s191, %s205
      %p207 = scmp.eq.s32.totalorder %s21, 0
      %p208 = por %p206, %p207
      %s209 = ssub.s32 %s22, %s34
      %p210 = scmp.eq.s32.totalorder %s209, 0
      %s212 = sadd.s32 %s211, 1
      %s213 = scalar_select %p210, %s211, %s212
      %p216 = pneg %p210
      %p217 = scmp.eq.s32.totalorder %s15, 3
      %p218 = por %p216, %p217
      %p219 = scmp.ne.s32.totalorder %s211, %s214
      %p220 = scmp.eq.s32.totalorder %s15, 0
      %p221 = por %p219, %p220
      %p222 = scmp.ne.s32.totalorder %s211, %s214
      %p223 = scmp.eq.s32.totalorder %s20, 3
      %p224 = por %p222, %p223
      %p225 = scmp.ne.s32.totalorder %s214, %s215
      %p226 = scmp.eq.s32.totalorder %s20, 0
      %p227 = por %p225, %p226
      %p228 = scmp.ne.s32.totalorder %s214, %s215
      %p229 = scmp.eq.s32.totalorder %s21, 3
      %p230 = por %p228, %p229
      %p232 = scmp.ne.s32.totalorder %s215, %s231
      %p233 = scmp.eq.s32.totalorder %s21, 0
      %p234 = por %p232, %p233
      %p235 = scmp.le.s32.totalorder 1, %s15
      %p236 = scmp.lt.s32.totalorder %s15, 5
      %p237 = pnand %p235, %p236
      %p238 = pneg %p237
      // Predicated region
      $region9: #{block_forward.3} parent=5 // pred_check
        _
      $region10: #{block_forward.3} parent=5 // pred_check_branch
        %240 = sbr.rel (%p237) target = $region12
      $region11: #{block_forward.3} parent=5 // pred_region
        %s241 = ssub.s32 %s15, 1
        // Predicated region
        $region13: #{block_forward.3} parent=11 // pred_check
          %p242 = pneg %p48
        $region14: #{block_forward.3} parent=11 // pred_check_branch
          %244 = sbr.rel (%p242) target = $region16
        $region15: #{block_forward.3} parent=11 // pred_region
          _
        $region16: #{block_forward.3} parent=11 // pred_fallthru
          _
        // Predicated region
        $region17: #{block_forward.3} parent=11 // pred_check
          %p245 = pneg %p69
        $region18: #{block_forward.3} parent=11 // pred_check_branch
          %247 = sbr.rel (%p245) target = $region20
        $region19: #{block_forward.3} parent=11 // pred_region
          %s249 = ssub.s32 128, 128
          %250 = vsyncadd [#allocation4], %s249
          %s252 = sshll.u32 [#allocation3], 4
          %s253 = int_to_ptr.vmem [resolvable:$true] %s252
          %255 = dma.hbm_to_vmem [thread:$0]  %s1, 128, %s253, [#allocation4]
        $region20: #{block_forward.3} parent=11 // pred_fallthru
          _
        // Predicated region
        $region21: #{block_forward.3} parent=11 // pred_check
          %p256 = pneg %p90
        $region22: #{block_forward.3} parent=11 // pred_check_branch
          %258 = sbr.rel (%p256) target = $region24
        $region23: #{block_forward.3} parent=11 // pred_region
          %s260 = ssub.s32 128, 128
          %261 = vsyncadd [#allocation6], %s260
          %s263 = sshll.u32 [#allocation5], 4
          %s264 = int_to_ptr.vmem [resolvable:$true] %s263
          %266 = dma.hbm_to_vmem [thread:$0]  %s2, 128, %s264, [#allocation6]
        $region24: #{block_forward.3} parent=11 // pred_fallthru
          _
        // Predicated region
        $region25: #{block_forward.3} parent=11 // pred_check
          %p267 = pneg %p201
        $region26: #{block_forward.3} parent=11 // pred_check_branch
          %269 = sbr.rel (%p267) target = $region28
        $region27: #{block_forward.3} parent=11 // pred_region
          %s271 = ssub.s32 128, 128
          %272 = vsyncadd [#allocation6], %s271
          %s274 = sshll.u32 [#allocation10], 4
          %s275 = int_to_ptr.vmem [resolvable:$true] %s274
          %277 = dma.hbm_to_vmem [thread:$0]  %s6, 128, %s275, [#allocation6]
        $region28: #{block_forward.3} parent=11 // pred_fallthru
          _
      $region12: #{block_forward.3} parent=5 // pred_fallthru
        _
      %p278 = scmp.lt.s32.totalorder %s15, 4
      // Predicated region
      $region29: #{block_forward.3} parent=5 // pred_check
        %p279 = pneg %p278
      $region30: #{block_forward.3} parent=5 // pred_check_branch
        %281 = sbr.rel (%p279) target = $region32
      $region31: #{block_forward.3} parent=5 // pred_region
        // Predicated region
        $region33: #{block_forward.3} parent=31 // pred_check
          %p282 = pneg %p114
        $region34: #{block_forward.3} parent=31 // pred_check_branch
          %284 = sbr.rel (%p282) target = $region36
        $region35: #{block_forward.3} parent=31 // pred_region
          %s285 = sand.u32 %s15, 1
          %s286 = scalar_lea.sflag [#allocation4], %s285
          %s287 = sand.u32 %s104, 1
          %s288 = smul.addr %s287, 8192
          %s289 = scalar_lea.vmem [#allocation7], %s288
          %s290 = smul.u32 %s22, 2
          %s291 = sadd.s32 %s290, %s23
          %s292 = smul.u32 8, %s291
          %s294 = ssub.s32 131072, 131072
          %295 = vsyncadd %s286, %s294
          %s296 = smul.addr %s292, 128
          %s297 = scalar_lea.hbm %s3, %s296
          %s298 = sshll.u32 %s289, 4
          %s299 = int_to_ptr.vmem [resolvable:$true] %s298
          %304 = dma.hbm_to_vmem [thread:$0]  %s297, 131072, %s299, %s286, 4096, 1024, 64
        $region36: #{block_forward.3} parent=31 // pred_fallthru
          _
        // Predicated region
        $region37: #{block_forward.3} parent=31 // pred_check
          %p305 = pneg %p144
        $region38: #{block_forward.3} parent=31 // pred_check_branch
          %307 = sbr.rel (%p305) target = $region40
        $region39: #{block_forward.3} parent=31 // pred_region
          %s308 = sand.u32 %s15, 1
          %s309 = scalar_lea.sflag [#allocation4], %s308
          %s310 = sand.u32 %s134, 1
          %s311 = smul.addr %s310, 8
          %s312 = scalar_lea.vmem [#allocation8], %s311
          %s313 = smul.u32 %s22, 2
          %s314 = sadd.s32 %s313, %s23
          %s315 = smul.u32 8, %s314
          %s317 = ssub.s32 128, 128
          %318 = vsyncadd %s309, %s317
          %s319 = smul.addr %s315, 16
          %s320 = scalar_lea.hbm %s4, %s319
          %s322 = sshll.u32 %s312, 4
          %s323 = int_to_ptr.vmem [resolvable:$true] %s322
          %325 = dma.hbm_to_vmem [thread:$0]  %s320, 128, %s323, %s309
        $region40: #{block_forward.3} parent=31 // pred_fallthru
          _
        // Predicated region
        $region41: #{block_forward.3} parent=31 // pred_check
          %p326 = pneg %p174
        $region42: #{block_forward.3} parent=31 // pred_check_branch
          %328 = sbr.rel (%p326) target = $region44
        $region43: #{block_forward.3} parent=31 // pred_region
          %s329 = sand.u32 %s15, 1
          %s330 = scalar_lea.sflag [#allocation4], %s329
          %s331 = sand.u32 %s164, 1
          %s332 = smul.addr %s331, 8192
          %s333 = scalar_lea.vmem [#allocation9], %s332
          %s334 = smul.u32 %s22, 2
          %s335 = sadd.s32 %s334, %s23
          %s336 = smul.u32 128, %s335
          %s338 = ssub.s32 131072, 131072
          %339 = vsyncadd %s330, %s338
          %s340 = smul.addr %s336, 8
          %s341 = smul.addr %s340, 128
          %s342 = scalar_lea.hbm %s5, %s341
          %s343 = sshll.u32 %s333, 4
          %s344 = int_to_ptr.vmem [resolvable:$true] %s343
          %349 = dma.hbm_to_vmem [thread:$0]  %s342, 131072, %s344, %s330, 1024, 1024, 64
        $region44: #{block_forward.3} parent=31 // pred_fallthru
          _
      $region32: #{block_forward.3} parent=5 // pred_fallthru
        _
      %p350 = scmp.le.s32.totalorder 1, %s15
      %p351 = scmp.lt.s32.totalorder %s15, 5
      %p352 = pnand %p350, %p351
      %p353 = pneg %p352
      // Predicated region
      $region45: #{block_forward.3} parent=5 // pred_check
        _
      $region46: #{block_forward.3} parent=5 // pred_check_branch
        %355 = sbr.rel (%p352) target = $region48
      $region47: #{block_forward.3} parent=5 // pred_region
        %s356 = ssub.s32 %s15, 1
        // Predicated region
        $region49: #{block_forward.3} parent=47 // pred_check
          %p357 = pneg %p69
        $region50: #{block_forward.3} parent=47 // pred_check_branch
          %359 = sbr.rel (%p357) target = $region52
        $region51: #{block_forward.3} parent=47 // pred_region
          %360 = dma.done [#allocation4], 128
        $region52: #{block_forward.3} parent=47 // pred_fallthru
          _
        // Predicated region
        $region53: #{block_forward.3} parent=47 // pred_check
          %p361 = pneg %p90
        $region54: #{block_forward.3} parent=47 // pred_check_branch
          %363 = sbr.rel (%p361) target = $region56
        $region55: #{block_forward.3} parent=47 // pred_region
          %364 = dma.done [#allocation6], 128
        $region56: #{block_forward.3} parent=47 // pred_fallthru
          _
        %s365 = sand.u32 %s20, 1
        %s366 = scalar_lea.sflag [#allocation4], %s365
        %s367 = sand.u32 %s107, 1
        %s368 = smul.addr %s367, 8192
        %s369 = scalar_lea.vmem [#allocation7], %s368
        // Predicated region
        $region57: #{block_forward.3} parent=47 // pred_check
          %p370 = pneg %p120
        $region58: #{block_forward.3} parent=47 // pred_check_branch
          %372 = sbr.rel (%p370) target = $region60
        $region59: #{block_forward.3} parent=47 // pred_region
          %373 = dma.done %s366, 131072
        $region60: #{block_forward.3} parent=47 // pred_fallthru
          _
        %s374 = sand.u32 %s20, 1
        %s375 = scalar_lea.sflag [#allocation4], %s374
        %s376 = sand.u32 %s137, 1
        %s377 = smul.addr %s376, 8
        %s378 = scalar_lea.vmem [#allocation8], %s377
        // Predicated region
        $region61: #{block_forward.3} parent=47 // pred_check
          %p379 = pneg %p150
        $region62: #{block_forward.3} parent=47 // pred_check_branch
          %381 = sbr.rel (%p379) target = $region64
        $region63: #{block_forward.3} parent=47 // pred_region
          %382 = dma.done %s375, 128
        $region64: #{block_forward.3} parent=47 // pred_fallthru
          _
        %s383 = sand.u32 %s20, 1
        %s384 = scalar_lea.sflag [#allocation4], %s383
        %s385 = sand.u32 %s167, 1
        %s386 = smul.addr %s385, 8192
        %s387 = scalar_lea.vmem [#allocation9], %s386
        // Predicated region
        $region65: #{block_forward.3} parent=47 // pred_check
          %p388 = pneg %p180
        $region66: #{block_forward.3} parent=47 // pred_check_branch
          %390 = sbr.rel (%p388) target = $region68
        $region67: #{block_forward.3} parent=47 // pred_region
          %391 = dma.done %s384, 131072
        $region68: #{block_forward.3} parent=47 // pred_fallthru
          _
        // Predicated region
        $region69: #{block_forward.3} parent=47 // pred_check
          %p392 = pneg %p201
        $region70: #{block_forward.3} parent=47 // pred_check_branch
          %394 = sbr.rel (%p392) target = $region72
        $region71: #{block_forward.3} parent=47 // pred_region
          %395 = dma.done [#allocation6], 128
        $region72: #{block_forward.3} parent=47 // pred_fallthru
          _
        %p396 = pneg %p48
        %p397 = pneg %p45
        %p398 = pneg %p69
        %p399 = pneg %p66
        %p400 = pneg %p90
        %p401 = pneg %p87
        %s402 = sand.u32 %s20, 1
        %s403 = scalar_lea.sflag [#allocation4], %s402
        %s404 = sand.u32 %s107, 1
        %s405 = smul.addr %s404, 8192
        %s406 = scalar_lea.vmem [#allocation7], %s405
        %p407 = pneg %p120
        %p408 = pneg %p117
        %s409 = sand.u32 %s20, 1
        %s410 = scalar_lea.sflag [#allocation4], %s409
        %s411 = sand.u32 %s137, 1
        %s412 = smul.addr %s411, 8
        %s413 = scalar_lea.vmem [#allocation8], %s412
        %p414 = pneg %p150
        %p415 = pneg %p147
        %s416 = sand.u32 %s20, 1
        %s417 = scalar_lea.sflag [#allocation4], %s416
        %s418 = sand.u32 %s167, 1
        %s419 = smul.addr %s418, 8192
        %s420 = scalar_lea.vmem [#allocation9], %s419
        %p421 = pneg %p180
        %p422 = pneg %p177
        %p423 = pneg %p201
        %p424 = pneg %p198
        %p425 = pneg %p227
        %p426 = pneg %p224
        %p427 = scmp.lt.s32.totalorder %s24, 1
        %s428 = scalar_select %p427, %s24, 1
        %s429 = smul.addr %s428, 32
        %s430 = smul.addr %s429, 8
        %s431 = scalar_lea.vmem %s7, %s430
        %s432 = smul.u32 %s24, 2
        %s433 = sadd.s32 %s432, %s25
        %s434 = smul.u32 8, %s433
        %s435 = smul.u32 %s24, 2
        %s436 = sadd.s32 %s435, %s25
        %s437 = smul.u32 8, %s436
        %s438 = smul.u32 %s24, 2
        %s439 = sadd.s32 %s438, %s25
        %s440 = smul.u32 128, %s439
        %p441 = scmp.lt.s32.totalorder %s24, 1
        %s442 = scalar_select %p441, %s24, 1
        %s443 = smul.addr %s442, 32
        %s444 = smul.addr %s443, 8
        %s445 = scalar_lea.vmem %s7, %s444
        %p446 = scmp.eq.s32.totalorder %s25, 0
        // Predicated region
        $region73: #{block_forward.3} parent=47 // pred_check
          %p447 = pneg %p446
        $region74: #{block_forward.3} parent=47 // pred_check_branch
          %449 = sbr.rel (%p447) target = $region76
        $region75: #{block_forward.3} parent=47 // pred_region
          %v450 = vld [vmem:[%s0] sm:$0xff]
          %v451 = vld [vmem:[%s0 + $0x8] sm:$0xff]
          %v452 = vld [vmem:[%s0 + $0x10] sm:$0xff]
          %v453 = vld [vmem:[%s0 + $0x18] sm:$0xff]
          %v454 = vld [vmem:[%s0 + $0x20] sm:$0xff]
          %v455 = vld [vmem:[%s0 + $0x28] sm:$0xff]
          %v456 = vld [vmem:[%s0 + $0x30] sm:$0xff]
          %v457 = vld [vmem:[%s0 + $0x38] sm:$0xff]
          %v458 = vld [vmem:[%s0 + $0x40] sm:$0xff]
          %v459 = vld [vmem:[%s0 + $0x48] sm:$0xff]
          %v460 = vld [vmem:[%s0 + $0x50] sm:$0xff]
          %v461 = vld [vmem:[%s0 + $0x58] sm:$0xff]
          %v462 = vld [vmem:[%s0 + $0x60] sm:$0xff]
          %v463 = vld [vmem:[%s0 + $0x68] sm:$0xff]
          %v464 = vld [vmem:[%s0 + $0x70] sm:$0xff]
          %v465 = vld [vmem:[%s0 + $0x78] sm:$0xff]
          %v466 = vld [vmem:[%s0 + $0x80] sm:$0xff]
          %v467 = vld [vmem:[%s0 + $0x88] sm:$0xff]
          %v468 = vld [vmem:[%s0 + $0x90] sm:$0xff]
          %v469 = vld [vmem:[%s0 + $0x98] sm:$0xff]
          %v470 = vld [vmem:[%s0 + $0xa0] sm:$0xff]
          %v471 = vld [vmem:[%s0 + $0xa8] sm:$0xff]
          %v472 = vld [vmem:[%s0 + $0xb0] sm:$0xff]
          %v473 = vld [vmem:[%s0 + $0xb8] sm:$0xff]
          %v474 = vld [vmem:[%s0 + $0xc0] sm:$0xff]
          %v475 = vld [vmem:[%s0 + $0xc8] sm:$0xff]
          %v476 = vld [vmem:[%s0 + $0xd0] sm:$0xff]
          %v477 = vld [vmem:[%s0 + $0xd8] sm:$0xff]
          %v478 = vld [vmem:[%s0 + $0xe0] sm:$0xff]
          %v479 = vld [vmem:[%s0 + $0xe8] sm:$0xff]
          %v480 = vld [vmem:[%s0 + $0xf0] sm:$0xff]
          %v481 = vld [vmem:[%s0 + $0xf8] sm:$0xff]
          %v482 = vld [vmem:[#allocation3] sm:$0xff]
          %v483 = vld [vmem:[#allocation5] sm:$0xff]
          %v484 = vadd.f32 %v450, %v451
          %v485 = vadd.f32 %v484, %v452
          %v486 = vadd.f32 %v485, %v453
          %v487 = vadd.f32 %v486, %v454
          %v488 = vadd.f32 %v487, %v455
          %v489 = vadd.f32 %v488, %v456
          %v490 = vadd.f32 %v489, %v457
          %491 = vadd.xlane.f32.xlu0 %v490
          %v492 = vpop.xlane.xlu0 %491
          %v493 = vadd.f32 %v458, %v459
          %v494 = vadd.f32 %v493, %v460
          %v495 = vadd.f32 %v494, %v461
          %v496 = vadd.f32 %v495, %v462
          %v497 = vadd.f32 %v496, %v463
          %v498 = vadd.f32 %v497, %v464
          %v499 = vadd.f32 %v498, %v465
          %500 = vadd.xlane.f32.xlu0 %v499
          %v501 = vpop.xlane.xlu0 %500
          %v502 = vadd.f32 %v466, %v467
          %v503 = vadd.f32 %v502, %v468
          %v504 = vadd.f32 %v503, %v469
          %v505 = vadd.f32 %v504, %v470
          %v506 = vadd.f32 %v505, %v471
          %v507 = vadd.f32 %v506, %v472
          %v508 = vadd.f32 %v507, %v473
          %509 = vadd.xlane.f32.xlu0 %v508
          %v510 = vpop.xlane.xlu0 %509
          %v511 = vadd.f32 %v474, %v475
          %v512 = vadd.f32 %v511, %v476
          %v513 = vadd.f32 %v512, %v477
          %v514 = vadd.f32 %v513, %v478
          %v515 = vadd.f32 %v514, %v479
          %v516 = vadd.f32 %v515, %v480
          %v517 = vadd.f32 %v516, %v481
          %518 = vadd.xlane.f32.xlu0 %v517
          %v519 = vpop.xlane.xlu0 %518
          %v520 = vrcp.pop 1024.0
          %v521 = vmul.f32 %v492, %v520
          %v522 = vmul.f32 %v501, %v520
          %v523 = vmul.f32 %v510, %v520
          %v524 = vmul.f32 %v519, %v520
          %v525 = vsub.f32 %v450, %v521
          %v526 = vsub.f32 %v451, %v521
          %v527 = vsub.f32 %v452, %v521
          %v528 = vsub.f32 %v453, %v521
          %v529 = vsub.f32 %v454, %v521
          %v530 = vsub.f32 %v455, %v521
          %v531 = vsub.f32 %v456, %v521
          %v532 = vsub.f32 %v457, %v521
          %v533 = vsub.f32 %v458, %v522
          %v534 = vsub.f32 %v459, %v522
          %v535 = vsub.f32 %v460, %v522
          %v536 = vsub.f32 %v461, %v522
          %v537 = vsub.f32 %v462, %v522
          %v538 = vsub.f32 %v463, %v522
          %v539 = vsub.f32 %v464, %v522
          %v540 = vsub.f32 %v465, %v522
          %v541 = vsub.f32 %v466, %v523
          %v542 = vsub.f32 %v467, %v523
          %v543 = vsub.f32 %v468, %v523
          %v544 = vsub.f32 %v469, %v523
          %v545 = vsub.f32 %v470, %v523
          %v546 = vsub.f32 %v471, %v523
          %v547 = vsub.f32 %v472, %v523
          %v548 = vsub.f32 %v473, %v523
          %v549 = vsub.f32 %v474, %v524
          %v550 = vsub.f32 %v475, %v524
          %v551 = vsub.f32 %v476, %v524
          %v552 = vsub.f32 %v477, %v524
          %v553 = vsub.f32 %v478, %v524
          %v554 = vsub.f32 %v479, %v524
          %v555 = vsub.f32 %v480, %v524
          %v556 = vsub.f32 %v481, %v524
          %v557 = vmul.f32 %v525, %v525
          %v558 = vmul.f32 %v526, %v526
          %v559 = vmul.f32 %v527, %v527
          %v560 = vmul.f32 %v528, %v528
          %v561 = vmul.f32 %v529, %v529
          %v562 = vmul.f32 %v530, %v530
          %v563 = vmul.f32 %v531, %v531
          %v564 = vmul.f32 %v532, %v532
          %v565 = vmul.f32 %v533, %v533
          %v566 = vmul.f32 %v534, %v534
          %v567 = vmul.f32 %v535, %v535
          %v568 = vmul.f32 %v536, %v536
          %v569 = vmul.f32 %v537, %v537
          %v570 = vmul.f32 %v538, %v538
          %v571 = vmul.f32 %v539, %v539
          %v572 = vmul.f32 %v540, %v540
          %v573 = vmul.f32 %v541, %v541
          %v574 = vmul.f32 %v542, %v542
          %v575 = vmul.f32 %v543, %v543
          %v576 = vmul.f32 %v544, %v544
          %v577 = vmul.f32 %v545, %v545
          %v578 = vmul.f32 %v546, %v546
          %v579 = vmul.f32 %v547, %v547
          %v580 = vmul.f32 %v548, %v548
          %v581 = vmul.f32 %v549, %v549
          %v582 = vmul.f32 %v550, %v550
          %v583 = vmul.f32 %v551, %v551
          %v584 = vmul.f32 %v552, %v552
          %v585 = vmul.f32 %v553, %v553
          %v586 = vmul.f32 %v554, %v554
          %v587 = vmul.f32 %v555, %v555
          %v588 = vmul.f32 %v556, %v556
          %v589 = vadd.f32 %v557, %v558
          %v590 = vadd.f32 %v589, %v559
          %v591 = vadd.f32 %v590, %v560
          %v592 = vadd.f32 %v591, %v561
          %v593 = vadd.f32 %v592, %v562
          %v594 = vadd.f32 %v593, %v563
          %v595 = vadd.f32 %v594, %v564
          %596 = vadd.xlane.f32.xlu0 %v595
          %v597 = vpop.xlane.xlu0 %596
          %v598 = vadd.f32 %v565, %v566
          %v599 = vadd.f32 %v598, %v567
          %v600 = vadd.f32 %v599, %v568
          %v601 = vadd.f32 %v600, %v569
          %v602 = vadd.f32 %v601, %v570
          %v603 = vadd.f32 %v602, %v571
          %v604 = vadd.f32 %v603, %v572
          %605 = vadd.xlane.f32.xlu0 %v604
          %v606 = vpop.xlane.xlu0 %605
          %v607 = vadd.f32 %v573, %v574
          %v608 = vadd.f32 %v607, %v575
          %v609 = vadd.f32 %v608, %v576
          %v610 = vadd.f32 %v609, %v577
          %v611 = vadd.f32 %v610, %v578
          %v612 = vadd.f32 %v611, %v579
          %v613 = vadd.f32 %v612, %v580
          %614 = vadd.xlane.f32.xlu0 %v613
          %v615 = vpop.xlane.xlu0 %614
          %v616 = vadd.f32 %v581, %v582
          %v617 = vadd.f32 %v616, %v583
          %v618 = vadd.f32 %v617, %v584
          %v619 = vadd.f32 %v618, %v585
          %v620 = vadd.f32 %v619, %v586
          %v621 = vadd.f32 %v620, %v587
          %v622 = vadd.f32 %v621, %v588
          %623 = vadd.xlane.f32.xlu0 %v622
          %v624 = vpop.xlane.xlu0 %623
          %v625 = vmul.f32 %v597, %v520
          %v626 = vmul.f32 %v606, %v520
          %v627 = vmul.f32 %v615, %v520
          %v628 = vmul.f32 %v624, %v520
          %v629 = vadd.f32 %v625, 1e-05
          %v630 = vadd.f32 %v626, 1e-05
          %v631 = vadd.f32 %v627, 1e-05
          %v632 = vadd.f32 %v628, 1e-05
          %v633 = vrsqrt.pop %v629
          %v634 = vrsqrt.pop %v630
          %v635 = vrsqrt.pop %v631
          %v636 = vrsqrt.pop %v632
          %v637 = vmul.f32 %v525, %v633
          %v638 = vmul.f32 %v526, %v633
          %v639 = vmul.f32 %v527, %v633
          %v640 = vmul.f32 %v528, %v633
          %v641 = vmul.f32 %v529, %v633
          %v642 = vmul.f32 %v530, %v633
          %v643 = vmul.f32 %v531, %v633
          %v644 = vmul.f32 %v532, %v633
          %v645 = vmul.f32 %v533, %v634
          %v646 = vmul.f32 %v534, %v634
          %v647 = vmul.f32 %v535, %v634
          %v648 = vmul.f32 %v536, %v634
          %v649 = vmul.f32 %v537, %v634
          %v650 = vmul.f32 %v538, %v634
          %v651 = vmul.f32 %v539, %v634
          %v652 = vmul.f32 %v540, %v634
          %v653 = vmul.f32 %v541, %v635
          %v654 = vmul.f32 %v542, %v635
          %v655 = vmul.f32 %v543, %v635
          %v656 = vmul.f32 %v544, %v635
          %v657 = vmul.f32 %v545, %v635
          %v658 = vmul.f32 %v546, %v635
          %v659 = vmul.f32 %v547, %v635
          %v660 = vmul.f32 %v548, %v635
          %v661 = vmul.f32 %v549, %v636
          %v662 = vmul.f32 %v550, %v636
          %v663 = vmul.f32 %v551, %v636
          %v664 = vmul.f32 %v552, %v636
          %v665 = vmul.f32 %v553, %v636
          %v666 = vmul.f32 %v554, %v636
          %v667 = vmul.f32 %v555, %v636
          %v668 = vmul.f32 %v556, %v636
          %v670 = vlaneseq
          %v671 = vshrl.u32 %v670, 7
          %v672 = vsub.s32 0, %v671
          %v673 = vrot.slane %v482, %v672
          %v674 = vlaneseq
          %v675 = vshrl.u32 %v674, 7
          %v676 = vsub.s32 1, %v675
          %v677 = vrot.slane %v482, %v676
          %v678 = vlaneseq
          %v679 = vshrl.u32 %v678, 7
          %v680 = vsub.s32 2, %v679
          %v681 = vrot.slane %v482, %v680
          %v682 = vlaneseq
          %v683 = vshrl.u32 %v682, 7
          %v684 = vsub.s32 3, %v683
          %v685 = vrot.slane %v482, %v684
          %v686 = vlaneseq
          %v687 = vshrl.u32 %v686, 7
          %v688 = vsub.s32 4, %v687
          %v689 = vrot.slane %v482, %v688
          %v690 = vlaneseq
          %v691 = vshrl.u32 %v690, 7
          %v692 = vsub.s32 5, %v691
          %v693 = vrot.slane %v482, %v692
          %v694 = vlaneseq
          %v695 = vshrl.u32 %v694, 7
          %v696 = vsub.s32 6, %v695
          %v697 = vrot.slane %v482, %v696
          %v698 = vlaneseq
          %v699 = vshrl.u32 %v698, 7
          %v700 = vsub.s32 7, %v699
          %v701 = vrot.slane %v482, %v700
          %v710 = vmul.f32 %v637, %v673
          %v711 = vmul.f32 %v638, %v677
          %v712 = vmul.f32 %v639, %v681
          %v713 = vmul.f32 %v640, %v685
          %v714 = vmul.f32 %v641, %v689
          %v715 = vmul.f32 %v642, %v693
          %v716 = vmul.f32 %v643, %v697
          %v717 = vmul.f32 %v644, %v701
          %v718 = vmul.f32 %v645, %v673
          %v719 = vmul.f32 %v646, %v677
          %v720 = vmul.f32 %v647, %v681
          %v721 = vmul.f32 %v648, %v685
          %v722 = vmul.f32 %v649, %v689
          %v723 = vmul.f32 %v650, %v693
          %v724 = vmul.f32 %v651, %v697
          %v725 = vmul.f32 %v652, %v701
          %v726 = vmul.f32 %v653, %v673
          %v727 = vmul.f32 %v654, %v677
          %v728 = vmul.f32 %v655, %v681
          %v729 = vmul.f32 %v656, %v685
          %v730 = vmul.f32 %v657, %v689
          %v731 = vmul.f32 %v658, %v693
          %v732 = vmul.f32 %v659, %v697
          %v733 = vmul.f32 %v660, %v701
          %v734 = vmul.f32 %v661, %v673
          %v735 = vmul.f32 %v662, %v677
          %v736 = vmul.f32 %v663, %v681
          %v737 = vmul.f32 %v664, %v685
          %v738 = vmul.f32 %v665, %v689
          %v739 = vmul.f32 %v666, %v693
          %v740 = vmul.f32 %v667, %v697
          %v741 = vmul.f32 %v668, %v701
          %v743 = vlaneseq
          %v744 = vshrl.u32 %v743, 7
          %v745 = vsub.s32 0, %v744
          %v746 = vrot.slane %v483, %v745
          %v747 = vlaneseq
          %v748 = vshrl.u32 %v747, 7
          %v749 = vsub.s32 1, %v748
          %v750 = vrot.slane %v483, %v749
          %v751 = vlaneseq
          %v752 = vshrl.u32 %v751, 7
          %v753 = vsub.s32 2, %v752
          %v754 = vrot.slane %v483, %v753
          %v755 = vlaneseq
          %v756 = vshrl.u32 %v755, 7
          %v757 = vsub.s32 3, %v756
          %v758 = vrot.slane %v483, %v757
          %v759 = vlaneseq
          %v760 = vshrl.u32 %v759, 7
          %v761 = vsub.s32 4, %v760
          %v762 = vrot.slane %v483, %v761
          %v763 = vlaneseq
          %v764 = vshrl.u32 %v763, 7
          %v765 = vsub.s32 5, %v764
          %v766 = vrot.slane %v483, %v765
          %v767 = vlaneseq
          %v768 = vshrl.u32 %v767, 7
          %v769 = vsub.s32 6, %v768
          %v770 = vrot.slane %v483, %v769
          %v771 = vlaneseq
          %v772 = vshrl.u32 %v771, 7
          %v773 = vsub.s32 7, %v772
          %v774 = vrot.slane %v483, %v773
          %v783 = vadd.f32 %v710, %v746
          %v784 = vadd.f32 %v711, %v750
          %v785 = vadd.f32 %v712, %v754
          %v786 = vadd.f32 %v713, %v758
          %v787 = vadd.f32 %v714, %v762
          %v788 = vadd.f32 %v715, %v766
          %v789 = vadd.f32 %v716, %v770
          %v790 = vadd.f32 %v717, %v774
          %v791 = vadd.f32 %v718, %v746
          %v792 = vadd.f32 %v719, %v750
          %v793 = vadd.f32 %v720, %v754
          %v794 = vadd.f32 %v721, %v758
          %v795 = vadd.f32 %v722, %v762
          %v796 = vadd.f32 %v723, %v766
          %v797 = vadd.f32 %v724, %v770
          %v798 = vadd.f32 %v725, %v774
          %v799 = vadd.f32 %v726, %v746
          %v800 = vadd.f32 %v727, %v750
          %v801 = vadd.f32 %v728, %v754
          %v802 = vadd.f32 %v729, %v758
          %v803 = vadd.f32 %v730, %v762
          %v804 = vadd.f32 %v731, %v766
          %v805 = vadd.f32 %v732, %v770
          %v806 = vadd.f32 %v733, %v774
          %v807 = vadd.f32 %v734, %v746
          %v808 = vadd.f32 %v735, %v750
          %v809 = vadd.f32 %v736, %v754
          %v810 = vadd.f32 %v737, %v758
          %v811 = vadd.f32 %v738, %v762
          %v812 = vadd.f32 %v739, %v766
          %v813 = vadd.f32 %v740, %v770
          %v814 = vadd.f32 %v741, %v774
          %815 = vst [vmem:[#allocation2] sm:$0xff] %v783
          %816 = vst [vmem:[#allocation2 + $0x8] sm:$0xff] %v784
          %817 = vst [vmem:[#allocation2 + $0x10] sm:$0xff] %v785
          %818 = vst [vmem:[#allocation2 + $0x18] sm:$0xff] %v786
          %819 = vst [vmem:[#allocation2 + $0x20] sm:$0xff] %v787
          %820 = vst [vmem:[#allocation2 + $0x28] sm:$0xff] %v788
          %821 = vst [vmem:[#allocation2 + $0x30] sm:$0xff] %v789
          %822 = vst [vmem:[#allocation2 + $0x38] sm:$0xff] %v790
          %823 = vst [vmem:[#allocation2 + $0x40] sm:$0xff] %v791
          %824 = vst [vmem:[#allocation2 + $0x48] sm:$0xff] %v792
          %825 = vst [vmem:[#allocation2 + $0x50] sm:$0xff] %v793
          %826 = vst [vmem:[#allocation2 + $0x58] sm:$0xff] %v794
          %827 = vst [vmem:[#allocation2 + $0x60] sm:$0xff] %v795
          %828 = vst [vmem:[#allocation2 + $0x68] sm:$0xff] %v796
          %829 = vst [vmem:[#allocation2 + $0x70] sm:$0xff] %v797
          %830 = vst [vmem:[#allocation2 + $0x78] sm:$0xff] %v798
          %831 = vst [vmem:[#allocation2 + $0x80] sm:$0xff] %v799
          %832 = vst [vmem:[#allocation2 + $0x88] sm:$0xff] %v800
          %833 = vst [vmem:[#allocation2 + $0x90] sm:$0xff] %v801
          %834 = vst [vmem:[#allocation2 + $0x98] sm:$0xff] %v802
          %835 = vst [vmem:[#allocation2 + $0xa0] sm:$0xff] %v803
          %836 = vst [vmem:[#allocation2 + $0xa8] sm:$0xff] %v804
          %837 = vst [vmem:[#allocation2 + $0xb0] sm:$0xff] %v805
          %838 = vst [vmem:[#allocation2 + $0xb8] sm:$0xff] %v806
          %839 = vst [vmem:[#allocation2 + $0xc0] sm:$0xff] %v807
          %840 = vst [vmem:[#allocation2 + $0xc8] sm:$0xff] %v808
          %841 = vst [vmem:[#allocation2 + $0xd0] sm:$0xff] %v809
          %842 = vst [vmem:[#allocation2 + $0xd8] sm:$0xff] %v810
          %843 = vst [vmem:[#allocation2 + $0xe0] sm:$0xff] %v811
          %844 = vst [vmem:[#allocation2 + $0xe8] sm:$0xff] %v812
          %845 = vst [vmem:[#allocation2 + $0xf0] sm:$0xff] %v813
          %846 = vst [vmem:[#allocation2 + $0xf8] sm:$0xff] %v814
          %v847 = vld [vmem:[#allocation10] sm:$0xff]
          %v849 = vlaneseq
          %v850 = vshrl.u32 %v849, 7
          %v851 = vsub.s32 0, %v850
          %v852 = vrot.slane %v847, %v851
          %v853 = vlaneseq
          %v854 = vshrl.u32 %v853, 7
          %v855 = vsub.s32 1, %v854
          %v856 = vrot.slane %v847, %v855
          %v857 = vlaneseq
          %v858 = vshrl.u32 %v857, 7
          %v859 = vsub.s32 2, %v858
          %v860 = vrot.slane %v847, %v859
          %v861 = vlaneseq
          %v862 = vshrl.u32 %v861, 7
          %v863 = vsub.s32 3, %v862
          %v864 = vrot.slane %v847, %v863
          %v865 = vlaneseq
          %v866 = vshrl.u32 %v865, 7
          %v867 = vsub.s32 4, %v866
          %v868 = vrot.slane %v847, %v867
          %v869 = vlaneseq
          %v870 = vshrl.u32 %v869, 7
          %v871 = vsub.s32 5, %v870
          %v872 = vrot.slane %v847, %v871
          %v873 = vlaneseq
          %v874 = vshrl.u32 %v873, 7
          %v875 = vsub.s32 6, %v874
          %v876 = vrot.slane %v847, %v875
          %v877 = vlaneseq
          %v878 = vshrl.u32 %v877, 7
          %v879 = vsub.s32 7, %v878
          %v880 = vrot.slane %v847, %v879
          %v889 = vadd.f32 %v450, %v852
          %v890 = vadd.f32 %v451, %v856
          %v891 = vadd.f32 %v452, %v860
          %v892 = vadd.f32 %v453, %v864
          %v893 = vadd.f32 %v454, %v868
          %v894 = vadd.f32 %v455, %v872
          %v895 = vadd.f32 %v456, %v876
          %v896 = vadd.f32 %v457, %v880
          %v897 = vadd.f32 %v458, %v852
          %v898 = vadd.f32 %v459, %v856
          %v899 = vadd.f32 %v460, %v860
          %v900 = vadd.f32 %v461, %v864
          %v901 = vadd.f32 %v462, %v868
          %v902 = vadd.f32 %v463, %v872
          %v903 = vadd.f32 %v464, %v876
          %v904 = vadd.f32 %v465, %v880
          %v905 = vadd.f32 %v466, %v852
          %v906 = vadd.f32 %v467, %v856
          %v907 = vadd.f32 %v468, %v860
          %v908 = vadd.f32 %v469, %v864
          %v909 = vadd.f32 %v470, %v868
          %v910 = vadd.f32 %v471, %v872
          %v911 = vadd.f32 %v472, %v876
          %v912 = vadd.f32 %v473, %v880
          %v913 = vadd.f32 %v474, %v852
          %v914 = vadd.f32 %v475, %v856
          %v915 = vadd.f32 %v476, %v860
          %v916 = vadd.f32 %v477, %v864
          %v917 = vadd.f32 %v478, %v868
          %v918 = vadd.f32 %v479, %v872
          %v919 = vadd.f32 %v480, %v876
          %v920 = vadd.f32 %v481, %v880
          %p921 = scmp.eq.s32.totalorder %s24, 0
          %s922 = scalar_select %p921, 1, 0
          %v923 = vstv %s922
          %vm924 = vcmp.eq.s32.totalorder %v923, 1
          %v925 = vsel %vm924, %v889, 0.0
          %v926 = vsel %vm924, %v890, 0.0
          %v927 = vsel %vm924, %v891, 0.0
          %v928 = vsel %vm924, %v892, 0.0
          %v929 = vsel %vm924, %v893, 0.0
          %v930 = vsel %vm924, %v894, 0.0
          %v931 = vsel %vm924, %v895, 0.0
          %v932 = vsel %vm924, %v896, 0.0
          %v933 = vsel %vm924, %v897, 0.0
          %v934 = vsel %vm924, %v898, 0.0
          %v935 = vsel %vm924, %v899, 0.0
          %v936 = vsel %vm924, %v900, 0.0
          %v937 = vsel %vm924, %v901, 0.0
          %v938 = vsel %vm924, %v902, 0.0
          %v939 = vsel %vm924, %v903, 0.0
          %v940 = vsel %vm924, %v904, 0.0
          %v941 = vsel %vm924, %v905, 0.0
          %v942 = vsel %vm924, %v906, 0.0
          %v943 = vsel %vm924, %v907, 0.0
          %v944 = vsel %vm924, %v908, 0.0
          %v945 = vsel %vm924, %v909, 0.0
          %v946 = vsel %vm924, %v910, 0.0
          %v947 = vsel %vm924, %v911, 0.0
          %v948 = vsel %vm924, %v912, 0.0
          %v949 = vsel %vm924, %v913, 0.0
          %v950 = vsel %vm924, %v914, 0.0
          %v951 = vsel %vm924, %v915, 0.0
          %v952 = vsel %vm924, %v916, 0.0
          %v953 = vsel %vm924, %v917, 0.0
          %v954 = vsel %vm924, %v918, 0.0
          %v955 = vsel %vm924, %v919, 0.0
          %v956 = vsel %vm924, %v920, 0.0
          %957 = vst [vmem:[%s445] sm:$0xff] %v925
          %958 = vst [vmem:[%s445 + $0x8] sm:$0xff] %v926
          %959 = vst [vmem:[%s445 + $0x10] sm:$0xff] %v927
          %960 = vst [vmem:[%s445 + $0x18] sm:$0xff] %v928
          %961 = vst [vmem:[%s445 + $0x20] sm:$0xff] %v929
          %962 = vst [vmem:[%s445 + $0x28] sm:$0xff] %v930
          %963 = vst [vmem:[%s445 + $0x30] sm:$0xff] %v931
          %964 = vst [vmem:[%s445 + $0x38] sm:$0xff] %v932
          %965 = vst [vmem:[%s445 + $0x40] sm:$0xff] %v933
          %966 = vst [vmem:[%s445 + $0x48] sm:$0xff] %v934
          %967 = vst [vmem:[%s445 + $0x50] sm:$0xff] %v935
          %968 = vst [vmem:[%s445 + $0x58] sm:$0xff] %v936
          %969 = vst [vmem:[%s445 + $0x60] sm:$0xff] %v937
          %970 = vst [vmem:[%s445 + $0x68] sm:$0xff] %v938
          %971 = vst [vmem:[%s445 + $0x70] sm:$0xff] %v939
          %972 = vst [vmem:[%s445 + $0x78] sm:$0xff] %v940
          %973 = vst [vmem:[%s445 + $0x80] sm:$0xff] %v941
          %974 = vst [vmem:[%s445 + $0x88] sm:$0xff] %v942
          %975 = vst [vmem:[%s445 + $0x90] sm:$0xff] %v943
          %976 = vst [vmem:[%s445 + $0x98] sm:$0xff] %v944
          %977 = vst [vmem:[%s445 + $0xa0] sm:$0xff] %v945
          %978 = vst [vmem:[%s445 + $0xa8] sm:$0xff] %v946
          %979 = vst [vmem:[%s445 + $0xb0] sm:$0xff] %v947
          %980 = vst [vmem:[%s445 + $0xb8] sm:$0xff] %v948
          %981 = vst [vmem:[%s445 + $0xc0] sm:$0xff] %v949
          %982 = vst [vmem:[%s445 + $0xc8] sm:$0xff] %v950
          %983 = vst [vmem:[%s445 + $0xd0] sm:$0xff] %v951
          %984 = vst [vmem:[%s445 + $0xd8] sm:$0xff] %v952
          %985 = vst [vmem:[%s445 + $0xe0] sm:$0xff] %v953
          %986 = vst [vmem:[%s445 + $0xe8] sm:$0xff] %v954
          %987 = vst [vmem:[%s445 + $0xf0] sm:$0xff] %v955
          %988 = vst [vmem:[%s445 + $0xf8] sm:$0xff] %v956
        $region76: #{block_forward.3} parent=47 // pred_fallthru
          _
        %v989 = vld [vmem:[#allocation2] sm:$0xff]
        %v990 = vld [vmem:[#allocation2 + $0x8] sm:$0xff]
        %v991 = vld [vmem:[#allocation2 + $0x10] sm:$0xff]
        %v992 = vld [vmem:[#allocation2 + $0x18] sm:$0xff]
        %v993 = vld [vmem:[#allocation2 + $0x20] sm:$0xff]
        %v994 = vld [vmem:[#allocation2 + $0x28] sm:$0xff]
        %v995 = vld [vmem:[#allocation2 + $0x30] sm:$0xff]
        %v996 = vld [vmem:[#allocation2 + $0x38] sm:$0xff]
        %v997 = vld [vmem:[#allocation2 + $0x40] sm:$0xff]
        %v998 = vld [vmem:[#allocation2 + $0x48] sm:$0xff]
        %v999 = vld [vmem:[#allocation2 + $0x50] sm:$0xff]
        %v1000 = vld [vmem:[#allocation2 + $0x58] sm:$0xff]
        %v1001 = vld [vmem:[#allocation2 + $0x60] sm:$0xff]
        %v1002 = vld [vmem:[#allocation2 + $0x68] sm:$0xff]
        %v1003 = vld [vmem:[#allocation2 + $0x70] sm:$0xff]
        %v1004 = vld [vmem:[#allocation2 + $0x78] sm:$0xff]
        %v1005 = vld [vmem:[#allocation2 + $0x80] sm:$0xff]
        %v1006 = vld [vmem:[#allocation2 + $0x88] sm:$0xff]
        %v1007 = vld [vmem:[#allocation2 + $0x90] sm:$0xff]
        %v1008 = vld [vmem:[#allocation2 + $0x98] sm:$0xff]
        %v1009 = vld [vmem:[#allocation2 + $0xa0] sm:$0xff]
        %v1010 = vld [vmem:[#allocation2 + $0xa8] sm:$0xff]
        %v1011 = vld [vmem:[#allocation2 + $0xb0] sm:$0xff]
        %v1012 = vld [vmem:[#allocation2 + $0xb8] sm:$0xff]
        %v1013 = vld [vmem:[#allocation2 + $0xc0] sm:$0xff]
        %v1014 = vld [vmem:[#allocation2 + $0xc8] sm:$0xff]
        %v1015 = vld [vmem:[#allocation2 + $0xd0] sm:$0xff]
        %v1016 = vld [vmem:[#allocation2 + $0xd8] sm:$0xff]
        %v1017 = vld [vmem:[#allocation2 + $0xe0] sm:$0xff]
        %v1018 = vld [vmem:[#allocation2 + $0xe8] sm:$0xff]
        %v1019 = vld [vmem:[#allocation2 + $0xf0] sm:$0xff]
        %v1020 = vld [vmem:[#allocation2 + $0xf8] sm:$0xff]
        %v1021 = vld [vmem:[%s369] sm:$0xff]
        %v1022 = vld [vmem:[%s369 + $0x8] sm:$0xff]
        %v1023 = vld [vmem:[%s369 + $0x10] sm:$0xff]
        %v1024 = vld [vmem:[%s369 + $0x18] sm:$0xff]
        %v1025 = vld [vmem:[%s369 + $0x20] sm:$0xff]
        %v1026 = vld [vmem:[%s369 + $0x28] sm:$0xff]
        %v1027 = vld [vmem:[%s369 + $0x30] sm:$0xff]
        %v1028 = vld [vmem:[%s369 + $0x38] sm:$0xff]
        %v1029 = vld [vmem:[%s369 + $0x40] sm:$0xff]
        %v1030 = vld [vmem:[%s369 + $0x48] sm:$0xff]
        %v1031 = vld [vmem:[%s369 + $0x50] sm:$0xff]
        %v1032 = vld [vmem:[%s369 + $0x58] sm:$0xff]
        %v1033 = vld [vmem:[%s369 + $0x60] sm:$0xff]
        %v1034 = vld [vmem:[%s369 + $0x68] sm:$0xff]
        %v1035 = vld [vmem:[%s369 + $0x70] sm:$0xff]
        %v1036 = vld [vmem:[%s369 + $0x78] sm:$0xff]
        %v1037 = vld [vmem:[%s369 + $0x80] sm:$0xff]
        %v1038 = vld [vmem:[%s369 + $0x88] sm:$0xff]
        %v1039 = vld [vmem:[%s369 + $0x90] sm:$0xff]
        %v1040 = vld [vmem:[%s369 + $0x98] sm:$0xff]
        %v1041 = vld [vmem:[%s369 + $0xa0] sm:$0xff]
        %v1042 = vld [vmem:[%s369 + $0xa8] sm:$0xff]
        %v1043 = vld [vmem:[%s369 + $0xb0] sm:$0xff]
        %v1044 = vld [vmem:[%s369 + $0xb8] sm:$0xff]
        %v1045 = vld [vmem:[%s369 + $0xc0] sm:$0xff]
        %v1046 = vld [vmem:[%s369 + $0xc8] sm:$0xff]
        %v1047 = vld [vmem:[%s369 + $0xd0] sm:$0xff]
        %v1048 = vld [vmem:[%s369 + $0xd8] sm:$0xff]
        %v1049 = vld [vmem:[%s369 + $0xe0] sm:$0xff]
        %v1050 = vld [vmem:[%s369 + $0xe8] sm:$0xff]
        %v1051 = vld [vmem:[%s369 + $0xf0] sm:$0xff]
        %v1052 = vld [vmem:[%s369 + $0xf8] sm:$0xff]
        %v1053 = vld [vmem:[%s369 + $0x100] sm:$0xff]
        %v1054 = vld [vmem:[%s369 + $0x108] sm:$0xff]
        %v1055 = vld [vmem:[%s369 + $0x110] sm:$0xff]
        %v1056 = vld [vmem:[%s369 + $0x118] sm:$0xff]
        %v1057 = vld [vmem:[%s369 + $0x120] sm:$0xff]
        %v1058 = vld [vmem:[%s369 + $0x128] sm:$0xff]
        %v1059 = vld [vmem:[%s369 + $0x130] sm:$0xff]
        %v1060 = vld [vmem:[%s369 + $0x138] sm:$0xff]
        %v1061 = vld [vmem:[%s369 + $0x140] sm:$0xff]
        %v1062 = vld [vmem:[%s369 + $0x148] sm:$0xff]
        %v1063 = vld [vmem:[%s369 + $0x150] sm:$0xff]
        %v1064 = vld [vmem:[%s369 + $0x158] sm:$0xff]
        %v1065 = vld [vmem:[%s369 + $0x160] sm:$0xff]
        %v1066 = vld [vmem:[%s369 + $0x168] sm:$0xff]
        %v1067 = vld [vmem:[%s369 + $0x170] sm:$0xff]
        %v1068 = vld [vmem:[%s369 + $0x178] sm:$0xff]
        %v1069 = vld [vmem:[%s369 + $0x180] sm:$0xff]
        %v1070 = vld [vmem:[%s369 + $0x188] sm:$0xff]
        %v1071 = vld [vmem:[%s369 + $0x190] sm:$0xff]
        %v1072 = vld [vmem:[%s369 + $0x198] sm:$0xff]
        %v1073 = vld [vmem:[%s369 + $0x1a0] sm:$0xff]
        %v1074 = vld [vmem:[%s369 + $0x1a8] sm:$0xff]
        %v1075 = vld [vmem:[%s369 + $0x1b0] sm:$0xff]
        %v1076 = vld [vmem:[%s369 + $0x1b8] sm:$0xff]
        %v1077 = vld [vmem:[%s369 + $0x1c0] sm:$0xff]
        %v1078 = vld [vmem:[%s369 + $0x1c8] sm:$0xff]
        %v1079 = vld [vmem:[%s369 + $0x1d0] sm:$0xff]
        %v1080 = vld [vmem:[%s369 + $0x1d8] sm:$0xff]
        %v1081 = vld [vmem:[%s369 + $0x1e0] sm:$0xff]
        %v1082 = vld [vmem:[%s369 + $0x1e8] sm:$0xff]
        %v1083 = vld [vmem:[%s369 + $0x1f0] sm:$0xff]
        %v1084 = vld [vmem:[%s369 + $0x1f8] sm:$0xff]
        %v1085 = vld [vmem:[%s369 + $0x200] sm:$0xff]
        %v1086 = vld [vmem:[%s369 + $0x208] sm:$0xff]
        %v1087 = vld [vmem:[%s369 + $0x210] sm:$0xff]
        %v1088 = vld [vmem:[%s369 + $0x218] sm:$0xff]
        %v1089 = vld [vmem:[%s369 + $0x220] sm:$0xff]
        %v1090 = vld [vmem:[%s369 + $0x228] sm:$0xff]
        %v1091 = vld [vmem:[%s369 + $0x230] sm:$0xff]
        %v1092 = vld [vmem:[%s369 + $0x238] sm:$0xff]
        %v1093 = vld [vmem:[%s369 + $0x240] sm:$0xff]
        %v1094 = vld [vmem:[%s369 + $0x248] sm:$0xff]
        %v1095 = vld [vmem:[%s369 + $0x250] sm:$0xff]
        %v1096 = vld [vmem:[%s369 + $0x258] sm:$0xff]
        %v1097 = vld [vmem:[%s369 + $0x260] sm:$0xff]
        %v1098 = vld [vmem:[%s369 + $0x268] sm:$0xff]
        %v1099 = vld [vmem:[%s369 + $0x270] sm:$0xff]
        %v1100 = vld [vmem:[%s369 + $0x278] sm:$0xff]
        %v1101 = vld [vmem:[%s369 + $0x280] sm:$0xff]
        %v1102 = vld [vmem:[%s369 + $0x288] sm:$0xff]
        %v1103 = vld [vmem:[%s369 + $0x290] sm:$0xff]
        %v1104 = vld [vmem:[%s369 + $0x298] sm:$0xff]
        %v1105 = vld [vmem:[%s369 + $0x2a0] sm:$0xff]
        %v1106 = vld [vmem:[%s369 + $0x2a8] sm:$0xff]
        %v1107 = vld [vmem:[%s369 + $0x2b0] sm:$0xff]
        %v1108 = vld [vmem:[%s369 + $0x2b8] sm:$0xff]
        %v1109 = vld [vmem:[%s369 + $0x2c0] sm:$0xff]
        %v1110 = vld [vmem:[%s369 + $0x2c8] sm:$0xff]
        %v1111 = vld [vmem:[%s369 + $0x2d0] sm:$0xff]
        %v1112 = vld [vmem:[%s369 + $0x2d8] sm:$0xff]
        %v1113 = vld [vmem:[%s369 + $0x2e0] sm:$0xff]
        %v1114 = vld [vmem:[%s369 + $0x2e8] sm:$0xff]
        %v1115 = vld [vmem:[%s369 + $0x2f0] sm:$0xff]
        %v1116 = vld [vmem:[%s369 + $0x2f8] sm:$0xff]
        %v1117 = vld [vmem:[%s369 + $0x300] sm:$0xff]
        %v1118 = vld [vmem:[%s369 + $0x308] sm:$0xff]
        %v1119 = vld [vmem:[%s369 + $0x310] sm:$0xff]
        %v1120 = vld [vmem:[%s369 + $0x318] sm:$0xff]
        %v1121 = vld [vmem:[%s369 + $0x320] sm:$0xff]
        %v1122 = vld [vmem:[%s369 + $0x328] sm:$0xff]
        %v1123 = vld [vmem:[%s369 + $0x330] sm:$0xff]
        %v1124 = vld [vmem:[%s369 + $0x338] sm:$0xff]
        %v1125 = vld [vmem:[%s369 + $0x340] sm:$0xff]
        %v1126 = vld [vmem:[%s369 + $0x348] sm:$0xff]
        %v1127 = vld [vmem:[%s369 + $0x350] sm:$0xff]
        %v1128 = vld [vmem:[%s369 + $0x358] sm:$0xff]
        %v1129 = vld [vmem:[%s369 + $0x360] sm:$0xff]
        %v1130 = vld [vmem:[%s369 + $0x368] sm:$0xff]
        %v1131 = vld [vmem:[%s369 + $0x370] sm:$0xff]
        %v1132 = vld [vmem:[%s369 + $0x378] sm:$0xff]
        %v1133 = vld [vmem:[%s369 + $0x380] sm:$0xff]
        %v1134 = vld [vmem:[%s369 + $0x388] sm:$0xff]
        %v1135 = vld [vmem:[%s369 + $0x390] sm:$0xff]
        %v1136 = vld [vmem:[%s369 + $0x398] sm:$0xff]
        %v1137 = vld [vmem:[%s369 + $0x3a0] sm:$0xff]
        %v1138 = vld [vmem:[%s369 + $0x3a8] sm:$0xff]
        %v1139 = vld [vmem:[%s369 + $0x3b0] sm:$0xff]
        %v1140 = vld [vmem:[%s369 + $0x3b8] sm:$0xff]
        %v1141 = vld [vmem:[%s369 + $0x3c0] sm:$0xff]
        %v1142 = vld [vmem:[%s369 + $0x3c8] sm:$0xff]
        %v1143 = vld [vmem:[%s369 + $0x3d0] sm:$0xff]
        %v1144 = vld [vmem:[%s369 + $0x3d8] sm:$0xff]
        %v1145 = vld [vmem:[%s369 + $0x3e0] sm:$0xff]
        %v1146 = vld [vmem:[%s369 + $0x3e8] sm:$0xff]
        %v1147 = vld [vmem:[%s369 + $0x3f0] sm:$0xff]
        %v1148 = vld [vmem:[%s369 + $0x3f8] sm:$0xff]
        %v1149 = vld [vmem:[%s369 + $0x400] sm:$0xff]
        %v1150 = vld [vmem:[%s369 + $0x408] sm:$0xff]
        %v1151 = vld [vmem:[%s369 + $0x410] sm:$0xff]
        %v1152 = vld [vmem:[%s369 + $0x418] sm:$0xff]
        %v1153 = vld [vmem:[%s369 + $0x420] sm:$0xff]
        %v1154 = vld [vmem:[%s369 + $0x428] sm:$0xff]
        %v1155 = vld [vmem:[%s369 + $0x430] sm:$0xff]
        %v1156 = vld [vmem:[%s369 + $0x438] sm:$0xff]
        %v1157 = vld [vmem:[%s369 + $0x440] sm:$0xff]
        %v1158 = vld [vmem:[%s369 + $0x448] sm:$0xff]
        %v1159 = vld [vmem:[%s369 + $0x450] sm:$0xff]
        %v1160 = vld [vmem:[%s369 + $0x458] sm:$0xff]
        %v1161 = vld [vmem:[%s369 + $0x460] sm:$0xff]
        %v1162 = vld [vmem:[%s369 + $0x468] sm:$0xff]
        %v1163 = vld [vmem:[%s369 + $0x470] sm:$0xff]
        %v1164 = vld [vmem:[%s369 + $0x478] sm:$0xff]
        %v1165 = vld [vmem:[%s369 + $0x480] sm:$0xff]
        %v1166 = vld [vmem:[%s369 + $0x488] sm:$0xff]
        %v1167 = vld [vmem:[%s369 + $0x490] sm:$0xff]
        %v1168 = vld [vmem:[%s369 + $0x498] sm:$0xff]
        %v1169 = vld [vmem:[%s369 + $0x4a0] sm:$0xff]
        %v1170 = vld [vmem:[%s369 + $0x4a8] sm:$0xff]
        %v1171 = vld [vmem:[%s369 + $0x4b0] sm:$0xff]
        %v1172 = vld [vmem:[%s369 + $0x4b8] sm:$0xff]
        %v1173 = vld [vmem:[%s369 + $0x4c0] sm:$0xff]
        %v1174 = vld [vmem:[%s369 + $0x4c8] sm:$0xff]
        %v1175 = vld [vmem:[%s369 + $0x4d0] sm:$0xff]
        %v1176 = vld [vmem:[%s369 + $0x4d8] sm:$0xff]
        %v1177 = vld [vmem:[%s369 + $0x4e0] sm:$0xff]
        %v1178 = vld [vmem:[%s369 + $0x4e8] sm:$0xff]
        %v1179 = vld [vmem:[%s369 + $0x4f0] sm:$0xff]
        %v1180 = vld [vmem:[%s369 + $0x4f8] sm:$0xff]
        %v1181 = vld [vmem:[%s369 + $0x500] sm:$0xff]
        %v1182 = vld [vmem:[%s369 + $0x508] sm:$0xff]
        %v1183 = vld [vmem:[%s369 + $0x510] sm:$0xff]
        %v1184 = vld [vmem:[%s369 + $0x518] sm:$0xff]
        %v1185 = vld [vmem:[%s369 + $0x520] sm:$0xff]
        %v1186 = vld [vmem:[%s369 + $0x528] sm:$0xff]
        %v1187 = vld [vmem:[%s369 + $0x530] sm:$0xff]
        %v1188 = vld [vmem:[%s369 + $0x538] sm:$0xff]
        %v1189 = vld [vmem:[%s369 + $0x540] sm:$0xff]
        %v1190 = vld [vmem:[%s369 + $0x548] sm:$0xff]
        %v1191 = vld [vmem:[%s369 + $0x550] sm:$0xff]
        %v1192 = vld [vmem:[%s369 + $0x558] sm:$0xff]
        %v1193 = vld [vmem:[%s369 + $0x560] sm:$0xff]
        %v1194 = vld [vmem:[%s369 + $0x568] sm:$0xff]
        %v1195 = vld [vmem:[%s369 + $0x570] sm:$0xff]
        %v1196 = vld [vmem:[%s369 + $0x578] sm:$0xff]
        %v1197 = vld [vmem:[%s369 + $0x580] sm:$0xff]
        %v1198 = vld [vmem:[%s369 + $0x588] sm:$0xff]
        %v1199 = vld [vmem:[%s369 + $0x590] sm:$0xff]
        %v1200 = vld [vmem:[%s369 + $0x598] sm:$0xff]
        %v1201 = vld [vmem:[%s369 + $0x5a0] sm:$0xff]
        %v1202 = vld [vmem:[%s369 + $0x5a8] sm:$0xff]
        %v1203 = vld [vmem:[%s369 + $0x5b0] sm:$0xff]
        %v1204 = vld [vmem:[%s369 + $0x5b8] sm:$0xff]
        %v1205 = vld [vmem:[%s369 + $0x5c0] sm:$0xff]
        %v1206 = vld [vmem:[%s369 + $0x5c8] sm:$0xff]
        %v1207 = vld [vmem:[%s369 + $0x5d0] sm:$0xff]
        %v1208 = vld [vmem:[%s369 + $0x5d8] sm:$0xff]
        %v1209 = vld [vmem:[%s369 + $0x5e0] sm:$0xff]
        %v1210 = vld [vmem:[%s369 + $0x5e8] sm:$0xff]
        %v1211 = vld [vmem:[%s369 + $0x5f0] sm:$0xff]
        %v1212 = vld [vmem:[%s369 + $0x5f8] sm:$0xff]
        %v1213 = vld [vmem:[%s369 + $0x600] sm:$0xff]
        %v1214 = vld [vmem:[%s369 + $0x608] sm:$0xff]
        %v1215 = vld [vmem:[%s369 + $0x610] sm:$0xff]
        %v1216 = vld [vmem:[%s369 + $0x618] sm:$0xff]
        %v1217 = vld [vmem:[%s369 + $0x620] sm:$0xff]
        %v1218 = vld [vmem:[%s369 + $0x628] sm:$0xff]
        %v1219 = vld [vmem:[%s369 + $0x630] sm:$0xff]
        %v1220 = vld [vmem:[%s369 + $0x638] sm:$0xff]
        %v1221 = vld [vmem:[%s369 + $0x640] sm:$0xff]
        %v1222 = vld [vmem:[%s369 + $0x648] sm:$0xff]
        %v1223 = vld [vmem:[%s369 + $0x650] sm:$0xff]
        %v1224 = vld [vmem:[%s369 + $0x658] sm:$0xff]
        %v1225 = vld [vmem:[%s369 + $0x660] sm:$0xff]
        %v1226 = vld [vmem:[%s369 + $0x668] sm:$0xff]
        %v1227 = vld [vmem:[%s369 + $0x670] sm:$0xff]
        %v1228 = vld [vmem:[%s369 + $0x678] sm:$0xff]
        %v1229 = vld [vmem:[%s369 + $0x680] sm:$0xff]
        %v1230 = vld [vmem:[%s369 + $0x688] sm:$0xff]
        %v1231 = vld [vmem:[%s369 + $0x690] sm:$0xff]
        %v1232 = vld [vmem:[%s369 + $0x698] sm:$0xff]
        %v1233 = vld [vmem:[%s369 + $0x6a0] sm:$0xff]
        %v1234 = vld [vmem:[%s369 + $0x6a8] sm:$0xff]
        %v1235 = vld [vmem:[%s369 + $0x6b0] sm:$0xff]
        %v1236 = vld [vmem:[%s369 + $0x6b8] sm:$0xff]
        %v1237 = vld [vmem:[%s369 + $0x6c0] sm:$0xff]
        %v1238 = vld [vmem:[%s369 + $0x6c8] sm:$0xff]
        %v1239 = vld [vmem:[%s369 + $0x6d0] sm:$0xff]
        %v1240 = vld [vmem:[%s369 + $0x6d8] sm:$0xff]
        %v1241 = vld [vmem:[%s369 + $0x6e0] sm:$0xff]
        %v1242 = vld [vmem:[%s369 + $0x6e8] sm:$0xff]
        %v1243 = vld [vmem:[%s369 + $0x6f0] sm:$0xff]
        %v1244 = vld [vmem:[%s369 + $0x6f8] sm:$0xff]
        %v1245 = vld [vmem:[%s369 + $0x700] sm:$0xff]
        %v1246 = vld [vmem:[%s369 + $0x708] sm:$0xff]
        %v1247 = vld [vmem:[%s369 + $0x710] sm:$0xff]
        %v1248 = vld [vmem:[%s369 + $0x718] sm:$0xff]
        %v1249 = vld [vmem:[%s369 + $0x720] sm:$0xff]
        %v1250 = vld [vmem:[%s369 + $0x728] sm:$0xff]
        %v1251 = vld [vmem:[%s369 + $0x730] sm:$0xff]
        %v1252 = vld [vmem:[%s369 + $0x738] sm:$0xff]
        %v1253 = vld [vmem:[%s369 + $0x740] sm:$0xff]
        %v1254 = vld [vmem:[%s369 + $0x748] sm:$0xff]
        %v1255 = vld [vmem:[%s369 + $0x750] sm:$0xff]
        %v1256 = vld [vmem:[%s369 + $0x758] sm:$0xff]
        %v1257 = vld [vmem:[%s369 + $0x760] sm:$0xff]
        %v1258 = vld [vmem:[%s369 + $0x768] sm:$0xff]
        %v1259 = vld [vmem:[%s369 + $0x770] sm:$0xff]
        %v1260 = vld [vmem:[%s369 + $0x778] sm:$0xff]
        %v1261 = vld [vmem:[%s369 + $0x780] sm:$0xff]
        %v1262 = vld [vmem:[%s369 + $0x788] sm:$0xff]
        %v1263 = vld [vmem:[%s369 + $0x790] sm:$0xff]
        %v1264 = vld [vmem:[%s369 + $0x798] sm:$0xff]
        %v1265 = vld [vmem:[%s369 + $0x7a0] sm:$0xff]
        %v1266 = vld [vmem:[%s369 + $0x7a8] sm:$0xff]
        %v1267 = vld [vmem:[%s369 + $0x7b0] sm:$0xff]
        %v1268 = vld [vmem:[%s369 + $0x7b8] sm:$0xff]
        %v1269 = vld [vmem:[%s369 + $0x7c0] sm:$0xff]
        %v1270 = vld [vmem:[%s369 + $0x7c8] sm:$0xff]
        %v1271 = vld [vmem:[%s369 + $0x7d0] sm:$0xff]
        %v1272 = vld [vmem:[%s369 + $0x7d8] sm:$0xff]
        %v1273 = vld [vmem:[%s369 + $0x7e0] sm:$0xff]
        %v1274 = vld [vmem:[%s369 + $0x7e8] sm:$0xff]
        %v1275 = vld [vmem:[%s369 + $0x7f0] sm:$0xff]
        %v1276 = vld [vmem:[%s369 + $0x7f8] sm:$0xff]
        %v1277 = vld [vmem:[%s369 + $0x800] sm:$0xff]
        %v1278 = vld [vmem:[%s369 + $0x808] sm:$0xff]
        %v1279 = vld [vmem:[%s369 + $0x810] sm:$0xff]
        %v1280 = vld [vmem:[%s369 + $0x818] sm:$0xff]
        %v1281 = vld [vmem:[%s369 + $0x820] sm:$0xff]
        %v1282 = vld [vmem:[%s369 + $0x828] sm:$0xff]
        %v1283 = vld [vmem:[%s369 + $0x830] sm:$0xff]
        %v1284 = vld [vmem:[%s369 + $0x838] sm:$0xff]
        %v1285 = vld [vmem:[%s369 + $0x840] sm:$0xff]
        %v1286 = vld [vmem:[%s369 + $0x848] sm:$0xff]
        %v1287 = vld [vmem:[%s369 + $0x850] sm:$0xff]
        %v1288 = vld [vmem:[%s369 + $0x858] sm:$0xff]
        %v1289 = vld [vmem:[%s369 + $0x860] sm:$0xff]
        %v1290 = vld [vmem:[%s369 + $0x868] sm:$0xff]
        %v1291 = vld [vmem:[%s369 + $0x870] sm:$0xff]
        %v1292 = vld [vmem:[%s369 + $0x878] sm:$0xff]
        %v1293 = vld [vmem:[%s369 + $0x880] sm:$0xff]
        %v1294 = vld [vmem:[%s369 + $0x888] sm:$0xff]
        %v1295 = vld [vmem:[%s369 + $0x890] sm:$0xff]
        %v1296 = vld [vmem:[%s369 + $0x898] sm:$0xff]
        %v1297 = vld [vmem:[%s369 + $0x8a0] sm:$0xff]
        %v1298 = vld [vmem:[%s369 + $0x8a8] sm:$0xff]
        %v1299 = vld [vmem:[%s369 + $0x8b0] sm:$0xff]
        %v1300 = vld [vmem:[%s369 + $0x8b8] sm:$0xff]
        %v1301 = vld [vmem:[%s369 + $0x8c0] sm:$0xff]
        %v1302 = vld [vmem:[%s369 + $0x8c8] sm:$0xff]
        %v1303 = vld [vmem:[%s369 + $0x8d0] sm:$0xff]
        %v1304 = vld [vmem:[%s369 + $0x8d8] sm:$0xff]
        %v1305 = vld [vmem:[%s369 + $0x8e0] sm:$0xff]
        %v1306 = vld [vmem:[%s369 + $0x8e8] sm:$0xff]
        %v1307 = vld [vmem:[%s369 + $0x8f0] sm:$0xff]
        %v1308 = vld [vmem:[%s369 + $0x8f8] sm:$0xff]
        %v1309 = vld [vmem:[%s369 + $0x900] sm:$0xff]
        %v1310 = vld [vmem:[%s369 + $0x908] sm:$0xff]
        %v1311 = vld [vmem:[%s369 + $0x910] sm:$0xff]
        %v1312 = vld [vmem:[%s369 + $0x918] sm:$0xff]
        %v1313 = vld [vmem:[%s369 + $0x920] sm:$0xff]
        %v1314 = vld [vmem:[%s369 + $0x928] sm:$0xff]
        %v1315 = vld [vmem:[%s369 + $0x930] sm:$0xff]
        %v1316 = vld [vmem:[%s369 + $0x938] sm:$0xff]
        %v1317 = vld [vmem:[%s369 + $0x940] sm:$0xff]
        %v1318 = vld [vmem:[%s369 + $0x948] sm:$0xff]
        %v1319 = vld [vmem:[%s369 + $0x950] sm:$0xff]
        %v1320 = vld [vmem:[%s369 + $0x958] sm:$0xff]
        %v1321 = vld [vmem:[%s369 + $0x960] sm:$0xff]
        %v1322 = vld [vmem:[%s369 + $0x968] sm:$0xff]
        %v1323 = vld [vmem:[%s369 + $0x970] sm:$0xff]
        %v1324 = vld [vmem:[%s369 + $0x978] sm:$0xff]
        %v1325 = vld [vmem:[%s369 + $0x980] sm:$0xff]
        %v1326 = vld [vmem:[%s369 + $0x988] sm:$0xff]
        %v1327 = vld [vmem:[%s369 + $0x990] sm:$0xff]
        %v1328 = vld [vmem:[%s369 + $0x998] sm:$0xff]
        %v1329 = vld [vmem:[%s369 + $0x9a0] sm:$0xff]
        %v1330 = vld [vmem:[%s369 + $0x9a8] sm:$0xff]
        %v1331 = vld [vmem:[%s369 + $0x9b0] sm:$0xff]
        %v1332 = vld [vmem:[%s369 + $0x9b8] sm:$0xff]
        %v1333 = vld [vmem:[%s369 + $0x9c0] sm:$0xff]
        %v1334 = vld [vmem:[%s369 + $0x9c8] sm:$0xff]
        %v1335 = vld [vmem:[%s369 + $0x9d0] sm:$0xff]
        %v1336 = vld [vmem:[%s369 + $0x9d8] sm:$0xff]
        %v1337 = vld [vmem:[%s369 + $0x9e0] sm:$0xff]
        %v1338 = vld [vmem:[%s369 + $0x9e8] sm:$0xff]
        %v1339 = vld [vmem:[%s369 + $0x9f0] sm:$0xff]
        %v1340 = vld [vmem:[%s369 + $0x9f8] sm:$0xff]
        %v1341 = vld [vmem:[%s369 + $0xa00] sm:$0xff]
        %v1342 = vld [vmem:[%s369 + $0xa08] sm:$0xff]
        %v1343 = vld [vmem:[%s369 + $0xa10] sm:$0xff]
        %v1344 = vld [vmem:[%s369 + $0xa18] sm:$0xff]
        %v1345 = vld [vmem:[%s369 + $0xa20] sm:$0xff]
        %v1346 = vld [vmem:[%s369 + $0xa28] sm:$0xff]
        %v1347 = vld [vmem:[%s369 + $0xa30] sm:$0xff]
        %v1348 = vld [vmem:[%s369 + $0xa38] sm:$0xff]
        %v1349 = vld [vmem:[%s369 + $0xa40] sm:$0xff]
        %v1350 = vld [vmem:[%s369 + $0xa48] sm:$0xff]
        %v1351 = vld [vmem:[%s369 + $0xa50] sm:$0xff]
        %v1352 = vld [vmem:[%s369 + $0xa58] sm:$0xff]
        %v1353 = vld [vmem:[%s369 + $0xa60] sm:$0xff]
        %v1354 = vld [vmem:[%s369 + $0xa68] sm:$0xff]
        %v1355 = vld [vmem:[%s369 + $0xa70] sm:$0xff]
        %v1356 = vld [vmem:[%s369 + $0xa78] sm:$0xff]
        %v1357 = vld [vmem:[%s369 + $0xa80] sm:$0xff]
        %v1358 = vld [vmem:[%s369 + $0xa88] sm:$0xff]
        %v1359 = vld [vmem:[%s369 + $0xa90] sm:$0xff]
        %v1360 = vld [vmem:[%s369 + $0xa98] sm:$0xff]
        %v1361 = vld [vmem:[%s369 + $0xaa0] sm:$0xff]
        %v1362 = vld [vmem:[%s369 + $0xaa8] sm:$0xff]
        %v1363 = vld [vmem:[%s369 + $0xab0] sm:$0xff]
        %v1364 = vld [vmem:[%s369 + $0xab8] sm:$0xff]
        %v1365 = vld [vmem:[%s369 + $0xac0] sm:$0xff]
        %v1366 = vld [vmem:[%s369 + $0xac8] sm:$0xff]
        %v1367 = vld [vmem:[%s369 + $0xad0] sm:$0xff]
        %v1368 = vld [vmem:[%s369 + $0xad8] sm:$0xff]
        %v1369 = vld [vmem:[%s369 + $0xae0] sm:$0xff]
        %v1370 = vld [vmem:[%s369 + $0xae8] sm:$0xff]
        %v1371 = vld [vmem:[%s369 + $0xaf0] sm:$0xff]
        %v1372 = vld [vmem:[%s369 + $0xaf8] sm:$0xff]
        %v1373 = vld [vmem:[%s369 + $0xb00] sm:$0xff]
        %v1374 = vld [vmem:[%s369 + $0xb08] sm:$0xff]
        %v1375 = vld [vmem:[%s369 + $0xb10] sm:$0xff]
        %v1376 = vld [vmem:[%s369 + $0xb18] sm:$0xff]
        %v1377 = vld [vmem:[%s369 + $0xb20] sm:$0xff]
        %v1378 = vld [vmem:[%s369 + $0xb28] sm:$0xff]
        %v1379 = vld [vmem:[%s369 + $0xb30] sm:$0xff]
        %v1380 = vld [vmem:[%s369 + $0xb38] sm:$0xff]
        %v1381 = vld [vmem:[%s369 + $0xb40] sm:$0xff]
        %v1382 = vld [vmem:[%s369 + $0xb48] sm:$0xff]
        %v1383 = vld [vmem:[%s369 + $0xb50] sm:$0xff]
        %v1384 = vld [vmem:[%s369 + $0xb58] sm:$0xff]
        %v1385 = vld [vmem:[%s369 + $0xb60] sm:$0xff]
        %v1386 = vld [vmem:[%s369 + $0xb68] sm:$0xff]
        %v1387 = vld [vmem:[%s369 + $0xb70] sm:$0xff]
        %v1388 = vld [vmem:[%s369 + $0xb78] sm:$0xff]
        %v1389 = vld [vmem:[%s369 + $0xb80] sm:$0xff]
        %v1390 = vld [vmem:[%s369 + $0xb88] sm:$0xff]
        %v1391 = vld [vmem:[%s369 + $0xb90] sm:$0xff]
        %v1392 = vld [vmem:[%s369 + $0xb98] sm:$0xff]
        %v1393 = vld [vmem:[%s369 + $0xba0] sm:$0xff]
        %v1394 = vld [vmem:[%s369 + $0xba8] sm:$0xff]
        %v1395 = vld [vmem:[%s369 + $0xbb0] sm:$0xff]
        %v1396 = vld [vmem:[%s369 + $0xbb8] sm:$0xff]
        %v1397 = vld [vmem:[%s369 + $0xbc0] sm:$0xff]
        %v1398 = vld [vmem:[%s369 + $0xbc8] sm:$0xff]
        %v1399 = vld [vmem:[%s369 + $0xbd0] sm:$0xff]
        %v1400 = vld [vmem:[%s369 + $0xbd8] sm:$0xff]
        %v1401 = vld [vmem:[%s369 + $0xbe0] sm:$0xff]
        %v1402 = vld [vmem:[%s369 + $0xbe8] sm:$0xff]
        %v1403 = vld [vmem:[%s369 + $0xbf0] sm:$0xff]
        %v1404 = vld [vmem:[%s369 + $0xbf8] sm:$0xff]
        %v1405 = vld [vmem:[%s369 + $0xc00] sm:$0xff]
        %v1406 = vld [vmem:[%s369 + $0xc08] sm:$0xff]
        %v1407 = vld [vmem:[%s369 + $0xc10] sm:$0xff]
        %v1408 = vld [vmem:[%s369 + $0xc18] sm:$0xff]
        %v1409 = vld [vmem:[%s369 + $0xc20] sm:$0xff]
        %v1410 = vld [vmem:[%s369 + $0xc28] sm:$0xff]
        %v1411 = vld [vmem:[%s369 + $0xc30] sm:$0xff]
        %v1412 = vld [vmem:[%s369 + $0xc38] sm:$0xff]
        %v1413 = vld [vmem:[%s369 + $0xc40] sm:$0xff]
        %v1414 = vld [vmem:[%s369 + $0xc48] sm:$0xff]
        %v1415 = vld [vmem:[%s369 + $0xc50] sm:$0xff]
        %v1416 = vld [vmem:[%s369 + $0xc58] sm:$0xff]
        %v1417 = vld [vmem:[%s369 + $0xc60] sm:$0xff]
        %v1418 = vld [vmem:[%s369 + $0xc68] sm:$0xff]
        %v1419 = vld [vmem:[%s369 + $0xc70] sm:$0xff]
        %v1420 = vld [vmem:[%s369 + $0xc78] sm:$0xff]
        %v1421 = vld [vmem:[%s369 + $0xc80] sm:$0xff]
        %v1422 = vld [vmem:[%s369 + $0xc88] sm:$0xff]
        %v1423 = vld [vmem:[%s369 + $0xc90] sm:$0xff]
        %v1424 = vld [vmem:[%s369 + $0xc98] sm:$0xff]
        %v1425 = vld [vmem:[%s369 + $0xca0] sm:$0xff]
        %v1426 = vld [vmem:[%s369 + $0xca8] sm:$0xff]
        %v1427 = vld [vmem:[%s369 + $0xcb0] sm:$0xff]
        %v1428 = vld [vmem:[%s369 + $0xcb8] sm:$0xff]
        %v1429 = vld [vmem:[%s369 + $0xcc0] sm:$0xff]
        %v1430 = vld [vmem:[%s369 + $0xcc8] sm:$0xff]
        %v1431 = vld [vmem:[%s369 + $0xcd0] sm:$0xff]
        %v1432 = vld [vmem:[%s369 + $0xcd8] sm:$0xff]
        %v1433 = vld [vmem:[%s369 + $0xce0] sm:$0xff]
        %v1434 = vld [vmem:[%s369 + $0xce8] sm:$0xff]
        %v1435 = vld [vmem:[%s369 + $0xcf0] sm:$0xff]
        %v1436 = vld [vmem:[%s369 + $0xcf8] sm:$0xff]
        %v1437 = vld [vmem:[%s369 + $0xd00] sm:$0xff]
        %v1438 = vld [vmem:[%s369 + $0xd08] sm:$0xff]
        %v1439 = vld [vmem:[%s369 + $0xd10] sm:$0xff]
        %v1440 = vld [vmem:[%s369 + $0xd18] sm:$0xff]
        %v1441 = vld [vmem:[%s369 + $0xd20] sm:$0xff]
        %v1442 = vld [vmem:[%s369 + $0xd28] sm:$0xff]
        %v1443 = vld [vmem:[%s369 + $0xd30] sm:$0xff]
        %v1444 = vld [vmem:[%s369 + $0xd38] sm:$0xff]
        %v1445 = vld [vmem:[%s369 + $0xd40] sm:$0xff]
        %v1446 = vld [vmem:[%s369 + $0xd48] sm:$0xff]
        %v1447 = vld [vmem:[%s369 + $0xd50] sm:$0xff]
        %v1448 = vld [vmem:[%s369 + $0xd58] sm:$0xff]
        %v1449 = vld [vmem:[%s369 + $0xd60] sm:$0xff]
        %v1450 = vld [vmem:[%s369 + $0xd68] sm:$0xff]
        %v1451 = vld [vmem:[%s369 + $0xd70] sm:$0xff]
        %v1452 = vld [vmem:[%s369 + $0xd78] sm:$0xff]
        %v1453 = vld [vmem:[%s369 + $0xd80] sm:$0xff]
        %v1454 = vld [vmem:[%s369 + $0xd88] sm:$0xff]
        %v1455 = vld [vmem:[%s369 + $0xd90] sm:$0xff]
        %v1456 = vld [vmem:[%s369 + $0xd98] sm:$0xff]
        %v1457 = vld [vmem:[%s369 + $0xda0] sm:$0xff]
        %v1458 = vld [vmem:[%s369 + $0xda8] sm:$0xff]
        %v1459 = vld [vmem:[%s369 + $0xdb0] sm:$0xff]
        %v1460 = vld [vmem:[%s369 + $0xdb8] sm:$0xff]
        %v1461 = vld [vmem:[%s369 + $0xdc0] sm:$0xff]
        %v1462 = vld [vmem:[%s369 + $0xdc8] sm:$0xff]
        %v1463 = vld [vmem:[%s369 + $0xdd0] sm:$0xff]
        %v1464 = vld [vmem:[%s369 + $0xdd8] sm:$0xff]
        %v1465 = vld [vmem:[%s369 + $0xde0] sm:$0xff]
        %v1466 = vld [vmem:[%s369 + $0xde8] sm:$0xff]
        %v1467 = vld [vmem:[%s369 + $0xdf0] sm:$0xff]
        %v1468 = vld [vmem:[%s369 + $0xdf8] sm:$0xff]
        %v1469 = vld [vmem:[%s369 + $0xe00] sm:$0xff]
        %v1470 = vld [vmem:[%s369 + $0xe08] sm:$0xff]
        %v1471 = vld [vmem:[%s369 + $0xe10] sm:$0xff]
        %v1472 = vld [vmem:[%s369 + $0xe18] sm:$0xff]
        %v1473 = vld [vmem:[%s369 + $0xe20] sm:$0xff]
        %v1474 = vld [vmem:[%s369 + $0xe28] sm:$0xff]
        %v1475 = vld [vmem:[%s369 + $0xe30] sm:$0xff]
        %v1476 = vld [vmem:[%s369 + $0xe38] sm:$0xff]
        %v1477 = vld [vmem:[%s369 + $0xe40] sm:$0xff]
        %v1478 = vld [vmem:[%s369 + $0xe48] sm:$0xff]
        %v1479 = vld [vmem:[%s369 + $0xe50] sm:$0xff]
        %v1480 = vld [vmem:[%s369 + $0xe58] sm:$0xff]
        %v1481 = vld [vmem:[%s369 + $0xe60] sm:$0xff]
        %v1482 = vld [vmem:[%s369 + $0xe68] sm:$0xff]
        %v1483 = vld [vmem:[%s369 + $0xe70] sm:$0xff]
        %v1484 = vld [vmem:[%s369 + $0xe78] sm:$0xff]
        %v1485 = vld [vmem:[%s369 + $0xe80] sm:$0xff]
        %v1486 = vld [vmem:[%s369 + $0xe88] sm:$0xff]
        %v1487 = vld [vmem:[%s369 + $0xe90] sm:$0xff]
        %v1488 = vld [vmem:[%s369 + $0xe98] sm:$0xff]
        %v1489 = vld [vmem:[%s369 + $0xea0] sm:$0xff]
        %v1490 = vld [vmem:[%s369 + $0xea8] sm:$0xff]
        %v1491 = vld [vmem:[%s369 + $0xeb0] sm:$0xff]
        %v1492 = vld [vmem:[%s369 + $0xeb8] sm:$0xff]
        %v1493 = vld [vmem:[%s369 + $0xec0] sm:$0xff]
        %v1494 = vld [vmem:[%s369 + $0xec8] sm:$0xff]
        %v1495 = vld [vmem:[%s369 + $0xed0] sm:$0xff]
        %v1496 = vld [vmem:[%s369 + $0xed8] sm:$0xff]
        %v1497 = vld [vmem:[%s369 + $0xee0] sm:$0xff]
        %v1498 = vld [vmem:[%s369 + $0xee8] sm:$0xff]
        %v1499 = vld [vmem:[%s369 + $0xef0] sm:$0xff]
        %v1500 = vld [vmem:[%s369 + $0xef8] sm:$0xff]
        %v1501 = vld [vmem:[%s369 + $0xf00] sm:$0xff]
        %v1502 = vld [vmem:[%s369 + $0xf08] sm:$0xff]
        %v1503 = vld [vmem:[%s369 + $0xf10] sm:$0xff]
        %v1504 = vld [vmem:[%s369 + $0xf18] sm:$0xff]
        %v1505 = vld [vmem:[%s369 + $0xf20] sm:$0xff]
        %v1506 = vld [vmem:[%s369 + $0xf28] sm:$0xff]
        %v1507 = vld [vmem:[%s369 + $0xf30] sm:$0xff]
        %v1508 = vld [vmem:[%s369 + $0xf38] sm:$0xff]
        %v1509 = vld [vmem:[%s369 + $0xf40] sm:$0xff]
        %v1510 = vld [vmem:[%s369 + $0xf48] sm:$0xff]
        %v1511 = vld [vmem:[%s369 + $0xf50] sm:$0xff]
        %v1512 = vld [vmem:[%s369 + $0xf58] sm:$0xff]
        %v1513 = vld [vmem:[%s369 + $0xf60] sm:$0xff]
        %v1514 = vld [vmem:[%s369 + $0xf68] sm:$0xff]
        %v1515 = vld [vmem:[%s369 + $0xf70] sm:$0xff]
        %v1516 = vld [vmem:[%s369 + $0xf78] sm:$0xff]
        %v1517 = vld [vmem:[%s369 + $0xf80] sm:$0xff]
        %v1518 = vld [vmem:[%s369 + $0xf88] sm:$0xff]
        %v1519 = vld [vmem:[%s369 + $0xf90] sm:$0xff]
        %v1520 = vld [vmem:[%s369 + $0xf98] sm:$0xff]
        %v1521 = vld [vmem:[%s369 + $0xfa0] sm:$0xff]
        %v1522 = vld [vmem:[%s369 + $0xfa8] sm:$0xff]
        %v1523 = vld [vmem:[%s369 + $0xfb0] sm:$0xff]
        %v1524 = vld [vmem:[%s369 + $0xfb8] sm:$0xff]
        %v1525 = vld [vmem:[%s369 + $0xfc0] sm:$0xff]
        %v1526 = vld [vmem:[%s369 + $0xfc8] sm:$0xff]
        %v1527 = vld [vmem:[%s369 + $0xfd0] sm:$0xff]
        %v1528 = vld [vmem:[%s369 + $0xfd8] sm:$0xff]
        %v1529 = vld [vmem:[%s369 + $0xfe0] sm:$0xff]
        %v1530 = vld [vmem:[%s369 + $0xfe8] sm:$0xff]
        %v1531 = vld [vmem:[%s369 + $0xff0] sm:$0xff]
        %v1532 = vld [vmem:[%s369 + $0xff8] sm:$0xff]
        %v1533 = vld [vmem:[%s369 + $0x1000] sm:$0xff]
        %v1534 = vld [vmem:[%s369 + $0x1008] sm:$0xff]
        %v1535 = vld [vmem:[%s369 + $0x1010] sm:$0xff]
        %v1536 = vld [vmem:[%s369 + $0x1018] sm:$0xff]
        %v1537 = vld [vmem:[%s369 + $0x1020] sm:$0xff]
        %v1538 = vld [vmem:[%s369 + $0x1028] sm:$0xff]
        %v1539 = vld [vmem:[%s369 + $0x1030] sm:$0xff]
        %v1540 = vld [vmem:[%s369 + $0x1038] sm:$0xff]
        %v1541 = vld [vmem:[%s369 + $0x1040] sm:$0xff]
        %v1542 = vld [vmem:[%s369 + $0x1048] sm:$0xff]
        %v1543 = vld [vmem:[%s369 + $0x1050] sm:$0xff]
        %v1544 = vld [vmem:[%s369 + $0x1058] sm:$0xff]
        %v1545 = vld [vmem:[%s369 + $0x1060] sm:$0xff]
        %v1546 = vld [vmem:[%s369 + $0x1068] sm:$0xff]
        %v1547 = vld [vmem:[%s369 + $0x1070] sm:$0xff]
        %v1548 = vld [vmem:[%s369 + $0x1078] sm:$0xff]
        %v1549 = vld [vmem:[%s369 + $0x1080] sm:$0xff]
        %v1550 = vld [vmem:[%s369 + $0x1088] sm:$0xff]
        %v1551 = vld [vmem:[%s369 + $0x1090] sm:$0xff]
        %v1552 = vld [vmem:[%s369 + $0x1098] sm:$0xff]
        %v1553 = vld [vmem:[%s369 + $0x10a0] sm:$0xff]
        %v1554 = vld [vmem:[%s369 + $0x10a8] sm:$0xff]
        %v1555 = vld [vmem:[%s369 + $0x10b0] sm:$0xff]
        %v1556 = vld [vmem:[%s369 + $0x10b8] sm:$0xff]
        %v1557 = vld [vmem:[%s369 + $0x10c0] sm:$0xff]
        %v1558 = vld [vmem:[%s369 + $0x10c8] sm:$0xff]
        %v1559 = vld [vmem:[%s369 + $0x10d0] sm:$0xff]
        %v1560 = vld [vmem:[%s369 + $0x10d8] sm:$0xff]
        %v1561 = vld [vmem:[%s369 + $0x10e0] sm:$0xff]
        %v1562 = vld [vmem:[%s369 + $0x10e8] sm:$0xff]
        %v1563 = vld [vmem:[%s369 + $0x10f0] sm:$0xff]
        %v1564 = vld [vmem:[%s369 + $0x10f8] sm:$0xff]
        %v1565 = vld [vmem:[%s369 + $0x1100] sm:$0xff]
        %v1566 = vld [vmem:[%s369 + $0x1108] sm:$0xff]
        %v1567 = vld [vmem:[%s369 + $0x1110] sm:$0xff]
        %v1568 = vld [vmem:[%s369 + $0x1118] sm:$0xff]
        %v1569 = vld [vmem:[%s369 + $0x1120] sm:$0xff]
        %v1570 = vld [vmem:[%s369 + $0x1128] sm:$0xff]
        %v1571 = vld [vmem:[%s369 + $0x1130] sm:$0xff]
        %v1572 = vld [vmem:[%s369 + $0x1138] sm:$0xff]
        %v1573 = vld [vmem:[%s369 + $0x1140] sm:$0xff]
        %v1574 = vld [vmem:[%s369 + $0x1148] sm:$0xff]
        %v1575 = vld [vmem:[%s369 + $0x1150] sm:$0xff]
        %v1576 = vld [vmem:[%s369 + $0x1158] sm:$0xff]
        %v1577 = vld [vmem:[%s369 + $0x1160] sm:$0xff]
        %v1578 = vld [vmem:[%s369 + $0x1168] sm:$0xff]
        %v1579 = vld [vmem:[%s369 + $0x1170] sm:$0xff]
        %v1580 = vld [vmem:[%s369 + $0x1178] sm:$0xff]
        %v1581 = vld [vmem:[%s369 + $0x1180] sm:$0xff]
        %v1582 = vld [vmem:[%s369 + $0x1188] sm:$0xff]
        %v1583 = vld [vmem:[%s369 + $0x1190] sm:$0xff]
        %v1584 = vld [vmem:[%s369 + $0x1198] sm:$0xff]
        %v1585 = vld [vmem:[%s369 + $0x11a0] sm:$0xff]
        %v1586 = vld [vmem:[%s369 + $0x11a8] sm:$0xff]
        %v1587 = vld [vmem:[%s369 + $0x11b0] sm:$0xff]
        %v1588 = vld [vmem:[%s369 + $0x11b8] sm:$0xff]
        %v1589 = vld [vmem:[%s369 + $0x11c0] sm:$0xff]
        %v1590 = vld [vmem:[%s369 + $0x11c8] sm:$0xff]
        %v1591 = vld [vmem:[%s369 + $0x11d0] sm:$0xff]
        %v1592 = vld [vmem:[%s369 + $0x11d8] sm:$0xff]
        %v1593 = vld [vmem:[%s369 + $0x11e0] sm:$0xff]
        %v1594 = vld [vmem:[%s369 + $0x11e8] sm:$0xff]
        %v1595 = vld [vmem:[%s369 + $0x11f0] sm:$0xff]
        %v1596 = vld [vmem:[%s369 + $0x11f8] sm:$0xff]
        %v1597 = vld [vmem:[%s369 + $0x1200] sm:$0xff]
        %v1598 = vld [vmem:[%s369 + $0x1208] sm:$0xff]
        %v1599 = vld [vmem:[%s369 + $0x1210] sm:$0xff]
        %v1600 = vld [vmem:[%s369 + $0x1218] sm:$0xff]
        %v1601 = vld [vmem:[%s369 + $0x1220] sm:$0xff]
        %v1602 = vld [vmem:[%s369 + $0x1228] sm:$0xff]
        %v1603 = vld [vmem:[%s369 + $0x1230] sm:$0xff]
        %v1604 = vld [vmem:[%s369 + $0x1238] sm:$0xff]
        %v1605 = vld [vmem:[%s369 + $0x1240] sm:$0xff]
        %v1606 = vld [vmem:[%s369 + $0x1248] sm:$0xff]
        %v1607 = vld [vmem:[%s369 + $0x1250] sm:$0xff]
        %v1608 = vld [vmem:[%s369 + $0x1258] sm:$0xff]
        %v1609 = vld [vmem:[%s369 + $0x1260] sm:$0xff]
        %v1610 = vld [vmem:[%s369 + $0x1268] sm:$0xff]
        %v1611 = vld [vmem:[%s369 + $0x1270] sm:$0xff]
        %v1612 = vld [vmem:[%s369 + $0x1278] sm:$0xff]
        %v1613 = vld [vmem:[%s369 + $0x1280] sm:$0xff]
        %v1614 = vld [vmem:[%s369 + $0x1288] sm:$0xff]
        %v1615 = vld [vmem:[%s369 + $0x1290] sm:$0xff]
        %v1616 = vld [vmem:[%s369 + $0x1298] sm:$0xff]
        %v1617 = vld [vmem:[%s369 + $0x12a0] sm:$0xff]
        %v1618 = vld [vmem:[%s369 + $0x12a8] sm:$0xff]
        %v1619 = vld [vmem:[%s369 + $0x12b0] sm:$0xff]
        %v1620 = vld [vmem:[%s369 + $0x12b8] sm:$0xff]
        %v1621 = vld [vmem:[%s369 + $0x12c0] sm:$0xff]
        %v1622 = vld [vmem:[%s369 + $0x12c8] sm:$0xff]
        %v1623 = vld [vmem:[%s369 + $0x12d0] sm:$0xff]
        %v1624 = vld [vmem:[%s369 + $0x12d8] sm:$0xff]
        %v1625 = vld [vmem:[%s369 + $0x12e0] sm:$0xff]
        %v1626 = vld [vmem:[%s369 + $0x12e8] sm:$0xff]
        %v1627 = vld [vmem:[%s369 + $0x12f0] sm:$0xff]
        %v1628 = vld [vmem:[%s369 + $0x12f8] sm:$0xff]
        %v1629 = vld [vmem:[%s369 + $0x1300] sm:$0xff]
        %v1630 = vld [vmem:[%s369 + $0x1308] sm:$0xff]
        %v1631 = vld [vmem:[%s369 + $0x1310] sm:$0xff]
        %v1632 = vld [vmem:[%s369 + $0x1318] sm:$0xff]
        %v1633 = vld [vmem:[%s369 + $0x1320] sm:$0xff]
        %v1634 = vld [vmem:[%s369 + $0x1328] sm:$0xff]
        %v1635 = vld [vmem:[%s369 + $0x1330] sm:$0xff]
        %v1636 = vld [vmem:[%s369 + $0x1338] sm:$0xff]
        %v1637 = vld [vmem:[%s369 + $0x1340] sm:$0xff]
        %v1638 = vld [vmem:[%s369 + $0x1348] sm:$0xff]
        %v1639 = vld [vmem:[%s369 + $0x1350] sm:$0xff]
        %v1640 = vld [vmem:[%s369 + $0x1358] sm:$0xff]
        %v1641 = vld [vmem:[%s369 + $0x1360] sm:$0xff]
        %v1642 = vld [vmem:[%s369 + $0x1368] sm:$0xff]
        %v1643 = vld [vmem:[%s369 + $0x1370] sm:$0xff]
        %v1644 = vld [vmem:[%s369 + $0x1378] sm:$0xff]
        %v1645 = vld [vmem:[%s369 + $0x1380] sm:$0xff]
        %v1646 = vld [vmem:[%s369 + $0x1388] sm:$0xff]
        %v1647 = vld [vmem:[%s369 + $0x1390] sm:$0xff]
        %v1648 = vld [vmem:[%s369 + $0x1398] sm:$0xff]
        %v1649 = vld [vmem:[%s369 + $0x13a0] sm:$0xff]
        %v1650 = vld [vmem:[%s369 + $0x13a8] sm:$0xff]
        %v1651 = vld [vmem:[%s369 + $0x13b0] sm:$0xff]
        %v1652 = vld [vmem:[%s369 + $0x13b8] sm:$0xff]
        %v1653 = vld [vmem:[%s369 + $0x13c0] sm:$0xff]
        %v1654 = vld [vmem:[%s369 + $0x13c8] sm:$0xff]
        %v1655 = vld [vmem:[%s369 + $0x13d0] sm:$0xff]
        %v1656 = vld [vmem:[%s369 + $0x13d8] sm:$0xff]
        %v1657 = vld [vmem:[%s369 + $0x13e0] sm:$0xff]
        %v1658 = vld [vmem:[%s369 + $0x13e8] sm:$0xff]
        %v1659 = vld [vmem:[%s369 + $0x13f0] sm:$0xff]
        %v1660 = vld [vmem:[%s369 + $0x13f8] sm:$0xff]
        %v1661 = vld [vmem:[%s369 + $0x1400] sm:$0xff]
        %v1662 = vld [vmem:[%s369 + $0x1408] sm:$0xff]
        %v1663 = vld [vmem:[%s369 + $0x1410] sm:$0xff]
        %v1664 = vld [vmem:[%s369 + $0x1418] sm:$0xff]
        %v1665 = vld [vmem:[%s369 + $0x1420] sm:$0xff]
        %v1666 = vld [vmem:[%s369 + $0x1428] sm:$0xff]
        %v1667 = vld [vmem:[%s369 + $0x1430] sm:$0xff]
        %v1668 = vld [vmem:[%s369 + $0x1438] sm:$0xff]
        %v1669 = vld [vmem:[%s369 + $0x1440] sm:$0xff]
        %v1670 = vld [vmem:[%s369 + $0x1448] sm:$0xff]
        %v1671 = vld [vmem:[%s369 + $0x1450] sm:$0xff]
        %v1672 = vld [vmem:[%s369 + $0x1458] sm:$0xff]
        %v1673 = vld [vmem:[%s369 + $0x1460] sm:$0xff]
        %v1674 = vld [vmem:[%s369 + $0x1468] sm:$0xff]
        %v1675 = vld [vmem:[%s369 + $0x1470] sm:$0xff]
        %v1676 = vld [vmem:[%s369 + $0x1478] sm:$0xff]
        %v1677 = vld [vmem:[%s369 + $0x1480] sm:$0xff]
        %v1678 = vld [vmem:[%s369 + $0x1488] sm:$0xff]
        %v1679 = vld [vmem:[%s369 + $0x1490] sm:$0xff]
        %v1680 = vld [vmem:[%s369 + $0x1498] sm:$0xff]
        %v1681 = vld [vmem:[%s369 + $0x14a0] sm:$0xff]
        %v1682 = vld [vmem:[%s369 + $0x14a8] sm:$0xff]
        %v1683 = vld [vmem:[%s369 + $0x14b0] sm:$0xff]
        %v1684 = vld [vmem:[%s369 + $0x14b8] sm:$0xff]
        %v1685 = vld [vmem:[%s369 + $0x14c0] sm:$0xff]
        %v1686 = vld [vmem:[%s369 + $0x14c8] sm:$0xff]
        %v1687 = vld [vmem:[%s369 + $0x14d0] sm:$0xff]
        %v1688 = vld [vmem:[%s369 + $0x14d8] sm:$0xff]
        %v1689 = vld [vmem:[%s369 + $0x14e0] sm:$0xff]
        %v1690 = vld [vmem:[%s369 + $0x14e8] sm:$0xff]
        %v1691 = vld [vmem:[%s369 + $0x14f0] sm:$0xff]
        %v1692 = vld [vmem:[%s369 + $0x14f8] sm:$0xff]
        %v1693 = vld [vmem:[%s369 + $0x1500] sm:$0xff]
        %v1694 = vld [vmem:[%s369 + $0x1508] sm:$0xff]
        %v1695 = vld [vmem:[%s369 + $0x1510] sm:$0xff]
        %v1696 = vld [vmem:[%s369 + $0x1518] sm:$0xff]
        %v1697 = vld [vmem:[%s369 + $0x1520] sm:$0xff]
        %v1698 = vld [vmem:[%s369 + $0x1528] sm:$0xff]
        %v1699 = vld [vmem:[%s369 + $0x1530] sm:$0xff]
        %v1700 = vld [vmem:[%s369 + $0x1538] sm:$0xff]
        %v1701 = vld [vmem:[%s369 + $0x1540] sm:$0xff]
        %v1702 = vld [vmem:[%s369 + $0x1548] sm:$0xff]
        %v1703 = vld [vmem:[%s369 + $0x1550] sm:$0xff]
        %v1704 = vld [vmem:[%s369 + $0x1558] sm:$0xff]
        %v1705 = vld [vmem:[%s369 + $0x1560] sm:$0xff]
        %v1706 = vld [vmem:[%s369 + $0x1568] sm:$0xff]
        %v1707 = vld [vmem:[%s369 + $0x1570] sm:$0xff]
        %v1708 = vld [vmem:[%s369 + $0x1578] sm:$0xff]
        %v1709 = vld [vmem:[%s369 + $0x1580] sm:$0xff]
        %v1710 = vld [vmem:[%s369 + $0x1588] sm:$0xff]
        %v1711 = vld [vmem:[%s369 + $0x1590] sm:$0xff]
        %v1712 = vld [vmem:[%s369 + $0x1598] sm:$0xff]
        %v1713 = vld [vmem:[%s369 + $0x15a0] sm:$0xff]
        %v1714 = vld [vmem:[%s369 + $0x15a8] sm:$0xff]
        %v1715 = vld [vmem:[%s369 + $0x15b0] sm:$0xff]
        %v1716 = vld [vmem:[%s369 + $0x15b8] sm:$0xff]
        %v1717 = vld [vmem:[%s369 + $0x15c0] sm:$0xff]
        %v1718 = vld [vmem:[%s369 + $0x15c8] sm:$0xff]
        %v1719 = vld [vmem:[%s369 + $0x15d0] sm:$0xff]
        %v1720 = vld [vmem:[%s369 + $0x15d8] sm:$0xff]
        %v1721 = vld [vmem:[%s369 + $0x15e0] sm:$0xff]
        %v1722 = vld [vmem:[%s369 + $0x15e8] sm:$0xff]
        %v1723 = vld [vmem:[%s369 + $0x15f0] sm:$0xff]
        %v1724 = vld [vmem:[%s369 + $0x15f8] sm:$0xff]
        %v1725 = vld [vmem:[%s369 + $0x1600] sm:$0xff]
        %v1726 = vld [vmem:[%s369 + $0x1608] sm:$0xff]
        %v1727 = vld [vmem:[%s369 + $0x1610] sm:$0xff]
        %v1728 = vld [vmem:[%s369 + $0x1618] sm:$0xff]
        %v1729 = vld [vmem:[%s369 + $0x1620] sm:$0xff]
        %v1730 = vld [vmem:[%s369 + $0x1628] sm:$0xff]
        %v1731 = vld [vmem:[%s369 + $0x1630] sm:$0xff]
        %v1732 = vld [vmem:[%s369 + $0x1638] sm:$0xff]
        %v1733 = vld [vmem:[%s369 + $0x1640] sm:$0xff]
        %v1734 = vld [vmem:[%s369 + $0x1648] sm:$0xff]
        %v1735 = vld [vmem:[%s369 + $0x1650] sm:$0xff]
        %v1736 = vld [vmem:[%s369 + $0x1658] sm:$0xff]
        %v1737 = vld [vmem:[%s369 + $0x1660] sm:$0xff]
        %v1738 = vld [vmem:[%s369 + $0x1668] sm:$0xff]
        %v1739 = vld [vmem:[%s369 + $0x1670] sm:$0xff]
        %v1740 = vld [vmem:[%s369 + $0x1678] sm:$0xff]
        %v1741 = vld [vmem:[%s369 + $0x1680] sm:$0xff]
        %v1742 = vld [vmem:[%s369 + $0x1688] sm:$0xff]
        %v1743 = vld [vmem:[%s369 + $0x1690] sm:$0xff]
        %v1744 = vld [vmem:[%s369 + $0x1698] sm:$0xff]
        %v1745 = vld [vmem:[%s369 + $0x16a0] sm:$0xff]
        %v1746 = vld [vmem:[%s369 + $0x16a8] sm:$0xff]
        %v1747 = vld [vmem:[%s369 + $0x16b0] sm:$0xff]
        %v1748 = vld [vmem:[%s369 + $0x16b8] sm:$0xff]
        %v1749 = vld [vmem:[%s369 + $0x16c0] sm:$0xff]
        %v1750 = vld [vmem:[%s369 + $0x16c8] sm:$0xff]
        %v1751 = vld [vmem:[%s369 + $0x16d0] sm:$0xff]
        %v1752 = vld [vmem:[%s369 + $0x16d8] sm:$0xff]
        %v1753 = vld [vmem:[%s369 + $0x16e0] sm:$0xff]
        %v1754 = vld [vmem:[%s369 + $0x16e8] sm:$0xff]
        %v1755 = vld [vmem:[%s369 + $0x16f0] sm:$0xff]
        %v1756 = vld [vmem:[%s369 + $0x16f8] sm:$0xff]
        %v1757 = vld [vmem:[%s369 + $0x1700] sm:$0xff]
        %v1758 = vld [vmem:[%s369 + $0x1708] sm:$0xff]
        %v1759 = vld [vmem:[%s369 + $0x1710] sm:$0xff]
        %v1760 = vld [vmem:[%s369 + $0x1718] sm:$0xff]
        %v1761 = vld [vmem:[%s369 + $0x1720] sm:$0xff]
        %v1762 = vld [vmem:[%s369 + $0x1728] sm:$0xff]
        %v1763 = vld [vmem:[%s369 + $0x1730] sm:$0xff]
        %v1764 = vld [vmem:[%s369 + $0x1738] sm:$0xff]
        %v1765 = vld [vmem:[%s369 + $0x1740] sm:$0xff]
        %v1766 = vld [vmem:[%s369 + $0x1748] sm:$0xff]
        %v1767 = vld [vmem:[%s369 + $0x1750] sm:$0xff]
        %v1768 = vld [vmem:[%s369 + $0x1758] sm:$0xff]
        %v1769 = vld [vmem:[%s369 + $0x1760] sm:$0xff]
        %v1770 = vld [vmem:[%s369 + $0x1768] sm:$0xff]
        %v1771 = vld [vmem:[%s369 + $0x1770] sm:$0xff]
        %v1772 = vld [vmem:[%s369 + $0x1778] sm:$0xff]
        %v1773 = vld [vmem:[%s369 + $0x1780] sm:$0xff]
        %v1774 = vld [vmem:[%s369 + $0x1788] sm:$0xff]
        %v1775 = vld [vmem:[%s369 + $0x1790] sm:$0xff]
        %v1776 = vld [vmem:[%s369 + $0x1798] sm:$0xff]
        %v1777 = vld [vmem:[%s369 + $0x17a0] sm:$0xff]
        %v1778 = vld [vmem:[%s369 + $0x17a8] sm:$0xff]
        %v1779 = vld [vmem:[%s369 + $0x17b0] sm:$0xff]
        %v1780 = vld [vmem:[%s369 + $0x17b8] sm:$0xff]
        %v1781 = vld [vmem:[%s369 + $0x17c0] sm:$0xff]
        %v1782 = vld [vmem:[%s369 + $0x17c8] sm:$0xff]
        %v1783 = vld [vmem:[%s369 + $0x17d0] sm:$0xff]
        %v1784 = vld [vmem:[%s369 + $0x17d8] sm:$0xff]
        %v1785 = vld [vmem:[%s369 + $0x17e0] sm:$0xff]
        %v1786 = vld [vmem:[%s369 + $0x17e8] sm:$0xff]
        %v1787 = vld [vmem:[%s369 + $0x17f0] sm:$0xff]
        %v1788 = vld [vmem:[%s369 + $0x17f8] sm:$0xff]
        %v1789 = vld [vmem:[%s369 + $0x1800] sm:$0xff]
        %v1790 = vld [vmem:[%s369 + $0x1808] sm:$0xff]
        %v1791 = vld [vmem:[%s369 + $0x1810] sm:$0xff]
        %v1792 = vld [vmem:[%s369 + $0x1818] sm:$0xff]
        %v1793 = vld [vmem:[%s369 + $0x1820] sm:$0xff]
        %v1794 = vld [vmem:[%s369 + $0x1828] sm:$0xff]
        %v1795 = vld [vmem:[%s369 + $0x1830] sm:$0xff]
        %v1796 = vld [vmem:[%s369 + $0x1838] sm:$0xff]
        %v1797 = vld [vmem:[%s369 + $0x1840] sm:$0xff]
        %v1798 = vld [vmem:[%s369 + $0x1848] sm:$0xff]
        %v1799 = vld [vmem:[%s369 + $0x1850] sm:$0xff]
        %v1800 = vld [vmem:[%s369 + $0x1858] sm:$0xff]
        %v1801 = vld [vmem:[%s369 + $0x1860] sm:$0xff]
        %v1802 = vld [vmem:[%s369 + $0x1868] sm:$0xff]
        %v1803 = vld [vmem:[%s369 + $0x1870] sm:$0xff]
        %v1804 = vld [vmem:[%s369 + $0x1878] sm:$0xff]
        %v1805 = vld [vmem:[%s369 + $0x1880] sm:$0xff]
        %v1806 = vld [vmem:[%s369 + $0x1888] sm:$0xff]
        %v1807 = vld [vmem:[%s369 + $0x1890] sm:$0xff]
        %v1808 = vld [vmem:[%s369 + $0x1898] sm:$0xff]
        %v1809 = vld [vmem:[%s369 + $0x18a0] sm:$0xff]
        %v1810 = vld [vmem:[%s369 + $0x18a8] sm:$0xff]
        %v1811 = vld [vmem:[%s369 + $0x18b0] sm:$0xff]
        %v1812 = vld [vmem:[%s369 + $0x18b8] sm:$0xff]
        %v1813 = vld [vmem:[%s369 + $0x18c0] sm:$0xff]
        %v1814 = vld [vmem:[%s369 + $0x18c8] sm:$0xff]
        %v1815 = vld [vmem:[%s369 + $0x18d0] sm:$0xff]
        %v1816 = vld [vmem:[%s369 + $0x18d8] sm:$0xff]
        %v1817 = vld [vmem:[%s369 + $0x18e0] sm:$0xff]
        %v1818 = vld [vmem:[%s369 + $0x18e8] sm:$0xff]
        %v1819 = vld [vmem:[%s369 + $0x18f0] sm:$0xff]
        %v1820 = vld [vmem:[%s369 + $0x18f8] sm:$0xff]
        %v1821 = vld [vmem:[%s369 + $0x1900] sm:$0xff]
        %v1822 = vld [vmem:[%s369 + $0x1908] sm:$0xff]
        %v1823 = vld [vmem:[%s369 + $0x1910] sm:$0xff]
        %v1824 = vld [vmem:[%s369 + $0x1918] sm:$0xff]
        %v1825 = vld [vmem:[%s369 + $0x1920] sm:$0xff]
        %v1826 = vld [vmem:[%s369 + $0x1928] sm:$0xff]
        %v1827 = vld [vmem:[%s369 + $0x1930] sm:$0xff]
        %v1828 = vld [vmem:[%s369 + $0x1938] sm:$0xff]
        %v1829 = vld [vmem:[%s369 + $0x1940] sm:$0xff]
        %v1830 = vld [vmem:[%s369 + $0x1948] sm:$0xff]
        %v1831 = vld [vmem:[%s369 + $0x1950] sm:$0xff]
        %v1832 = vld [vmem:[%s369 + $0x1958] sm:$0xff]
        %v1833 = vld [vmem:[%s369 + $0x1960] sm:$0xff]
        %v1834 = vld [vmem:[%s369 + $0x1968] sm:$0xff]
        %v1835 = vld [vmem:[%s369 + $0x1970] sm:$0xff]
        %v1836 = vld [vmem:[%s369 + $0x1978] sm:$0xff]
        %v1837 = vld [vmem:[%s369 + $0x1980] sm:$0xff]
        %v1838 = vld [vmem:[%s369 + $0x1988] sm:$0xff]
        %v1839 = vld [vmem:[%s369 + $0x1990] sm:$0xff]
        %v1840 = vld [vmem:[%s369 + $0x1998] sm:$0xff]
        %v1841 = vld [vmem:[%s369 + $0x19a0] sm:$0xff]
        %v1842 = vld [vmem:[%s369 + $0x19a8] sm:$0xff]
        %v1843 = vld [vmem:[%s369 + $0x19b0] sm:$0xff]
        %v1844 = vld [vmem:[%s369 + $0x19b8] sm:$0xff]
        %v1845 = vld [vmem:[%s369 + $0x19c0] sm:$0xff]
        %v1846 = vld [vmem:[%s369 + $0x19c8] sm:$0xff]
        %v1847 = vld [vmem:[%s369 + $0x19d0] sm:$0xff]
        %v1848 = vld [vmem:[%s369 + $0x19d8] sm:$0xff]
        %v1849 = vld [vmem:[%s369 + $0x19e0] sm:$0xff]
        %v1850 = vld [vmem:[%s369 + $0x19e8] sm:$0xff]
        %v1851 = vld [vmem:[%s369 + $0x19f0] sm:$0xff]
        %v1852 = vld [vmem:[%s369 + $0x19f8] sm:$0xff]
        %v1853 = vld [vmem:[%s369 + $0x1a00] sm:$0xff]
        %v1854 = vld [vmem:[%s369 + $0x1a08] sm:$0xff]
        %v1855 = vld [vmem:[%s369 + $0x1a10] sm:$0xff]
        %v1856 = vld [vmem:[%s369 + $0x1a18] sm:$0xff]
        %v1857 = vld [vmem:[%s369 + $0x1a20] sm:$0xff]
        %v1858 = vld [vmem:[%s369 + $0x1a28] sm:$0xff]
        %v1859 = vld [vmem:[%s369 + $0x1a30] sm:$0xff]
        %v1860 = vld [vmem:[%s369 + $0x1a38] sm:$0xff]
        %v1861 = vld [vmem:[%s369 + $0x1a40] sm:$0xff]
        %v1862 = vld [vmem:[%s369 + $0x1a48] sm:$0xff]
        %v1863 = vld [vmem:[%s369 + $0x1a50] sm:$0xff]
        %v1864 = vld [vmem:[%s369 + $0x1a58] sm:$0xff]
        %v1865 = vld [vmem:[%s369 + $0x1a60] sm:$0xff]
        %v1866 = vld [vmem:[%s369 + $0x1a68] sm:$0xff]
        %v1867 = vld [vmem:[%s369 + $0x1a70] sm:$0xff]
        %v1868 = vld [vmem:[%s369 + $0x1a78] sm:$0xff]
        %v1869 = vld [vmem:[%s369 + $0x1a80] sm:$0xff]
        %v1870 = vld [vmem:[%s369 + $0x1a88] sm:$0xff]
        %v1871 = vld [vmem:[%s369 + $0x1a90] sm:$0xff]
        %v1872 = vld [vmem:[%s369 + $0x1a98] sm:$0xff]
        %v1873 = vld [vmem:[%s369 + $0x1aa0] sm:$0xff]
        %v1874 = vld [vmem:[%s369 + $0x1aa8] sm:$0xff]
        %v1875 = vld [vmem:[%s369 + $0x1ab0] sm:$0xff]
        %v1876 = vld [vmem:[%s369 + $0x1ab8] sm:$0xff]
        %v1877 = vld [vmem:[%s369 + $0x1ac0] sm:$0xff]
        %v1878 = vld [vmem:[%s369 + $0x1ac8] sm:$0xff]
        %v1879 = vld [vmem:[%s369 + $0x1ad0] sm:$0xff]
        %v1880 = vld [vmem:[%s369 + $0x1ad8] sm:$0xff]
        %v1881 = vld [vmem:[%s369 + $0x1ae0] sm:$0xff]
        %v1882 = vld [vmem:[%s369 + $0x1ae8] sm:$0xff]
        %v1883 = vld [vmem:[%s369 + $0x1af0] sm:$0xff]
        %v1884 = vld [vmem:[%s369 + $0x1af8] sm:$0xff]
        %v1885 = vld [vmem:[%s369 + $0x1b00] sm:$0xff]
        %v1886 = vld [vmem:[%s369 + $0x1b08] sm:$0xff]
        %v1887 = vld [vmem:[%s369 + $0x1b10] sm:$0xff]
        %v1888 = vld [vmem:[%s369 + $0x1b18] sm:$0xff]
        %v1889 = vld [vmem:[%s369 + $0x1b20] sm:$0xff]
        %v1890 = vld [vmem:[%s369 + $0x1b28] sm:$0xff]
        %v1891 = vld [vmem:[%s369 + $0x1b30] sm:$0xff]
        %v1892 = vld [vmem:[%s369 + $0x1b38] sm:$0xff]
        %v1893 = vld [vmem:[%s369 + $0x1b40] sm:$0xff]
        %v1894 = vld [vmem:[%s369 + $0x1b48] sm:$0xff]
        %v1895 = vld [vmem:[%s369 + $0x1b50] sm:$0xff]
        %v1896 = vld [vmem:[%s369 + $0x1b58] sm:$0xff]
        %v1897 = vld [vmem:[%s369 + $0x1b60] sm:$0xff]
        %v1898 = vld [vmem:[%s369 + $0x1b68] sm:$0xff]
        %v1899 = vld [vmem:[%s369 + $0x1b70] sm:$0xff]
        %v1900 = vld [vmem:[%s369 + $0x1b78] sm:$0xff]
        %v1901 = vld [vmem:[%s369 + $0x1b80] sm:$0xff]
        %v1902 = vld [vmem:[%s369 + $0x1b88] sm:$0xff]
        %v1903 = vld [vmem:[%s369 + $0x1b90] sm:$0xff]
        %v1904 = vld [vmem:[%s369 + $0x1b98] sm:$0xff]
        %v1905 = vld [vmem:[%s369 + $0x1ba0] sm:$0xff]
        %v1906 = vld [vmem:[%s369 + $0x1ba8] sm:$0xff]
        %v1907 = vld [vmem:[%s369 + $0x1bb0] sm:$0xff]
        %v1908 = vld [vmem:[%s369 + $0x1bb8] sm:$0xff]
        %v1909 = vld [vmem:[%s369 + $0x1bc0] sm:$0xff]
        %v1910 = vld [vmem:[%s369 + $0x1bc8] sm:$0xff]
        %v1911 = vld [vmem:[%s369 + $0x1bd0] sm:$0xff]
        %v1912 = vld [vmem:[%s369 + $0x1bd8] sm:$0xff]
        %v1913 = vld [vmem:[%s369 + $0x1be0] sm:$0xff]
        %v1914 = vld [vmem:[%s369 + $0x1be8] sm:$0xff]
        %v1915 = vld [vmem:[%s369 + $0x1bf0] sm:$0xff]
        %v1916 = vld [vmem:[%s369 + $0x1bf8] sm:$0xff]
        %v1917 = vld [vmem:[%s369 + $0x1c00] sm:$0xff]
        %v1918 = vld [vmem:[%s369 + $0x1c08] sm:$0xff]
        %v1919 = vld [vmem:[%s369 + $0x1c10] sm:$0xff]
        %v1920 = vld [vmem:[%s369 + $0x1c18] sm:$0xff]
        %v1921 = vld [vmem:[%s369 + $0x1c20] sm:$0xff]
        %v1922 = vld [vmem:[%s369 + $0x1c28] sm:$0xff]
        %v1923 = vld [vmem:[%s369 + $0x1c30] sm:$0xff]
        %v1924 = vld [vmem:[%s369 + $0x1c38] sm:$0xff]
        %v1925 = vld [vmem:[%s369 + $0x1c40] sm:$0xff]
        %v1926 = vld [vmem:[%s369 + $0x1c48] sm:$0xff]
        %v1927 = vld [vmem:[%s369 + $0x1c50] sm:$0xff]
        %v1928 = vld [vmem:[%s369 + $0x1c58] sm:$0xff]
        %v1929 = vld [vmem:[%s369 + $0x1c60] sm:$0xff]
        %v1930 = vld [vmem:[%s369 + $0x1c68] sm:$0xff]
        %v1931 = vld [vmem:[%s369 + $0x1c70] sm:$0xff]
        %v1932 = vld [vmem:[%s369 + $0x1c78] sm:$0xff]
        %v1933 = vld [vmem:[%s369 + $0x1c80] sm:$0xff]
        %v1934 = vld [vmem:[%s369 + $0x1c88] sm:$0xff]
        %v1935 = vld [vmem:[%s369 + $0x1c90] sm:$0xff]
        %v1936 = vld [vmem:[%s369 + $0x1c98] sm:$0xff]
        %v1937 = vld [vmem:[%s369 + $0x1ca0] sm:$0xff]
        %v1938 = vld [vmem:[%s369 + $0x1ca8] sm:$0xff]
        %v1939 = vld [vmem:[%s369 + $0x1cb0] sm:$0xff]
        %v1940 = vld [vmem:[%s369 + $0x1cb8] sm:$0xff]
        %v1941 = vld [vmem:[%s369 + $0x1cc0] sm:$0xff]
        %v1942 = vld [vmem:[%s369 + $0x1cc8] sm:$0xff]
        %v1943 = vld [vmem:[%s369 + $0x1cd0] sm:$0xff]
        %v1944 = vld [vmem:[%s369 + $0x1cd8] sm:$0xff]
        %v1945 = vld [vmem:[%s369 + $0x1ce0] sm:$0xff]
        %v1946 = vld [vmem:[%s369 + $0x1ce8] sm:$0xff]
        %v1947 = vld [vmem:[%s369 + $0x1cf0] sm:$0xff]
        %v1948 = vld [vmem:[%s369 + $0x1cf8] sm:$0xff]
        %v1949 = vld [vmem:[%s369 + $0x1d00] sm:$0xff]
        %v1950 = vld [vmem:[%s369 + $0x1d08] sm:$0xff]
        %v1951 = vld [vmem:[%s369 + $0x1d10] sm:$0xff]
        %v1952 = vld [vmem:[%s369 + $0x1d18] sm:$0xff]
        %v1953 = vld [vmem:[%s369 + $0x1d20] sm:$0xff]
        %v1954 = vld [vmem:[%s369 + $0x1d28] sm:$0xff]
        %v1955 = vld [vmem:[%s369 + $0x1d30] sm:$0xff]
        %v1956 = vld [vmem:[%s369 + $0x1d38] sm:$0xff]
        %v1957 = vld [vmem:[%s369 + $0x1d40] sm:$0xff]
        %v1958 = vld [vmem:[%s369 + $0x1d48] sm:$0xff]
        %v1959 = vld [vmem:[%s369 + $0x1d50] sm:$0xff]
        %v1960 = vld [vmem:[%s369 + $0x1d58] sm:$0xff]
        %v1961 = vld [vmem:[%s369 + $0x1d60] sm:$0xff]
        %v1962 = vld [vmem:[%s369 + $0x1d68] sm:$0xff]
        %v1963 = vld [vmem:[%s369 + $0x1d70] sm:$0xff]
        %v1964 = vld [vmem:[%s369 + $0x1d78] sm:$0xff]
        %v1965 = vld [vmem:[%s369 + $0x1d80] sm:$0xff]
        %v1966 = vld [vmem:[%s369 + $0x1d88] sm:$0xff]
        %v1967 = vld [vmem:[%s369 + $0x1d90] sm:$0xff]
        %v1968 = vld [vmem:[%s369 + $0x1d98] sm:$0xff]
        %v1969 = vld [vmem:[%s369 + $0x1da0] sm:$0xff]
        %v1970 = vld [vmem:[%s369 + $0x1da8] sm:$0xff]
        %v1971 = vld [vmem:[%s369 + $0x1db0] sm:$0xff]
        %v1972 = vld [vmem:[%s369 + $0x1db8] sm:$0xff]
        %v1973 = vld [vmem:[%s369 + $0x1dc0] sm:$0xff]
        %v1974 = vld [vmem:[%s369 + $0x1dc8] sm:$0xff]
        %v1975 = vld [vmem:[%s369 + $0x1dd0] sm:$0xff]
        %v1976 = vld [vmem:[%s369 + $0x1dd8] sm:$0xff]
        %v1977 = vld [vmem:[%s369 + $0x1de0] sm:$0xff]
        %v1978 = vld [vmem:[%s369 + $0x1de8] sm:$0xff]
        %v1979 = vld [vmem:[%s369 + $0x1df0] sm:$0xff]
        %v1980 = vld [vmem:[%s369 + $0x1df8] sm:$0xff]
        %v1981 = vld [vmem:[%s369 + $0x1e00] sm:$0xff]
        %v1982 = vld [vmem:[%s369 + $0x1e08] sm:$0xff]
        %v1983 = vld [vmem:[%s369 + $0x1e10] sm:$0xff]
        %v1984 = vld [vmem:[%s369 + $0x1e18] sm:$0xff]
        %v1985 = vld [vmem:[%s369 + $0x1e20] sm:$0xff]
        %v1986 = vld [vmem:[%s369 + $0x1e28] sm:$0xff]
        %v1987 = vld [vmem:[%s369 + $0x1e30] sm:$0xff]
        %v1988 = vld [vmem:[%s369 + $0x1e38] sm:$0xff]
        %v1989 = vld [vmem:[%s369 + $0x1e40] sm:$0xff]
        %v1990 = vld [vmem:[%s369 + $0x1e48] sm:$0xff]
        %v1991 = vld [vmem:[%s369 + $0x1e50] sm:$0xff]
        %v1992 = vld [vmem:[%s369 + $0x1e58] sm:$0xff]
        %v1993 = vld [vmem:[%s369 + $0x1e60] sm:$0xff]
        %v1994 = vld [vmem:[%s369 + $0x1e68] sm:$0xff]
        %v1995 = vld [vmem:[%s369 + $0x1e70] sm:$0xff]
        %v1996 = vld [vmem:[%s369 + $0x1e78] sm:$0xff]
        %v1997 = vld [vmem:[%s369 + $0x1e80] sm:$0xff]
        %v1998 = vld [vmem:[%s369 + $0x1e88] sm:$0xff]
        %v1999 = vld [vmem:[%s369 + $0x1e90] sm:$0xff]
        %v2000 = vld [vmem:[%s369 + $0x1e98] sm:$0xff]
        %v2001 = vld [vmem:[%s369 + $0x1ea0] sm:$0xff]
        %v2002 = vld [vmem:[%s369 + $0x1ea8] sm:$0xff]
        %v2003 = vld [vmem:[%s369 + $0x1eb0] sm:$0xff]
        %v2004 = vld [vmem:[%s369 + $0x1eb8] sm:$0xff]
        %v2005 = vld [vmem:[%s369 + $0x1ec0] sm:$0xff]
        %v2006 = vld [vmem:[%s369 + $0x1ec8] sm:$0xff]
        %v2007 = vld [vmem:[%s369 + $0x1ed0] sm:$0xff]
        %v2008 = vld [vmem:[%s369 + $0x1ed8] sm:$0xff]
        %v2009 = vld [vmem:[%s369 + $0x1ee0] sm:$0xff]
        %v2010 = vld [vmem:[%s369 + $0x1ee8] sm:$0xff]
        %v2011 = vld [vmem:[%s369 + $0x1ef0] sm:$0xff]
        %v2012 = vld [vmem:[%s369 + $0x1ef8] sm:$0xff]
        %v2013 = vld [vmem:[%s369 + $0x1f00] sm:$0xff]
        %v2014 = vld [vmem:[%s369 + $0x1f08] sm:$0xff]
        %v2015 = vld [vmem:[%s369 + $0x1f10] sm:$0xff]
        %v2016 = vld [vmem:[%s369 + $0x1f18] sm:$0xff]
        %v2017 = vld [vmem:[%s369 + $0x1f20] sm:$0xff]
        %v2018 = vld [vmem:[%s369 + $0x1f28] sm:$0xff]
        %v2019 = vld [vmem:[%s369 + $0x1f30] sm:$0xff]
        %v2020 = vld [vmem:[%s369 + $0x1f38] sm:$0xff]
        %v2021 = vld [vmem:[%s369 + $0x1f40] sm:$0xff]
        %v2022 = vld [vmem:[%s369 + $0x1f48] sm:$0xff]
        %v2023 = vld [vmem:[%s369 + $0x1f50] sm:$0xff]
        %v2024 = vld [vmem:[%s369 + $0x1f58] sm:$0xff]
        %v2025 = vld [vmem:[%s369 + $0x1f60] sm:$0xff]
        %v2026 = vld [vmem:[%s369 + $0x1f68] sm:$0xff]
        %v2027 = vld [vmem:[%s369 + $0x1f70] sm:$0xff]
        %v2028 = vld [vmem:[%s369 + $0x1f78] sm:$0xff]
        %v2029 = vld [vmem:[%s369 + $0x1f80] sm:$0xff]
        %v2030 = vld [vmem:[%s369 + $0x1f88] sm:$0xff]
        %v2031 = vld [vmem:[%s369 + $0x1f90] sm:$0xff]
        %v2032 = vld [vmem:[%s369 + $0x1f98] sm:$0xff]
        %v2033 = vld [vmem:[%s369 + $0x1fa0] sm:$0xff]
        %v2034 = vld [vmem:[%s369 + $0x1fa8] sm:$0xff]
        %v2035 = vld [vmem:[%s369 + $0x1fb0] sm:$0xff]
        %v2036 = vld [vmem:[%s369 + $0x1fb8] sm:$0xff]
        %v2037 = vld [vmem:[%s369 + $0x1fc0] sm:$0xff]
        %v2038 = vld [vmem:[%s369 + $0x1fc8] sm:$0xff]
        %v2039 = vld [vmem:[%s369 + $0x1fd0] sm:$0xff]
        %v2040 = vld [vmem:[%s369 + $0x1fd8] sm:$0xff]
        %v2041 = vld [vmem:[%s369 + $0x1fe0] sm:$0xff]
        %v2042 = vld [vmem:[%s369 + $0x1fe8] sm:$0xff]
        %v2043 = vld [vmem:[%s369 + $0x1ff0] sm:$0xff]
        %v2044 = vld [vmem:[%s369 + $0x1ff8] sm:$0xff]
        %v2045 = vld [vmem:[%s378] sm:$0xff]
        %v2047 = vlaneseq
        %v2048 = vshrl.u32 %v2047, 7
        %v2049 = vsub.s32 0, %v2048
        %v2050 = vrot.slane %v2045, %v2049
        %v2051 = vlaneseq
        %v2052 = vshrl.u32 %v2051, 7
        %v2053 = vsub.s32 1, %v2052
        %v2054 = vrot.slane %v2045, %v2053
        %v2055 = vlaneseq
        %v2056 = vshrl.u32 %v2055, 7
        %v2057 = vsub.s32 2, %v2056
        %v2058 = vrot.slane %v2045, %v2057
        %v2059 = vlaneseq
        %v2060 = vshrl.u32 %v2059, 7
        %v2061 = vsub.s32 3, %v2060
        %v2062 = vrot.slane %v2045, %v2061
        %v2063 = vlaneseq
        %v2064 = vshrl.u32 %v2063, 7
        %v2065 = vsub.s32 4, %v2064
        %v2066 = vrot.slane %v2045, %v2065
        %v2067 = vlaneseq
        %v2068 = vshrl.u32 %v2067, 7
        %v2069 = vsub.s32 5, %v2068
        %v2070 = vrot.slane %v2045, %v2069
        %v2071 = vlaneseq
        %v2072 = vshrl.u32 %v2071, 7
        %v2073 = vsub.s32 6, %v2072
        %v2074 = vrot.slane %v2045, %v2073
        %v2075 = vlaneseq
        %v2076 = vshrl.u32 %v2075, 7
        %v2077 = vsub.s32 7, %v2076
        %v2078 = vrot.slane %v2045, %v2077
        %2087 = vmatprep.subr.mxu0 %v1022
        %2088 = vmatpush1.msra.mxu0 %v1021
        %2089 = vmatprep.subr.mxu0 %v1030
        %2090 = vmatpush1.msra.mxu0 %v1029
        %2091 = vmatprep.subr.mxu0 %v1038
        %2092 = vmatpush1.msra.mxu0 %v1037
        %2093 = vmatprep.subr.mxu0 %v1046
        %2094 = vmatpush1.msra.mxu0 %v1045
        %2095 = vmatprep.subr.mxu0 %v1054
        %2096 = vmatpush1.msra.mxu0 %v1053
        %2097 = vmatprep.subr.mxu0 %v1062
        %2098 = vmatpush1.msra.mxu0 %v1061
        %2099 = vmatprep.subr.mxu0 %v1070
        %2100 = vmatpush1.msra.mxu0 %v1069
        %2101 = vmatprep.subr.mxu0 %v1078
        %2102 = vmatpush1.msra.mxu0 %v1077
        %2103 = vmatprep.subr.mxu0 %v1086
        %2104 = vmatpush1.msra.mxu0 %v1085
        %2105 = vmatprep.subr.mxu0 %v1094
        %2106 = vmatpush1.msra.mxu0 %v1093
        %2107 = vmatprep.subr.mxu0 %v1102
        %2108 = vmatpush1.msra.mxu0 %v1101
        %2109 = vmatprep.subr.mxu0 %v1110
        %2110 = vmatpush1.msra.mxu0 %v1109
        %2111 = vmatprep.subr.mxu0 %v1118
        %2112 = vmatpush1.msra.mxu0 %v1117
        %2113 = vmatprep.subr.mxu0 %v1126
        %2114 = vmatpush1.msra.mxu0 %v1125
        %2115 = vmatprep.subr.mxu0 %v1134
        %2116 = vmatpush1.msra.mxu0 %v1133
        %2117 = vmatprep.subr.mxu0 %v1142
        %2118 = vmatpush1.msra.mxu0 %v1141
        %2119 = vmatprep.subr.mxu0 %v1150
        %2120 = vmatpush1.msra.mxu0 %v1149
        %2121 = vmatprep.subr.mxu0 %v1158
        %2122 = vmatpush1.msra.mxu0 %v1157
        %2123 = vmatprep.subr.mxu0 %v1166
        %2124 = vmatpush1.msra.mxu0 %v1165
        %2125 = vmatprep.subr.mxu0 %v1174
        %2126 = vmatpush1.msra.mxu0 %v1173
        %2127 = vmatprep.subr.mxu0 %v1182
        %2128 = vmatpush1.msra.mxu0 %v1181
        %2129 = vmatprep.subr.mxu0 %v1190
        %2130 = vmatpush1.msra.mxu0 %v1189
        %2131 = vmatprep.subr.mxu0 %v1198
        %2132 = vmatpush1.msra.mxu0 %v1197
        %2133 = vmatprep.subr.mxu0 %v1206
        %2134 = vmatpush1.msra.mxu0 %v1205
        %2135 = vmatprep.subr.mxu0 %v1214
        %2136 = vmatpush1.msra.mxu0 %v1213
        %2137 = vmatprep.subr.mxu0 %v1222
        %2138 = vmatpush1.msra.mxu0 %v1221
        %2139 = vmatprep.subr.mxu0 %v1230
        %2140 = vmatpush1.msra.mxu0 %v1229
        %2141 = vmatprep.subr.mxu0 %v1238
        %2142 = vmatpush1.msra.mxu0 %v1237
        %2143 = vmatprep.subr.mxu0 %v1246
        %2144 = vmatpush1.msra.mxu0 %v1245
        %2145 = vmatprep.subr.mxu0 %v1254
        %2146 = vmatpush1.msra.mxu0 %v1253
        %2147 = vmatprep.subr.mxu0 %v1262
        %2148 = vmatpush1.msra.mxu0 %v1261
        %2149 = vmatprep.subr.mxu0 %v1270
        %2150 = vmatpush1.msra.mxu0 %v1269
        %2151 = vmatprep.mubr.f32.mxu0 %v990
        %2152 = vmatmul.mubr.f32.gmra.mrb[0].mxu0 %v989
        %v2153 = vpop.f32.mrb[0].mxu0
        %v2154 = vadd.f32 %v2050, %v2153
        %v2155 = vpop.f32.mrb[0].mxu0
        %v2156 = vadd.f32 %v2054, %v2155
        %2157 = vmatprep.mubr.f32.mxu0 %v998
        %2158 = vmatmul.mubr.f32.gmra.mrb[0].mxu0 %v997
        %v2159 = vpop.f32.mrb[0].mxu0
        %v2160 = vadd.f32 %v2050, %v2159
        %v2161 = vpop.f32.mrb[0].mxu0
        %v2162 = vadd.f32 %v2054, %v2161
        %2163 = vmatprep.mubr.f32.mxu0 %v1006
        %2164 = vmatmul.mubr.f32.gmra.mrb[0].mxu0 %v1005
        %v2165 = vpop.f32.mrb[0].mxu0
        %v2166 = vadd.f32 %v2050, %v2165
        %v2167 = vpop.f32.mrb[0].mxu0
        %v2168 = vadd.f32 %v2054, %v2167
        %2169 = vmatprep.mubr.f32.mxu0 %v1014
        %2170 = vmatmul.mubr.f32.gmra.mrb[0].mxu0 %v1013
        %v2171 = vpop.f32.mrb[0].mxu0
        %v2172 = vadd.f32 %v2050, %v2171
        %v2173 = vpop.f32.mrb[0].mxu0
        %v2174 = vadd.f32 %v2054, %v2173
        %2175 = vdwg.mxu0
        %2176 = vmatprep.subr.mxu0 %v1278
        %2177 = vmatpush1.msra.mxu0 %v1277
        %2178 = vmatprep.subr.mxu0 %v1286
        %2179 = vmatpush1.msra.mxu0 %v1285
        %2180 = vmatprep.subr.mxu0 %v1294
        %2181 = vmatpush1.msra.mxu0 %v1293
        %2182 = vmatprep.subr.mxu0 %v1302
        %2183 = vmatpush1.msra.mxu0 %v1301
        %2184 = vmatprep.subr.mxu0 %v1310
        %2185 = vmatpush1.msra.mxu0 %v1309
        %2186 = vmatprep.subr.mxu0 %v1318
        %2187 = vmatpush1.msra.mxu0 %v1317
        %2188 = vmatprep.subr.mxu0 %v1326
        %2189 = vmatpush1.msra.mxu0 %v1325
        %2190 = vmatprep.subr.mxu0 %v1334
        %2191 = vmatpush1.msra.mxu0 %v1333
        %2192 = vmatprep.subr.mxu0 %v1342
        %2193 = vmatpush1.msra.mxu0 %v1341
        %2194 = vmatprep.subr.mxu0 %v1350
        %2195 = vmatpush1.msra.mxu0 %v1349
        %2196 = vmatprep.subr.mxu0 %v1358
        %2197 = vmatpush1.msra.mxu0 %v1357
        %2198 = vmatprep.subr.mxu0 %v1366
        %2199 = vmatpush1.msra.mxu0 %v1365
        %2200 = vmatprep.subr.mxu0 %v1374
        %2201 = vmatpush1.msra.mxu0 %v1373
        %2202 = vmatprep.subr.mxu0 %v1382
        %2203 = vmatpush1.msra.mxu0 %v1381
        %2204 = vmatprep.subr.mxu0 %v1390
        %2205 = vmatpush1.msra.mxu0 %v1389
        %2206 = vmatprep.subr.mxu0 %v1398
        %2207 = vmatpush1.msra.mxu0 %v1397
        %2208 = vmatprep.subr.mxu0 %v1406
        %2209 = vmatpush1.msra.mxu0 %v1405
        %2210 = vmatprep.subr.mxu0 %v1414
        %2211 = vmatpush1.msra.mxu0 %v1413
        %2212 = vmatprep.subr.mxu0 %v1422
        %2213 = vmatpush1.msra.mxu0 %v1421
        %2214 = vmatprep.subr.mxu0 %v1430
        %2215 = vmatpush1.msra.mxu0 %v1429
        %2216 = vmatprep.subr.mxu0 %v1438
        %2217 = vmatpush1.msra.mxu0 %v1437
        %2218 = vmatprep.subr.mxu0 %v1446
        %2219 = vmatpush1.msra.mxu0 %v1445
        %2220 = vmatprep.subr.mxu0 %v1454
        %2221 = vmatpush1.msra.mxu0 %v1453
        %2222 = vmatprep.subr.mxu0 %v1462
        %2223 = vmatpush1.msra.mxu0 %v1461
        %2224 = vmatprep.subr.mxu0 %v1470
        %2225 = vmatpush1.msra.mxu0 %v1469
        %2226 = vmatprep.subr.mxu0 %v1478
        %2227 = vmatpush1.msra.mxu0 %v1477
        %2228 = vmatprep.subr.mxu0 %v1486
        %2229 = vmatpush1.msra.mxu0 %v1485
        %2230 = vmatprep.subr.mxu0 %v1494
        %2231 = vmatpush1.msra.mxu0 %v1493
        %2232 = vmatprep.subr.mxu0 %v1502
        %2233 = vmatpush1.msra.mxu0 %v1501
        %2234 = vmatprep.subr.mxu0 %v1510
        %2235 = vmatpush1.msra.mxu0 %v1509
        %2236 = vmatprep.subr.mxu0 %v1518
        %2237 = vmatpush1.msra.mxu0 %v1517
        %2238 = vmatprep.subr.mxu0 %v1526
        %2239 = vmatpush1.msra.mxu0 %v1525
        %2240 = vmatprep.mubr.f32.mxu0 %v992
        %2241 = vmatmul.mubr.f32.gmra.mrb[0].mxu0 %v991
        %v2242 = vpop.f32.mrb[0].mxu0
        %v2243 = vadd.f32 %v2154, %v2242
        %v2244 = vpop.f32.mrb[0].mxu0
        %v2245 = vadd.f32 %v2156, %v2244
        %2246 = vmatprep.mubr.f32.mxu0 %v1000
        %2247 = vmatmul.mubr.f32.gmra.mrb[0].mxu0 %v999
        %v2248 = vpop.f32.mrb[0].mxu0
        %v2249 = vadd.f32 %v2160, %v2248
        %v2250 = vpop.f32.mrb[0].mxu0
        %v2251 = vadd.f32 %v2162, %v2250
        %2252 = vmatprep.mubr.f32.mxu0 %v1008
        %2253 = vmatmul.mubr.f32.gmra.mrb[0].mxu0 %v1007
        %v2254 = vpop.f32.mrb[0].mxu0
        %v2255 = vadd.f32 %v2166, %v2254
        %v2256 = vpop.f32.mrb[0].mxu0
        %v2257 = vadd.f32 %v2168, %v2256
        %2258 = vmatprep.mubr.f32.mxu0 %v1016
        %2259 = vmatmul.mubr.f32.gmra.mrb[0].mxu0 %v1015
        %v2260 = vpop.f32.mrb[0].mxu0
        %v2261 = vadd.f32 %v2172, %v2260
        %v2262 = vpop.f32.mrb[0].mxu0
        %v2263 = vadd.f32 %v2174, %v2262
        %2264 = vdwg.mxu0
        %2265 = vmatprep.subr.mxu0 %v1534
        %2266 = vmatpush1.msra.mxu0 %v1533
        %2267 = vmatprep.subr.mxu0 %v1542
        %2268 = vmatpush1.msra.mxu0 %v1541
        %2269 = vmatprep.subr.mxu0 %v1550
        %2270 = vmatpush1.msra.mxu0 %v1549
        %2271 = vmatprep.subr.mxu0 %v1558
        %2272 = vmatpush1.msra.mxu0 %v1557
        %2273 = vmatprep.subr.mxu0 %v1566
        %2274 = vmatpush1.msra.mxu0 %v1565
        %2275 = vmatprep.subr.mxu0 %v1574
        %2276 = vmatpush1.msra.mxu0 %v1573
        %2277 = vmatprep.subr.mxu0 %v1582
        %2278 = vmatpush1.msra.mxu0 %v1581
        %2279 = vmatprep.subr.mxu0 %v1590
        %2280 = vmatpush1.msra.mxu0 %v1589
        %2281 = vmatprep.subr.mxu0 %v1598
        %2282 = vmatpush1.msra.mxu0 %v1597
        %2283 = vmatprep.subr.mxu0 %v1606
        %2284 = vmatpush1.msra.mxu0 %v1605
        %2285 = vmatprep.subr.mxu0 %v1614
        %2286 = vmatpush1.msra.mxu0 %v1613
        %2287 = vmatprep.subr.mxu0 %v1622
        %2288 = vmatpush1.msra.mxu0 %v1621
        %2289 = vmatprep.subr.mxu0 %v1630
        %2290 = vmatpush1.msra.mxu0 %v1629
        %2291 = vmatprep.subr.mxu0 %v1638
        %2292 = vmatpush1.msra.mxu0 %v1637
        %2293 = vmatprep.subr.mxu0 %v1646
        %2294 = vmatpush1.msra.mxu0 %v1645
        %2295 = vmatprep.subr.mxu0 %v1654
        %2296 = vmatpush1.msra.mxu0 %v1653
        %2297 = vmatprep.subr.mxu0 %v1662
        %2298 = vmatpush1.msra.mxu0 %v1661
        %2299 = vmatprep.subr.mxu0 %v1670
        %2300 = vmatpush1.msra.mxu0 %v1669
        %2301 = vmatprep.subr.mxu0 %v1678
        %2302 = vmatpush1.msra.mxu0 %v1677
        %2303 = vmatprep.subr.mxu0 %v1686
        %2304 = vmatpush1.msra.mxu0 %v1685
        %2305 = vmatprep.subr.mxu0 %v1694
        %2306 = vmatpush1.msra.mxu0 %v1693
        %2307 = vmatprep.subr.mxu0 %v1702
        %2308 = vmatpush1.msra.mxu0 %v1701
        %2309 = vmatprep.subr.mxu0 %v1710
        %2310 = vmatpush1.msra.mxu0 %v1709
        %2311 = vmatprep.subr.mxu0 %v1718
        %2312 = vmatpush1.msra.mxu0 %v1717
        %2313 = vmatprep.subr.mxu0 %v1726
        %2314 = vmatpush1.msra.mxu0 %v1725
        %2315 = vmatprep.subr.mxu0 %v1734
        %2316 = vmatpush1.msra.mxu0 %v1733
        %2317 = vmatprep.subr.mxu0 %v1742
        %2318 = vmatpush1.msra.mxu0 %v1741
        %2319 = vmatprep.subr.mxu0 %v1750
        %2320 = vmatpush1.msra.mxu0 %v1749
        %2321 = vmatprep.subr.mxu0 %v1758
        %2322 = vmatpush1.msra.mxu0 %v1757
        %2323 = vmatprep.subr.mxu0 %v1766
        %2324 = vmatpush1.msra.mxu0 %v1765
        %2325 = vmatprep.subr.mxu0 %v1774
        %2326 = vmatpush1.msra.mxu0 %v1773
        %2327 = vmatprep.subr.mxu0 %v1782
        %2328 = vmatpush1.msra.mxu0 %v1781
        %2329 = vmatprep.mubr.f32.mxu0 %v994
        %2330 = vmatmul.mubr.f32.gmra.mrb[0].mxu0 %v993
        %v2331 = vpop.f32.mrb[0].mxu0
        %v2332 = vadd.f32 %v2243, %v2331
        %v2333 = vpop.f32.mrb[0].mxu0
        %v2334 = vadd.f32 %v2245, %v2333
        %2335 = vmatprep.mubr.f32.mxu0 %v1002
        %2336 = vmatmul.mubr.f32.gmra.mrb[0].mxu0 %v1001
        %v2337 = vpop.f32.mrb[0].mxu0
        %v2338 = vadd.f32 %v2249, %v2337
        %v2339 = vpop.f32.mrb[0].mxu0
        %v2340 = vadd.f32 %v2251, %v2339
        %2341 = vmatprep.mubr.f32.mxu0 %v1010
        %2342 = vmatmul.mubr.f32.gmra.mrb[0].mxu0 %v1009
        %v2343 = vpop.f32.mrb[0].mxu0
        %v2344 = vadd.f32 %v2255, %v2343
        %v2345 = vpop.f32.mrb[0].mxu0
        %v2346 = vadd.f32 %v2257, %v2345
        %2347 = vmatprep.mubr.f32.mxu0 %v1018
        %2348 = vmatmul.mubr.f32.gmra.mrb[0].mxu0 %v1017
        %v2349 = vpop.f32.mrb[0].mxu0
        %v2350 = vadd.f32 %v2261, %v2349
        %v2351 = vpop.f32.mrb[0].mxu0
        %v2352 = vadd.f32 %v2263, %v2351
        %2353 = vdwg.mxu0
        %2354 = vmatprep.subr.mxu0 %v1790
        %2355 = vmatpush1.msra.mxu0 %v1789
        %2356 = vmatprep.subr.mxu0 %v1798
        %2357 = vmatpush1.msra.mxu0 %v1797
        %2358 = vmatprep.subr.mxu0 %v1806
        %2359 = vmatpush1.msra.mxu0 %v1805
        %2360 = vmatprep.subr.mxu0 %v1814
        %2361 = vmatpush1.msra.mxu0 %v1813
        %2362 = vmatprep.subr.mxu0 %v1822
        %2363 = vmatpush1.msra.mxu0 %v1821
        %2364 = vmatprep.subr.mxu0 %v1830
        %2365 = vmatpush1.msra.mxu0 %v1829
        %2366 = vmatprep.subr.mxu0 %v1838
        %2367 = vmatpush1.msra.mxu0 %v1837
        %2368 = vmatprep.subr.mxu0 %v1846
        %2369 = vmatpush1.msra.mxu0 %v1845
        %2370 = vmatprep.subr.mxu0 %v1854
        %2371 = vmatpush1.msra.mxu0 %v1853
        %2372 = vmatprep.subr.mxu0 %v1862
        %2373 = vmatpush1.msra.mxu0 %v1861
        %2374 = vmatprep.subr.mxu0 %v1870
        %2375 = vmatpush1.msra.mxu0 %v1869
        %2376 = vmatprep.subr.mxu0 %v1878
        %2377 = vmatpush1.msra.mxu0 %v1877
        %2378 = vmatprep.subr.mxu0 %v1886
        %2379 = vmatpush1.msra.mxu0 %v1885
        %2380 = vmatprep.subr.mxu0 %v1894
        %2381 = vmatpush1.msra.mxu0 %v1893
        %2382 = vmatprep.subr.mxu0 %v1902
        %2383 = vmatpush1.msra.mxu0 %v1901
        %2384 = vmatprep.subr.mxu0 %v1910
        %2385 = vmatpush1.msra.mxu0 %v1909
        %2386 = vmatprep.subr.mxu0 %v1918
        %2387 = vmatpush1.msra.mxu0 %v1917
        %2388 = vmatprep.subr.mxu0 %v1926
        %2389 = vmatpush1.msra.mxu0 %v1925
        %2390 = vmatprep.subr.mxu0 %v1934
        %2391 = vmatpush1.msra.mxu0 %v1933
        %2392 = vmatprep.subr.mxu0 %v1942
        %2393 = vmatpush1.msra.mxu0 %v1941
        %2394 = vmatprep.subr.mxu0 %v1950
        %2395 = vmatpush1.msra.mxu0 %v1949
        %2396 = vmatprep.subr.mxu0 %v1958
        %2397 = vmatpush1.msra.mxu0 %v1957
        %2398 = vmatprep.subr.mxu0 %v1966
        %2399 = vmatpush1.msra.mxu0 %v1965
        %2400 = vmatprep.subr.mxu0 %v1974
        %2401 = vmatpush1.msra.mxu0 %v1973
        %2402 = vmatprep.subr.mxu0 %v1982
        %2403 = vmatpush1.msra.mxu0 %v1981
        %2404 = vmatprep.subr.mxu0 %v1990
        %2405 = vmatpush1.msra.mxu0 %v1989
        %2406 = vmatprep.subr.mxu0 %v1998
        %2407 = vmatpush1.msra.mxu0 %v1997
        %2408 = vmatprep.subr.mxu0 %v2006
        %2409 = vmatpush1.msra.mxu0 %v2005
        %2410 = vmatprep.subr.mxu0 %v2014
        %2411 = vmatpush1.msra.mxu0 %v2013
        %2412 = vmatprep.subr.mxu0 %v2022
        %2413 = vmatpush1.msra.mxu0 %v2021
        %2414 = vmatprep.subr.mxu0 %v2030
        %2415 = vmatpush1.msra.mxu0 %v2029
        %2416 = vmatprep.subr.mxu0 %v2038
        %2417 = vmatpush1.msra.mxu0 %v2037
        %2418 = vmatprep.mubr.f32.mxu0 %v996
        %2419 = vmatmul.mubr.f32.gmra.mrb[0].mxu0 %v995
        %v2420 = vpop.f32.mrb[0].mxu0
        %v2421 = vadd.f32 %v2332, %v2420
        %v2422 = vpop.f32.mrb[0].mxu0
        %v2423 = vadd.f32 %v2334, %v2422
        %2424 = vmatprep.mubr.f32.mxu0 %v1004
        %2425 = vmatmul.mubr.f32.gmra.mrb[0].mxu0 %v1003
        %v2426 = vpop.f32.mrb[0].mxu0
        %v2427 = vadd.f32 %v2338, %v2426
        %v2428 = vpop.f32.mrb[0].mxu0
        %v2429 = vadd.f32 %v2340, %v2428
        %2430 = vmatprep.mubr.f32.mxu0 %v1012
        %2431 = vmatmul.mubr.f32.gmra.mrb[0].mxu0 %v1011
        %v2432 = vpop.f32.mrb[0].mxu0
        %v2433 = vadd.f32 %v2344, %v2432
        %v2434 = vpop.f32.mrb[0].mxu0
        %v2435 = vadd.f32 %v2346, %v2434
        %2436 = vmatprep.mubr.f32.mxu0 %v1020
        %2437 = vmatmul.mubr.f32.gmra.mrb[0].mxu0 %v1019
        %v2438 = vpop.f32.mrb[0].mxu0
        %v2439 = vadd.f32 %v2350, %v2438
        %v2440 = vpop.f32.mrb[0].mxu0
        %v2441 = vadd.f32 %v2352, %v2440
        %2442 = vdwg.mxu0
        %2443 = vmatprep.subr.mxu0 %v1024
        %2444 = vmatpush1.msra.mxu0 %v1023
        %2445 = vmatprep.subr.mxu0 %v1032
        %2446 = vmatpush1.msra.mxu0 %v1031
        %2447 = vmatprep.subr.mxu0 %v1040
        %2448 = vmatpush1.msra.mxu0 %v1039
        %2449 = vmatprep.subr.mxu0 %v1048
        %2450 = vmatpush1.msra.mxu0 %v1047
        %2451 = vmatprep.subr.mxu0 %v1056
        %2452 = vmatpush1.msra.mxu0 %v1055
        %2453 = vmatprep.subr.mxu0 %v1064
        %2454 = vmatpush1.msra.mxu0 %v1063
        %2455 = vmatprep.subr.mxu0 %v1072
        %2456 = vmatpush1.msra.mxu0 %v1071
        %2457 = vmatprep.subr.mxu0 %v1080
        %2458 = vmatpush1.msra.mxu0 %v1079
        %2459 = vmatprep.subr.mxu0 %v1088
        %2460 = vmatpush1.msra.mxu0 %v1087
        %2461 = vmatprep.subr.mxu0 %v1096
        %2462 = vmatpush1.msra.mxu0 %v1095
        %2463 = vmatprep.subr.mxu0 %v1104
        %2464 = vmatpush1.msra.mxu0 %v1103
        %2465 = vmatprep.subr.mxu0 %v1112
        %2466 = vmatpush1.msra.mxu0 %v1111
        %2467 = vmatprep.subr.mxu0 %v1120
        %2468 = vmatpush1.msra.mxu0 %v1119
        %2469 = vmatprep.subr.mxu0 %v1128
        %2470 = vmatpush1.msra.mxu0 %v1127
        %2471 = vmatprep.subr.mxu0 %v1136
        %2472 = vmatpush1.msra.mxu0 %v1135
        %2473 = vmatprep.subr.mxu0 %v1144
        %2474 = vmatpush1.msra.mxu0 %v1143
        %2475 = vmatprep.subr.mxu0 %v1152
        %2476 = vmatpush1.msra.mxu0 %v1151
        %2477 = vmatprep.subr.mxu0 %v1160
        %2478 = vmatpush1.msra.mxu0 %v1159
        %2479 = vmatprep.subr.mxu0 %v1168
        %2480 = vmatpush1.msra.mxu0 %v1167
        %2481 = vmatprep.subr.mxu0 %v1176
        %2482 = vmatpush1.msra.mxu0 %v1175
        %2483 = vmatprep.subr.mxu0 %v1184
        %2484 = vmatpush1.msra.mxu0 %v1183
        %2485 = vmatprep.subr.mxu0 %v1192
        %2486 = vmatpush1.msra.mxu0 %v1191
        %2487 = vmatprep.subr.mxu0 %v1200
        %2488 = vmatpush1.msra.mxu0 %v1199
        %2489 = vmatprep.subr.mxu0 %v1208
        %2490 = vmatpush1.msra.mxu0 %v1207
        %2491 = vmatprep.subr.mxu0 %v1216
        %2492 = vmatpush1.msra.mxu0 %v1215
        %2493 = vmatprep.subr.mxu0 %v1224
        %2494 = vmatpush1.msra.mxu0 %v1223
        %2495 = vmatprep.subr.mxu0 %v1232
        %2496 = vmatpush1.msra.mxu0 %v1231
        %2497 = vmatprep.subr.mxu0 %v1240
        %2498 = vmatpush1.msra.mxu0 %v1239
        %2499 = vmatprep.subr.mxu0 %v1248
        %2500 = vmatpush1.msra.mxu0 %v1247
        %2501 = vmatprep.subr.mxu0 %v1256
        %2502 = vmatpush1.msra.mxu0 %v1255
        %2503 = vmatprep.subr.mxu0 %v1264
        %2504 = vmatpush1.msra.mxu0 %v1263
        %2505 = vmatprep.subr.mxu0 %v1272
        %2506 = vmatpush1.msra.mxu0 %v1271
        %2507 = vmatprep.mubr.f32.mxu0 %v990
        %2508 = vmatmul.mubr.f32.gmra.mrb[0].mxu0 %v989
        %v2509 = vpop.f32.mrb[0].mxu0
        %v2510 = vadd.f32 %v2058, %v2509
        %v2511 = vpop.f32.mrb[0].mxu0
        %v2512 = vadd.f32 %v2062, %v2511
        %2513 = vmatprep.mubr.f32.mxu0 %v998
        %2514 = vmatmul.mubr.f32.gmra.mrb[0].mxu0 %v997
        %v2515 = vpop.f32.mrb[0].mxu0
        %v2516 = vadd.f32 %v2058, %v2515
        %v2517 = vpop.f32.mrb[0].mxu0
        %v2518 = vadd.f32 %v2062, %v2517
        %2519 = vmatprep.mubr.f32.mxu0 %v1006
        %2520 = vmatmul.mubr.f32.gmra.mrb[0].mxu0 %v1005
        %v2521 = vpop.f32.mrb[0].mxu0
        %v2522 = vadd.f32 %v2058, %v2521
        %v2523 = vpop.f32.mrb[0].mxu0
        %v2524 = vadd.f32 %v2062, %v2523
        %2525 = vmatprep.mubr.f32.mxu0 %v1014
        %2526 = vmatmul.mubr.f32.gmra.mrb[0].mxu0 %v1013
        %v2527 = vpop.f32.mrb[0].mxu0
        %v2528 = vadd.f32 %v2058, %v2527
        %v2529 = vpop.f32.mrb[0].mxu0
        %v2530 = vadd.f32 %v2062, %v2529
        %2531 = vdwg.mxu0
        %2532 = vmatprep.subr.mxu0 %v1280
        %2533 = vmatpush1.msra.mxu0 %v1279
        %2534 = vmatprep.subr.mxu0 %v1288
        %2535 = vmatpush1.msra.mxu0 %v1287
        %2536 = vmatprep.subr.mxu0 %v1296
        %2537 = vmatpush1.msra.mxu0 %v1295
        %2538 = vmatprep.subr.mxu0 %v1304
        %2539 = vmatpush1.msra.mxu0 %v1303
        %2540 = vmatprep.subr.mxu0 %v1312
        %2541 = vmatpush1.msra.mxu0 %v1311
        %2542 = vmatprep.subr.mxu0 %v1320
        %2543 = vmatpush1.msra.mxu0 %v1319
        %2544 = vmatprep.subr.mxu0 %v1328
        %2545 = vmatpush1.msra.mxu0 %v1327
        %2546 = vmatprep.subr.mxu0 %v1336
        %2547 = vmatpush1.msra.mxu0 %v1335
        %2548 = vmatprep.subr.mxu0 %v1344
        %2549 = vmatpush1.msra.mxu0 %v1343
        %2550 = vmatprep.subr.mxu0 %v1352
        %2551 = vmatpush1.msra.mxu0 %v1351
        %2552 = vmatprep.subr.mxu0 %v1360
        %2553 = vmatpush1.msra.mxu0 %v1359
        %2554 = vmatprep.subr.mxu0 %v1368
        %2555 = vmatpush1.msra.mxu0 %v1367
        %2556 = vmatprep.subr.mxu0 %v1376
        %2557 = vmatpush1.msra.mxu0 %v1375
        %2558 = vmatprep.subr.mxu0 %v1384
        %2559 = vmatpush1.msra.mxu0 %v1383
        %2560 = vmatprep.subr.mxu0 %v1392
        %2561 = vmatpush1.msra.mxu0 %v1391
        %2562 = vmatprep.subr.mxu0 %v1400
        %2563 = vmatpush1.msra.mxu0 %v1399
        %2564 = vmatprep.subr.mxu0 %v1408
        %2565 = vmatpush1.msra.mxu0 %v1407
        %2566 = vmatprep.subr.mxu0 %v1416
        %2567 = vmatpush1.msra.mxu0 %v1415
        %2568 = vmatprep.subr.mxu0 %v1424
        %2569 = vmatpush1.msra.mxu0 %v1423
        %2570 = vmatprep.subr.mxu0 %v1432
        %2571 = vmatpush1.msra.mxu0 %v1431
        %2572 = vmatprep.subr.mxu0 %v1440
        %2573 = vmatpush1.msra.mxu0 %v1439
        %2574 = vmatprep.subr.mxu0 %v1448
        %2575 = vmatpush1.msra.mxu0 %v1447
        %2576 = vmatprep.subr.mxu0 %v1456
        %2577 = vmatpush1.msra.mxu0 %v1455
        %2578 = vmatprep.subr.mxu0 %v1464
        %2579 = vmatpush1.msra.mxu0 %v1463
        %2580 = vmatprep.subr.mxu0 %v1472
        %2581 = vmatpush1.msra.mxu0 %v1471
        %2582 = vmatprep.subr.mxu0 %v1480
        %2583 = vmatpush1.msra.mxu0 %v1479
        %2584 = vmatprep.subr.mxu0 %v1488
        %2585 = vmatpush1.msra.mxu0 %v1487
        %2586 = vmatprep.subr.mxu0 %v1496
        %2587 = vmatpush1.msra.mxu0 %v1495
        %2588 = vmatprep.subr.mxu0 %v1504
        %2589 = vmatpush1.msra.mxu0 %v1503
        %2590 = vmatprep.subr.mxu0 %v1512
        %2591 = vmatpush1.msra.mxu0 %v1511
        %2592 = vmatprep.subr.mxu0 %v1520
        %2593 = vmatpush1.msra.mxu0 %v1519
        %2594 = vmatprep.subr.mxu0 %v1528
        %2595 = vmatpush1.msra.mxu0 %v1527
        %2596 = vmatprep.mubr.f32.mxu0 %v992
        %2597 = vmatmul.mubr.f32.gmra.mrb[0].mxu0 %v991
        %v2598 = vpop.f32.mrb[0].mxu0
        %v2599 = vadd.f32 %v2510, %v2598
        %v2600 = vpop.f32.mrb[0].mxu0
        %v2601 = vadd.f32 %v2512, %v2600
        %2602 = vmatprep.mubr.f32.mxu0 %v1000
        %2603 = vmatmul.mubr.f32.gmra.mrb[0].mxu0 %v999
        %v2604 = vpop.f32.mrb[0].mxu0
        %v2605 = vadd.f32 %v2516, %v2604
        %v2606 = vpop.f32.mrb[0].mxu0
        %v2607 = vadd.f32 %v2518, %v2606
        %2608 = vmatprep.mubr.f32.mxu0 %v1008
        %2609 = vmatmul.mubr.f32.gmra.mrb[0].mxu0 %v1007
        %v2610 = vpop.f32.mrb[0].mxu0
        %v2611 = vadd.f32 %v2522, %v2610
        %v2612 = vpop.f32.mrb[0].mxu0
        %v2613 = vadd.f32 %v2524, %v2612
        %2614 = vmatprep.mubr.f32.mxu0 %v1016
        %2615 = vmatmul.mubr.f32.gmra.mrb[0].mxu0 %v1015
        %v2616 = vpop.f32.mrb[0].mxu0
        %v2617 = vadd.f32 %v2528, %v2616
        %v2618 = vpop.f32.mrb[0].mxu0
        %v2619 = vadd.f32 %v2530, %v2618
        %2620 = vdwg.mxu0
        %2621 = vmatprep.subr.mxu0 %v1536
        %2622 = vmatpush1.msra.mxu0 %v1535
        %2623 = vmatprep.subr.mxu0 %v1544
        %2624 = vmatpush1.msra.mxu0 %v1543
        %2625 = vmatprep.subr.mxu0 %v1552
        %2626 = vmatpush1.msra.mxu0 %v1551
        %2627 = vmatprep.subr.mxu0 %v1560
        %2628 = vmatpush1.msra.mxu0 %v1559
        %2629 = vmatprep.subr.mxu0 %v1568
        %2630 = vmatpush1.msra.mxu0 %v1567
        %2631 = vmatprep.subr.mxu0 %v1576
        %2632 = vmatpush1.msra.mxu0 %v1575
        %2633 = vmatprep.subr.mxu0 %v1584
        %2634 = vmatpush1.msra.mxu0 %v1583
        %2635 = vmatprep.subr.mxu0 %v1592
        %2636 = vmatpush1.msra.mxu0 %v1591
        %2637 = vmatprep.subr.mxu0 %v1600
        %2638 = vmatpush1.msra.mxu0 %v1599
        %2639 = vmatprep.subr.mxu0 %v1608
        %2640 = vmatpush1.msra.mxu0 %v1607
        %2641 = vmatprep.subr.mxu0 %v1616
        %2642 = vmatpush1.msra.mxu0 %v1615
        %2643 = vmatprep.subr.mxu0 %v1624
        %2644 = vmatpush1.msra.mxu0 %v1623
        %2645 = vmatprep.subr.mxu0 %v1632
        %2646 = vmatpush1.msra.mxu0 %v1631
        %2647 = vmatprep.subr.mxu0 %v1640
        %2648 = vmatpush1.msra.mxu0 %v1639
        %2649 = vmatprep.subr.mxu0 %v1648
        %2650 = vmatpush1.msra.mxu0 %v1647
        %2651 = vmatprep.subr.mxu0 %v1656
        %2652 = vmatpush1.msra.mxu0 %v1655
        %2653 = vmatprep.subr.mxu0 %v1664
        %2654 = vmatpush1.msra.mxu0 %v1663
        %2655 = vmatprep.subr.mxu0 %v1672
        %2656 = vmatpush1.msra.mxu0 %v1671
        %2657 = vmatprep.subr.mxu0 %v1680
        %2658 = vmatpush1.msra.mxu0 %v1679
        %2659 = vmatprep.subr.mxu0 %v1688
        %2660 = vmatpush1.msra.mxu0 %v1687
        %2661 = vmatprep.subr.mxu0 %v1696
        %2662 = vmatpush1.msra.mxu0 %v1695
        %2663 = vmatprep.subr.mxu0 %v1704
        %2664 = vmatpush1.msra.mxu0 %v1703
        %2665 = vmatprep.subr.mxu0 %v1712
        %2666 = vmatpush1.msra.mxu0 %v1711
        %2667 = vmatprep.subr.mxu0 %v1720
        %2668 = vmatpush1.msra.mxu0 %v1719
        %2669 = vmatprep.subr.mxu0 %v1728
        %2670 = vmatpush1.msra.mxu0 %v1727
        %2671 = vmatprep.subr.mxu0 %v1736
        %2672 = vmatpush1.msra.mxu0 %v1735
        %2673 = vmatprep.subr.mxu0 %v1744
        %2674 = vmatpush1.msra.mxu0 %v1743
        %2675 = vmatprep.subr.mxu0 %v1752
        %2676 = vmatpush1.msra.mxu0 %v1751
        %2677 = vmatprep.subr.mxu0 %v1760
        %2678 = vmatpush1.msra.mxu0 %v1759
        %2679 = vmatprep.subr.mxu0 %v1768
        %2680 = vmatpush1.msra.mxu0 %v1767
        %2681 = vmatprep.subr.mxu0 %v1776
        %2682 = vmatpush1.msra.mxu0 %v1775
        %2683 = vmatprep.subr.mxu0 %v1784
        %2684 = vmatpush1.msra.mxu0 %v1783
        %2685 = vmatprep.mubr.f32.mxu0 %v994
        %2686 = vmatmul.mubr.f32.gmra.mrb[0].mxu0 %v993
        %v2687 = vpop.f32.mrb[0].mxu0
        %v2688 = vadd.f32 %v2599, %v2687
        %v2689 = vpop.f32.mrb[0].mxu0
        %v2690 = vadd.f32 %v2601, %v2689
        %2691 = vmatprep.mubr.f32.mxu0 %v1002
        %2692 = vmatmul.mubr.f32.gmra.mrb[0].mxu0 %v1001
        %v2693 = vpop.f32.mrb[0].mxu0
        %v2694 = vadd.f32 %v2605, %v2693
        %v2695 = vpop.f32.mrb[0].mxu0
        %v2696 = vadd.f32 %v2607, %v2695
        %2697 = vmatprep.mubr.f32.mxu0 %v1010
        %2698 = vmatmul.mubr.f32.gmra.mrb[0].mxu0 %v1009
        %v2699 = vpop.f32.mrb[0].mxu0
        %v2700 = vadd.f32 %v2611, %v2699
        %v2701 = vpop.f32.mrb[0].mxu0
        %v2702 = vadd.f32 %v2613, %v2701
        %2703 = vmatprep.mubr.f32.mxu0 %v1018
        %2704 = vmatmul.mubr.f32.gmra.mrb[0].mxu0 %v1017
        %v2705 = vpop.f32.mrb[0].mxu0
        %v2706 = vadd.f32 %v2617, %v2705
        %v2707 = vpop.f32.mrb[0].mxu0
        %v2708 = vadd.f32 %v2619, %v2707
        %2709 = vdwg.mxu0
        %2710 = vmatprep.subr.mxu0 %v1792
        %2711 = vmatpush1.msra.mxu0 %v1791
        %2712 = vmatprep.subr.mxu0 %v1800
        %2713 = vmatpush1.msra.mxu0 %v1799
        %2714 = vmatprep.subr.mxu0 %v1808
        %2715 = vmatpush1.msra.mxu0 %v1807
        %2716 = vmatprep.subr.mxu0 %v1816
        %2717 = vmatpush1.msra.mxu0 %v1815
        %2718 = vmatprep.subr.mxu0 %v1824
        %2719 = vmatpush1.msra.mxu0 %v1823
        %2720 = vmatprep.subr.mxu0 %v1832
        %2721 = vmatpush1.msra.mxu0 %v1831
        %2722 = vmatprep.subr.mxu0 %v1840
        %2723 = vmatpush1.msra.mxu0 %v1839
        %2724 = vmatprep.subr.mxu0 %v1848
        %2725 = vmatpush1.msra.mxu0 %v1847
        %2726 = vmatprep.subr.mxu0 %v1856
        %2727 = vmatpush1.msra.mxu0 %v1855
        %2728 = vmatprep.subr.mxu0 %v1864
        %2729 = vmatpush1.msra.mxu0 %v1863
        %2730 = vmatprep.subr.mxu0 %v1872
        %2731 = vmatpush1.msra.mxu0 %v1871
        %2732 = vmatprep.subr.mxu0 %v1880
        %2733 = vmatpush1.msra.mxu0 %v1879
        %2734 = vmatprep.subr.mxu0 %v1888
        %2735 = vmatpush1.msra.mxu0 %v1887
        %2736 = vmatprep.subr.mxu0 %v1896
        %2737 = vmatpush1.msra.mxu0 %v1895
        %2738 = vmatprep.subr.mxu0 %v1904
        %2739 = vmatpush1.msra.mxu0 %v1903
        %2740 = vmatprep.subr.mxu0 %v1912
        %2741 = vmatpush1.msra.mxu0 %v1911
        %2742 = vmatprep.subr.mxu0 %v1920
        %2743 = vmatpush1.msra.mxu0 %v1919
        %2744 = vmatprep.subr.mxu0 %v1928
        %2745 = vmatpush1.msra.mxu0 %v1927
        %2746 = vmatprep.subr.mxu0 %v1936
        %2747 = vmatpush1.msra.mxu0 %v1935
        %2748 = vmatprep.subr.mxu0 %v1944
        %2749 = vmatpush1.msra.mxu0 %v1943
        %2750 = vmatprep.subr.mxu0 %v1952
        %2751 = vmatpush1.msra.mxu0 %v1951
        %2752 = vmatprep.subr.mxu0 %v1960
        %2753 = vmatpush1.msra.mxu0 %v1959
        %2754 = vmatprep.subr.mxu0 %v1968
        %2755 = vmatpush1.msra.mxu0 %v1967
        %2756 = vmatprep.subr.mxu0 %v1976
        %2757 = vmatpush1.msra.mxu0 %v1975
        %2758 = vmatprep.subr.mxu0 %v1984
        %2759 = vmatpush1.msra.mxu0 %v1983
        %2760 = vmatprep.subr.mxu0 %v1992
        %2761 = vmatpush1.msra.mxu0 %v1991
        %2762 = vmatprep.subr.mxu0 %v2000
        %2763 = vmatpush1.msra.mxu0 %v1999
        %2764 = vmatprep.subr.mxu0 %v2008
        %2765 = vmatpush1.msra.mxu0 %v2007
        %2766 = vmatprep.subr.mxu0 %v2016
        %2767 = vmatpush1.msra.mxu0 %v2015
        %2768 = vmatprep.subr.mxu0 %v2024
        %2769 = vmatpush1.msra.mxu0 %v2023
        %2770 = vmatprep.subr.mxu0 %v2032
        %2771 = vmatpush1.msra.mxu0 %v2031
        %2772 = vmatprep.subr.mxu0 %v2040
        %2773 = vmatpush1.msra.mxu0 %v2039
        %2774 = vmatprep.mubr.f32.mxu0 %v996
        %2775 = vmatmul.mubr.f32.gmra.mrb[0].mxu0 %v995
        %v2776 = vpop.f32.mrb[0].mxu0
        %v2777 = vadd.f32 %v2688, %v2776
        %v2778 = vpop.f32.mrb[0].mxu0
        %v2779 = vadd.f32 %v2690, %v2778
        %2780 = vmatprep.mubr.f32.mxu0 %v1004
        %2781 = vmatmul.mubr.f32.gmra.mrb[0].mxu0 %v1003
        %v2782 = vpop.f32.mrb[0].mxu0
        %v2783 = vadd.f32 %v2694, %v2782
        %v2784 = vpop.f32.mrb[0].mxu0
        %v2785 = vadd.f32 %v2696, %v2784
        %2786 = vmatprep.mubr.f32.mxu0 %v1012
        %2787 = vmatmul.mubr.f32.gmra.mrb[0].mxu0 %v1011
        %v2788 = vpop.f32.mrb[0].mxu0
        %v2789 = vadd.f32 %v2700, %v2788
        %v2790 = vpop.f32.mrb[0].mxu0
        %v2791 = vadd.f32 %v2702, %v2790
        %2792 = vmatprep.mubr.f32.mxu0 %v1020
        %2793 = vmatmul.mubr.f32.gmra.mrb[0].mxu0 %v1019
        %v2794 = vpop.f32.mrb[0].mxu0
        %v2795 = vadd.f32 %v2706, %v2794
        %v2796 = vpop.f32.mrb[0].mxu0
        %v2797 = vadd.f32 %v2708, %v2796
        %2798 = vdwg.mxu0
        %2799 = vmatprep.subr.mxu0 %v1026
        %2800 = vmatpush1.msra.mxu0 %v1025
        %2801 = vmatprep.subr.mxu0 %v1034
        %2802 = vmatpush1.msra.mxu0 %v1033
        %2803 = vmatprep.subr.mxu0 %v1042
        %2804 = vmatpush1.msra.mxu0 %v1041
        %2805 = vmatprep.subr.mxu0 %v1050
        %2806 = vmatpush1.msra.mxu0 %v1049
        %2807 = vmatprep.subr.mxu0 %v1058
        %2808 = vmatpush1.msra.mxu0 %v1057
        %2809 = vmatprep.subr.mxu0 %v1066
        %2810 = vmatpush1.msra.mxu0 %v1065
        %2811 = vmatprep.subr.mxu0 %v1074
        %2812 = vmatpush1.msra.mxu0 %v1073
        %2813 = vmatprep.subr.mxu0 %v1082
        %2814 = vmatpush1.msra.mxu0 %v1081
        %2815 = vmatprep.subr.mxu0 %v1090
        %2816 = vmatpush1.msra.mxu0 %v1089
        %2817 = vmatprep.subr.mxu0 %v1098
        %2818 = vmatpush1.msra.mxu0 %v1097
        %2819 = vmatprep.subr.mxu0 %v1106
        %2820 = vmatpush1.msra.mxu0 %v1105
        %2821 = vmatprep.subr.mxu0 %v1114
        %2822 = vmatpush1.msra.mxu0 %v1113
        %2823 = vmatprep.subr.mxu0 %v1122
        %2824 = vmatpush1.msra.mxu0 %v1121
        %2825 = vmatprep.subr.mxu0 %v1130
        %2826 = vmatpush1.msra.mxu0 %v1129
        %2827 = vmatprep.subr.mxu0 %v1138
        %2828 = vmatpush1.msra.mxu0 %v1137
        %2829 = vmatprep.subr.mxu0 %v1146
        %2830 = vmatpush1.msra.mxu0 %v1145
        %2831 = vmatprep.subr.mxu0 %v1154
        %2832 = vmatpush1.msra.mxu0 %v1153
        %2833 = vmatprep.subr.mxu0 %v1162
        %2834 = vmatpush1.msra.mxu0 %v1161
        %2835 = vmatprep.subr.mxu0 %v1170
        %2836 = vmatpush1.msra.mxu0 %v1169
        %2837 = vmatprep.subr.mxu0 %v1178
        %2838 = vmatpush1.msra.mxu0 %v1177
        %2839 = vmatprep.subr.mxu0 %v1186
        %2840 = vmatpush1.msra.mxu0 %v1185
        %2841 = vmatprep.subr.mxu0 %v1194
        %2842 = vmatpush1.msra.mxu0 %v1193
        %2843 = vmatprep.subr.mxu0 %v1202
        %2844 = vmatpush1.msra.mxu0 %v1201
        %2845 = vmatprep.subr.mxu0 %v1210
        %2846 = vmatpush1.msra.mxu0 %v1209
        %2847 = vmatprep.subr.mxu0 %v1218
        %2848 = vmatpush1.msra.mxu0 %v1217
        %2849 = vmatprep.subr.mxu0 %v1226
        %2850 = vmatpush1.msra.mxu0 %v1225
        %2851 = vmatprep.subr.mxu0 %v1234
        %2852 = vmatpush1.msra.mxu0 %v1233
        %2853 = vmatprep.subr.mxu0 %v1242
        %2854 = vmatpush1.msra.mxu0 %v1241
        %2855 = vmatprep.subr.mxu0 %v1250
        %2856 = vmatpush1.msra.mxu0 %v1249
        %2857 = vmatprep.subr.mxu0 %v1258
        %2858 = vmatpush1.msra.mxu0 %v1257
        %2859 = vmatprep.subr.mxu0 %v1266
        %2860 = vmatpush1.msra.mxu0 %v1265
        %2861 = vmatprep.subr.mxu0 %v1274
        %2862 = vmatpush1.msra.mxu0 %v1273
        %2863 = vmatprep.mubr.f32.mxu0 %v990
        %2864 = vmatmul.mubr.f32.gmra.mrb[0].mxu0 %v989
        %v2865 = vpop.f32.mrb[0].mxu0
        %v2866 = vadd.f32 %v2066, %v2865
        %v2867 = vpop.f32.mrb[0].mxu0
        %v2868 = vadd.f32 %v2070, %v2867
        %2869 = vmatprep.mubr.f32.mxu0 %v998
        %2870 = vmatmul.mubr.f32.gmra.mrb[0].mxu0 %v997
        %v2871 = vpop.f32.mrb[0].mxu0
        %v2872 = vadd.f32 %v2066, %v2871
        %v2873 = vpop.f32.mrb[0].mxu0
        %v2874 = vadd.f32 %v2070, %v2873
        %2875 = vmatprep.mubr.f32.mxu0 %v1006
        %2876 = vmatmul.mubr.f32.gmra.mrb[0].mxu0 %v1005
        %v2877 = vpop.f32.mrb[0].mxu0
        %v2878 = vadd.f32 %v2066, %v2877
        %v2879 = vpop.f32.mrb[0].mxu0
        %v2880 = vadd.f32 %v2070, %v2879
        %2881 = vmatprep.mubr.f32.mxu0 %v1014
        %2882 = vmatmul.mubr.f32.gmra.mrb[0].mxu0 %v1013
        %v2883 = vpop.f32.mrb[0].mxu0
        %v2884 = vadd.f32 %v2066, %v2883
        %v2885 = vpop.f32.mrb[0].mxu0
        %v2886 = vadd.f32 %v2070, %v2885
        %2887 = vdwg.mxu0
        %2888 = vmatprep.subr.mxu0 %v1282
        %2889 = vmatpush1.msra.mxu0 %v1281
        %2890 = vmatprep.subr.mxu0 %v1290
        %2891 = vmatpush1.msra.mxu0 %v1289
        %2892 = vmatprep.subr.mxu0 %v1298
        %2893 = vmatpush1.msra.mxu0 %v1297
        %2894 = vmatprep.subr.mxu0 %v1306
        %2895 = vmatpush1.msra.mxu0 %v1305
        %2896 = vmatprep.subr.mxu0 %v1314
        %2897 = vmatpush1.msra.mxu0 %v1313
        %2898 = vmatprep.subr.mxu0 %v1322
        %2899 = vmatpush1.msra.mxu0 %v1321
        %2900 = vmatprep.subr.mxu0 %v1330
        %2901 = vmatpush1.msra.mxu0 %v1329
        %2902 = vmatprep.subr.mxu0 %v1338
        %2903 = vmatpush1.msra.mxu0 %v1337
        %2904 = vmatprep.subr.mxu0 %v1346
        %2905 = vmatpush1.msra.mxu0 %v1345
        %2906 = vmatprep.subr.mxu0 %v1354
        %2907 = vmatpush1.msra.mxu0 %v1353
        %2908 = vmatprep.subr.mxu0 %v1362
        %2909 = vmatpush1.msra.mxu0 %v1361
        %2910 = vmatprep.subr.mxu0 %v1370
        %2911 = vmatpush1.msra.mxu0 %v1369
        %2912 = vmatprep.subr.mxu0 %v1378
        %2913 = vmatpush1.msra.mxu0 %v1377
        %2914 = vmatprep.subr.mxu0 %v1386
        %2915 = vmatpush1.msra.mxu0 %v1385
        %2916 = vmatprep.subr.mxu0 %v1394
        %2917 = vmatpush1.msra.mxu0 %v1393
        %2918 = vmatprep.subr.mxu0 %v1402
        %2919 = vmatpush1.msra.mxu0 %v1401
        %2920 = vmatprep.subr.mxu0 %v1410
        %2921 = vmatpush1.msra.mxu0 %v1409
        %2922 = vmatprep.subr.mxu0 %v1418
        %2923 = vmatpush1.msra.mxu0 %v1417
        %2924 = vmatprep.subr.mxu0 %v1426
        %2925 = vmatpush1.msra.mxu0 %v1425
        %2926 = vmatprep.subr.mxu0 %v1434
        %2927 = vmatpush1.msra.mxu0 %v1433
        %2928 = vmatprep.subr.mxu0 %v1442
        %2929 = vmatpush1.msra.mxu0 %v1441
        %2930 = vmatprep.subr.mxu0 %v1450
        %2931 = vmatpush1.msra.mxu0 %v1449
        %2932 = vmatprep.subr.mxu0 %v1458
        %2933 = vmatpush1.msra.mxu0 %v1457
        %2934 = vmatprep.subr.mxu0 %v1466
        %2935 = vmatpush1.msra.mxu0 %v1465
        %2936 = vmatprep.subr.mxu0 %v1474
        %2937 = vmatpush1.msra.mxu0 %v1473
        %2938 = vmatprep.subr.mxu0 %v1482
        %2939 = vmatpush1.msra.mxu0 %v1481
        %2940 = vmatprep.subr.mxu0 %v1490
        %2941 = vmatpush1.msra.mxu0 %v1489
        %2942 = vmatprep.subr.mxu0 %v1498
        %2943 = vmatpush1.msra.mxu0 %v1497
        %2944 = vmatprep.subr.mxu0 %v1506
        %2945 = vmatpush1.msra.mxu0 %v1505
        %2946 = vmatprep.subr.mxu0 %v1514
        %2947 = vmatpush1.msra.mxu0 %v1513
        %2948 = vmatprep.subr.mxu0 %v1522
        %2949 = vmatpush1.msra.mxu0 %v1521
        %2950 = vmatprep.subr.mxu0 %v1530
        %2951 = vmatpush1.msra.mxu0 %v1529
        %2952 = vmatprep.mubr.f32.mxu0 %v992
        %2953 = vmatmul.mubr.f32.gmra.mrb[0].mxu0 %v991
        %v2954 = vpop.f32.mrb[0].mxu0
        %v2955 = vadd.f32 %v2866, %v2954
        %v2956 = vpop.f32.mrb[0].mxu0
        %v2957 = vadd.f32 %v2868, %v2956
        %2958 = vmatprep.mubr.f32.mxu0 %v1000
        %2959 = vmatmul.mubr.f32.gmra.mrb[0].mxu0 %v999
        %v2960 = vpop.f32.mrb[0].mxu0
        %v2961 = vadd.f32 %v2872, %v2960
        %v2962 = vpop.f32.mrb[0].mxu0
        %v2963 = vadd.f32 %v2874, %v2962
        %2964 = vmatprep.mubr.f32.mxu0 %v1008
        %2965 = vmatmul.mubr.f32.gmra.mrb[0].mxu0 %v1007
        %v2966 = vpop.f32.mrb[0].mxu0
        %v2967 = vadd.f32 %v2878, %v2966
        %v2968 = vpop.f32.mrb[0].mxu0
        %v2969 = vadd.f32 %v2880, %v2968
        %2970 = vmatprep.mubr.f32.mxu0 %v1016
        %2971 = vmatmul.mubr.f32.gmra.mrb[0].mxu0 %v1015
        %v2972 = vpop.f32.mrb[0].mxu0
        %v2973 = vadd.f32 %v2884, %v2972
        %v2974 = vpop.f32.mrb[0].mxu0
        %v2975 = vadd.f32 %v2886, %v2974
        %2976 = vdwg.mxu0
        %2977 = vmatprep.subr.mxu0 %v1538
        %2978 = vmatpush1.msra.mxu0 %v1537
        %2979 = vmatprep.subr.mxu0 %v1546
        %2980 = vmatpush1.msra.mxu0 %v1545
        %2981 = vmatprep.subr.mxu0 %v1554
        %2982 = vmatpush1.msra.mxu0 %v1553
        %2983 = vmatprep.subr.mxu0 %v1562
        %2984 = vmatpush1.msra.mxu0 %v1561
        %2985 = vmatprep.subr.mxu0 %v1570
        %2986 = vmatpush1.msra.mxu0 %v1569
        %2987 = vmatprep.subr.mxu0 %v1578
        %2988 = vmatpush1.msra.mxu0 %v1577
        %2989 = vmatprep.subr.mxu0 %v1586
        %2990 = vmatpush1.msra.mxu0 %v1585
        %2991 = vmatprep.subr.mxu0 %v1594
        %2992 = vmatpush1.msra.mxu0 %v1593
        %2993 = vmatprep.subr.mxu0 %v1602
        %2994 = vmatpush1.msra.mxu0 %v1601
        %2995 = vmatprep.subr.mxu0 %v1610
        %2996 = vmatpush1.msra.mxu0 %v1609
        %2997 = vmatprep.subr.mxu0 %v1618
        %2998 = vmatpush1.msra.mxu0 %v1617
        %2999 = vmatprep.subr.mxu0 %v1626
        %3000 = vmatpush1.msra.mxu0 %v1625
        %3001 = vmatprep.subr.mxu0 %v1634
        %3002 = vmatpush1.msra.mxu0 %v1633
        %3003 = vmatprep.subr.mxu0 %v1642
        %3004 = vmatpush1.msra.mxu0 %v1641
        %3005 = vmatprep.subr.mxu0 %v1650
        %3006 = vmatpush1.msra.mxu0 %v1649
        %3007 = vmatprep.subr.mxu0 %v1658
        %3008 = vmatpush1.msra.mxu0 %v1657
        %3009 = vmatprep.subr.mxu0 %v1666
        %3010 = vmatpush1.msra.mxu0 %v1665
        %3011 = vmatprep.subr.mxu0 %v1674
        %3012 = vmatpush1.msra.mxu0 %v1673
        %3013 = vmatprep.subr.mxu0 %v1682
        %3014 = vmatpush1.msra.mxu0 %v1681
        %3015 = vmatprep.subr.mxu0 %v1690
        %3016 = vmatpush1.msra.mxu0 %v1689
        %3017 = vmatprep.subr.mxu0 %v1698
        %3018 = vmatpush1.msra.mxu0 %v1697
        %3019 = vmatprep.subr.mxu0 %v1706
        %3020 = vmatpush1.msra.mxu0 %v1705
        %3021 = vmatprep.subr.mxu0 %v1714
        %3022 = vmatpush1.msra.mxu0 %v1713
        %3023 = vmatprep.subr.mxu0 %v1722
        %3024 = vmatpush1.msra.mxu0 %v1721
        %3025 = vmatprep.subr.mxu0 %v1730
        %3026 = vmatpush1.msra.mxu0 %v1729
        %3027 = vmatprep.subr.mxu0 %v1738
        %3028 = vmatpush1.msra.mxu0 %v1737
        %3029 = vmatprep.subr.mxu0 %v1746
        %3030 = vmatpush1.msra.mxu0 %v1745
        %3031 = vmatprep.subr.mxu0 %v1754
        %3032 = vmatpush1.msra.mxu0 %v1753
        %3033 = vmatprep.subr.mxu0 %v1762
        %3034 = vmatpush1.msra.mxu0 %v1761
        %3035 = vmatprep.subr.mxu0 %v1770
        %3036 = vmatpush1.msra.mxu0 %v1769
        %3037 = vmatprep.subr.mxu0 %v1778
        %3038 = vmatpush1.msra.mxu0 %v1777
        %3039 = vmatprep.subr.mxu0 %v1786
        %3040 = vmatpush1.msra.mxu0 %v1785
        %3041 = vmatprep.mubr.f32.mxu0 %v994
        %3042 = vmatmul.mubr.f32.gmra.mrb[0].mxu0 %v993
        %v3043 = vpop.f32.mrb[0].mxu0
        %v3044 = vadd.f32 %v2955, %v3043
        %v3045 = vpop.f32.mrb[0].mxu0
        %v3046 = vadd.f32 %v2957, %v3045
        %3047 = vmatprep.mubr.f32.mxu0 %v1002
        %3048 = vmatmul.mubr.f32.gmra.mrb[0].mxu0 %v1001
        %v3049 = vpop.f32.mrb[0].mxu0
        %v3050 = vadd.f32 %v2961, %v3049
        %v3051 = vpop.f32.mrb[0].mxu0
        %v3052 = vadd.f32 %v2963, %v3051
        %3053 = vmatprep.mubr.f32.mxu0 %v1010
        %3054 = vmatmul.mubr.f32.gmra.mrb[0].mxu0 %v1009
        %v3055 = vpop.f32.mrb[0].mxu0
        %v3056 = vadd.f32 %v2967, %v3055
        %v3057 = vpop.f32.mrb[0].mxu0
        %v3058 = vadd.f32 %v2969, %v3057
        %3059 = vmatprep.mubr.f32.mxu0 %v1018
        %3060 = vmatmul.mubr.f32.gmra.mrb[0].mxu0 %v1017
        %v3061 = vpop.f32.mrb[0].mxu0
        %v3062 = vadd.f32 %v2973, %v3061
        %v3063 = vpop.f32.mrb[0].mxu0
        %v3064 = vadd.f32 %v2975, %v3063
        %3065 = vdwg.mxu0
        %3066 = vmatprep.subr.mxu0 %v1794
        %3067 = vmatpush1.msra.mxu0 %v1793
        %3068 = vmatprep.subr.mxu0 %v1802
        %3069 = vmatpush1.msra.mxu0 %v1801
        %3070 = vmatprep.subr.mxu0 %v1810
        %3071 = vmatpush1.msra.mxu0 %v1809
        %3072 = vmatprep.subr.mxu0 %v1818
        %3073 = vmatpush1.msra.mxu0 %v1817
        %3074 = vmatprep.subr.mxu0 %v1826
        %3075 = vmatpush1.msra.mxu0 %v1825
        %3076 = vmatprep.subr.mxu0 %v1834
        %3077 = vmatpush1.msra.mxu0 %v1833
        %3078 = vmatprep.subr.mxu0 %v1842
        %3079 = vmatpush1.msra.mxu0 %v1841
        %3080 = vmatprep.subr.mxu0 %v1850
        %3081 = vmatpush1.msra.mxu0 %v1849
        %3082 = vmatprep.subr.mxu0 %v1858
        %3083 = vmatpush1.msra.mxu0 %v1857
        %3084 = vmatprep.subr.mxu0 %v1866
        %3085 = vmatpush1.msra.mxu0 %v1865
        %3086 = vmatprep.subr.mxu0 %v1874
        %3087 = vmatpush1.msra.mxu0 %v1873
        %3088 = vmatprep.subr.mxu0 %v1882
        %3089 = vmatpush1.msra.mxu0 %v1881
        %3090 = vmatprep.subr.mxu0 %v1890
        %3091 = vmatpush1.msra.mxu0 %v1889
        %3092 = vmatprep.subr.mxu0 %v1898
        %3093 = vmatpush1.msra.mxu0 %v1897
        %3094 = vmatprep.subr.mxu0 %v1906
        %3095 = vmatpush1.msra.mxu0 %v1905
        %3096 = vmatprep.subr.mxu0 %v1914
        %3097 = vmatpush1.msra.mxu0 %v1913
        %3098 = vmatprep.subr.mxu0 %v1922
        %3099 = vmatpush1.msra.mxu0 %v1921
        %3100 = vmatprep.subr.mxu0 %v1930
        %3101 = vmatpush1.msra.mxu0 %v1929
        %3102 = vmatprep.subr.mxu0 %v1938
        %3103 = vmatpush1.msra.mxu0 %v1937
        %3104 = vmatprep.subr.mxu0 %v1946
        %3105 = vmatpush1.msra.mxu0 %v1945
        %3106 = vmatprep.subr.mxu0 %v1954
        %3107 = vmatpush1.msra.mxu0 %v1953
        %3108 = vmatprep.subr.mxu0 %v1962
        %3109 = vmatpush1.msra.mxu0 %v1961
        %3110 = vmatprep.subr.mxu0 %v1970
        %3111 = vmatpush1.msra.mxu0 %v1969
        %3112 = vmatprep.subr.mxu0 %v1978
        %3113 = vmatpush1.msra.mxu0 %v1977
        %3114 = vmatprep.subr.mxu0 %v1986
        %3115 = vmatpush1.msra.mxu0 %v1985
        %3116 = vmatprep.subr.mxu0 %v1994
        %3117 = vmatpush1.msra.mxu0 %v1993
        %3118 = vmatprep.subr.mxu0 %v2002
        %3119 = vmatpush1.msra.mxu0 %v2001
        %3120 = vmatprep.subr.mxu0 %v2010
        %3121 = vmatpush1.msra.mxu0 %v2009
        %3122 = vmatprep.subr.mxu0 %v2018
        %3123 = vmatpush1.msra.mxu0 %v2017
        %3124 = vmatprep.subr.mxu0 %v2026
        %3125 = vmatpush1.msra.mxu0 %v2025
        %3126 = vmatprep.subr.mxu0 %v2034
        %3127 = vmatpush1.msra.mxu0 %v2033
        %3128 = vmatprep.subr.mxu0 %v2042
        %3129 = vmatpush1.msra.mxu0 %v2041
        %3130 = vmatprep.mubr.f32.mxu0 %v996
        %3131 = vmatmul.mubr.f32.gmra.mrb[0].mxu0 %v995
        %v3132 = vpop.f32.mrb[0].mxu0
        %v3133 = vadd.f32 %v3044, %v3132
        %v3134 = vpop.f32.mrb[0].mxu0
        %v3135 = vadd.f32 %v3046, %v3134
        %3136 = vmatprep.mubr.f32.mxu0 %v1004
        %3137 = vmatmul.mubr.f32.gmra.mrb[0].mxu0 %v1003
        %v3138 = vpop.f32.mrb[0].mxu0
        %v3139 = vadd.f32 %v3050, %v3138
        %v3140 = vpop.f32.mrb[0].mxu0
        %v3141 = vadd.f32 %v3052, %v3140
        %3142 = vmatprep.mubr.f32.mxu0 %v1012
        %3143 = vmatmul.mubr.f32.gmra.mrb[0].mxu0 %v1011
        %v3144 = vpop.f32.mrb[0].mxu0
        %v3145 = vadd.f32 %v3056, %v3144
        %v3146 = vpop.f32.mrb[0].mxu0
        %v3147 = vadd.f32 %v3058, %v3146
        %3148 = vmatprep.mubr.f32.mxu0 %v1020
        %3149 = vmatmul.mubr.f32.gmra.mrb[0].mxu0 %v1019
        %v3150 = vpop.f32.mrb[0].mxu0
        %v3151 = vadd.f32 %v3062, %v3150
        %v3152 = vpop.f32.mrb[0].mxu0
        %v3153 = vadd.f32 %v3064, %v3152
        %3154 = vdwg.mxu0
        %3155 = vmatprep.subr.mxu0 %v1028
        %3156 = vmatpush1.msra.mxu0 %v1027
        %3157 = vmatprep.subr.mxu0 %v1036
        %3158 = vmatpush1.msra.mxu0 %v1035
        %3159 = vmatprep.subr.mxu0 %v1044
        %3160 = vmatpush1.msra.mxu0 %v1043
        %3161 = vmatprep.subr.mxu0 %v1052
        %3162 = vmatpush1.msra.mxu0 %v1051
        %3163 = vmatprep.subr.mxu0 %v1060
        %3164 = vmatpush1.msra.mxu0 %v1059
        %3165 = vmatprep.subr.mxu0 %v1068
        %3166 = vmatpush1.msra.mxu0 %v1067
        %3167 = vmatprep.subr.mxu0 %v1076
        %3168 = vmatpush1.msra.mxu0 %v1075
        %3169 = vmatprep.subr.mxu0 %v1084
        %3170 = vmatpush1.msra.mxu0 %v1083
        %3171 = vmatprep.subr.mxu0 %v1092
        %3172 = vmatpush1.msra.mxu0 %v1091
        %3173 = vmatprep.subr.mxu0 %v1100
        %3174 = vmatpush1.msra.mxu0 %v1099
        %3175 = vmatprep.subr.mxu0 %v1108
        %3176 = vmatpush1.msra.mxu0 %v1107
        %3177 = vmatprep.subr.mxu0 %v1116
        %3178 = vmatpush1.msra.mxu0 %v1115
        %3179 = vmatprep.subr.mxu0 %v1124
        %3180 = vmatpush1.msra.mxu0 %v1123
        %3181 = vmatprep.subr.mxu0 %v1132
        %3182 = vmatpush1.msra.mxu0 %v1131
        %3183 = vmatprep.subr.mxu0 %v1140
        %3184 = vmatpush1.msra.mxu0 %v1139
        %3185 = vmatprep.subr.mxu0 %v1148
        %3186 = vmatpush1.msra.mxu0 %v1147
        %3187 = vmatprep.subr.mxu0 %v1156
        %3188 = vmatpush1.msra.mxu0 %v1155
        %3189 = vmatprep.subr.mxu0 %v1164
        %3190 = vmatpush1.msra.mxu0 %v1163
        %3191 = vmatprep.subr.mxu0 %v1172
        %3192 = vmatpush1.msra.mxu0 %v1171
        %3193 = vmatprep.subr.mxu0 %v1180
        %3194 = vmatpush1.msra.mxu0 %v1179
        %3195 = vmatprep.subr.mxu0 %v1188
        %3196 = vmatpush1.msra.mxu0 %v1187
        %3197 = vmatprep.subr.mxu0 %v1196
        %3198 = vmatpush1.msra.mxu0 %v1195
        %3199 = vmatprep.subr.mxu0 %v1204
        %3200 = vmatpush1.msra.mxu0 %v1203
        %3201 = vmatprep.subr.mxu0 %v1212
        %3202 = vmatpush1.msra.mxu0 %v1211
        %3203 = vmatprep.subr.mxu0 %v1220
        %3204 = vmatpush1.msra.mxu0 %v1219
        %3205 = vmatprep.subr.mxu0 %v1228
        %3206 = vmatpush1.msra.mxu0 %v1227
        %3207 = vmatprep.subr.mxu0 %v1236
        %3208 = vmatpush1.msra.mxu0 %v1235
        %3209 = vmatprep.subr.mxu0 %v1244
        %3210 = vmatpush1.msra.mxu0 %v1243
        %3211 = vmatprep.subr.mxu0 %v1252
        %3212 = vmatpush1.msra.mxu0 %v1251
        %3213 = vmatprep.subr.mxu0 %v1260
        %3214 = vmatpush1.msra.mxu0 %v1259
        %3215 = vmatprep.subr.mxu0 %v1268
        %3216 = vmatpush1.msra.mxu0 %v1267
        %3217 = vmatprep.subr.mxu0 %v1276
        %3218 = vmatpush1.msra.mxu0 %v1275
        %3219 = vmatprep.mubr.f32.mxu0 %v990
        %3220 = vmatmul.mubr.f32.gmra.mrb[0].mxu0 %v989
        %v3221 = vpop.f32.mrb[0].mxu0
        %v3222 = vadd.f32 %v2074, %v3221
        %v3223 = vpop.f32.mrb[0].mxu0
        %v3224 = vadd.f32 %v2078, %v3223
        %3225 = vmatprep.mubr.f32.mxu0 %v998
        %3226 = vmatmul.mubr.f32.gmra.mrb[0].mxu0 %v997
        %v3227 = vpop.f32.mrb[0].mxu0
        %v3228 = vadd.f32 %v2074, %v3227
        %v3229 = vpop.f32.mrb[0].mxu0
        %v3230 = vadd.f32 %v2078, %v3229
        %3231 = vmatprep.mubr.f32.mxu0 %v1006
        %3232 = vmatmul.mubr.f32.gmra.mrb[0].mxu0 %v1005
        %v3233 = vpop.f32.mrb[0].mxu0
        %v3234 = vadd.f32 %v2074, %v3233
        %v3235 = vpop.f32.mrb[0].mxu0
        %v3236 = vadd.f32 %v2078, %v3235
        %3237 = vmatprep.mubr.f32.mxu0 %v1014
        %3238 = vmatmul.mubr.f32.gmra.mrb[0].mxu0 %v1013
        %v3239 = vpop.f32.mrb[0].mxu0
        %v3240 = vadd.f32 %v2074, %v3239
        %v3241 = vpop.f32.mrb[0].mxu0
        %v3242 = vadd.f32 %v2078, %v3241
        %3243 = vdwg.mxu0
        %3244 = vmatprep.subr.mxu0 %v1284
        %3245 = vmatpush1.msra.mxu0 %v1283
        %3246 = vmatprep.subr.mxu0 %v1292
        %3247 = vmatpush1.msra.mxu0 %v1291
        %3248 = vmatprep.subr.mxu0 %v1300
        %3249 = vmatpush1.msra.mxu0 %v1299
        %3250 = vmatprep.subr.mxu0 %v1308
        %3251 = vmatpush1.msra.mxu0 %v1307
        %3252 = vmatprep.subr.mxu0 %v1316
        %3253 = vmatpush1.msra.mxu0 %v1315
        %3254 = vmatprep.subr.mxu0 %v1324
        %3255 = vmatpush1.msra.mxu0 %v1323
        %3256 = vmatprep.subr.mxu0 %v1332
        %3257 = vmatpush1.msra.mxu0 %v1331
        %3258 = vmatprep.subr.mxu0 %v1340
        %3259 = vmatpush1.msra.mxu0 %v1339
        %3260 = vmatprep.subr.mxu0 %v1348
        %3261 = vmatpush1.msra.mxu0 %v1347
        %3262 = vmatprep.subr.mxu0 %v1356
        %3263 = vmatpush1.msra.mxu0 %v1355
        %3264 = vmatprep.subr.mxu0 %v1364
        %3265 = vmatpush1.msra.mxu0 %v1363
        %3266 = vmatprep.subr.mxu0 %v1372
        %3267 = vmatpush1.msra.mxu0 %v1371
        %3268 = vmatprep.subr.mxu0 %v1380
        %3269 = vmatpush1.msra.mxu0 %v1379
        %3270 = vmatprep.subr.mxu0 %v1388
        %3271 = vmatpush1.msra.mxu0 %v1387
        %3272 = vmatprep.subr.mxu0 %v1396
        %3273 = vmatpush1.msra.mxu0 %v1395
        %3274 = vmatprep.subr.mxu0 %v1404
        %3275 = vmatpush1.msra.mxu0 %v1403
        %3276 = vmatprep.subr.mxu0 %v1412
        %3277 = vmatpush1.msra.mxu0 %v1411
        %3278 = vmatprep.subr.mxu0 %v1420
        %3279 = vmatpush1.msra.mxu0 %v1419
        %3280 = vmatprep.subr.mxu0 %v1428
        %3281 = vmatpush1.msra.mxu0 %v1427
        %3282 = vmatprep.subr.mxu0 %v1436
        %3283 = vmatpush1.msra.mxu0 %v1435
        %3284 = vmatprep.subr.mxu0 %v1444
        %3285 = vmatpush1.msra.mxu0 %v1443
        %3286 = vmatprep.subr.mxu0 %v1452
        %3287 = vmatpush1.msra.mxu0 %v1451
        %3288 = vmatprep.subr.mxu0 %v1460
        %3289 = vmatpush1.msra.mxu0 %v1459
        %3290 = vmatprep.subr.mxu0 %v1468
        %3291 = vmatpush1.msra.mxu0 %v1467
        %3292 = vmatprep.subr.mxu0 %v1476
        %3293 = vmatpush1.msra.mxu0 %v1475
        %3294 = vmatprep.subr.mxu0 %v1484
        %3295 = vmatpush1.msra.mxu0 %v1483
        %3296 = vmatprep.subr.mxu0 %v1492
        %3297 = vmatpush1.msra.mxu0 %v1491
        %3298 = vmatprep.subr.mxu0 %v1500
        %3299 = vmatpush1.msra.mxu0 %v1499
        %3300 = vmatprep.subr.mxu0 %v1508
        %3301 = vmatpush1.msra.mxu0 %v1507
        %3302 = vmatprep.subr.mxu0 %v1516
        %3303 = vmatpush1.msra.mxu0 %v1515
        %3304 = vmatprep.subr.mxu0 %v1524
        %3305 = vmatpush1.msra.mxu0 %v1523
        %3306 = vmatprep.subr.mxu0 %v1532
        %3307 = vmatpush1.msra.mxu0 %v1531
        %3308 = vmatprep.mubr.f32.mxu0 %v992
        %3309 = vmatmul.mubr.f32.gmra.mrb[0].mxu0 %v991
        %v3310 = vpop.f32.mrb[0].mxu0
        %v3311 = vadd.f32 %v3222, %v3310
        %v3312 = vpop.f32.mrb[0].mxu0
        %v3313 = vadd.f32 %v3224, %v3312
        %3314 = vmatprep.mubr.f32.mxu0 %v1000
        %3315 = vmatmul.mubr.f32.gmra.mrb[0].mxu0 %v999
        %v3316 = vpop.f32.mrb[0].mxu0
        %v3317 = vadd.f32 %v3228, %v3316
        %v3318 = vpop.f32.mrb[0].mxu0
        %v3319 = vadd.f32 %v3230, %v3318
        %3320 = vmatprep.mubr.f32.mxu0 %v1008
        %3321 = vmatmul.mubr.f32.gmra.mrb[0].mxu0 %v1007
        %v3322 = vpop.f32.mrb[0].mxu0
        %v3323 = vadd.f32 %v3234, %v3322
        %v3324 = vpop.f32.mrb[0].mxu0
        %v3325 = vadd.f32 %v3236, %v3324
        %3326 = vmatprep.mubr.f32.mxu0 %v1016
        %3327 = vmatmul.mubr.f32.gmra.mrb[0].mxu0 %v1015
        %v3328 = vpop.f32.mrb[0].mxu0
        %v3329 = vadd.f32 %v3240, %v3328
        %v3330 = vpop.f32.mrb[0].mxu0
        %v3331 = vadd.f32 %v3242, %v3330
        %3332 = vdwg.mxu0
        %3333 = vmatprep.subr.mxu0 %v1540
        %3334 = vmatpush1.msra.mxu0 %v1539
        %3335 = vmatprep.subr.mxu0 %v1548
        %3336 = vmatpush1.msra.mxu0 %v1547
        %3337 = vmatprep.subr.mxu0 %v1556
        %3338 = vmatpush1.msra.mxu0 %v1555
        %3339 = vmatprep.subr.mxu0 %v1564
        %3340 = vmatpush1.msra.mxu0 %v1563
        %3341 = vmatprep.subr.mxu0 %v1572
        %3342 = vmatpush1.msra.mxu0 %v1571
        %3343 = vmatprep.subr.mxu0 %v1580
        %3344 = vmatpush1.msra.mxu0 %v1579
        %3345 = vmatprep.subr.mxu0 %v1588
        %3346 = vmatpush1.msra.mxu0 %v1587
        %3347 = vmatprep.subr.mxu0 %v1596
        %3348 = vmatpush1.msra.mxu0 %v1595
        %3349 = vmatprep.subr.mxu0 %v1604
        %3350 = vmatpush1.msra.mxu0 %v1603
        %3351 = vmatprep.subr.mxu0 %v1612
        %3352 = vmatpush1.msra.mxu0 %v1611
        %3353 = vmatprep.subr.mxu0 %v1620
        %3354 = vmatpush1.msra.mxu0 %v1619
        %3355 = vmatprep.subr.mxu0 %v1628
        %3356 = vmatpush1.msra.mxu0 %v1627
        %3357 = vmatprep.subr.mxu0 %v1636
        %3358 = vmatpush1.msra.mxu0 %v1635
        %3359 = vmatprep.subr.mxu0 %v1644
        %3360 = vmatpush1.msra.mxu0 %v1643
        %3361 = vmatprep.subr.mxu0 %v1652
        %3362 = vmatpush1.msra.mxu0 %v1651
        %3363 = vmatprep.subr.mxu0 %v1660
        %3364 = vmatpush1.msra.mxu0 %v1659
        %3365 = vmatprep.subr.mxu0 %v1668
        %3366 = vmatpush1.msra.mxu0 %v1667
        %3367 = vmatprep.subr.mxu0 %v1676
        %3368 = vmatpush1.msra.mxu0 %v1675
        %3369 = vmatprep.subr.mxu0 %v1684
        %3370 = vmatpush1.msra.mxu0 %v1683
        %3371 = vmatprep.subr.mxu0 %v1692
        %3372 = vmatpush1.msra.mxu0 %v1691
        %3373 = vmatprep.subr.mxu0 %v1700
        %3374 = vmatpush1.msra.mxu0 %v1699
        %3375 = vmatprep.subr.mxu0 %v1708
        %3376 = vmatpush1.msra.mxu0 %v1707
        %3377 = vmatprep.subr.mxu0 %v1716
        %3378 = vmatpush1.msra.mxu0 %v1715
        %3379 = vmatprep.subr.mxu0 %v1724
        %3380 = vmatpush1.msra.mxu0 %v1723
        %3381 = vmatprep.subr.mxu0 %v1732
        %3382 = vmatpush1.msra.mxu0 %v1731
        %3383 = vmatprep.subr.mxu0 %v1740
        %3384 = vmatpush1.msra.mxu0 %v1739
        %3385 = vmatprep.subr.mxu0 %v1748
        %3386 = vmatpush1.msra.mxu0 %v1747
        %3387 = vmatprep.subr.mxu0 %v1756
        %3388 = vmatpush1.msra.mxu0 %v1755
        %3389 = vmatprep.subr.mxu0 %v1764
        %3390 = vmatpush1.msra.mxu0 %v1763
        %3391 = vmatprep.subr.mxu0 %v1772
        %3392 = vmatpush1.msra.mxu0 %v1771
        %3393 = vmatprep.subr.mxu0 %v1780
        %3394 = vmatpush1.msra.mxu0 %v1779
        %3395 = vmatprep.subr.mxu0 %v1788
        %3396 = vmatpush1.msra.mxu0 %v1787
        %3397 = vmatprep.mubr.f32.mxu0 %v994
        %3398 = vmatmul.mubr.f32.gmra.mrb[0].mxu0 %v993
        %v3399 = vpop.f32.mrb[0].mxu0
        %v3400 = vadd.f32 %v3311, %v3399
        %v3401 = vpop.f32.mrb[0].mxu0
        %v3402 = vadd.f32 %v3313, %v3401
        %3403 = vmatprep.mubr.f32.mxu0 %v1002
        %3404 = vmatmul.mubr.f32.gmra.mrb[0].mxu0 %v1001
        %v3405 = vpop.f32.mrb[0].mxu0
        %v3406 = vadd.f32 %v3317, %v3405
        %v3407 = vpop.f32.mrb[0].mxu0
        %v3408 = vadd.f32 %v3319, %v3407
        %3409 = vmatprep.mubr.f32.mxu0 %v1010
        %3410 = vmatmul.mubr.f32.gmra.mrb[0].mxu0 %v1009
        %v3411 = vpop.f32.mrb[0].mxu0
        %v3412 = vadd.f32 %v3323, %v3411
        %v3413 = vpop.f32.mrb[0].mxu0
        %v3414 = vadd.f32 %v3325, %v3413
        %3415 = vmatprep.mubr.f32.mxu0 %v1018
        %3416 = vmatmul.mubr.f32.gmra.mrb[0].mxu0 %v1017
        %v3417 = vpop.f32.mrb[0].mxu0
        %v3418 = vadd.f32 %v3329, %v3417
        %v3419 = vpop.f32.mrb[0].mxu0
        %v3420 = vadd.f32 %v3331, %v3419
        %3421 = vdwg.mxu0
        %3422 = vmatprep.subr.mxu0 %v1796
        %3423 = vmatpush1.msra.mxu0 %v1795
        %3424 = vmatprep.subr.mxu0 %v1804
        %3425 = vmatpush1.msra.mxu0 %v1803
        %3426 = vmatprep.subr.mxu0 %v1812
        %3427 = vmatpush1.msra.mxu0 %v1811
        %3428 = vmatprep.subr.mxu0 %v1820
        %3429 = vmatpush1.msra.mxu0 %v1819
        %3430 = vmatprep.subr.mxu0 %v1828
        %3431 = vmatpush1.msra.mxu0 %v1827
        %3432 = vmatprep.subr.mxu0 %v1836
        %3433 = vmatpush1.msra.mxu0 %v1835
        %3434 = vmatprep.subr.mxu0 %v1844
        %3435 = vmatpush1.msra.mxu0 %v1843
        %3436 = vmatprep.subr.mxu0 %v1852
        %3437 = vmatpush1.msra.mxu0 %v1851
        %3438 = vmatprep.subr.mxu0 %v1860
        %3439 = vmatpush1.msra.mxu0 %v1859
        %3440 = vmatprep.subr.mxu0 %v1868
        %3441 = vmatpush1.msra.mxu0 %v1867
        %3442 = vmatprep.subr.mxu0 %v1876
        %3443 = vmatpush1.msra.mxu0 %v1875
        %3444 = vmatprep.subr.mxu0 %v1884
        %3445 = vmatpush1.msra.mxu0 %v1883
        %3446 = vmatprep.subr.mxu0 %v1892
        %3447 = vmatpush1.msra.mxu0 %v1891
        %3448 = vmatprep.subr.mxu0 %v1900
        %3449 = vmatpush1.msra.mxu0 %v1899
        %3450 = vmatprep.subr.mxu0 %v1908
        %3451 = vmatpush1.msra.mxu0 %v1907
        %3452 = vmatprep.subr.mxu0 %v1916
        %3453 = vmatpush1.msra.mxu0 %v1915
        %3454 = vmatprep.subr.mxu0 %v1924
        %3455 = vmatpush1.msra.mxu0 %v1923
        %3456 = vmatprep.subr.mxu0 %v1932
        %3457 = vmatpush1.msra.mxu0 %v1931
        %3458 = vmatprep.subr.mxu0 %v1940
        %3459 = vmatpush1.msra.mxu0 %v1939
        %3460 = vmatprep.subr.mxu0 %v1948
        %3461 = vmatpush1.msra.mxu0 %v1947
        %3462 = vmatprep.subr.mxu0 %v1956
        %3463 = vmatpush1.msra.mxu0 %v1955
        %3464 = vmatprep.subr.mxu0 %v1964
        %3465 = vmatpush1.msra.mxu0 %v1963
        %3466 = vmatprep.subr.mxu0 %v1972
        %3467 = vmatpush1.msra.mxu0 %v1971
        %3468 = vmatprep.subr.mxu0 %v1980
        %3469 = vmatpush1.msra.mxu0 %v1979
        %3470 = vmatprep.subr.mxu0 %v1988
        %3471 = vmatpush1.msra.mxu0 %v1987
        %3472 = vmatprep.subr.mxu0 %v1996
        %3473 = vmatpush1.msra.mxu0 %v1995
        %3474 = vmatprep.subr.mxu0 %v2004
        %3475 = vmatpush1.msra.mxu0 %v2003
        %3476 = vmatprep.subr.mxu0 %v2012
        %3477 = vmatpush1.msra.mxu0 %v2011
        %3478 = vmatprep.subr.mxu0 %v2020
        %3479 = vmatpush1.msra.mxu0 %v2019
        %3480 = vmatprep.subr.mxu0 %v2028
        %3481 = vmatpush1.msra.mxu0 %v2027
        %3482 = vmatprep.subr.mxu0 %v2036
        %3483 = vmatpush1.msra.mxu0 %v2035
        %3484 = vmatprep.subr.mxu0 %v2044
        %3485 = vmatpush1.msra.mxu0 %v2043
        %3486 = vmatprep.mubr.f32.mxu0 %v996
        %3487 = vmatmul.mubr.f32.gmra.mrb[0].mxu0 %v995
        %v3488 = vpop.f32.mrb[0].mxu0
        %v3489 = vadd.f32 %v3400, %v3488
        %v3490 = vpop.f32.mrb[0].mxu0
        %v3491 = vadd.f32 %v3402, %v3490
        %3492 = vmatprep.mubr.f32.mxu0 %v1004
        %3493 = vmatmul.mubr.f32.gmra.mrb[0].mxu0 %v1003
        %v3494 = vpop.f32.mrb[0].mxu0
        %v3495 = vadd.f32 %v3406, %v3494
        %v3496 = vpop.f32.mrb[0].mxu0
        %v3497 = vadd.f32 %v3408, %v3496
        %3498 = vmatprep.mubr.f32.mxu0 %v1012
        %3499 = vmatmul.mubr.f32.gmra.mrb[0].mxu0 %v1011
        %v3500 = vpop.f32.mrb[0].mxu0
        %v3501 = vadd.f32 %v3412, %v3500
        %v3502 = vpop.f32.mrb[0].mxu0
        %v3503 = vadd.f32 %v3414, %v3502
        %3504 = vmatprep.mubr.f32.mxu0 %v1020
        %3505 = vmatmul.mubr.f32.gmra.mrb[0].mxu0 %v1019
        %v3506 = vpop.f32.mrb[0].mxu0
        %v3507 = vadd.f32 %v3418, %v3506
        %v3508 = vpop.f32.mrb[0].mxu0
        %v3509 = vadd.f32 %v3420, %v3508
        %3510 = vdwg.mxu0
        %v3511 = vmax.f32 %v2421, 0.0
        %v3512 = vmax.f32 %v2423, 0.0
        %v3513 = vmax.f32 %v2777, 0.0
        %v3514 = vmax.f32 %v2779, 0.0
        %v3515 = vmax.f32 %v3133, 0.0
        %v3516 = vmax.f32 %v3135, 0.0
        %v3517 = vmax.f32 %v3489, 0.0
        %v3518 = vmax.f32 %v3491, 0.0
        %v3519 = vmax.f32 %v2427, 0.0
        %v3520 = vmax.f32 %v2429, 0.0
        %v3521 = vmax.f32 %v2783, 0.0
        %v3522 = vmax.f32 %v2785, 0.0
        %v3523 = vmax.f32 %v3139, 0.0
        %v3524 = vmax.f32 %v3141, 0.0
        %v3525 = vmax.f32 %v3495, 0.0
        %v3526 = vmax.f32 %v3497, 0.0
        %v3527 = vmax.f32 %v2433, 0.0
        %v3528 = vmax.f32 %v2435, 0.0
        %v3529 = vmax.f32 %v2789, 0.0
        %v3530 = vmax.f32 %v2791, 0.0
        %v3531 = vmax.f32 %v3145, 0.0
        %v3532 = vmax.f32 %v3147, 0.0
        %v3533 = vmax.f32 %v3501, 0.0
        %v3534 = vmax.f32 %v3503, 0.0
        %v3535 = vmax.f32 %v2439, 0.0
        %v3536 = vmax.f32 %v2441, 0.0
        %v3537 = vmax.f32 %v2795, 0.0
        %v3538 = vmax.f32 %v2797, 0.0
        %v3539 = vmax.f32 %v3151, 0.0
        %v3540 = vmax.f32 %v3153, 0.0
        %v3541 = vmax.f32 %v3507, 0.0
        %v3542 = vmax.f32 %v3509, 0.0
        %v3543 = vld [vmem:[%s445] sm:$0xff]
        %v3544 = vld [vmem:[%s445 + $0x8] sm:$0xff]
        %v3545 = vld [vmem:[%s445 + $0x10] sm:$0xff]
        %v3546 = vld [vmem:[%s445 + $0x18] sm:$0xff]
        %v3547 = vld [vmem:[%s445 + $0x20] sm:$0xff]
        %v3548 = vld [vmem:[%s445 + $0x28] sm:$0xff]
        %v3549 = vld [vmem:[%s445 + $0x30] sm:$0xff]
        %v3550 = vld [vmem:[%s445 + $0x38] sm:$0xff]
        %v3551 = vld [vmem:[%s445 + $0x40] sm:$0xff]
        %v3552 = vld [vmem:[%s445 + $0x48] sm:$0xff]
        %v3553 = vld [vmem:[%s445 + $0x50] sm:$0xff]
        %v3554 = vld [vmem:[%s445 + $0x58] sm:$0xff]
        %v3555 = vld [vmem:[%s445 + $0x60] sm:$0xff]
        %v3556 = vld [vmem:[%s445 + $0x68] sm:$0xff]
        %v3557 = vld [vmem:[%s445 + $0x70] sm:$0xff]
        %v3558 = vld [vmem:[%s445 + $0x78] sm:$0xff]
        %v3559 = vld [vmem:[%s445 + $0x80] sm:$0xff]
        %v3560 = vld [vmem:[%s445 + $0x88] sm:$0xff]
        %v3561 = vld [vmem:[%s445 + $0x90] sm:$0xff]
        %v3562 = vld [vmem:[%s445 + $0x98] sm:$0xff]
        %v3563 = vld [vmem:[%s445 + $0xa0] sm:$0xff]
        %v3564 = vld [vmem:[%s445 + $0xa8] sm:$0xff]
        %v3565 = vld [vmem:[%s445 + $0xb0] sm:$0xff]
        %v3566 = vld [vmem:[%s445 + $0xb8] sm:$0xff]
        %v3567 = vld [vmem:[%s445 + $0xc0] sm:$0xff]
        %v3568 = vld [vmem:[%s445 + $0xc8] sm:$0xff]
        %v3569 = vld [vmem:[%s445 + $0xd0] sm:$0xff]
        %v3570 = vld [vmem:[%s445 + $0xd8] sm:$0xff]
        %v3571 = vld [vmem:[%s445 + $0xe0] sm:$0xff]
        %v3572 = vld [vmem:[%s445 + $0xe8] sm:$0xff]
        %v3573 = vld [vmem:[%s445 + $0xf0] sm:$0xff]
        %v3574 = vld [vmem:[%s445 + $0xf8] sm:$0xff]
        %v3575 = vld [vmem:[%s387] sm:$0xff]
        %v3576 = vld [vmem:[%s387 + $0x8] sm:$0xff]
        %v3577 = vld [vmem:[%s387 + $0x10] sm:$0xff]
        %v3578 = vld [vmem:[%s387 + $0x18] sm:$0xff]
        %v3579 = vld [vmem:[%s387 + $0x20] sm:$0xff]
        %v3580 = vld [vmem:[%s387 + $0x28] sm:$0xff]
        %v3581 = vld [vmem:[%s387 + $0x30] sm:$0xff]
        %v3582 = vld [vmem:[%s387 + $0x38] sm:$0xff]
        %v3583 = vld [vmem:[%s387 + $0x40] sm:$0xff]
        %v3584 = vld [vmem:[%s387 + $0x48] sm:$0xff]
        %v3585 = vld [vmem:[%s387 + $0x50] sm:$0xff]
        %v3586 = vld [vmem:[%s387 + $0x58] sm:$0xff]
        %v3587 = vld [vmem:[%s387 + $0x60] sm:$0xff]
        %v3588 = vld [vmem:[%s387 + $0x68] sm:$0xff]
        %v3589 = vld [vmem:[%s387 + $0x70] sm:$0xff]
        %v3590 = vld [vmem:[%s387 + $0x78] sm:$0xff]
        %v3591 = vld [vmem:[%s387 + $0x80] sm:$0xff]
        %v3592 = vld [vmem:[%s387 + $0x88] sm:$0xff]
        %v3593 = vld [vmem:[%s387 + $0x90] sm:$0xff]
        %v3594 = vld [vmem:[%s387 + $0x98] sm:$0xff]
        %v3595 = vld [vmem:[%s387 + $0xa0] sm:$0xff]
        %v3596 = vld [vmem:[%s387 + $0xa8] sm:$0xff]
        %v3597 = vld [vmem:[%s387 + $0xb0] sm:$0xff]
        %v3598 = vld [vmem:[%s387 + $0xb8] sm:$0xff]
        %v3599 = vld [vmem:[%s387 + $0xc0] sm:$0xff]
        %v3600 = vld [vmem:[%s387 + $0xc8] sm:$0xff]
        %v3601 = vld [vmem:[%s387 + $0xd0] sm:$0xff]
        %v3602 = vld [vmem:[%s387 + $0xd8] sm:$0xff]
        %v3603 = vld [vmem:[%s387 + $0xe0] sm:$0xff]
        %v3604 = vld [vmem:[%s387 + $0xe8] sm:$0xff]
        %v3605 = vld [vmem:[%s387 + $0xf0] sm:$0xff]
        %v3606 = vld [vmem:[%s387 + $0xf8] sm:$0xff]
        %v3607 = vld [vmem:[%s387 + $0x100] sm:$0xff]
        %v3608 = vld [vmem:[%s387 + $0x108] sm:$0xff]
        %v3609 = vld [vmem:[%s387 + $0x110] sm:$0xff]
        %v3610 = vld [vmem:[%s387 + $0x118] sm:$0xff]
        %v3611 = vld [vmem:[%s387 + $0x120] sm:$0xff]
        %v3612 = vld [vmem:[%s387 + $0x128] sm:$0xff]
        %v3613 = vld [vmem:[%s387 + $0x130] sm:$0xff]
        %v3614 = vld [vmem:[%s387 + $0x138] sm:$0xff]
        %v3615 = vld [vmem:[%s387 + $0x140] sm:$0xff]
        %v3616 = vld [vmem:[%s387 + $0x148] sm:$0xff]
        %v3617 = vld [vmem:[%s387 + $0x150] sm:$0xff]
        %v3618 = vld [vmem:[%s387 + $0x158] sm:$0xff]
        %v3619 = vld [vmem:[%s387 + $0x160] sm:$0xff]
        %v3620 = vld [vmem:[%s387 + $0x168] sm:$0xff]
        %v3621 = vld [vmem:[%s387 + $0x170] sm:$0xff]
        %v3622 = vld [vmem:[%s387 + $0x178] sm:$0xff]
        %v3623 = vld [vmem:[%s387 + $0x180] sm:$0xff]
        %v3624 = vld [vmem:[%s387 + $0x188] sm:$0xff]
        %v3625 = vld [vmem:[%s387 + $0x190] sm:$0xff]
        %v3626 = vld [vmem:[%s387 + $0x198] sm:$0xff]
        %v3627 = vld [vmem:[%s387 + $0x1a0] sm:$0xff]
        %v3628 = vld [vmem:[%s387 + $0x1a8] sm:$0xff]
        %v3629 = vld [vmem:[%s387 + $0x1b0] sm:$0xff]
        %v3630 = vld [vmem:[%s387 + $0x1b8] sm:$0xff]
        %v3631 = vld [vmem:[%s387 + $0x1c0] sm:$0xff]
        %v3632 = vld [vmem:[%s387 + $0x1c8] sm:$0xff]
        %v3633 = vld [vmem:[%s387 + $0x1d0] sm:$0xff]
        %v3634 = vld [vmem:[%s387 + $0x1d8] sm:$0xff]
        %v3635 = vld [vmem:[%s387 + $0x1e0] sm:$0xff]
        %v3636 = vld [vmem:[%s387 + $0x1e8] sm:$0xff]
        %v3637 = vld [vmem:[%s387 + $0x1f0] sm:$0xff]
        %v3638 = vld [vmem:[%s387 + $0x1f8] sm:$0xff]
        %v3639 = vld [vmem:[%s387 + $0x200] sm:$0xff]
        %v3640 = vld [vmem:[%s387 + $0x208] sm:$0xff]
        %v3641 = vld [vmem:[%s387 + $0x210] sm:$0xff]
        %v3642 = vld [vmem:[%s387 + $0x218] sm:$0xff]
        %v3643 = vld [vmem:[%s387 + $0x220] sm:$0xff]
        %v3644 = vld [vmem:[%s387 + $0x228] sm:$0xff]
        %v3645 = vld [vmem:[%s387 + $0x230] sm:$0xff]
        %v3646 = vld [vmem:[%s387 + $0x238] sm:$0xff]
        %v3647 = vld [vmem:[%s387 + $0x240] sm:$0xff]
        %v3648 = vld [vmem:[%s387 + $0x248] sm:$0xff]
        %v3649 = vld [vmem:[%s387 + $0x250] sm:$0xff]
        %v3650 = vld [vmem:[%s387 + $0x258] sm:$0xff]
        %v3651 = vld [vmem:[%s387 + $0x260] sm:$0xff]
        %v3652 = vld [vmem:[%s387 + $0x268] sm:$0xff]
        %v3653 = vld [vmem:[%s387 + $0x270] sm:$0xff]
        %v3654 = vld [vmem:[%s387 + $0x278] sm:$0xff]
        %v3655 = vld [vmem:[%s387 + $0x280] sm:$0xff]
        %v3656 = vld [vmem:[%s387 + $0x288] sm:$0xff]
        %v3657 = vld [vmem:[%s387 + $0x290] sm:$0xff]
        %v3658 = vld [vmem:[%s387 + $0x298] sm:$0xff]
        %v3659 = vld [vmem:[%s387 + $0x2a0] sm:$0xff]
        %v3660 = vld [vmem:[%s387 + $0x2a8] sm:$0xff]
        %v3661 = vld [vmem:[%s387 + $0x2b0] sm:$0xff]
        %v3662 = vld [vmem:[%s387 + $0x2b8] sm:$0xff]
        %v3663 = vld [vmem:[%s387 + $0x2c0] sm:$0xff]
        %v3664 = vld [vmem:[%s387 + $0x2c8] sm:$0xff]
        %v3665 = vld [vmem:[%s387 + $0x2d0] sm:$0xff]
        %v3666 = vld [vmem:[%s387 + $0x2d8] sm:$0xff]
        %v3667 = vld [vmem:[%s387 + $0x2e0] sm:$0xff]
        %v3668 = vld [vmem:[%s387 + $0x2e8] sm:$0xff]
        %v3669 = vld [vmem:[%s387 + $0x2f0] sm:$0xff]
        %v3670 = vld [vmem:[%s387 + $0x2f8] sm:$0xff]
        %v3671 = vld [vmem:[%s387 + $0x300] sm:$0xff]
        %v3672 = vld [vmem:[%s387 + $0x308] sm:$0xff]
        %v3673 = vld [vmem:[%s387 + $0x310] sm:$0xff]
        %v3674 = vld [vmem:[%s387 + $0x318] sm:$0xff]
        %v3675 = vld [vmem:[%s387 + $0x320] sm:$0xff]
        %v3676 = vld [vmem:[%s387 + $0x328] sm:$0xff]
        %v3677 = vld [vmem:[%s387 + $0x330] sm:$0xff]
        %v3678 = vld [vmem:[%s387 + $0x338] sm:$0xff]
        %v3679 = vld [vmem:[%s387 + $0x340] sm:$0xff]
        %v3680 = vld [vmem:[%s387 + $0x348] sm:$0xff]
        %v3681 = vld [vmem:[%s387 + $0x350] sm:$0xff]
        %v3682 = vld [vmem:[%s387 + $0x358] sm:$0xff]
        %v3683 = vld [vmem:[%s387 + $0x360] sm:$0xff]
        %v3684 = vld [vmem:[%s387 + $0x368] sm:$0xff]
        %v3685 = vld [vmem:[%s387 + $0x370] sm:$0xff]
        %v3686 = vld [vmem:[%s387 + $0x378] sm:$0xff]
        %v3687 = vld [vmem:[%s387 + $0x380] sm:$0xff]
        %v3688 = vld [vmem:[%s387 + $0x388] sm:$0xff]
        %v3689 = vld [vmem:[%s387 + $0x390] sm:$0xff]
        %v3690 = vld [vmem:[%s387 + $0x398] sm:$0xff]
        %v3691 = vld [vmem:[%s387 + $0x3a0] sm:$0xff]
        %v3692 = vld [vmem:[%s387 + $0x3a8] sm:$0xff]
        %v3693 = vld [vmem:[%s387 + $0x3b0] sm:$0xff]
        %v3694 = vld [vmem:[%s387 + $0x3b8] sm:$0xff]
        %v3695 = vld [vmem:[%s387 + $0x3c0] sm:$0xff]
        %v3696 = vld [vmem:[%s387 + $0x3c8] sm:$0xff]
        %v3697 = vld [vmem:[%s387 + $0x3d0] sm:$0xff]
        %v3698 = vld [vmem:[%s387 + $0x3d8] sm:$0xff]
        %v3699 = vld [vmem:[%s387 + $0x3e0] sm:$0xff]
        %v3700 = vld [vmem:[%s387 + $0x3e8] sm:$0xff]
        %v3701 = vld [vmem:[%s387 + $0x3f0] sm:$0xff]
        %v3702 = vld [vmem:[%s387 + $0x3f8] sm:$0xff]
        %v3703 = vld [vmem:[%s387 + $0x400] sm:$0xff]
        %v3704 = vld [vmem:[%s387 + $0x408] sm:$0xff]
        %v3705 = vld [vmem:[%s387 + $0x410] sm:$0xff]
        %v3706 = vld [vmem:[%s387 + $0x418] sm:$0xff]
        %v3707 = vld [vmem:[%s387 + $0x420] sm:$0xff]
        %v3708 = vld [vmem:[%s387 + $0x428] sm:$0xff]
        %v3709 = vld [vmem:[%s387 + $0x430] sm:$0xff]
        %v3710 = vld [vmem:[%s387 + $0x438] sm:$0xff]
        %v3711 = vld [vmem:[%s387 + $0x440] sm:$0xff]
        %v3712 = vld [vmem:[%s387 + $0x448] sm:$0xff]
        %v3713 = vld [vmem:[%s387 + $0x450] sm:$0xff]
        %v3714 = vld [vmem:[%s387 + $0x458] sm:$0xff]
        %v3715 = vld [vmem:[%s387 + $0x460] sm:$0xff]
        %v3716 = vld [vmem:[%s387 + $0x468] sm:$0xff]
        %v3717 = vld [vmem:[%s387 + $0x470] sm:$0xff]
        %v3718 = vld [vmem:[%s387 + $0x478] sm:$0xff]
        %v3719 = vld [vmem:[%s387 + $0x480] sm:$0xff]
        %v3720 = vld [vmem:[%s387 + $0x488] sm:$0xff]
        %v3721 = vld [vmem:[%s387 + $0x490] sm:$0xff]
        %v3722 = vld [vmem:[%s387 + $0x498] sm:$0xff]
        %v3723 = vld [vmem:[%s387 + $0x4a0] sm:$0xff]
        %v3724 = vld [vmem:[%s387 + $0x4a8] sm:$0xff]
        %v3725 = vld [vmem:[%s387 + $0x4b0] sm:$0xff]
        %v3726 = vld [vmem:[%s387 + $0x4b8] sm:$0xff]
        %v3727 = vld [vmem:[%s387 + $0x4c0] sm:$0xff]
        %v3728 = vld [vmem:[%s387 + $0x4c8] sm:$0xff]
        %v3729 = vld [vmem:[%s387 + $0x4d0] sm:$0xff]
        %v3730 = vld [vmem:[%s387 + $0x4d8] sm:$0xff]
        %v3731 = vld [vmem:[%s387 + $0x4e0] sm:$0xff]
        %v3732 = vld [vmem:[%s387 + $0x4e8] sm:$0xff]
        %v3733 = vld [vmem:[%s387 + $0x4f0] sm:$0xff]
        %v3734 = vld [vmem:[%s387 + $0x4f8] sm:$0xff]
        %v3735 = vld [vmem:[%s387 + $0x500] sm:$0xff]
        %v3736 = vld [vmem:[%s387 + $0x508] sm:$0xff]
        %v3737 = vld [vmem:[%s387 + $0x510] sm:$0xff]
        %v3738 = vld [vmem:[%s387 + $0x518] sm:$0xff]
        %v3739 = vld [vmem:[%s387 + $0x520] sm:$0xff]
        %v3740 = vld [vmem:[%s387 + $0x528] sm:$0xff]
        %v3741 = vld [vmem:[%s387 + $0x530] sm:$0xff]
        %v3742 = vld [vmem:[%s387 + $0x538] sm:$0xff]
        %v3743 = vld [vmem:[%s387 + $0x540] sm:$0xff]
        %v3744 = vld [vmem:[%s387 + $0x548] sm:$0xff]
        %v3745 = vld [vmem:[%s387 + $0x550] sm:$0xff]
        %v3746 = vld [vmem:[%s387 + $0x558] sm:$0xff]
        %v3747 = vld [vmem:[%s387 + $0x560] sm:$0xff]
        %v3748 = vld [vmem:[%s387 + $0x568] sm:$0xff]
        %v3749 = vld [vmem:[%s387 + $0x570] sm:$0xff]
        %v3750 = vld [vmem:[%s387 + $0x578] sm:$0xff]
        %v3751 = vld [vmem:[%s387 + $0x580] sm:$0xff]
        %v3752 = vld [vmem:[%s387 + $0x588] sm:$0xff]
        %v3753 = vld [vmem:[%s387 + $0x590] sm:$0xff]
        %v3754 = vld [vmem:[%s387 + $0x598] sm:$0xff]
        %v3755 = vld [vmem:[%s387 + $0x5a0] sm:$0xff]
        %v3756 = vld [vmem:[%s387 + $0x5a8] sm:$0xff]
        %v3757 = vld [vmem:[%s387 + $0x5b0] sm:$0xff]
        %v3758 = vld [vmem:[%s387 + $0x5b8] sm:$0xff]
        %v3759 = vld [vmem:[%s387 + $0x5c0] sm:$0xff]
        %v3760 = vld [vmem:[%s387 + $0x5c8] sm:$0xff]
        %v3761 = vld [vmem:[%s387 + $0x5d0] sm:$0xff]
        %v3762 = vld [vmem:[%s387 + $0x5d8] sm:$0xff]
        %v3763 = vld [vmem:[%s387 + $0x5e0] sm:$0xff]
        %v3764 = vld [vmem:[%s387 + $0x5e8] sm:$0xff]
        %v3765 = vld [vmem:[%s387 + $0x5f0] sm:$0xff]
        %v3766 = vld [vmem:[%s387 + $0x5f8] sm:$0xff]
        %v3767 = vld [vmem:[%s387 + $0x600] sm:$0xff]
        %v3768 = vld [vmem:[%s387 + $0x608] sm:$0xff]
        %v3769 = vld [vmem:[%s387 + $0x610] sm:$0xff]
        %v3770 = vld [vmem:[%s387 + $0x618] sm:$0xff]
        %v3771 = vld [vmem:[%s387 + $0x620] sm:$0xff]
        %v3772 = vld [vmem:[%s387 + $0x628] sm:$0xff]
        %v3773 = vld [vmem:[%s387 + $0x630] sm:$0xff]
        %v3774 = vld [vmem:[%s387 + $0x638] sm:$0xff]
        %v3775 = vld [vmem:[%s387 + $0x640] sm:$0xff]
        %v3776 = vld [vmem:[%s387 + $0x648] sm:$0xff]
        %v3777 = vld [vmem:[%s387 + $0x650] sm:$0xff]
        %v3778 = vld [vmem:[%s387 + $0x658] sm:$0xff]
        %v3779 = vld [vmem:[%s387 + $0x660] sm:$0xff]
        %v3780 = vld [vmem:[%s387 + $0x668] sm:$0xff]
        %v3781 = vld [vmem:[%s387 + $0x670] sm:$0xff]
        %v3782 = vld [vmem:[%s387 + $0x678] sm:$0xff]
        %v3783 = vld [vmem:[%s387 + $0x680] sm:$0xff]
        %v3784 = vld [vmem:[%s387 + $0x688] sm:$0xff]
        %v3785 = vld [vmem:[%s387 + $0x690] sm:$0xff]
        %v3786 = vld [vmem:[%s387 + $0x698] sm:$0xff]
        %v3787 = vld [vmem:[%s387 + $0x6a0] sm:$0xff]
        %v3788 = vld [vmem:[%s387 + $0x6a8] sm:$0xff]
        %v3789 = vld [vmem:[%s387 + $0x6b0] sm:$0xff]
        %v3790 = vld [vmem:[%s387 + $0x6b8] sm:$0xff]
        %v3791 = vld [vmem:[%s387 + $0x6c0] sm:$0xff]
        %v3792 = vld [vmem:[%s387 + $0x6c8] sm:$0xff]
        %v3793 = vld [vmem:[%s387 + $0x6d0] sm:$0xff]
        %v3794 = vld [vmem:[%s387 + $0x6d8] sm:$0xff]
        %v3795 = vld [vmem:[%s387 + $0x6e0] sm:$0xff]
        %v3796 = vld [vmem:[%s387 + $0x6e8] sm:$0xff]
        %v3797 = vld [vmem:[%s387 + $0x6f0] sm:$0xff]
        %v3798 = vld [vmem:[%s387 + $0x6f8] sm:$0xff]
        %v3799 = vld [vmem:[%s387 + $0x700] sm:$0xff]
        %v3800 = vld [vmem:[%s387 + $0x708] sm:$0xff]
        %v3801 = vld [vmem:[%s387 + $0x710] sm:$0xff]
        %v3802 = vld [vmem:[%s387 + $0x718] sm:$0xff]
        %v3803 = vld [vmem:[%s387 + $0x720] sm:$0xff]
        %v3804 = vld [vmem:[%s387 + $0x728] sm:$0xff]
        %v3805 = vld [vmem:[%s387 + $0x730] sm:$0xff]
        %v3806 = vld [vmem:[%s387 + $0x738] sm:$0xff]
        %v3807 = vld [vmem:[%s387 + $0x740] sm:$0xff]
        %v3808 = vld [vmem:[%s387 + $0x748] sm:$0xff]
        %v3809 = vld [vmem:[%s387 + $0x750] sm:$0xff]
        %v3810 = vld [vmem:[%s387 + $0x758] sm:$0xff]
        %v3811 = vld [vmem:[%s387 + $0x760] sm:$0xff]
        %v3812 = vld [vmem:[%s387 + $0x768] sm:$0xff]
        %v3813 = vld [vmem:[%s387 + $0x770] sm:$0xff]
        %v3814 = vld [vmem:[%s387 + $0x778] sm:$0xff]
        %v3815 = vld [vmem:[%s387 + $0x780] sm:$0xff]
        %v3816 = vld [vmem:[%s387 + $0x788] sm:$0xff]
        %v3817 = vld [vmem:[%s387 + $0x790] sm:$0xff]
        %v3818 = vld [vmem:[%s387 + $0x798] sm:$0xff]
        %v3819 = vld [vmem:[%s387 + $0x7a0] sm:$0xff]
        %v3820 = vld [vmem:[%s387 + $0x7a8] sm:$0xff]
        %v3821 = vld [vmem:[%s387 + $0x7b0] sm:$0xff]
        %v3822 = vld [vmem:[%s387 + $0x7b8] sm:$0xff]
        %v3823 = vld [vmem:[%s387 + $0x7c0] sm:$0xff]
        %v3824 = vld [vmem:[%s387 + $0x7c8] sm:$0xff]
        %v3825 = vld [vmem:[%s387 + $0x7d0] sm:$0xff]
        %v3826 = vld [vmem:[%s387 + $0x7d8] sm:$0xff]
        %v3827 = vld [vmem:[%s387 + $0x7e0] sm:$0xff]
        %v3828 = vld [vmem:[%s387 + $0x7e8] sm:$0xff]
        %v3829 = vld [vmem:[%s387 + $0x7f0] sm:$0xff]
        %v3830 = vld [vmem:[%s387 + $0x7f8] sm:$0xff]
        %v3831 = vld [vmem:[%s387 + $0x800] sm:$0xff]
        %v3832 = vld [vmem:[%s387 + $0x808] sm:$0xff]
        %v3833 = vld [vmem:[%s387 + $0x810] sm:$0xff]
        %v3834 = vld [vmem:[%s387 + $0x818] sm:$0xff]
        %v3835 = vld [vmem:[%s387 + $0x820] sm:$0xff]
        %v3836 = vld [vmem:[%s387 + $0x828] sm:$0xff]
        %v3837 = vld [vmem:[%s387 + $0x830] sm:$0xff]
        %v3838 = vld [vmem:[%s387 + $0x838] sm:$0xff]
        %v3839 = vld [vmem:[%s387 + $0x840] sm:$0xff]
        %v3840 = vld [vmem:[%s387 + $0x848] sm:$0xff]
        %v3841 = vld [vmem:[%s387 + $0x850] sm:$0xff]
        %v3842 = vld [vmem:[%s387 + $0x858] sm:$0xff]
        %v3843 = vld [vmem:[%s387 + $0x860] sm:$0xff]
        %v3844 = vld [vmem:[%s387 + $0x868] sm:$0xff]
        %v3845 = vld [vmem:[%s387 + $0x870] sm:$0xff]
        %v3846 = vld [vmem:[%s387 + $0x878] sm:$0xff]
        %v3847 = vld [vmem:[%s387 + $0x880] sm:$0xff]
        %v3848 = vld [vmem:[%s387 + $0x888] sm:$0xff]
        %v3849 = vld [vmem:[%s387 + $0x890] sm:$0xff]
        %v3850 = vld [vmem:[%s387 + $0x898] sm:$0xff]
        %v3851 = vld [vmem:[%s387 + $0x8a0] sm:$0xff]
        %v3852 = vld [vmem:[%s387 + $0x8a8] sm:$0xff]
        %v3853 = vld [vmem:[%s387 + $0x8b0] sm:$0xff]
        %v3854 = vld [vmem:[%s387 + $0x8b8] sm:$0xff]
        %v3855 = vld [vmem:[%s387 + $0x8c0] sm:$0xff]
        %v3856 = vld [vmem:[%s387 + $0x8c8] sm:$0xff]
        %v3857 = vld [vmem:[%s387 + $0x8d0] sm:$0xff]
        %v3858 = vld [vmem:[%s387 + $0x8d8] sm:$0xff]
        %v3859 = vld [vmem:[%s387 + $0x8e0] sm:$0xff]
        %v3860 = vld [vmem:[%s387 + $0x8e8] sm:$0xff]
        %v3861 = vld [vmem:[%s387 + $0x8f0] sm:$0xff]
        %v3862 = vld [vmem:[%s387 + $0x8f8] sm:$0xff]
        %v3863 = vld [vmem:[%s387 + $0x900] sm:$0xff]
        %v3864 = vld [vmem:[%s387 + $0x908] sm:$0xff]
        %v3865 = vld [vmem:[%s387 + $0x910] sm:$0xff]
        %v3866 = vld [vmem:[%s387 + $0x918] sm:$0xff]
        %v3867 = vld [vmem:[%s387 + $0x920] sm:$0xff]
        %v3868 = vld [vmem:[%s387 + $0x928] sm:$0xff]
        %v3869 = vld [vmem:[%s387 + $0x930] sm:$0xff]
        %v3870 = vld [vmem:[%s387 + $0x938] sm:$0xff]
        %v3871 = vld [vmem:[%s387 + $0x940] sm:$0xff]
        %v3872 = vld [vmem:[%s387 + $0x948] sm:$0xff]
        %v3873 = vld [vmem:[%s387 + $0x950] sm:$0xff]
        %v3874 = vld [vmem:[%s387 + $0x958] sm:$0xff]
        %v3875 = vld [vmem:[%s387 + $0x960] sm:$0xff]
        %v3876 = vld [vmem:[%s387 + $0x968] sm:$0xff]
        %v3877 = vld [vmem:[%s387 + $0x970] sm:$0xff]
        %v3878 = vld [vmem:[%s387 + $0x978] sm:$0xff]
        %v3879 = vld [vmem:[%s387 + $0x980] sm:$0xff]
        %v3880 = vld [vmem:[%s387 + $0x988] sm:$0xff]
        %v3881 = vld [vmem:[%s387 + $0x990] sm:$0xff]
        %v3882 = vld [vmem:[%s387 + $0x998] sm:$0xff]
        %v3883 = vld [vmem:[%s387 + $0x9a0] sm:$0xff]
        %v3884 = vld [vmem:[%s387 + $0x9a8] sm:$0xff]
        %v3885 = vld [vmem:[%s387 + $0x9b0] sm:$0xff]
        %v3886 = vld [vmem:[%s387 + $0x9b8] sm:$0xff]
        %v3887 = vld [vmem:[%s387 + $0x9c0] sm:$0xff]
        %v3888 = vld [vmem:[%s387 + $0x9c8] sm:$0xff]
        %v3889 = vld [vmem:[%s387 + $0x9d0] sm:$0xff]
        %v3890 = vld [vmem:[%s387 + $0x9d8] sm:$0xff]
        %v3891 = vld [vmem:[%s387 + $0x9e0] sm:$0xff]
        %v3892 = vld [vmem:[%s387 + $0x9e8] sm:$0xff]
        %v3893 = vld [vmem:[%s387 + $0x9f0] sm:$0xff]
        %v3894 = vld [vmem:[%s387 + $0x9f8] sm:$0xff]
        %v3895 = vld [vmem:[%s387 + $0xa00] sm:$0xff]
        %v3896 = vld [vmem:[%s387 + $0xa08] sm:$0xff]
        %v3897 = vld [vmem:[%s387 + $0xa10] sm:$0xff]
        %v3898 = vld [vmem:[%s387 + $0xa18] sm:$0xff]
        %v3899 = vld [vmem:[%s387 + $0xa20] sm:$0xff]
        %v3900 = vld [vmem:[%s387 + $0xa28] sm:$0xff]
        %v3901 = vld [vmem:[%s387 + $0xa30] sm:$0xff]
        %v3902 = vld [vmem:[%s387 + $0xa38] sm:$0xff]
        %v3903 = vld [vmem:[%s387 + $0xa40] sm:$0xff]
        %v3904 = vld [vmem:[%s387 + $0xa48] sm:$0xff]
        %v3905 = vld [vmem:[%s387 + $0xa50] sm:$0xff]
        %v3906 = vld [vmem:[%s387 + $0xa58] sm:$0xff]
        %v3907 = vld [vmem:[%s387 + $0xa60] sm:$0xff]
        %v3908 = vld [vmem:[%s387 + $0xa68] sm:$0xff]
        %v3909 = vld [vmem:[%s387 + $0xa70] sm:$0xff]
        %v3910 = vld [vmem:[%s387 + $0xa78] sm:$0xff]
        %v3911 = vld [vmem:[%s387 + $0xa80] sm:$0xff]
        %v3912 = vld [vmem:[%s387 + $0xa88] sm:$0xff]
        %v3913 = vld [vmem:[%s387 + $0xa90] sm:$0xff]
        %v3914 = vld [vmem:[%s387 + $0xa98] sm:$0xff]
        %v3915 = vld [vmem:[%s387 + $0xaa0] sm:$0xff]
        %v3916 = vld [vmem:[%s387 + $0xaa8] sm:$0xff]
        %v3917 = vld [vmem:[%s387 + $0xab0] sm:$0xff]
        %v3918 = vld [vmem:[%s387 + $0xab8] sm:$0xff]
        %v3919 = vld [vmem:[%s387 + $0xac0] sm:$0xff]
        %v3920 = vld [vmem:[%s387 + $0xac8] sm:$0xff]
        %v3921 = vld [vmem:[%s387 + $0xad0] sm:$0xff]
        %v3922 = vld [vmem:[%s387 + $0xad8] sm:$0xff]
        %v3923 = vld [vmem:[%s387 + $0xae0] sm:$0xff]
        %v3924 = vld [vmem:[%s387 + $0xae8] sm:$0xff]
        %v3925 = vld [vmem:[%s387 + $0xaf0] sm:$0xff]
        %v3926 = vld [vmem:[%s387 + $0xaf8] sm:$0xff]
        %v3927 = vld [vmem:[%s387 + $0xb00] sm:$0xff]
        %v3928 = vld [vmem:[%s387 + $0xb08] sm:$0xff]
        %v3929 = vld [vmem:[%s387 + $0xb10] sm:$0xff]
        %v3930 = vld [vmem:[%s387 + $0xb18] sm:$0xff]
        %v3931 = vld [vmem:[%s387 + $0xb20] sm:$0xff]
        %v3932 = vld [vmem:[%s387 + $0xb28] sm:$0xff]
        %v3933 = vld [vmem:[%s387 + $0xb30] sm:$0xff]
        %v3934 = vld [vmem:[%s387 + $0xb38] sm:$0xff]
        %v3935 = vld [vmem:[%s387 + $0xb40] sm:$0xff]
        %v3936 = vld [vmem:[%s387 + $0xb48] sm:$0xff]
        %v3937 = vld [vmem:[%s387 + $0xb50] sm:$0xff]
        %v3938 = vld [vmem:[%s387 + $0xb58] sm:$0xff]
        %v3939 = vld [vmem:[%s387 + $0xb60] sm:$0xff]
        %v3940 = vld [vmem:[%s387 + $0xb68] sm:$0xff]
        %v3941 = vld [vmem:[%s387 + $0xb70] sm:$0xff]
        %v3942 = vld [vmem:[%s387 + $0xb78] sm:$0xff]
        %v3943 = vld [vmem:[%s387 + $0xb80] sm:$0xff]
        %v3944 = vld [vmem:[%s387 + $0xb88] sm:$0xff]
        %v3945 = vld [vmem:[%s387 + $0xb90] sm:$0xff]
        %v3946 = vld [vmem:[%s387 + $0xb98] sm:$0xff]
        %v3947 = vld [vmem:[%s387 + $0xba0] sm:$0xff]
        %v3948 = vld [vmem:[%s387 + $0xba8] sm:$0xff]
        %v3949 = vld [vmem:[%s387 + $0xbb0] sm:$0xff]
        %v3950 = vld [vmem:[%s387 + $0xbb8] sm:$0xff]
        %v3951 = vld [vmem:[%s387 + $0xbc0] sm:$0xff]
        %v3952 = vld [vmem:[%s387 + $0xbc8] sm:$0xff]
        %v3953 = vld [vmem:[%s387 + $0xbd0] sm:$0xff]
        %v3954 = vld [vmem:[%s387 + $0xbd8] sm:$0xff]
        %v3955 = vld [vmem:[%s387 + $0xbe0] sm:$0xff]
        %v3956 = vld [vmem:[%s387 + $0xbe8] sm:$0xff]
        %v3957 = vld [vmem:[%s387 + $0xbf0] sm:$0xff]
        %v3958 = vld [vmem:[%s387 + $0xbf8] sm:$0xff]
        %v3959 = vld [vmem:[%s387 + $0xc00] sm:$0xff]
        %v3960 = vld [vmem:[%s387 + $0xc08] sm:$0xff]
        %v3961 = vld [vmem:[%s387 + $0xc10] sm:$0xff]
        %v3962 = vld [vmem:[%s387 + $0xc18] sm:$0xff]
        %v3963 = vld [vmem:[%s387 + $0xc20] sm:$0xff]
        %v3964 = vld [vmem:[%s387 + $0xc28] sm:$0xff]
        %v3965 = vld [vmem:[%s387 + $0xc30] sm:$0xff]
        %v3966 = vld [vmem:[%s387 + $0xc38] sm:$0xff]
        %v3967 = vld [vmem:[%s387 + $0xc40] sm:$0xff]
        %v3968 = vld [vmem:[%s387 + $0xc48] sm:$0xff]
        %v3969 = vld [vmem:[%s387 + $0xc50] sm:$0xff]
        %v3970 = vld [vmem:[%s387 + $0xc58] sm:$0xff]
        %v3971 = vld [vmem:[%s387 + $0xc60] sm:$0xff]
        %v3972 = vld [vmem:[%s387 + $0xc68] sm:$0xff]
        %v3973 = vld [vmem:[%s387 + $0xc70] sm:$0xff]
        %v3974 = vld [vmem:[%s387 + $0xc78] sm:$0xff]
        %v3975 = vld [vmem:[%s387 + $0xc80] sm:$0xff]
        %v3976 = vld [vmem:[%s387 + $0xc88] sm:$0xff]
        %v3977 = vld [vmem:[%s387 + $0xc90] sm:$0xff]
        %v3978 = vld [vmem:[%s387 + $0xc98] sm:$0xff]
        %v3979 = vld [vmem:[%s387 + $0xca0] sm:$0xff]
        %v3980 = vld [vmem:[%s387 + $0xca8] sm:$0xff]
        %v3981 = vld [vmem:[%s387 + $0xcb0] sm:$0xff]
        %v3982 = vld [vmem:[%s387 + $0xcb8] sm:$0xff]
        %v3983 = vld [vmem:[%s387 + $0xcc0] sm:$0xff]
        %v3984 = vld [vmem:[%s387 + $0xcc8] sm:$0xff]
        %v3985 = vld [vmem:[%s387 + $0xcd0] sm:$0xff]
        %v3986 = vld [vmem:[%s387 + $0xcd8] sm:$0xff]
        %v3987 = vld [vmem:[%s387 + $0xce0] sm:$0xff]
        %v3988 = vld [vmem:[%s387 + $0xce8] sm:$0xff]
        %v3989 = vld [vmem:[%s387 + $0xcf0] sm:$0xff]
        %v3990 = vld [vmem:[%s387 + $0xcf8] sm:$0xff]
        %v3991 = vld [vmem:[%s387 + $0xd00] sm:$0xff]
        %v3992 = vld [vmem:[%s387 + $0xd08] sm:$0xff]
        %v3993 = vld [vmem:[%s387 + $0xd10] sm:$0xff]
        %v3994 = vld [vmem:[%s387 + $0xd18] sm:$0xff]
        %v3995 = vld [vmem:[%s387 + $0xd20] sm:$0xff]
        %v3996 = vld [vmem:[%s387 + $0xd28] sm:$0xff]
        %v3997 = vld [vmem:[%s387 + $0xd30] sm:$0xff]
        %v3998 = vld [vmem:[%s387 + $0xd38] sm:$0xff]
        %v3999 = vld [vmem:[%s387 + $0xd40] sm:$0xff]
        %v4000 = vld [vmem:[%s387 + $0xd48] sm:$0xff]
        %v4001 = vld [vmem:[%s387 + $0xd50] sm:$0xff]
        %v4002 = vld [vmem:[%s387 + $0xd58] sm:$0xff]
        %v4003 = vld [vmem:[%s387 + $0xd60] sm:$0xff]
        %v4004 = vld [vmem:[%s387 + $0xd68] sm:$0xff]
        %v4005 = vld [vmem:[%s387 + $0xd70] sm:$0xff]
        %v4006 = vld [vmem:[%s387 + $0xd78] sm:$0xff]
        %v4007 = vld [vmem:[%s387 + $0xd80] sm:$0xff]
        %v4008 = vld [vmem:[%s387 + $0xd88] sm:$0xff]
        %v4009 = vld [vmem:[%s387 + $0xd90] sm:$0xff]
        %v4010 = vld [vmem:[%s387 + $0xd98] sm:$0xff]
        %v4011 = vld [vmem:[%s387 + $0xda0] sm:$0xff]
        %v4012 = vld [vmem:[%s387 + $0xda8] sm:$0xff]
        %v4013 = vld [vmem:[%s387 + $0xdb0] sm:$0xff]
        %v4014 = vld [vmem:[%s387 + $0xdb8] sm:$0xff]
        %v4015 = vld [vmem:[%s387 + $0xdc0] sm:$0xff]
        %v4016 = vld [vmem:[%s387 + $0xdc8] sm:$0xff]
        %v4017 = vld [vmem:[%s387 + $0xdd0] sm:$0xff]
        %v4018 = vld [vmem:[%s387 + $0xdd8] sm:$0xff]
        %v4019 = vld [vmem:[%s387 + $0xde0] sm:$0xff]
        %v4020 = vld [vmem:[%s387 + $0xde8] sm:$0xff]
        %v4021 = vld [vmem:[%s387 + $0xdf0] sm:$0xff]
        %v4022 = vld [vmem:[%s387 + $0xdf8] sm:$0xff]
        %v4023 = vld [vmem:[%s387 + $0xe00] sm:$0xff]
        %v4024 = vld [vmem:[%s387 + $0xe08] sm:$0xff]
        %v4025 = vld [vmem:[%s387 + $0xe10] sm:$0xff]
        %v4026 = vld [vmem:[%s387 + $0xe18] sm:$0xff]
        %v4027 = vld [vmem:[%s387 + $0xe20] sm:$0xff]
        %v4028 = vld [vmem:[%s387 + $0xe28] sm:$0xff]
        %v4029 = vld [vmem:[%s387 + $0xe30] sm:$0xff]
        %v4030 = vld [vmem:[%s387 + $0xe38] sm:$0xff]
        %v4031 = vld [vmem:[%s387 + $0xe40] sm:$0xff]
        %v4032 = vld [vmem:[%s387 + $0xe48] sm:$0xff]
        %v4033 = vld [vmem:[%s387 + $0xe50] sm:$0xff]
        %v4034 = vld [vmem:[%s387 + $0xe58] sm:$0xff]
        %v4035 = vld [vmem:[%s387 + $0xe60] sm:$0xff]
        %v4036 = vld [vmem:[%s387 + $0xe68] sm:$0xff]
        %v4037 = vld [vmem:[%s387 + $0xe70] sm:$0xff]
        %v4038 = vld [vmem:[%s387 + $0xe78] sm:$0xff]
        %v4039 = vld [vmem:[%s387 + $0xe80] sm:$0xff]
        %v4040 = vld [vmem:[%s387 + $0xe88] sm:$0xff]
        %v4041 = vld [vmem:[%s387 + $0xe90] sm:$0xff]
        %v4042 = vld [vmem:[%s387 + $0xe98] sm:$0xff]
        %v4043 = vld [vmem:[%s387 + $0xea0] sm:$0xff]
        %v4044 = vld [vmem:[%s387 + $0xea8] sm:$0xff]
        %v4045 = vld [vmem:[%s387 + $0xeb0] sm:$0xff]
        %v4046 = vld [vmem:[%s387 + $0xeb8] sm:$0xff]
        %v4047 = vld [vmem:[%s387 + $0xec0] sm:$0xff]
        %v4048 = vld [vmem:[%s387 + $0xec8] sm:$0xff]
        %v4049 = vld [vmem:[%s387 + $0xed0] sm:$0xff]
        %v4050 = vld [vmem:[%s387 + $0xed8] sm:$0xff]
        %v4051 = vld [vmem:[%s387 + $0xee0] sm:$0xff]
        %v4052 = vld [vmem:[%s387 + $0xee8] sm:$0xff]
        %v4053 = vld [vmem:[%s387 + $0xef0] sm:$0xff]
        %v4054 = vld [vmem:[%s387 + $0xef8] sm:$0xff]
        %v4055 = vld [vmem:[%s387 + $0xf00] sm:$0xff]
        %v4056 = vld [vmem:[%s387 + $0xf08] sm:$0xff]
        %v4057 = vld [vmem:[%s387 + $0xf10] sm:$0xff]
        %v4058 = vld [vmem:[%s387 + $0xf18] sm:$0xff]
        %v4059 = vld [vmem:[%s387 + $0xf20] sm:$0xff]
        %v4060 = vld [vmem:[%s387 + $0xf28] sm:$0xff]
        %v4061 = vld [vmem:[%s387 + $0xf30] sm:$0xff]
        %v4062 = vld [vmem:[%s387 + $0xf38] sm:$0xff]
        %v4063 = vld [vmem:[%s387 + $0xf40] sm:$0xff]
        %v4064 = vld [vmem:[%s387 + $0xf48] sm:$0xff]
        %v4065 = vld [vmem:[%s387 + $0xf50] sm:$0xff]
        %v4066 = vld [vmem:[%s387 + $0xf58] sm:$0xff]
        %v4067 = vld [vmem:[%s387 + $0xf60] sm:$0xff]
        %v4068 = vld [vmem:[%s387 + $0xf68] sm:$0xff]
        %v4069 = vld [vmem:[%s387 + $0xf70] sm:$0xff]
        %v4070 = vld [vmem:[%s387 + $0xf78] sm:$0xff]
        %v4071 = vld [vmem:[%s387 + $0xf80] sm:$0xff]
        %v4072 = vld [vmem:[%s387 + $0xf88] sm:$0xff]
        %v4073 = vld [vmem:[%s387 + $0xf90] sm:$0xff]
        %v4074 = vld [vmem:[%s387 + $0xf98] sm:$0xff]
        %v4075 = vld [vmem:[%s387 + $0xfa0] sm:$0xff]
        %v4076 = vld [vmem:[%s387 + $0xfa8] sm:$0xff]
        %v4077 = vld [vmem:[%s387 + $0xfb0] sm:$0xff]
        %v4078 = vld [vmem:[%s387 + $0xfb8] sm:$0xff]
        %v4079 = vld [vmem:[%s387 + $0xfc0] sm:$0xff]
        %v4080 = vld [vmem:[%s387 + $0xfc8] sm:$0xff]
        %v4081 = vld [vmem:[%s387 + $0xfd0] sm:$0xff]
        %v4082 = vld [vmem:[%s387 + $0xfd8] sm:$0xff]
        %v4083 = vld [vmem:[%s387 + $0xfe0] sm:$0xff]
        %v4084 = vld [vmem:[%s387 + $0xfe8] sm:$0xff]
        %v4085 = vld [vmem:[%s387 + $0xff0] sm:$0xff]
        %v4086 = vld [vmem:[%s387 + $0xff8] sm:$0xff]
        %v4087 = vld [vmem:[%s387 + $0x1000] sm:$0xff]
        %v4088 = vld [vmem:[%s387 + $0x1008] sm:$0xff]
        %v4089 = vld [vmem:[%s387 + $0x1010] sm:$0xff]
        %v4090 = vld [vmem:[%s387 + $0x1018] sm:$0xff]
        %v4091 = vld [vmem:[%s387 + $0x1020] sm:$0xff]
        %v4092 = vld [vmem:[%s387 + $0x1028] sm:$0xff]
        %v4093 = vld [vmem:[%s387 + $0x1030] sm:$0xff]
        %v4094 = vld [vmem:[%s387 + $0x1038] sm:$0xff]
        %v4095 = vld [vmem:[%s387 + $0x1040] sm:$0xff]
        %v4096 = vld [vmem:[%s387 + $0x1048] sm:$0xff]
        %v4097 = vld [vmem:[%s387 + $0x1050] sm:$0xff]
        %v4098 = vld [vmem:[%s387 + $0x1058] sm:$0xff]
        %v4099 = vld [vmem:[%s387 + $0x1060] sm:$0xff]
        %v4100 = vld [vmem:[%s387 + $0x1068] sm:$0xff]
        %v4101 = vld [vmem:[%s387 + $0x1070] sm:$0xff]
        %v4102 = vld [vmem:[%s387 + $0x1078] sm:$0xff]
        %v4103 = vld [vmem:[%s387 + $0x1080] sm:$0xff]
        %v4104 = vld [vmem:[%s387 + $0x1088] sm:$0xff]
        %v4105 = vld [vmem:[%s387 + $0x1090] sm:$0xff]
        %v4106 = vld [vmem:[%s387 + $0x1098] sm:$0xff]
        %v4107 = vld [vmem:[%s387 + $0x10a0] sm:$0xff]
        %v4108 = vld [vmem:[%s387 + $0x10a8] sm:$0xff]
        %v4109 = vld [vmem:[%s387 + $0x10b0] sm:$0xff]
        %v4110 = vld [vmem:[%s387 + $0x10b8] sm:$0xff]
        %v4111 = vld [vmem:[%s387 + $0x10c0] sm:$0xff]
        %v4112 = vld [vmem:[%s387 + $0x10c8] sm:$0xff]
        %v4113 = vld [vmem:[%s387 + $0x10d0] sm:$0xff]
        %v4114 = vld [vmem:[%s387 + $0x10d8] sm:$0xff]
        %v4115 = vld [vmem:[%s387 + $0x10e0] sm:$0xff]
        %v4116 = vld [vmem:[%s387 + $0x10e8] sm:$0xff]
        %v4117 = vld [vmem:[%s387 + $0x10f0] sm:$0xff]
        %v4118 = vld [vmem:[%s387 + $0x10f8] sm:$0xff]
        %v4119 = vld [vmem:[%s387 + $0x1100] sm:$0xff]
        %v4120 = vld [vmem:[%s387 + $0x1108] sm:$0xff]
        %v4121 = vld [vmem:[%s387 + $0x1110] sm:$0xff]
        %v4122 = vld [vmem:[%s387 + $0x1118] sm:$0xff]
        %v4123 = vld [vmem:[%s387 + $0x1120] sm:$0xff]
        %v4124 = vld [vmem:[%s387 + $0x1128] sm:$0xff]
        %v4125 = vld [vmem:[%s387 + $0x1130] sm:$0xff]
        %v4126 = vld [vmem:[%s387 + $0x1138] sm:$0xff]
        %v4127 = vld [vmem:[%s387 + $0x1140] sm:$0xff]
        %v4128 = vld [vmem:[%s387 + $0x1148] sm:$0xff]
        %v4129 = vld [vmem:[%s387 + $0x1150] sm:$0xff]
        %v4130 = vld [vmem:[%s387 + $0x1158] sm:$0xff]
        %v4131 = vld [vmem:[%s387 + $0x1160] sm:$0xff]
        %v4132 = vld [vmem:[%s387 + $0x1168] sm:$0xff]
        %v4133 = vld [vmem:[%s387 + $0x1170] sm:$0xff]
        %v4134 = vld [vmem:[%s387 + $0x1178] sm:$0xff]
        %v4135 = vld [vmem:[%s387 + $0x1180] sm:$0xff]
        %v4136 = vld [vmem:[%s387 + $0x1188] sm:$0xff]
        %v4137 = vld [vmem:[%s387 + $0x1190] sm:$0xff]
        %v4138 = vld [vmem:[%s387 + $0x1198] sm:$0xff]
        %v4139 = vld [vmem:[%s387 + $0x11a0] sm:$0xff]
        %v4140 = vld [vmem:[%s387 + $0x11a8] sm:$0xff]
        %v4141 = vld [vmem:[%s387 + $0x11b0] sm:$0xff]
        %v4142 = vld [vmem:[%s387 + $0x11b8] sm:$0xff]
        %v4143 = vld [vmem:[%s387 + $0x11c0] sm:$0xff]
        %v4144 = vld [vmem:[%s387 + $0x11c8] sm:$0xff]
        %v4145 = vld [vmem:[%s387 + $0x11d0] sm:$0xff]
        %v4146 = vld [vmem:[%s387 + $0x11d8] sm:$0xff]
        %v4147 = vld [vmem:[%s387 + $0x11e0] sm:$0xff]
        %v4148 = vld [vmem:[%s387 + $0x11e8] sm:$0xff]
        %v4149 = vld [vmem:[%s387 + $0x11f0] sm:$0xff]
        %v4150 = vld [vmem:[%s387 + $0x11f8] sm:$0xff]
        %v4151 = vld [vmem:[%s387 + $0x1200] sm:$0xff]
        %v4152 = vld [vmem:[%s387 + $0x1208] sm:$0xff]
        %v4153 = vld [vmem:[%s387 + $0x1210] sm:$0xff]
        %v4154 = vld [vmem:[%s387 + $0x1218] sm:$0xff]
        %v4155 = vld [vmem:[%s387 + $0x1220] sm:$0xff]
        %v4156 = vld [vmem:[%s387 + $0x1228] sm:$0xff]
        %v4157 = vld [vmem:[%s387 + $0x1230] sm:$0xff]
        %v4158 = vld [vmem:[%s387 + $0x1238] sm:$0xff]
        %v4159 = vld [vmem:[%s387 + $0x1240] sm:$0xff]
        %v4160 = vld [vmem:[%s387 + $0x1248] sm:$0xff]
        %v4161 = vld [vmem:[%s387 + $0x1250] sm:$0xff]
        %v4162 = vld [vmem:[%s387 + $0x1258] sm:$0xff]
        %v4163 = vld [vmem:[%s387 + $0x1260] sm:$0xff]
        %v4164 = vld [vmem:[%s387 + $0x1268] sm:$0xff]
        %v4165 = vld [vmem:[%s387 + $0x1270] sm:$0xff]
        %v4166 = vld [vmem:[%s387 + $0x1278] sm:$0xff]
        %v4167 = vld [vmem:[%s387 + $0x1280] sm:$0xff]
        %v4168 = vld [vmem:[%s387 + $0x1288] sm:$0xff]
        %v4169 = vld [vmem:[%s387 + $0x1290] sm:$0xff]
        %v4170 = vld [vmem:[%s387 + $0x1298] sm:$0xff]
        %v4171 = vld [vmem:[%s387 + $0x12a0] sm:$0xff]
        %v4172 = vld [vmem:[%s387 + $0x12a8] sm:$0xff]
        %v4173 = vld [vmem:[%s387 + $0x12b0] sm:$0xff]
        %v4174 = vld [vmem:[%s387 + $0x12b8] sm:$0xff]
        %v4175 = vld [vmem:[%s387 + $0x12c0] sm:$0xff]
        %v4176 = vld [vmem:[%s387 + $0x12c8] sm:$0xff]
        %v4177 = vld [vmem:[%s387 + $0x12d0] sm:$0xff]
        %v4178 = vld [vmem:[%s387 + $0x12d8] sm:$0xff]
        %v4179 = vld [vmem:[%s387 + $0x12e0] sm:$0xff]
        %v4180 = vld [vmem:[%s387 + $0x12e8] sm:$0xff]
        %v4181 = vld [vmem:[%s387 + $0x12f0] sm:$0xff]
        %v4182 = vld [vmem:[%s387 + $0x12f8] sm:$0xff]
        %v4183 = vld [vmem:[%s387 + $0x1300] sm:$0xff]
        %v4184 = vld [vmem:[%s387 + $0x1308] sm:$0xff]
        %v4185 = vld [vmem:[%s387 + $0x1310] sm:$0xff]
        %v4186 = vld [vmem:[%s387 + $0x1318] sm:$0xff]
        %v4187 = vld [vmem:[%s387 + $0x1320] sm:$0xff]
        %v4188 = vld [vmem:[%s387 + $0x1328] sm:$0xff]
        %v4189 = vld [vmem:[%s387 + $0x1330] sm:$0xff]
        %v4190 = vld [vmem:[%s387 + $0x1338] sm:$0xff]
        %v4191 = vld [vmem:[%s387 + $0x1340] sm:$0xff]
        %v4192 = vld [vmem:[%s387 + $0x1348] sm:$0xff]
        %v4193 = vld [vmem:[%s387 + $0x1350] sm:$0xff]
        %v4194 = vld [vmem:[%s387 + $0x1358] sm:$0xff]
        %v4195 = vld [vmem:[%s387 + $0x1360] sm:$0xff]
        %v4196 = vld [vmem:[%s387 + $0x1368] sm:$0xff]
        %v4197 = vld [vmem:[%s387 + $0x1370] sm:$0xff]
        %v4198 = vld [vmem:[%s387 + $0x1378] sm:$0xff]
        %v4199 = vld [vmem:[%s387 + $0x1380] sm:$0xff]
        %v4200 = vld [vmem:[%s387 + $0x1388] sm:$0xff]
        %v4201 = vld [vmem:[%s387 + $0x1390] sm:$0xff]
        %v4202 = vld [vmem:[%s387 + $0x1398] sm:$0xff]
        %v4203 = vld [vmem:[%s387 + $0x13a0] sm:$0xff]
        %v4204 = vld [vmem:[%s387 + $0x13a8] sm:$0xff]
        %v4205 = vld [vmem:[%s387 + $0x13b0] sm:$0xff]
        %v4206 = vld [vmem:[%s387 + $0x13b8] sm:$0xff]
        %v4207 = vld [vmem:[%s387 + $0x13c0] sm:$0xff]
        %v4208 = vld [vmem:[%s387 + $0x13c8] sm:$0xff]
        %v4209 = vld [vmem:[%s387 + $0x13d0] sm:$0xff]
        %v4210 = vld [vmem:[%s387 + $0x13d8] sm:$0xff]
        %v4211 = vld [vmem:[%s387 + $0x13e0] sm:$0xff]
        %v4212 = vld [vmem:[%s387 + $0x13e8] sm:$0xff]
        %v4213 = vld [vmem:[%s387 + $0x13f0] sm:$0xff]
        %v4214 = vld [vmem:[%s387 + $0x13f8] sm:$0xff]
        %v4215 = vld [vmem:[%s387 + $0x1400] sm:$0xff]
        %v4216 = vld [vmem:[%s387 + $0x1408] sm:$0xff]
        %v4217 = vld [vmem:[%s387 + $0x1410] sm:$0xff]
        %v4218 = vld [vmem:[%s387 + $0x1418] sm:$0xff]
        %v4219 = vld [vmem:[%s387 + $0x1420] sm:$0xff]
        %v4220 = vld [vmem:[%s387 + $0x1428] sm:$0xff]
        %v4221 = vld [vmem:[%s387 + $0x1430] sm:$0xff]
        %v4222 = vld [vmem:[%s387 + $0x1438] sm:$0xff]
        %v4223 = vld [vmem:[%s387 + $0x1440] sm:$0xff]
        %v4224 = vld [vmem:[%s387 + $0x1448] sm:$0xff]
        %v4225 = vld [vmem:[%s387 + $0x1450] sm:$0xff]
        %v4226 = vld [vmem:[%s387 + $0x1458] sm:$0xff]
        %v4227 = vld [vmem:[%s387 + $0x1460] sm:$0xff]
        %v4228 = vld [vmem:[%s387 + $0x1468] sm:$0xff]
        %v4229 = vld [vmem:[%s387 + $0x1470] sm:$0xff]
        %v4230 = vld [vmem:[%s387 + $0x1478] sm:$0xff]
        %v4231 = vld [vmem:[%s387 + $0x1480] sm:$0xff]
        %v4232 = vld [vmem:[%s387 + $0x1488] sm:$0xff]
        %v4233 = vld [vmem:[%s387 + $0x1490] sm:$0xff]
        %v4234 = vld [vmem:[%s387 + $0x1498] sm:$0xff]
        %v4235 = vld [vmem:[%s387 + $0x14a0] sm:$0xff]
        %v4236 = vld [vmem:[%s387 + $0x14a8] sm:$0xff]
        %v4237 = vld [vmem:[%s387 + $0x14b0] sm:$0xff]
        %v4238 = vld [vmem:[%s387 + $0x14b8] sm:$0xff]
        %v4239 = vld [vmem:[%s387 + $0x14c0] sm:$0xff]
        %v4240 = vld [vmem:[%s387 + $0x14c8] sm:$0xff]
        %v4241 = vld [vmem:[%s387 + $0x14d0] sm:$0xff]
        %v4242 = vld [vmem:[%s387 + $0x14d8] sm:$0xff]
        %v4243 = vld [vmem:[%s387 + $0x14e0] sm:$0xff]
        %v4244 = vld [vmem:[%s387 + $0x14e8] sm:$0xff]
        %v4245 = vld [vmem:[%s387 + $0x14f0] sm:$0xff]
        %v4246 = vld [vmem:[%s387 + $0x14f8] sm:$0xff]
        %v4247 = vld [vmem:[%s387 + $0x1500] sm:$0xff]
        %v4248 = vld [vmem:[%s387 + $0x1508] sm:$0xff]
        %v4249 = vld [vmem:[%s387 + $0x1510] sm:$0xff]
        %v4250 = vld [vmem:[%s387 + $0x1518] sm:$0xff]
        %v4251 = vld [vmem:[%s387 + $0x1520] sm:$0xff]
        %v4252 = vld [vmem:[%s387 + $0x1528] sm:$0xff]
        %v4253 = vld [vmem:[%s387 + $0x1530] sm:$0xff]
        %v4254 = vld [vmem:[%s387 + $0x1538] sm:$0xff]
        %v4255 = vld [vmem:[%s387 + $0x1540] sm:$0xff]
        %v4256 = vld [vmem:[%s387 + $0x1548] sm:$0xff]
        %v4257 = vld [vmem:[%s387 + $0x1550] sm:$0xff]
        %v4258 = vld [vmem:[%s387 + $0x1558] sm:$0xff]
        %v4259 = vld [vmem:[%s387 + $0x1560] sm:$0xff]
        %v4260 = vld [vmem:[%s387 + $0x1568] sm:$0xff]
        %v4261 = vld [vmem:[%s387 + $0x1570] sm:$0xff]
        %v4262 = vld [vmem:[%s387 + $0x1578] sm:$0xff]
        %v4263 = vld [vmem:[%s387 + $0x1580] sm:$0xff]
        %v4264 = vld [vmem:[%s387 + $0x1588] sm:$0xff]
        %v4265 = vld [vmem:[%s387 + $0x1590] sm:$0xff]
        %v4266 = vld [vmem:[%s387 + $0x1598] sm:$0xff]
        %v4267 = vld [vmem:[%s387 + $0x15a0] sm:$0xff]
        %v4268 = vld [vmem:[%s387 + $0x15a8] sm:$0xff]
        %v4269 = vld [vmem:[%s387 + $0x15b0] sm:$0xff]
        %v4270 = vld [vmem:[%s387 + $0x15b8] sm:$0xff]
        %v4271 = vld [vmem:[%s387 + $0x15c0] sm:$0xff]
        %v4272 = vld [vmem:[%s387 + $0x15c8] sm:$0xff]
        %v4273 = vld [vmem:[%s387 + $0x15d0] sm:$0xff]
        %v4274 = vld [vmem:[%s387 + $0x15d8] sm:$0xff]
        %v4275 = vld [vmem:[%s387 + $0x15e0] sm:$0xff]
        %v4276 = vld [vmem:[%s387 + $0x15e8] sm:$0xff]
        %v4277 = vld [vmem:[%s387 + $0x15f0] sm:$0xff]
        %v4278 = vld [vmem:[%s387 + $0x15f8] sm:$0xff]
        %v4279 = vld [vmem:[%s387 + $0x1600] sm:$0xff]
        %v4280 = vld [vmem:[%s387 + $0x1608] sm:$0xff]
        %v4281 = vld [vmem:[%s387 + $0x1610] sm:$0xff]
        %v4282 = vld [vmem:[%s387 + $0x1618] sm:$0xff]
        %v4283 = vld [vmem:[%s387 + $0x1620] sm:$0xff]
        %v4284 = vld [vmem:[%s387 + $0x1628] sm:$0xff]
        %v4285 = vld [vmem:[%s387 + $0x1630] sm:$0xff]
        %v4286 = vld [vmem:[%s387 + $0x1638] sm:$0xff]
        %v4287 = vld [vmem:[%s387 + $0x1640] sm:$0xff]
        %v4288 = vld [vmem:[%s387 + $0x1648] sm:$0xff]
        %v4289 = vld [vmem:[%s387 + $0x1650] sm:$0xff]
        %v4290 = vld [vmem:[%s387 + $0x1658] sm:$0xff]
        %v4291 = vld [vmem:[%s387 + $0x1660] sm:$0xff]
        %v4292 = vld [vmem:[%s387 + $0x1668] sm:$0xff]
        %v4293 = vld [vmem:[%s387 + $0x1670] sm:$0xff]
        %v4294 = vld [vmem:[%s387 + $0x1678] sm:$0xff]
        %v4295 = vld [vmem:[%s387 + $0x1680] sm:$0xff]
        %v4296 = vld [vmem:[%s387 + $0x1688] sm:$0xff]
        %v4297 = vld [vmem:[%s387 + $0x1690] sm:$0xff]
        %v4298 = vld [vmem:[%s387 + $0x1698] sm:$0xff]
        %v4299 = vld [vmem:[%s387 + $0x16a0] sm:$0xff]
        %v4300 = vld [vmem:[%s387 + $0x16a8] sm:$0xff]
        %v4301 = vld [vmem:[%s387 + $0x16b0] sm:$0xff]
        %v4302 = vld [vmem:[%s387 + $0x16b8] sm:$0xff]
        %v4303 = vld [vmem:[%s387 + $0x16c0] sm:$0xff]
        %v4304 = vld [vmem:[%s387 + $0x16c8] sm:$0xff]
        %v4305 = vld [vmem:[%s387 + $0x16d0] sm:$0xff]
        %v4306 = vld [vmem:[%s387 + $0x16d8] sm:$0xff]
        %v4307 = vld [vmem:[%s387 + $0x16e0] sm:$0xff]
        %v4308 = vld [vmem:[%s387 + $0x16e8] sm:$0xff]
        %v4309 = vld [vmem:[%s387 + $0x16f0] sm:$0xff]
        %v4310 = vld [vmem:[%s387 + $0x16f8] sm:$0xff]
        %v4311 = vld [vmem:[%s387 + $0x1700] sm:$0xff]
        %v4312 = vld [vmem:[%s387 + $0x1708] sm:$0xff]
        %v4313 = vld [vmem:[%s387 + $0x1710] sm:$0xff]
        %v4314 = vld [vmem:[%s387 + $0x1718] sm:$0xff]
        %v4315 = vld [vmem:[%s387 + $0x1720] sm:$0xff]
        %v4316 = vld [vmem:[%s387 + $0x1728] sm:$0xff]
        %v4317 = vld [vmem:[%s387 + $0x1730] sm:$0xff]
        %v4318 = vld [vmem:[%s387 + $0x1738] sm:$0xff]
        %v4319 = vld [vmem:[%s387 + $0x1740] sm:$0xff]
        %v4320 = vld [vmem:[%s387 + $0x1748] sm:$0xff]
        %v4321 = vld [vmem:[%s387 + $0x1750] sm:$0xff]
        %v4322 = vld [vmem:[%s387 + $0x1758] sm:$0xff]
        %v4323 = vld [vmem:[%s387 + $0x1760] sm:$0xff]
        %v4324 = vld [vmem:[%s387 + $0x1768] sm:$0xff]
        %v4325 = vld [vmem:[%s387 + $0x1770] sm:$0xff]
        %v4326 = vld [vmem:[%s387 + $0x1778] sm:$0xff]
        %v4327 = vld [vmem:[%s387 + $0x1780] sm:$0xff]
        %v4328 = vld [vmem:[%s387 + $0x1788] sm:$0xff]
        %v4329 = vld [vmem:[%s387 + $0x1790] sm:$0xff]
        %v4330 = vld [vmem:[%s387 + $0x1798] sm:$0xff]
        %v4331 = vld [vmem:[%s387 + $0x17a0] sm:$0xff]
        %v4332 = vld [vmem:[%s387 + $0x17a8] sm:$0xff]
        %v4333 = vld [vmem:[%s387 + $0x17b0] sm:$0xff]
        %v4334 = vld [vmem:[%s387 + $0x17b8] sm:$0xff]
        %v4335 = vld [vmem:[%s387 + $0x17c0] sm:$0xff]
        %v4336 = vld [vmem:[%s387 + $0x17c8] sm:$0xff]
        %v4337 = vld [vmem:[%s387 + $0x17d0] sm:$0xff]
        %v4338 = vld [vmem:[%s387 + $0x17d8] sm:$0xff]
        %v4339 = vld [vmem:[%s387 + $0x17e0] sm:$0xff]
        %v4340 = vld [vmem:[%s387 + $0x17e8] sm:$0xff]
        %v4341 = vld [vmem:[%s387 + $0x17f0] sm:$0xff]
        %v4342 = vld [vmem:[%s387 + $0x17f8] sm:$0xff]
        %v4343 = vld [vmem:[%s387 + $0x1800] sm:$0xff]
        %v4344 = vld [vmem:[%s387 + $0x1808] sm:$0xff]
        %v4345 = vld [vmem:[%s387 + $0x1810] sm:$0xff]
        %v4346 = vld [vmem:[%s387 + $0x1818] sm:$0xff]
        %v4347 = vld [vmem:[%s387 + $0x1820] sm:$0xff]
        %v4348 = vld [vmem:[%s387 + $0x1828] sm:$0xff]
        %v4349 = vld [vmem:[%s387 + $0x1830] sm:$0xff]
        %v4350 = vld [vmem:[%s387 + $0x1838] sm:$0xff]
        %v4351 = vld [vmem:[%s387 + $0x1840] sm:$0xff]
        %v4352 = vld [vmem:[%s387 + $0x1848] sm:$0xff]
        %v4353 = vld [vmem:[%s387 + $0x1850] sm:$0xff]
        %v4354 = vld [vmem:[%s387 + $0x1858] sm:$0xff]
        %v4355 = vld [vmem:[%s387 + $0x1860] sm:$0xff]
        %v4356 = vld [vmem:[%s387 + $0x1868] sm:$0xff]
        %v4357 = vld [vmem:[%s387 + $0x1870] sm:$0xff]
        %v4358 = vld [vmem:[%s387 + $0x1878] sm:$0xff]
        %v4359 = vld [vmem:[%s387 + $0x1880] sm:$0xff]
        %v4360 = vld [vmem:[%s387 + $0x1888] sm:$0xff]
        %v4361 = vld [vmem:[%s387 + $0x1890] sm:$0xff]
        %v4362 = vld [vmem:[%s387 + $0x1898] sm:$0xff]
        %v4363 = vld [vmem:[%s387 + $0x18a0] sm:$0xff]
        %v4364 = vld [vmem:[%s387 + $0x18a8] sm:$0xff]
        %v4365 = vld [vmem:[%s387 + $0x18b0] sm:$0xff]
        %v4366 = vld [vmem:[%s387 + $0x18b8] sm:$0xff]
        %v4367 = vld [vmem:[%s387 + $0x18c0] sm:$0xff]
        %v4368 = vld [vmem:[%s387 + $0x18c8] sm:$0xff]
        %v4369 = vld [vmem:[%s387 + $0x18d0] sm:$0xff]
        %v4370 = vld [vmem:[%s387 + $0x18d8] sm:$0xff]
        %v4371 = vld [vmem:[%s387 + $0x18e0] sm:$0xff]
        %v4372 = vld [vmem:[%s387 + $0x18e8] sm:$0xff]
        %v4373 = vld [vmem:[%s387 + $0x18f0] sm:$0xff]
        %v4374 = vld [vmem:[%s387 + $0x18f8] sm:$0xff]
        %v4375 = vld [vmem:[%s387 + $0x1900] sm:$0xff]
        %v4376 = vld [vmem:[%s387 + $0x1908] sm:$0xff]
        %v4377 = vld [vmem:[%s387 + $0x1910] sm:$0xff]
        %v4378 = vld [vmem:[%s387 + $0x1918] sm:$0xff]
        %v4379 = vld [vmem:[%s387 + $0x1920] sm:$0xff]
        %v4380 = vld [vmem:[%s387 + $0x1928] sm:$0xff]
        %v4381 = vld [vmem:[%s387 + $0x1930] sm:$0xff]
        %v4382 = vld [vmem:[%s387 + $0x1938] sm:$0xff]
        %v4383 = vld [vmem:[%s387 + $0x1940] sm:$0xff]
        %v4384 = vld [vmem:[%s387 + $0x1948] sm:$0xff]
        %v4385 = vld [vmem:[%s387 + $0x1950] sm:$0xff]
        %v4386 = vld [vmem:[%s387 + $0x1958] sm:$0xff]
        %v4387 = vld [vmem:[%s387 + $0x1960] sm:$0xff]
        %v4388 = vld [vmem:[%s387 + $0x1968] sm:$0xff]
        %v4389 = vld [vmem:[%s387 + $0x1970] sm:$0xff]
        %v4390 = vld [vmem:[%s387 + $0x1978] sm:$0xff]
        %v4391 = vld [vmem:[%s387 + $0x1980] sm:$0xff]
        %v4392 = vld [vmem:[%s387 + $0x1988] sm:$0xff]
        %v4393 = vld [vmem:[%s387 + $0x1990] sm:$0xff]
        %v4394 = vld [vmem:[%s387 + $0x1998] sm:$0xff]
        %v4395 = vld [vmem:[%s387 + $0x19a0] sm:$0xff]
        %v4396 = vld [vmem:[%s387 + $0x19a8] sm:$0xff]
        %v4397 = vld [vmem:[%s387 + $0x19b0] sm:$0xff]
        %v4398 = vld [vmem:[%s387 + $0x19b8] sm:$0xff]
        %v4399 = vld [vmem:[%s387 + $0x19c0] sm:$0xff]
        %v4400 = vld [vmem:[%s387 + $0x19c8] sm:$0xff]
        %v4401 = vld [vmem:[%s387 + $0x19d0] sm:$0xff]
        %v4402 = vld [vmem:[%s387 + $0x19d8] sm:$0xff]
        %v4403 = vld [vmem:[%s387 + $0x19e0] sm:$0xff]
        %v4404 = vld [vmem:[%s387 + $0x19e8] sm:$0xff]
        %v4405 = vld [vmem:[%s387 + $0x19f0] sm:$0xff]
        %v4406 = vld [vmem:[%s387 + $0x19f8] sm:$0xff]
        %v4407 = vld [vmem:[%s387 + $0x1a00] sm:$0xff]
        %v4408 = vld [vmem:[%s387 + $0x1a08] sm:$0xff]
        %v4409 = vld [vmem:[%s387 + $0x1a10] sm:$0xff]
        %v4410 = vld [vmem:[%s387 + $0x1a18] sm:$0xff]
        %v4411 = vld [vmem:[%s387 + $0x1a20] sm:$0xff]
        %v4412 = vld [vmem:[%s387 + $0x1a28] sm:$0xff]
        %v4413 = vld [vmem:[%s387 + $0x1a30] sm:$0xff]
        %v4414 = vld [vmem:[%s387 + $0x1a38] sm:$0xff]
        %v4415 = vld [vmem:[%s387 + $0x1a40] sm:$0xff]
        %v4416 = vld [vmem:[%s387 + $0x1a48] sm:$0xff]
        %v4417 = vld [vmem:[%s387 + $0x1a50] sm:$0xff]
        %v4418 = vld [vmem:[%s387 + $0x1a58] sm:$0xff]
        %v4419 = vld [vmem:[%s387 + $0x1a60] sm:$0xff]
        %v4420 = vld [vmem:[%s387 + $0x1a68] sm:$0xff]
        %v4421 = vld [vmem:[%s387 + $0x1a70] sm:$0xff]
        %v4422 = vld [vmem:[%s387 + $0x1a78] sm:$0xff]
        %v4423 = vld [vmem:[%s387 + $0x1a80] sm:$0xff]
        %v4424 = vld [vmem:[%s387 + $0x1a88] sm:$0xff]
        %v4425 = vld [vmem:[%s387 + $0x1a90] sm:$0xff]
        %v4426 = vld [vmem:[%s387 + $0x1a98] sm:$0xff]
        %v4427 = vld [vmem:[%s387 + $0x1aa0] sm:$0xff]
        %v4428 = vld [vmem:[%s387 + $0x1aa8] sm:$0xff]
        %v4429 = vld [vmem:[%s387 + $0x1ab0] sm:$0xff]
        %v4430 = vld [vmem:[%s387 + $0x1ab8] sm:$0xff]
        %v4431 = vld [vmem:[%s387 + $0x1ac0] sm:$0xff]
        %v4432 = vld [vmem:[%s387 + $0x1ac8] sm:$0xff]
        %v4433 = vld [vmem:[%s387 + $0x1ad0] sm:$0xff]
        %v4434 = vld [vmem:[%s387 + $0x1ad8] sm:$0xff]
        %v4435 = vld [vmem:[%s387 + $0x1ae0] sm:$0xff]
        %v4436 = vld [vmem:[%s387 + $0x1ae8] sm:$0xff]
        %v4437 = vld [vmem:[%s387 + $0x1af0] sm:$0xff]
        %v4438 = vld [vmem:[%s387 + $0x1af8] sm:$0xff]
        %v4439 = vld [vmem:[%s387 + $0x1b00] sm:$0xff]
        %v4440 = vld [vmem:[%s387 + $0x1b08] sm:$0xff]
        %v4441 = vld [vmem:[%s387 + $0x1b10] sm:$0xff]
        %v4442 = vld [vmem:[%s387 + $0x1b18] sm:$0xff]
        %v4443 = vld [vmem:[%s387 + $0x1b20] sm:$0xff]
        %v4444 = vld [vmem:[%s387 + $0x1b28] sm:$0xff]
        %v4445 = vld [vmem:[%s387 + $0x1b30] sm:$0xff]
        %v4446 = vld [vmem:[%s387 + $0x1b38] sm:$0xff]
        %v4447 = vld [vmem:[%s387 + $0x1b40] sm:$0xff]
        %v4448 = vld [vmem:[%s387 + $0x1b48] sm:$0xff]
        %v4449 = vld [vmem:[%s387 + $0x1b50] sm:$0xff]
        %v4450 = vld [vmem:[%s387 + $0x1b58] sm:$0xff]
        %v4451 = vld [vmem:[%s387 + $0x1b60] sm:$0xff]
        %v4452 = vld [vmem:[%s387 + $0x1b68] sm:$0xff]
        %v4453 = vld [vmem:[%s387 + $0x1b70] sm:$0xff]
        %v4454 = vld [vmem:[%s387 + $0x1b78] sm:$0xff]
        %v4455 = vld [vmem:[%s387 + $0x1b80] sm:$0xff]
        %v4456 = vld [vmem:[%s387 + $0x1b88] sm:$0xff]
        %v4457 = vld [vmem:[%s387 + $0x1b90] sm:$0xff]
        %v4458 = vld [vmem:[%s387 + $0x1b98] sm:$0xff]
        %v4459 = vld [vmem:[%s387 + $0x1ba0] sm:$0xff]
        %v4460 = vld [vmem:[%s387 + $0x1ba8] sm:$0xff]
        %v4461 = vld [vmem:[%s387 + $0x1bb0] sm:$0xff]
        %v4462 = vld [vmem:[%s387 + $0x1bb8] sm:$0xff]
        %v4463 = vld [vmem:[%s387 + $0x1bc0] sm:$0xff]
        %v4464 = vld [vmem:[%s387 + $0x1bc8] sm:$0xff]
        %v4465 = vld [vmem:[%s387 + $0x1bd0] sm:$0xff]
        %v4466 = vld [vmem:[%s387 + $0x1bd8] sm:$0xff]
        %v4467 = vld [vmem:[%s387 + $0x1be0] sm:$0xff]
        %v4468 = vld [vmem:[%s387 + $0x1be8] sm:$0xff]
        %v4469 = vld [vmem:[%s387 + $0x1bf0] sm:$0xff]
        %v4470 = vld [vmem:[%s387 + $0x1bf8] sm:$0xff]
        %v4471 = vld [vmem:[%s387 + $0x1c00] sm:$0xff]
        %v4472 = vld [vmem:[%s387 + $0x1c08] sm:$0xff]
        %v4473 = vld [vmem:[%s387 + $0x1c10] sm:$0xff]
        %v4474 = vld [vmem:[%s387 + $0x1c18] sm:$0xff]
        %v4475 = vld [vmem:[%s387 + $0x1c20] sm:$0xff]
        %v4476 = vld [vmem:[%s387 + $0x1c28] sm:$0xff]
        %v4477 = vld [vmem:[%s387 + $0x1c30] sm:$0xff]
        %v4478 = vld [vmem:[%s387 + $0x1c38] sm:$0xff]
        %v4479 = vld [vmem:[%s387 + $0x1c40] sm:$0xff]
        %v4480 = vld [vmem:[%s387 + $0x1c48] sm:$0xff]
        %v4481 = vld [vmem:[%s387 + $0x1c50] sm:$0xff]
        %v4482 = vld [vmem:[%s387 + $0x1c58] sm:$0xff]
        %v4483 = vld [vmem:[%s387 + $0x1c60] sm:$0xff]
        %v4484 = vld [vmem:[%s387 + $0x1c68] sm:$0xff]
        %v4485 = vld [vmem:[%s387 + $0x1c70] sm:$0xff]
        %v4486 = vld [vmem:[%s387 + $0x1c78] sm:$0xff]
        %v4487 = vld [vmem:[%s387 + $0x1c80] sm:$0xff]
        %v4488 = vld [vmem:[%s387 + $0x1c88] sm:$0xff]
        %v4489 = vld [vmem:[%s387 + $0x1c90] sm:$0xff]
        %v4490 = vld [vmem:[%s387 + $0x1c98] sm:$0xff]
        %v4491 = vld [vmem:[%s387 + $0x1ca0] sm:$0xff]
        %v4492 = vld [vmem:[%s387 + $0x1ca8] sm:$0xff]
        %v4493 = vld [vmem:[%s387 + $0x1cb0] sm:$0xff]
        %v4494 = vld [vmem:[%s387 + $0x1cb8] sm:$0xff]
        %v4495 = vld [vmem:[%s387 + $0x1cc0] sm:$0xff]
        %v4496 = vld [vmem:[%s387 + $0x1cc8] sm:$0xff]
        %v4497 = vld [vmem:[%s387 + $0x1cd0] sm:$0xff]
        %v4498 = vld [vmem:[%s387 + $0x1cd8] sm:$0xff]
        %v4499 = vld [vmem:[%s387 + $0x1ce0] sm:$0xff]
        %v4500 = vld [vmem:[%s387 + $0x1ce8] sm:$0xff]
        %v4501 = vld [vmem:[%s387 + $0x1cf0] sm:$0xff]
        %v4502 = vld [vmem:[%s387 + $0x1cf8] sm:$0xff]
        %v4503 = vld [vmem:[%s387 + $0x1d00] sm:$0xff]
        %v4504 = vld [vmem:[%s387 + $0x1d08] sm:$0xff]
        %v4505 = vld [vmem:[%s387 + $0x1d10] sm:$0xff]
        %v4506 = vld [vmem:[%s387 + $0x1d18] sm:$0xff]
        %v4507 = vld [vmem:[%s387 + $0x1d20] sm:$0xff]
        %v4508 = vld [vmem:[%s387 + $0x1d28] sm:$0xff]
        %v4509 = vld [vmem:[%s387 + $0x1d30] sm:$0xff]
        %v4510 = vld [vmem:[%s387 + $0x1d38] sm:$0xff]
        %v4511 = vld [vmem:[%s387 + $0x1d40] sm:$0xff]
        %v4512 = vld [vmem:[%s387 + $0x1d48] sm:$0xff]
        %v4513 = vld [vmem:[%s387 + $0x1d50] sm:$0xff]
        %v4514 = vld [vmem:[%s387 + $0x1d58] sm:$0xff]
        %v4515 = vld [vmem:[%s387 + $0x1d60] sm:$0xff]
        %v4516 = vld [vmem:[%s387 + $0x1d68] sm:$0xff]
        %v4517 = vld [vmem:[%s387 + $0x1d70] sm:$0xff]
        %v4518 = vld [vmem:[%s387 + $0x1d78] sm:$0xff]
        %v4519 = vld [vmem:[%s387 + $0x1d80] sm:$0xff]
        %v4520 = vld [vmem:[%s387 + $0x1d88] sm:$0xff]
        %v4521 = vld [vmem:[%s387 + $0x1d90] sm:$0xff]
        %v4522 = vld [vmem:[%s387 + $0x1d98] sm:$0xff]
        %v4523 = vld [vmem:[%s387 + $0x1da0] sm:$0xff]
        %v4524 = vld [vmem:[%s387 + $0x1da8] sm:$0xff]
        %v4525 = vld [vmem:[%s387 + $0x1db0] sm:$0xff]
        %v4526 = vld [vmem:[%s387 + $0x1db8] sm:$0xff]
        %v4527 = vld [vmem:[%s387 + $0x1dc0] sm:$0xff]
        %v4528 = vld [vmem:[%s387 + $0x1dc8] sm:$0xff]
        %v4529 = vld [vmem:[%s387 + $0x1dd0] sm:$0xff]
        %v4530 = vld [vmem:[%s387 + $0x1dd8] sm:$0xff]
        %v4531 = vld [vmem:[%s387 + $0x1de0] sm:$0xff]
        %v4532 = vld [vmem:[%s387 + $0x1de8] sm:$0xff]
        %v4533 = vld [vmem:[%s387 + $0x1df0] sm:$0xff]
        %v4534 = vld [vmem:[%s387 + $0x1df8] sm:$0xff]
        %v4535 = vld [vmem:[%s387 + $0x1e00] sm:$0xff]
        %v4536 = vld [vmem:[%s387 + $0x1e08] sm:$0xff]
        %v4537 = vld [vmem:[%s387 + $0x1e10] sm:$0xff]
        %v4538 = vld [vmem:[%s387 + $0x1e18] sm:$0xff]
        %v4539 = vld [vmem:[%s387 + $0x1e20] sm:$0xff]
        %v4540 = vld [vmem:[%s387 + $0x1e28] sm:$0xff]
        %v4541 = vld [vmem:[%s387 + $0x1e30] sm:$0xff]
        %v4542 = vld [vmem:[%s387 + $0x1e38] sm:$0xff]
        %v4543 = vld [vmem:[%s387 + $0x1e40] sm:$0xff]
        %v4544 = vld [vmem:[%s387 + $0x1e48] sm:$0xff]
        %v4545 = vld [vmem:[%s387 + $0x1e50] sm:$0xff]
        %v4546 = vld [vmem:[%s387 + $0x1e58] sm:$0xff]
        %v4547 = vld [vmem:[%s387 + $0x1e60] sm:$0xff]
        %v4548 = vld [vmem:[%s387 + $0x1e68] sm:$0xff]
        %v4549 = vld [vmem:[%s387 + $0x1e70] sm:$0xff]
        %v4550 = vld [vmem:[%s387 + $0x1e78] sm:$0xff]
        %v4551 = vld [vmem:[%s387 + $0x1e80] sm:$0xff]
        %v4552 = vld [vmem:[%s387 + $0x1e88] sm:$0xff]
        %v4553 = vld [vmem:[%s387 + $0x1e90] sm:$0xff]
        %v4554 = vld [vmem:[%s387 + $0x1e98] sm:$0xff]
        %v4555 = vld [vmem:[%s387 + $0x1ea0] sm:$0xff]
        %v4556 = vld [vmem:[%s387 + $0x1ea8] sm:$0xff]
        %v4557 = vld [vmem:[%s387 + $0x1eb0] sm:$0xff]
        %v4558 = vld [vmem:[%s387 + $0x1eb8] sm:$0xff]
        %v4559 = vld [vmem:[%s387 + $0x1ec0] sm:$0xff]
        %v4560 = vld [vmem:[%s387 + $0x1ec8] sm:$0xff]
        %v4561 = vld [vmem:[%s387 + $0x1ed0] sm:$0xff]
        %v4562 = vld [vmem:[%s387 + $0x1ed8] sm:$0xff]
        %v4563 = vld [vmem:[%s387 + $0x1ee0] sm:$0xff]
        %v4564 = vld [vmem:[%s387 + $0x1ee8] sm:$0xff]
        %v4565 = vld [vmem:[%s387 + $0x1ef0] sm:$0xff]
        %v4566 = vld [vmem:[%s387 + $0x1ef8] sm:$0xff]
        %v4567 = vld [vmem:[%s387 + $0x1f00] sm:$0xff]
        %v4568 = vld [vmem:[%s387 + $0x1f08] sm:$0xff]
        %v4569 = vld [vmem:[%s387 + $0x1f10] sm:$0xff]
        %v4570 = vld [vmem:[%s387 + $0x1f18] sm:$0xff]
        %v4571 = vld [vmem:[%s387 + $0x1f20] sm:$0xff]
        %v4572 = vld [vmem:[%s387 + $0x1f28] sm:$0xff]
        %v4573 = vld [vmem:[%s387 + $0x1f30] sm:$0xff]
        %v4574 = vld [vmem:[%s387 + $0x1f38] sm:$0xff]
        %v4575 = vld [vmem:[%s387 + $0x1f40] sm:$0xff]
        %v4576 = vld [vmem:[%s387 + $0x1f48] sm:$0xff]
        %v4577 = vld [vmem:[%s387 + $0x1f50] sm:$0xff]
        %v4578 = vld [vmem:[%s387 + $0x1f58] sm:$0xff]
        %v4579 = vld [vmem:[%s387 + $0x1f60] sm:$0xff]
        %v4580 = vld [vmem:[%s387 + $0x1f68] sm:$0xff]
        %v4581 = vld [vmem:[%s387 + $0x1f70] sm:$0xff]
        %v4582 = vld [vmem:[%s387 + $0x1f78] sm:$0xff]
        %v4583 = vld [vmem:[%s387 + $0x1f80] sm:$0xff]
        %v4584 = vld [vmem:[%s387 + $0x1f88] sm:$0xff]
        %v4585 = vld [vmem:[%s387 + $0x1f90] sm:$0xff]
        %v4586 = vld [vmem:[%s387 + $0x1f98] sm:$0xff]
        %v4587 = vld [vmem:[%s387 + $0x1fa0] sm:$0xff]
        %v4588 = vld [vmem:[%s387 + $0x1fa8] sm:$0xff]
        %v4589 = vld [vmem:[%s387 + $0x1fb0] sm:$0xff]
        %v4590 = vld [vmem:[%s387 + $0x1fb8] sm:$0xff]
        %v4591 = vld [vmem:[%s387 + $0x1fc0] sm:$0xff]
        %v4592 = vld [vmem:[%s387 + $0x1fc8] sm:$0xff]
        %v4593 = vld [vmem:[%s387 + $0x1fd0] sm:$0xff]
        %v4594 = vld [vmem:[%s387 + $0x1fd8] sm:$0xff]
        %v4595 = vld [vmem:[%s387 + $0x1fe0] sm:$0xff]
        %v4596 = vld [vmem:[%s387 + $0x1fe8] sm:$0xff]
        %v4597 = vld [vmem:[%s387 + $0x1ff0] sm:$0xff]
        %v4598 = vld [vmem:[%s387 + $0x1ff8] sm:$0xff]
        %4599 = vmatprep.subr.mxu0 %v3576
        %4600 = vmatpush1.msra.mxu0 %v3575
        %4601 = vmatprep.subr.mxu0 %v3584
        %4602 = vmatpush1.msra.mxu0 %v3583
        %4603 = vmatprep.subr.mxu0 %v3592
        %4604 = vmatpush1.msra.mxu0 %v3591
        %4605 = vmatprep.subr.mxu0 %v3600
        %4606 = vmatpush1.msra.mxu0 %v3599
        %4607 = vmatprep.subr.mxu0 %v3608
        %4608 = vmatpush1.msra.mxu0 %v3607
        %4609 = vmatprep.subr.mxu0 %v3616
        %4610 = vmatpush1.msra.mxu0 %v3615
        %4611 = vmatprep.subr.mxu0 %v3624
        %4612 = vmatpush1.msra.mxu0 %v3623
        %4613 = vmatprep.subr.mxu0 %v3632
        %4614 = vmatpush1.msra.mxu0 %v3631
        %4615 = vmatprep.subr.mxu0 %v3640
        %4616 = vmatpush1.msra.mxu0 %v3639
        %4617 = vmatprep.subr.mxu0 %v3648
        %4618 = vmatpush1.msra.mxu0 %v3647
        %4619 = vmatprep.subr.mxu0 %v3656
        %4620 = vmatpush1.msra.mxu0 %v3655
        %4621 = vmatprep.subr.mxu0 %v3664
        %4622 = vmatpush1.msra.mxu0 %v3663
        %4623 = vmatprep.subr.mxu0 %v3672
        %4624 = vmatpush1.msra.mxu0 %v3671
        %4625 = vmatprep.subr.mxu0 %v3680
        %4626 = vmatpush1.msra.mxu0 %v3679
        %4627 = vmatprep.subr.mxu0 %v3688
        %4628 = vmatpush1.msra.mxu0 %v3687
        %4629 = vmatprep.subr.mxu0 %v3696
        %4630 = vmatpush1.msra.mxu0 %v3695
        %4631 = vmatprep.subr.mxu0 %v3704
        %4632 = vmatpush1.msra.mxu0 %v3703
        %4633 = vmatprep.subr.mxu0 %v3712
        %4634 = vmatpush1.msra.mxu0 %v3711
        %4635 = vmatprep.subr.mxu0 %v3720
        %4636 = vmatpush1.msra.mxu0 %v3719
        %4637 = vmatprep.subr.mxu0 %v3728
        %4638 = vmatpush1.msra.mxu0 %v3727
        %4639 = vmatprep.subr.mxu0 %v3736
        %4640 = vmatpush1.msra.mxu0 %v3735
        %4641 = vmatprep.subr.mxu0 %v3744
        %4642 = vmatpush1.msra.mxu0 %v3743
        %4643 = vmatprep.subr.mxu0 %v3752
        %4644 = vmatpush1.msra.mxu0 %v3751
        %4645 = vmatprep.subr.mxu0 %v3760
        %4646 = vmatpush1.msra.mxu0 %v3759
        %4647 = vmatprep.subr.mxu0 %v3768
        %4648 = vmatpush1.msra.mxu0 %v3767
        %4649 = vmatprep.subr.mxu0 %v3776
        %4650 = vmatpush1.msra.mxu0 %v3775
        %4651 = vmatprep.subr.mxu0 %v3784
        %4652 = vmatpush1.msra.mxu0 %v3783
        %4653 = vmatprep.subr.mxu0 %v3792
        %4654 = vmatpush1.msra.mxu0 %v3791
        %4655 = vmatprep.subr.mxu0 %v3800
        %4656 = vmatpush1.msra.mxu0 %v3799
        %4657 = vmatprep.subr.mxu0 %v3808
        %4658 = vmatpush1.msra.mxu0 %v3807
        %4659 = vmatprep.subr.mxu0 %v3816
        %4660 = vmatpush1.msra.mxu0 %v3815
        %4661 = vmatprep.subr.mxu0 %v3824
        %4662 = vmatpush1.msra.mxu0 %v3823
        %4663 = vmatprep.mubr.f32.mxu0 %v3512
        %4664 = vmatmul.mubr.f32.gmra.mrb[0].mxu0 %v3511
        %v4665 = vpop.f32.mrb[0].mxu0
        %v4666 = vadd.f32 0.0, %v4665
        %v4667 = vpop.f32.mrb[0].mxu0
        %v4668 = vadd.f32 0.0, %v4667
        %4669 = vmatprep.mubr.f32.mxu0 %v3520
        %4670 = vmatmul.mubr.f32.gmra.mrb[0].mxu0 %v3519
        %v4671 = vpop.f32.mrb[0].mxu0
        %v4672 = vadd.f32 0.0, %v4671
        %v4673 = vpop.f32.mrb[0].mxu0
        %v4674 = vadd.f32 0.0, %v4673
        %4675 = vmatprep.mubr.f32.mxu0 %v3528
        %4676 = vmatmul.mubr.f32.gmra.mrb[0].mxu0 %v3527
        %v4677 = vpop.f32.mrb[0].mxu0
        %v4678 = vadd.f32 0.0, %v4677
        %v4679 = vpop.f32.mrb[0].mxu0
        %v4680 = vadd.f32 0.0, %v4679
        %4681 = vmatprep.mubr.f32.mxu0 %v3536
        %4682 = vmatmul.mubr.f32.gmra.mrb[0].mxu0 %v3535
        %v4683 = vpop.f32.mrb[0].mxu0
        %v4684 = vadd.f32 0.0, %v4683
        %v4685 = vpop.f32.mrb[0].mxu0
        %v4686 = vadd.f32 0.0, %v4685
        %4687 = vdwg.mxu0
        %4688 = vmatprep.subr.mxu0 %v3832
        %4689 = vmatpush1.msra.mxu0 %v3831
        %4690 = vmatprep.subr.mxu0 %v3840
        %4691 = vmatpush1.msra.mxu0 %v3839
        %4692 = vmatprep.subr.mxu0 %v3848
        %4693 = vmatpush1.msra.mxu0 %v3847
        %4694 = vmatprep.subr.mxu0 %v3856
        %4695 = vmatpush1.msra.mxu0 %v3855
        %4696 = vmatprep.subr.mxu0 %v3864
        %4697 = vmatpush1.msra.mxu0 %v3863
        %4698 = vmatprep.subr.mxu0 %v3872
        %4699 = vmatpush1.msra.mxu0 %v3871
        %4700 = vmatprep.subr.mxu0 %v3880
        %4701 = vmatpush1.msra.mxu0 %v3879
        %4702 = vmatprep.subr.mxu0 %v3888
        %4703 = vmatpush1.msra.mxu0 %v3887
        %4704 = vmatprep.subr.mxu0 %v3896
        %4705 = vmatpush1.msra.mxu0 %v3895
        %4706 = vmatprep.subr.mxu0 %v3904
        %4707 = vmatpush1.msra.mxu0 %v3903
        %4708 = vmatprep.subr.mxu0 %v3912
        %4709 = vmatpush1.msra.mxu0 %v3911
        %4710 = vmatprep.subr.mxu0 %v3920
        %4711 = vmatpush1.msra.mxu0 %v3919
        %4712 = vmatprep.subr.mxu0 %v3928
        %4713 = vmatpush1.msra.mxu0 %v3927
        %4714 = vmatprep.subr.mxu0 %v3936
        %4715 = vmatpush1.msra.mxu0 %v3935
        %4716 = vmatprep.subr.mxu0 %v3944
        %4717 = vmatpush1.msra.mxu0 %v3943
        %4718 = vmatprep.subr.mxu0 %v3952
        %4719 = vmatpush1.msra.mxu0 %v3951
        %4720 = vmatprep.subr.mxu0 %v3960
        %4721 = vmatpush1.msra.mxu0 %v3959
        %4722 = vmatprep.subr.mxu0 %v3968
        %4723 = vmatpush1.msra.mxu0 %v3967
        %4724 = vmatprep.subr.mxu0 %v3976
        %4725 = vmatpush1.msra.mxu0 %v3975
        %4726 = vmatprep.subr.mxu0 %v3984
        %4727 = vmatpush1.msra.mxu0 %v3983
        %4728 = vmatprep.subr.mxu0 %v3992
        %4729 = vmatpush1.msra.mxu0 %v3991
        %4730 = vmatprep.subr.mxu0 %v4000
        %4731 = vmatpush1.msra.mxu0 %v3999
        %4732 = vmatprep.subr.mxu0 %v4008
        %4733 = vmatpush1.msra.mxu0 %v4007
        %4734 = vmatprep.subr.mxu0 %v4016
        %4735 = vmatpush1.msra.mxu0 %v4015
        %4736 = vmatprep.subr.mxu0 %v4024
        %4737 = vmatpush1.msra.mxu0 %v4023
        %4738 = vmatprep.subr.mxu0 %v4032
        %4739 = vmatpush1.msra.mxu0 %v4031
        %4740 = vmatprep.subr.mxu0 %v4040
        %4741 = vmatpush1.msra.mxu0 %v4039
        %4742 = vmatprep.subr.mxu0 %v4048
        %4743 = vmatpush1.msra.mxu0 %v4047
        %4744 = vmatprep.subr.mxu0 %v4056
        %4745 = vmatpush1.msra.mxu0 %v4055
        %4746 = vmatprep.subr.mxu0 %v4064
        %4747 = vmatpush1.msra.mxu0 %v4063
        %4748 = vmatprep.subr.mxu0 %v4072
        %4749 = vmatpush1.msra.mxu0 %v4071
        %4750 = vmatprep.subr.mxu0 %v4080
        %4751 = vmatpush1.msra.mxu0 %v4079
        %4752 = vmatprep.mubr.f32.mxu0 %v3514
        %4753 = vmatmul.mubr.f32.gmra.mrb[0].mxu0 %v3513
        %v4754 = vpop.f32.mrb[0].mxu0
        %v4755 = vadd.f32 %v4666, %v4754
        %v4756 = vpop.f32.mrb[0].mxu0
        %v4757 = vadd.f32 %v4668, %v4756
        %4758 = vmatprep.mubr.f32.mxu0 %v3522
        %4759 = vmatmul.mubr.f32.gmra.mrb[0].mxu0 %v3521
        %v4760 = vpop.f32.mrb[0].mxu0
        %v4761 = vadd.f32 %v4672, %v4760
        %v4762 = vpop.f32.mrb[0].mxu0
        %v4763 = vadd.f32 %v4674, %v4762
        %4764 = vmatprep.mubr.f32.mxu0 %v3530
        %4765 = vmatmul.mubr.f32.gmra.mrb[0].mxu0 %v3529
        %v4766 = vpop.f32.mrb[0].mxu0
        %v4767 = vadd.f32 %v4678, %v4766
        %v4768 = vpop.f32.mrb[0].mxu0
        %v4769 = vadd.f32 %v4680, %v4768
        %4770 = vmatprep.mubr.f32.mxu0 %v3538
        %4771 = vmatmul.mubr.f32.gmra.mrb[0].mxu0 %v3537
        %v4772 = vpop.f32.mrb[0].mxu0
        %v4773 = vadd.f32 %v4684, %v4772
        %v4774 = vpop.f32.mrb[0].mxu0
        %v4775 = vadd.f32 %v4686, %v4774
        %4776 = vdwg.mxu0
        %4777 = vmatprep.subr.mxu0 %v4088
        %4778 = vmatpush1.msra.mxu0 %v4087
        %4779 = vmatprep.subr.mxu0 %v4096
        %4780 = vmatpush1.msra.mxu0 %v4095
        %4781 = vmatprep.subr.mxu0 %v4104
        %4782 = vmatpush1.msra.mxu0 %v4103
        %4783 = vmatprep.subr.mxu0 %v4112
        %4784 = vmatpush1.msra.mxu0 %v4111
        %4785 = vmatprep.subr.mxu0 %v4120
        %4786 = vmatpush1.msra.mxu0 %v4119
        %4787 = vmatprep.subr.mxu0 %v4128
        %4788 = vmatpush1.msra.mxu0 %v4127
        %4789 = vmatprep.subr.mxu0 %v4136
        %4790 = vmatpush1.msra.mxu0 %v4135
        %4791 = vmatprep.subr.mxu0 %v4144
        %4792 = vmatpush1.msra.mxu0 %v4143
        %4793 = vmatprep.subr.mxu0 %v4152
        %4794 = vmatpush1.msra.mxu0 %v4151
        %4795 = vmatprep.subr.mxu0 %v4160
        %4796 = vmatpush1.msra.mxu0 %v4159
        %4797 = vmatprep.subr.mxu0 %v4168
        %4798 = vmatpush1.msra.mxu0 %v4167
        %4799 = vmatprep.subr.mxu0 %v4176
        %4800 = vmatpush1.msra.mxu0 %v4175
        %4801 = vmatprep.subr.mxu0 %v4184
        %4802 = vmatpush1.msra.mxu0 %v4183
        %4803 = vmatprep.subr.mxu0 %v4192
        %4804 = vmatpush1.msra.mxu0 %v4191
        %4805 = vmatprep.subr.mxu0 %v4200
        %4806 = vmatpush1.msra.mxu0 %v4199
        %4807 = vmatprep.subr.mxu0 %v4208
        %4808 = vmatpush1.msra.mxu0 %v4207
        %4809 = vmatprep.subr.mxu0 %v4216
        %4810 = vmatpush1.msra.mxu0 %v4215
        %4811 = vmatprep.subr.mxu0 %v4224
        %4812 = vmatpush1.msra.mxu0 %v4223
        %4813 = vmatprep.subr.mxu0 %v4232
        %4814 = vmatpush1.msra.mxu0 %v4231
        %4815 = vmatprep.subr.mxu0 %v4240
        %4816 = vmatpush1.msra.mxu0 %v4239
        %4817 = vmatprep.subr.mxu0 %v4248
        %4818 = vmatpush1.msra.mxu0 %v4247
        %4819 = vmatprep.subr.mxu0 %v4256
        %4820 = vmatpush1.msra.mxu0 %v4255
        %4821 = vmatprep.subr.mxu0 %v4264
        %4822 = vmatpush1.msra.mxu0 %v4263
        %4823 = vmatprep.subr.mxu0 %v4272
        %4824 = vmatpush1.msra.mxu0 %v4271
        %4825 = vmatprep.subr.mxu0 %v4280
        %4826 = vmatpush1.msra.mxu0 %v4279
        %4827 = vmatprep.subr.mxu0 %v4288
        %4828 = vmatpush1.msra.mxu0 %v4287
        %4829 = vmatprep.subr.mxu0 %v4296
        %4830 = vmatpush1.msra.mxu0 %v4295
        %4831 = vmatprep.subr.mxu0 %v4304
        %4832 = vmatpush1.msra.mxu0 %v4303
        %4833 = vmatprep.subr.mxu0 %v4312
        %4834 = vmatpush1.msra.mxu0 %v4311
        %4835 = vmatprep.subr.mxu0 %v4320
        %4836 = vmatpush1.msra.mxu0 %v4319
        %4837 = vmatprep.subr.mxu0 %v4328
        %4838 = vmatpush1.msra.mxu0 %v4327
        %4839 = vmatprep.subr.mxu0 %v4336
        %4840 = vmatpush1.msra.mxu0 %v4335
        %4841 = vmatprep.mubr.f32.mxu0 %v3516
        %4842 = vmatmul.mubr.f32.gmra.mrb[0].mxu0 %v3515
        %v4843 = vpop.f32.mrb[0].mxu0
        %v4844 = vadd.f32 %v4755, %v4843
        %v4845 = vpop.f32.mrb[0].mxu0
        %v4846 = vadd.f32 %v4757, %v4845
        %4847 = vmatprep.mubr.f32.mxu0 %v3524
        %4848 = vmatmul.mubr.f32.gmra.mrb[0].mxu0 %v3523
        %v4849 = vpop.f32.mrb[0].mxu0
        %v4850 = vadd.f32 %v4761, %v4849
        %v4851 = vpop.f32.mrb[0].mxu0
        %v4852 = vadd.f32 %v4763, %v4851
        %4853 = vmatprep.mubr.f32.mxu0 %v3532
        %4854 = vmatmul.mubr.f32.gmra.mrb[0].mxu0 %v3531
        %v4855 = vpop.f32.mrb[0].mxu0
        %v4856 = vadd.f32 %v4767, %v4855
        %v4857 = vpop.f32.mrb[0].mxu0
        %v4858 = vadd.f32 %v4769, %v4857
        %4859 = vmatprep.mubr.f32.mxu0 %v3540
        %4860 = vmatmul.mubr.f32.gmra.mrb[0].mxu0 %v3539
        %v4861 = vpop.f32.mrb[0].mxu0
        %v4862 = vadd.f32 %v4773, %v4861
        %v4863 = vpop.f32.mrb[0].mxu0
        %v4864 = vadd.f32 %v4775, %v4863
        %4865 = vdwg.mxu0
        %4866 = vmatprep.subr.mxu0 %v4344
        %4867 = vmatpush1.msra.mxu0 %v4343
        %4868 = vmatprep.subr.mxu0 %v4352
        %4869 = vmatpush1.msra.mxu0 %v4351
        %4870 = vmatprep.subr.mxu0 %v4360
        %4871 = vmatpush1.msra.mxu0 %v4359
        %4872 = vmatprep.subr.mxu0 %v4368
        %4873 = vmatpush1.msra.mxu0 %v4367
        %4874 = vmatprep.subr.mxu0 %v4376
        %4875 = vmatpush1.msra.mxu0 %v4375
        %4876 = vmatprep.subr.mxu0 %v4384
        %4877 = vmatpush1.msra.mxu0 %v4383
        %4878 = vmatprep.subr.mxu0 %v4392
        %4879 = vmatpush1.msra.mxu0 %v4391
        %4880 = vmatprep.subr.mxu0 %v4400
        %4881 = vmatpush1.msra.mxu0 %v4399
        %4882 = vmatprep.subr.mxu0 %v4408
        %4883 = vmatpush1.msra.mxu0 %v4407
        %4884 = vmatprep.subr.mxu0 %v4416
        %4885 = vmatpush1.msra.mxu0 %v4415
        %4886 = vmatprep.subr.mxu0 %v4424
        %4887 = vmatpush1.msra.mxu0 %v4423
        %4888 = vmatprep.subr.mxu0 %v4432
        %4889 = vmatpush1.msra.mxu0 %v4431
        %4890 = vmatprep.subr.mxu0 %v4440
        %4891 = vmatpush1.msra.mxu0 %v4439
        %4892 = vmatprep.subr.mxu0 %v4448
        %4893 = vmatpush1.msra.mxu0 %v4447
        %4894 = vmatprep.subr.mxu0 %v4456
        %4895 = vmatpush1.msra.mxu0 %v4455
        %4896 = vmatprep.subr.mxu0 %v4464
        %4897 = vmatpush1.msra.mxu0 %v4463
        %4898 = vmatprep.subr.mxu0 %v4472
        %4899 = vmatpush1.msra.mxu0 %v4471
        %4900 = vmatprep.subr.mxu0 %v4480
        %4901 = vmatpush1.msra.mxu0 %v4479
        %4902 = vmatprep.subr.mxu0 %v4488
        %4903 = vmatpush1.msra.mxu0 %v4487
        %4904 = vmatprep.subr.mxu0 %v4496
        %4905 = vmatpush1.msra.mxu0 %v4495
        %4906 = vmatprep.subr.mxu0 %v4504
        %4907 = vmatpush1.msra.mxu0 %v4503
        %4908 = vmatprep.subr.mxu0 %v4512
        %4909 = vmatpush1.msra.mxu0 %v4511
        %4910 = vmatprep.subr.mxu0 %v4520
        %4911 = vmatpush1.msra.mxu0 %v4519
        %4912 = vmatprep.subr.mxu0 %v4528
        %4913 = vmatpush1.msra.mxu0 %v4527
        %4914 = vmatprep.subr.mxu0 %v4536
        %4915 = vmatpush1.msra.mxu0 %v4535
        %4916 = vmatprep.subr.mxu0 %v4544
        %4917 = vmatpush1.msra.mxu0 %v4543
        %4918 = vmatprep.subr.mxu0 %v4552
        %4919 = vmatpush1.msra.mxu0 %v4551
        %4920 = vmatprep.subr.mxu0 %v4560
        %4921 = vmatpush1.msra.mxu0 %v4559
        %4922 = vmatprep.subr.mxu0 %v4568
        %4923 = vmatpush1.msra.mxu0 %v4567
        %4924 = vmatprep.subr.mxu0 %v4576
        %4925 = vmatpush1.msra.mxu0 %v4575
        %4926 = vmatprep.subr.mxu0 %v4584
        %4927 = vmatpush1.msra.mxu0 %v4583
        %4928 = vmatprep.subr.mxu0 %v4592
        %4929 = vmatpush1.msra.mxu0 %v4591
        %4930 = vmatprep.mubr.f32.mxu0 %v3518
        %4931 = vmatmul.mubr.f32.gmra.mrb[0].mxu0 %v3517
        %v4932 = vpop.f32.mrb[0].mxu0
        %v4933 = vadd.f32 %v4844, %v4932
        %v4934 = vpop.f32.mrb[0].mxu0
        %v4935 = vadd.f32 %v4846, %v4934
        %4936 = vmatprep.mubr.f32.mxu0 %v3526
        %4937 = vmatmul.mubr.f32.gmra.mrb[0].mxu0 %v3525
        %v4938 = vpop.f32.mrb[0].mxu0
        %v4939 = vadd.f32 %v4850, %v4938
        %v4940 = vpop.f32.mrb[0].mxu0
        %v4941 = vadd.f32 %v4852, %v4940
        %4942 = vmatprep.mubr.f32.mxu0 %v3534
        %4943 = vmatmul.mubr.f32.gmra.mrb[0].mxu0 %v3533
        %v4944 = vpop.f32.mrb[0].mxu0
        %v4945 = vadd.f32 %v4856, %v4944
        %v4946 = vpop.f32.mrb[0].mxu0
        %v4947 = vadd.f32 %v4858, %v4946
        %4948 = vmatprep.mubr.f32.mxu0 %v3542
        %4949 = vmatmul.mubr.f32.gmra.mrb[0].mxu0 %v3541
        %v4950 = vpop.f32.mrb[0].mxu0
        %v4951 = vadd.f32 %v4862, %v4950
        %v4952 = vpop.f32.mrb[0].mxu0
        %v4953 = vadd.f32 %v4864, %v4952
        %4954 = vdwg.mxu0
        %4955 = vmatprep.subr.mxu0 %v3578
        %4956 = vmatpush1.msra.mxu0 %v3577
        %4957 = vmatprep.subr.mxu0 %v3586
        %4958 = vmatpush1.msra.mxu0 %v3585
        %4959 = vmatprep.subr.mxu0 %v3594
        %4960 = vmatpush1.msra.mxu0 %v3593
        %4961 = vmatprep.subr.mxu0 %v3602
        %4962 = vmatpush1.msra.mxu0 %v3601
        %4963 = vmatprep.subr.mxu0 %v3610
        %4964 = vmatpush1.msra.mxu0 %v3609
        %4965 = vmatprep.subr.mxu0 %v3618
        %4966 = vmatpush1.msra.mxu0 %v3617
        %4967 = vmatprep.subr.mxu0 %v3626
        %4968 = vmatpush1.msra.mxu0 %v3625
        %4969 = vmatprep.subr.mxu0 %v3634
        %4970 = vmatpush1.msra.mxu0 %v3633
        %4971 = vmatprep.subr.mxu0 %v3642
        %4972 = vmatpush1.msra.mxu0 %v3641
        %4973 = vmatprep.subr.mxu0 %v3650
        %4974 = vmatpush1.msra.mxu0 %v3649
        %4975 = vmatprep.subr.mxu0 %v3658
        %4976 = vmatpush1.msra.mxu0 %v3657
        %4977 = vmatprep.subr.mxu0 %v3666
        %4978 = vmatpush1.msra.mxu0 %v3665
        %4979 = vmatprep.subr.mxu0 %v3674
        %4980 = vmatpush1.msra.mxu0 %v3673
        %4981 = vmatprep.subr.mxu0 %v3682
        %4982 = vmatpush1.msra.mxu0 %v3681
        %4983 = vmatprep.subr.mxu0 %v3690
        %4984 = vmatpush1.msra.mxu0 %v3689
        %4985 = vmatprep.subr.mxu0 %v3698
        %4986 = vmatpush1.msra.mxu0 %v3697
        %4987 = vmatprep.subr.mxu0 %v3706
        %4988 = vmatpush1.msra.mxu0 %v3705
        %4989 = vmatprep.subr.mxu0 %v3714
        %4990 = vmatpush1.msra.mxu0 %v3713
        %4991 = vmatprep.subr.mxu0 %v3722
        %4992 = vmatpush1.msra.mxu0 %v3721
        %4993 = vmatprep.subr.mxu0 %v3730
        %4994 = vmatpush1.msra.mxu0 %v3729
        %4995 = vmatprep.subr.mxu0 %v3738
        %4996 = vmatpush1.msra.mxu0 %v3737
        %4997 = vmatprep.subr.mxu0 %v3746
        %4998 = vmatpush1.msra.mxu0 %v3745
        %4999 = vmatprep.subr.mxu0 %v3754
        %5000 = vmatpush1.msra.mxu0 %v3753
        %5001 = vmatprep.subr.mxu0 %v3762
        %5002 = vmatpush1.msra.mxu0 %v3761
        %5003 = vmatprep.subr.mxu0 %v3770
        %5004 = vmatpush1.msra.mxu0 %v3769
        %5005 = vmatprep.subr.mxu0 %v3778
        %5006 = vmatpush1.msra.mxu0 %v3777
        %5007 = vmatprep.subr.mxu0 %v3786
        %5008 = vmatpush1.msra.mxu0 %v3785
        %5009 = vmatprep.subr.mxu0 %v3794
        %5010 = vmatpush1.msra.mxu0 %v3793
        %5011 = vmatprep.subr.mxu0 %v3802
        %5012 = vmatpush1.msra.mxu0 %v3801
        %5013 = vmatprep.subr.mxu0 %v3810
        %5014 = vmatpush1.msra.mxu0 %v3809
        %5015 = vmatprep.subr.mxu0 %v3818
        %5016 = vmatpush1.msra.mxu0 %v3817
        %5017 = vmatprep.subr.mxu0 %v3826
        %5018 = vmatpush1.msra.mxu0 %v3825
        %5019 = vmatprep.mubr.f32.mxu0 %v3512
        %5020 = vmatmul.mubr.f32.gmra.mrb[0].mxu0 %v3511
        %v5021 = vpop.f32.mrb[0].mxu0
        %v5022 = vadd.f32 0.0, %v5021
        %v5023 = vpop.f32.mrb[0].mxu0
        %v5024 = vadd.f32 0.0, %v5023
        %5025 = vmatprep.mubr.f32.mxu0 %v3520
        %5026 = vmatmul.mubr.f32.gmra.mrb[0].mxu0 %v3519
        %v5027 = vpop.f32.mrb[0].mxu0
        %v5028 = vadd.f32 0.0, %v5027
        %v5029 = vpop.f32.mrb[0].mxu0
        %v5030 = vadd.f32 0.0, %v5029
        %5031 = vmatprep.mubr.f32.mxu0 %v3528
        %5032 = vmatmul.mubr.f32.gmra.mrb[0].mxu0 %v3527
        %v5033 = vpop.f32.mrb[0].mxu0
        %v5034 = vadd.f32 0.0, %v5033
        %v5035 = vpop.f32.mrb[0].mxu0
        %v5036 = vadd.f32 0.0, %v5035
        %5037 = vmatprep.mubr.f32.mxu0 %v3536
        %5038 = vmatmul.mubr.f32.gmra.mrb[0].mxu0 %v3535
        %v5039 = vpop.f32.mrb[0].mxu0
        %v5040 = vadd.f32 0.0, %v5039
        %v5041 = vpop.f32.mrb[0].mxu0
        %v5042 = vadd.f32 0.0, %v5041
        %5043 = vdwg.mxu0
        %5044 = vmatprep.subr.mxu0 %v3834
        %5045 = vmatpush1.msra.mxu0 %v3833
        %5046 = vmatprep.subr.mxu0 %v3842
        %5047 = vmatpush1.msra.mxu0 %v3841
        %5048 = vmatprep.subr.mxu0 %v3850
        %5049 = vmatpush1.msra.mxu0 %v3849
        %5050 = vmatprep.subr.mxu0 %v3858
        %5051 = vmatpush1.msra.mxu0 %v3857
        %5052 = vmatprep.subr.mxu0 %v3866
        %5053 = vmatpush1.msra.mxu0 %v3865
        %5054 = vmatprep.subr.mxu0 %v3874
        %5055 = vmatpush1.msra.mxu0 %v3873
        %5056 = vmatprep.subr.mxu0 %v3882
        %5057 = vmatpush1.msra.mxu0 %v3881
        %5058 = vmatprep.subr.mxu0 %v3890
        %5059 = vmatpush1.msra.mxu0 %v3889
        %5060 = vmatprep.subr.mxu0 %v3898
        %5061 = vmatpush1.msra.mxu0 %v3897
        %5062 = vmatprep.subr.mxu0 %v3906
        %5063 = vmatpush1.msra.mxu0 %v3905
        %5064 = vmatprep.subr.mxu0 %v3914
        %5065 = vmatpush1.msra.mxu0 %v3913
        %5066 = vmatprep.subr.mxu0 %v3922
        %5067 = vmatpush1.msra.mxu0 %v3921
        %5068 = vmatprep.subr.mxu0 %v3930
        %5069 = vmatpush1.msra.mxu0 %v3929
        %5070 = vmatprep.subr.mxu0 %v3938
        %5071 = vmatpush1.msra.mxu0 %v3937
        %5072 = vmatprep.subr.mxu0 %v3946
        %5073 = vmatpush1.msra.mxu0 %v3945
        %5074 = vmatprep.subr.mxu0 %v3954
        %5075 = vmatpush1.msra.mxu0 %v3953
        %5076 = vmatprep.subr.mxu0 %v3962
        %5077 = vmatpush1.msra.mxu0 %v3961
        %5078 = vmatprep.subr.mxu0 %v3970
        %5079 = vmatpush1.msra.mxu0 %v3969
        %5080 = vmatprep.subr.mxu0 %v3978
        %5081 = vmatpush1.msra.mxu0 %v3977
        %5082 = vmatprep.subr.mxu0 %v3986
        %5083 = vmatpush1.msra.mxu0 %v3985
        %5084 = vmatprep.subr.mxu0 %v3994
        %5085 = vmatpush1.msra.mxu0 %v3993
        %5086 = vmatprep.subr.mxu0 %v4002
        %5087 = vmatpush1.msra.mxu0 %v4001
        %5088 = vmatprep.subr.mxu0 %v4010
        %5089 = vmatpush1.msra.mxu0 %v4009
        %5090 = vmatprep.subr.mxu0 %v4018
        %5091 = vmatpush1.msra.mxu0 %v4017
        %5092 = vmatprep.subr.mxu0 %v4026
        %5093 = vmatpush1.msra.mxu0 %v4025
        %5094 = vmatprep.subr.mxu0 %v4034
        %5095 = vmatpush1.msra.mxu0 %v4033
        %5096 = vmatprep.subr.mxu0 %v4042
        %5097 = vmatpush1.msra.mxu0 %v4041
        %5098 = vmatprep.subr.mxu0 %v4050
        %5099 = vmatpush1.msra.mxu0 %v4049
        %5100 = vmatprep.subr.mxu0 %v4058
        %5101 = vmatpush1.msra.mxu0 %v4057
        %5102 = vmatprep.subr.mxu0 %v4066
        %5103 = vmatpush1.msra.mxu0 %v4065
        %5104 = vmatprep.subr.mxu0 %v4074
        %5105 = vmatpush1.msra.mxu0 %v4073
        %5106 = vmatprep.subr.mxu0 %v4082
        %5107 = vmatpush1.msra.mxu0 %v4081
        %5108 = vmatprep.mubr.f32.mxu0 %v3514
        %5109 = vmatmul.mubr.f32.gmra.mrb[0].mxu0 %v3513
        %v5110 = vpop.f32.mrb[0].mxu0
        %v5111 = vadd.f32 %v5022, %v5110
        %v5112 = vpop.f32.mrb[0].mxu0
        %v5113 = vadd.f32 %v5024, %v5112
        %5114 = vmatprep.mubr.f32.mxu0 %v3522
        %5115 = vmatmul.mubr.f32.gmra.mrb[0].mxu0 %v3521
        %v5116 = vpop.f32.mrb[0].mxu0
        %v5117 = vadd.f32 %v5028, %v5116
        %v5118 = vpop.f32.mrb[0].mxu0
        %v5119 = vadd.f32 %v5030, %v5118
        %5120 = vmatprep.mubr.f32.mxu0 %v3530
        %5121 = vmatmul.mubr.f32.gmra.mrb[0].mxu0 %v3529
        %v5122 = vpop.f32.mrb[0].mxu0
        %v5123 = vadd.f32 %v5034, %v5122
        %v5124 = vpop.f32.mrb[0].mxu0
        %v5125 = vadd.f32 %v5036, %v5124
        %5126 = vmatprep.mubr.f32.mxu0 %v3538
        %5127 = vmatmul.mubr.f32.gmra.mrb[0].mxu0 %v3537
        %v5128 = vpop.f32.mrb[0].mxu0
        %v5129 = vadd.f32 %v5040, %v5128
        %v5130 = vpop.f32.mrb[0].mxu0
        %v5131 = vadd.f32 %v5042, %v5130
        %5132 = vdwg.mxu0
        %5133 = vmatprep.subr.mxu0 %v4090
        %5134 = vmatpush1.msra.mxu0 %v4089
        %5135 = vmatprep.subr.mxu0 %v4098
        %5136 = vmatpush1.msra.mxu0 %v4097
        %5137 = vmatprep.subr.mxu0 %v4106
        %5138 = vmatpush1.msra.mxu0 %v4105
        %5139 = vmatprep.subr.mxu0 %v4114
        %5140 = vmatpush1.msra.mxu0 %v4113
        %5141 = vmatprep.subr.mxu0 %v4122
        %5142 = vmatpush1.msra.mxu0 %v4121
        %5143 = vmatprep.subr.mxu0 %v4130
        %5144 = vmatpush1.msra.mxu0 %v4129
        %5145 = vmatprep.subr.mxu0 %v4138
        %5146 = vmatpush1.msra.mxu0 %v4137
        %5147 = vmatprep.subr.mxu0 %v4146
        %5148 = vmatpush1.msra.mxu0 %v4145
        %5149 = vmatprep.subr.mxu0 %v4154
        %5150 = vmatpush1.msra.mxu0 %v4153
        %5151 = vmatprep.subr.mxu0 %v4162
        %5152 = vmatpush1.msra.mxu0 %v4161
        %5153 = vmatprep.subr.mxu0 %v4170
        %5154 = vmatpush1.msra.mxu0 %v4169
        %5155 = vmatprep.subr.mxu0 %v4178
        %5156 = vmatpush1.msra.mxu0 %v4177
        %5157 = vmatprep.subr.mxu0 %v4186
        %5158 = vmatpush1.msra.mxu0 %v4185
        %5159 = vmatprep.subr.mxu0 %v4194
        %5160 = vmatpush1.msra.mxu0 %v4193
        %5161 = vmatprep.subr.mxu0 %v4202
        %5162 = vmatpush1.msra.mxu0 %v4201
        %5163 = vmatprep.subr.mxu0 %v4210
        %5164 = vmatpush1.msra.mxu0 %v4209
        %5165 = vmatprep.subr.mxu0 %v4218
        %5166 = vmatpush1.msra.mxu0 %v4217
        %5167 = vmatprep.subr.mxu0 %v4226
        %5168 = vmatpush1.msra.mxu0 %v4225
        %5169 = vmatprep.subr.mxu0 %v4234
        %5170 = vmatpush1.msra.mxu0 %v4233
        %5171 = vmatprep.subr.mxu0 %v4242
        %5172 = vmatpush1.msra.mxu0 %v4241
        %5173 = vmatprep.subr.mxu0 %v4250
        %5174 = vmatpush1.msra.mxu0 %v4249
        %5175 = vmatprep.subr.mxu0 %v4258
        %5176 = vmatpush1.msra.mxu0 %v4257
        %5177 = vmatprep.subr.mxu0 %v4266
        %5178 = vmatpush1.msra.mxu0 %v4265
        %5179 = vmatprep.subr.mxu0 %v4274
        %5180 = vmatpush1.msra.mxu0 %v4273
        %5181 = vmatprep.subr.mxu0 %v4282
        %5182 = vmatpush1.msra.mxu0 %v4281
        %5183 = vmatprep.subr.mxu0 %v4290
        %5184 = vmatpush1.msra.mxu0 %v4289
        %5185 = vmatprep.subr.mxu0 %v4298
        %5186 = vmatpush1.msra.mxu0 %v4297
        %5187 = vmatprep.subr.mxu0 %v4306
        %5188 = vmatpush1.msra.mxu0 %v4305
        %5189 = vmatprep.subr.mxu0 %v4314
        %5190 = vmatpush1.msra.mxu0 %v4313
        %5191 = vmatprep.subr.mxu0 %v4322
        %5192 = vmatpush1.msra.mxu0 %v4321
        %5193 = vmatprep.subr.mxu0 %v4330
        %5194 = vmatpush1.msra.mxu0 %v4329
        %5195 = vmatprep.subr.mxu0 %v4338
        %5196 = vmatpush1.msra.mxu0 %v4337
        %5197 = vmatprep.mubr.f32.mxu0 %v3516
        %5198 = vmatmul.mubr.f32.gmra.mrb[0].mxu0 %v3515
        %v5199 = vpop.f32.mrb[0].mxu0
        %v5200 = vadd.f32 %v5111, %v5199
        %v5201 = vpop.f32.mrb[0].mxu0
        %v5202 = vadd.f32 %v5113, %v5201
        %5203 = vmatprep.mubr.f32.mxu0 %v3524
        %5204 = vmatmul.mubr.f32.gmra.mrb[0].mxu0 %v3523
        %v5205 = vpop.f32.mrb[0].mxu0
        %v5206 = vadd.f32 %v5117, %v5205
        %v5207 = vpop.f32.mrb[0].mxu0
        %v5208 = vadd.f32 %v5119, %v5207
        %5209 = vmatprep.mubr.f32.mxu0 %v3532
        %5210 = vmatmul.mubr.f32.gmra.mrb[0].mxu0 %v3531
        %v5211 = vpop.f32.mrb[0].mxu0
        %v5212 = vadd.f32 %v5123, %v5211
        %v5213 = vpop.f32.mrb[0].mxu0
        %v5214 = vadd.f32 %v5125, %v5213
        %5215 = vmatprep.mubr.f32.mxu0 %v3540
        %5216 = vmatmul.mubr.f32.gmra.mrb[0].mxu0 %v3539
        %v5217 = vpop.f32.mrb[0].mxu0
        %v5218 = vadd.f32 %v5129, %v5217
        %v5219 = vpop.f32.mrb[0].mxu0
        %v5220 = vadd.f32 %v5131, %v5219
        %5221 = vdwg.mxu0
        %5222 = vmatprep.subr.mxu0 %v4346
        %5223 = vmatpush1.msra.mxu0 %v4345
        %5224 = vmatprep.subr.mxu0 %v4354
        %5225 = vmatpush1.msra.mxu0 %v4353
        %5226 = vmatprep.subr.mxu0 %v4362
        %5227 = vmatpush1.msra.mxu0 %v4361
        %5228 = vmatprep.subr.mxu0 %v4370
        %5229 = vmatpush1.msra.mxu0 %v4369
        %5230 = vmatprep.subr.mxu0 %v4378
        %5231 = vmatpush1.msra.mxu0 %v4377
        %5232 = vmatprep.subr.mxu0 %v4386
        %5233 = vmatpush1.msra.mxu0 %v4385
        %5234 = vmatprep.subr.mxu0 %v4394
        %5235 = vmatpush1.msra.mxu0 %v4393
        %5236 = vmatprep.subr.mxu0 %v4402
        %5237 = vmatpush1.msra.mxu0 %v4401
        %5238 = vmatprep.subr.mxu0 %v4410
        %5239 = vmatpush1.msra.mxu0 %v4409
        %5240 = vmatprep.subr.mxu0 %v4418
        %5241 = vmatpush1.msra.mxu0 %v4417
        %5242 = vmatprep.subr.mxu0 %v4426
        %5243 = vmatpush1.msra.mxu0 %v4425
        %5244 = vmatprep.subr.mxu0 %v4434
        %5245 = vmatpush1.msra.mxu0 %v4433
        %5246 = vmatprep.subr.mxu0 %v4442
        %5247 = vmatpush1.msra.mxu0 %v4441
        %5248 = vmatprep.subr.mxu0 %v4450
        %5249 = vmatpush1.msra.mxu0 %v4449
        %5250 = vmatprep.subr.mxu0 %v4458
        %5251 = vmatpush1.msra.mxu0 %v4457
        %5252 = vmatprep.subr.mxu0 %v4466
        %5253 = vmatpush1.msra.mxu0 %v4465
        %5254 = vmatprep.subr.mxu0 %v4474
        %5255 = vmatpush1.msra.mxu0 %v4473
        %5256 = vmatprep.subr.mxu0 %v4482
        %5257 = vmatpush1.msra.mxu0 %v4481
        %5258 = vmatprep.subr.mxu0 %v4490
        %5259 = vmatpush1.msra.mxu0 %v4489
        %5260 = vmatprep.subr.mxu0 %v4498
        %5261 = vmatpush1.msra.mxu0 %v4497
        %5262 = vmatprep.subr.mxu0 %v4506
        %5263 = vmatpush1.msra.mxu0 %v4505
        %5264 = vmatprep.subr.mxu0 %v4514
        %5265 = vmatpush1.msra.mxu0 %v4513
        %5266 = vmatprep.subr.mxu0 %v4522
        %5267 = vmatpush1.msra.mxu0 %v4521
        %5268 = vmatprep.subr.mxu0 %v4530
        %5269 = vmatpush1.msra.mxu0 %v4529
        %5270 = vmatprep.subr.mxu0 %v4538
        %5271 = vmatpush1.msra.mxu0 %v4537
        %5272 = vmatprep.subr.mxu0 %v4546
        %5273 = vmatpush1.msra.mxu0 %v4545
        %5274 = vmatprep.subr.mxu0 %v4554
        %5275 = vmatpush1.msra.mxu0 %v4553
        %5276 = vmatprep.subr.mxu0 %v4562
        %5277 = vmatpush1.msra.mxu0 %v4561
        %5278 = vmatprep.subr.mxu0 %v4570
        %5279 = vmatpush1.msra.mxu0 %v4569
        %5280 = vmatprep.subr.mxu0 %v4578
        %5281 = vmatpush1.msra.mxu0 %v4577
        %5282 = vmatprep.subr.mxu0 %v4586
        %5283 = vmatpush1.msra.mxu0 %v4585
        %5284 = vmatprep.subr.mxu0 %v4594
        %5285 = vmatpush1.msra.mxu0 %v4593
        %5286 = vmatprep.mubr.f32.mxu0 %v3518
        %5287 = vmatmul.mubr.f32.gmra.mrb[0].mxu0 %v3517
        %v5288 = vpop.f32.mrb[0].mxu0
        %v5289 = vadd.f32 %v5200, %v5288
        %v5290 = vpop.f32.mrb[0].mxu0
        %v5291 = vadd.f32 %v5202, %v5290
        %5292 = vmatprep.mubr.f32.mxu0 %v3526
        %5293 = vmatmul.mubr.f32.gmra.mrb[0].mxu0 %v3525
        %v5294 = vpop.f32.mrb[0].mxu0
        %v5295 = vadd.f32 %v5206, %v5294
        %v5296 = vpop.f32.mrb[0].mxu0
        %v5297 = vadd.f32 %v5208, %v5296
        %5298 = vmatprep.mubr.f32.mxu0 %v3534
        %5299 = vmatmul.mubr.f32.gmra.mrb[0].mxu0 %v3533
        %v5300 = vpop.f32.mrb[0].mxu0
        %v5301 = vadd.f32 %v5212, %v5300
        %v5302 = vpop.f32.mrb[0].mxu0
        %v5303 = vadd.f32 %v5214, %v5302
        %5304 = vmatprep.mubr.f32.mxu0 %v3542
        %5305 = vmatmul.mubr.f32.gmra.mrb[0].mxu0 %v3541
        %v5306 = vpop.f32.mrb[0].mxu0
        %v5307 = vadd.f32 %v5218, %v5306
        %v5308 = vpop.f32.mrb[0].mxu0
        %v5309 = vadd.f32 %v5220, %v5308
        %5310 = vdwg.mxu0
        %5311 = vmatprep.subr.mxu0 %v3580
        %5312 = vmatpush1.msra.mxu0 %v3579
        %5313 = vmatprep.subr.mxu0 %v3588
        %5314 = vmatpush1.msra.mxu0 %v3587
        %5315 = vmatprep.subr.mxu0 %v3596
        %5316 = vmatpush1.msra.mxu0 %v3595
        %5317 = vmatprep.subr.mxu0 %v3604
        %5318 = vmatpush1.msra.mxu0 %v3603
        %5319 = vmatprep.subr.mxu0 %v3612
        %5320 = vmatpush1.msra.mxu0 %v3611
        %5321 = vmatprep.subr.mxu0 %v3620
        %5322 = vmatpush1.msra.mxu0 %v3619
        %5323 = vmatprep.subr.mxu0 %v3628
        %5324 = vmatpush1.msra.mxu0 %v3627
        %5325 = vmatprep.subr.mxu0 %v3636
        %5326 = vmatpush1.msra.mxu0 %v3635
        %5327 = vmatprep.subr.mxu0 %v3644
        %5328 = vmatpush1.msra.mxu0 %v3643
        %5329 = vmatprep.subr.mxu0 %v3652
        %5330 = vmatpush1.msra.mxu0 %v3651
        %5331 = vmatprep.subr.mxu0 %v3660
        %5332 = vmatpush1.msra.mxu0 %v3659
        %5333 = vmatprep.subr.mxu0 %v3668
        %5334 = vmatpush1.msra.mxu0 %v3667
        %5335 = vmatprep.subr.mxu0 %v3676
        %5336 = vmatpush1.msra.mxu0 %v3675
        %5337 = vmatprep.subr.mxu0 %v3684
        %5338 = vmatpush1.msra.mxu0 %v3683
        %5339 = vmatprep.subr.mxu0 %v3692
        %5340 = vmatpush1.msra.mxu0 %v3691
        %5341 = vmatprep.subr.mxu0 %v3700
        %5342 = vmatpush1.msra.mxu0 %v3699
        %5343 = vmatprep.subr.mxu0 %v3708
        %5344 = vmatpush1.msra.mxu0 %v3707
        %5345 = vmatprep.subr.mxu0 %v3716
        %5346 = vmatpush1.msra.mxu0 %v3715
        %5347 = vmatprep.subr.mxu0 %v3724
        %5348 = vmatpush1.msra.mxu0 %v3723
        %5349 = vmatprep.subr.mxu0 %v3732
        %5350 = vmatpush1.msra.mxu0 %v3731
        %5351 = vmatprep.subr.mxu0 %v3740
        %5352 = vmatpush1.msra.mxu0 %v3739
        %5353 = vmatprep.subr.mxu0 %v3748
        %5354 = vmatpush1.msra.mxu0 %v3747
        %5355 = vmatprep.subr.mxu0 %v3756
        %5356 = vmatpush1.msra.mxu0 %v3755
        %5357 = vmatprep.subr.mxu0 %v3764
        %5358 = vmatpush1.msra.mxu0 %v3763
        %5359 = vmatprep.subr.mxu0 %v3772
        %5360 = vmatpush1.msra.mxu0 %v3771
        %5361 = vmatprep.subr.mxu0 %v3780
        %5362 = vmatpush1.msra.mxu0 %v3779
        %5363 = vmatprep.subr.mxu0 %v3788
        %5364 = vmatpush1.msra.mxu0 %v3787
        %5365 = vmatprep.subr.mxu0 %v3796
        %5366 = vmatpush1.msra.mxu0 %v3795
        %5367 = vmatprep.subr.mxu0 %v3804
        %5368 = vmatpush1.msra.mxu0 %v3803
        %5369 = vmatprep.subr.mxu0 %v3812
        %5370 = vmatpush1.msra.mxu0 %v3811
        %5371 = vmatprep.subr.mxu0 %v3820
        %5372 = vmatpush1.msra.mxu0 %v3819
        %5373 = vmatprep.subr.mxu0 %v3828
        %5374 = vmatpush1.msra.mxu0 %v3827
        %5375 = vmatprep.mubr.f32.mxu0 %v3512
        %5376 = vmatmul.mubr.f32.gmra.mrb[0].mxu0 %v3511
        %v5377 = vpop.f32.mrb[0].mxu0
        %v5378 = vadd.f32 0.0, %v5377
        %v5379 = vpop.f32.mrb[0].mxu0
        %v5380 = vadd.f32 0.0, %v5379
        %5381 = vmatprep.mubr.f32.mxu0 %v3520
        %5382 = vmatmul.mubr.f32.gmra.mrb[0].mxu0 %v3519
        %v5383 = vpop.f32.mrb[0].mxu0
        %v5384 = vadd.f32 0.0, %v5383
        %v5385 = vpop.f32.mrb[0].mxu0
        %v5386 = vadd.f32 0.0, %v5385
        %5387 = vmatprep.mubr.f32.mxu0 %v3528
        %5388 = vmatmul.mubr.f32.gmra.mrb[0].mxu0 %v3527
        %v5389 = vpop.f32.mrb[0].mxu0
        %v5390 = vadd.f32 0.0, %v5389
        %v5391 = vpop.f32.mrb[0].mxu0
        %v5392 = vadd.f32 0.0, %v5391
        %5393 = vmatprep.mubr.f32.mxu0 %v3536
        %5394 = vmatmul.mubr.f32.gmra.mrb[0].mxu0 %v3535
        %v5395 = vpop.f32.mrb[0].mxu0
        %v5396 = vadd.f32 0.0, %v5395
        %v5397 = vpop.f32.mrb[0].mxu0
        %v5398 = vadd.f32 0.0, %v5397
        %5399 = vdwg.mxu0
        %5400 = vmatprep.subr.mxu0 %v3836
        %5401 = vmatpush1.msra.mxu0 %v3835
        %5402 = vmatprep.subr.mxu0 %v3844
        %5403 = vmatpush1.msra.mxu0 %v3843
        %5404 = vmatprep.subr.mxu0 %v3852
        %5405 = vmatpush1.msra.mxu0 %v3851
        %5406 = vmatprep.subr.mxu0 %v3860
        %5407 = vmatpush1.msra.mxu0 %v3859
        %5408 = vmatprep.subr.mxu0 %v3868
        %5409 = vmatpush1.msra.mxu0 %v3867
        %5410 = vmatprep.subr.mxu0 %v3876
        %5411 = vmatpush1.msra.mxu0 %v3875
        %5412 = vmatprep.subr.mxu0 %v3884
        %5413 = vmatpush1.msra.mxu0 %v3883
        %5414 = vmatprep.subr.mxu0 %v3892
        %5415 = vmatpush1.msra.mxu0 %v3891
        %5416 = vmatprep.subr.mxu0 %v3900
        %5417 = vmatpush1.msra.mxu0 %v3899
        %5418 = vmatprep.subr.mxu0 %v3908
        %5419 = vmatpush1.msra.mxu0 %v3907
        %5420 = vmatprep.subr.mxu0 %v3916
        %5421 = vmatpush1.msra.mxu0 %v3915
        %5422 = vmatprep.subr.mxu0 %v3924
        %5423 = vmatpush1.msra.mxu0 %v3923
        %5424 = vmatprep.subr.mxu0 %v3932
        %5425 = vmatpush1.msra.mxu0 %v3931
        %5426 = vmatprep.subr.mxu0 %v3940
        %5427 = vmatpush1.msra.mxu0 %v3939
        %5428 = vmatprep.subr.mxu0 %v3948
        %5429 = vmatpush1.msra.mxu0 %v3947
        %5430 = vmatprep.subr.mxu0 %v3956
        %5431 = vmatpush1.msra.mxu0 %v3955
        %5432 = vmatprep.subr.mxu0 %v3964
        %5433 = vmatpush1.msra.mxu0 %v3963
        %5434 = vmatprep.subr.mxu0 %v3972
        %5435 = vmatpush1.msra.mxu0 %v3971
        %5436 = vmatprep.subr.mxu0 %v3980
        %5437 = vmatpush1.msra.mxu0 %v3979
        %5438 = vmatprep.subr.mxu0 %v3988
        %5439 = vmatpush1.msra.mxu0 %v3987
        %5440 = vmatprep.subr.mxu0 %v3996
        %5441 = vmatpush1.msra.mxu0 %v3995
        %5442 = vmatprep.subr.mxu0 %v4004
        %5443 = vmatpush1.msra.mxu0 %v4003
        %5444 = vmatprep.subr.mxu0 %v4012
        %5445 = vmatpush1.msra.mxu0 %v4011
        %5446 = vmatprep.subr.mxu0 %v4020
        %5447 = vmatpush1.msra.mxu0 %v4019
        %5448 = vmatprep.subr.mxu0 %v4028
        %5449 = vmatpush1.msra.mxu0 %v4027
        %5450 = vmatprep.subr.mxu0 %v4036
        %5451 = vmatpush1.msra.mxu0 %v4035
        %5452 = vmatprep.subr.mxu0 %v4044
        %5453 = vmatpush1.msra.mxu0 %v4043
        %5454 = vmatprep.subr.mxu0 %v4052
        %5455 = vmatpush1.msra.mxu0 %v4051
        %5456 = vmatprep.subr.mxu0 %v4060
        %5457 = vmatpush1.msra.mxu0 %v4059
        %5458 = vmatprep.subr.mxu0 %v4068
        %5459 = vmatpush1.msra.mxu0 %v4067
        %5460 = vmatprep.subr.mxu0 %v4076
        %5461 = vmatpush1.msra.mxu0 %v4075
        %5462 = vmatprep.subr.mxu0 %v4084
        %5463 = vmatpush1.msra.mxu0 %v4083
        %5464 = vmatprep.mubr.f32.mxu0 %v3514
        %5465 = vmatmul.mubr.f32.gmra.mrb[0].mxu0 %v3513
        %v5466 = vpop.f32.mrb[0].mxu0
        %v5467 = vadd.f32 %v5378, %v5466
        %v5468 = vpop.f32.mrb[0].mxu0
        %v5469 = vadd.f32 %v5380, %v5468
        %5470 = vmatprep.mubr.f32.mxu0 %v3522
        %5471 = vmatmul.mubr.f32.gmra.mrb[0].mxu0 %v3521
        %v5472 = vpop.f32.mrb[0].mxu0
        %v5473 = vadd.f32 %v5384, %v5472
        %v5474 = vpop.f32.mrb[0].mxu0
        %v5475 = vadd.f32 %v5386, %v5474
        %5476 = vmatprep.mubr.f32.mxu0 %v3530
        %5477 = vmatmul.mubr.f32.gmra.mrb[0].mxu0 %v3529
        %v5478 = vpop.f32.mrb[0].mxu0
        %v5479 = vadd.f32 %v5390, %v5478
        %v5480 = vpop.f32.mrb[0].mxu0
        %v5481 = vadd.f32 %v5392, %v5480
        %5482 = vmatprep.mubr.f32.mxu0 %v3538
        %5483 = vmatmul.mubr.f32.gmra.mrb[0].mxu0 %v3537
        %v5484 = vpop.f32.mrb[0].mxu0
        %v5485 = vadd.f32 %v5396, %v5484
        %v5486 = vpop.f32.mrb[0].mxu0
        %v5487 = vadd.f32 %v5398, %v5486
        %5488 = vdwg.mxu0
        %5489 = vmatprep.subr.mxu0 %v4092
        %5490 = vmatpush1.msra.mxu0 %v4091
        %5491 = vmatprep.subr.mxu0 %v4100
        %5492 = vmatpush1.msra.mxu0 %v4099
        %5493 = vmatprep.subr.mxu0 %v4108
        %5494 = vmatpush1.msra.mxu0 %v4107
        %5495 = vmatprep.subr.mxu0 %v4116
        %5496 = vmatpush1.msra.mxu0 %v4115
        %5497 = vmatprep.subr.mxu0 %v4124
        %5498 = vmatpush1.msra.mxu0 %v4123
        %5499 = vmatprep.subr.mxu0 %v4132
        %5500 = vmatpush1.msra.mxu0 %v4131
        %5501 = vmatprep.subr.mxu0 %v4140
        %5502 = vmatpush1.msra.mxu0 %v4139
        %5503 = vmatprep.subr.mxu0 %v4148
        %5504 = vmatpush1.msra.mxu0 %v4147
        %5505 = vmatprep.subr.mxu0 %v4156
        %5506 = vmatpush1.msra.mxu0 %v4155
        %5507 = vmatprep.subr.mxu0 %v4164
        %5508 = vmatpush1.msra.mxu0 %v4163
        %5509 = vmatprep.subr.mxu0 %v4172
        %5510 = vmatpush1.msra.mxu0 %v4171
        %5511 = vmatprep.subr.mxu0 %v4180
        %5512 = vmatpush1.msra.mxu0 %v4179
        %5513 = vmatprep.subr.mxu0 %v4188
        %5514 = vmatpush1.msra.mxu0 %v4187
        %5515 = vmatprep.subr.mxu0 %v4196
        %5516 = vmatpush1.msra.mxu0 %v4195
        %5517 = vmatprep.subr.mxu0 %v4204
        %5518 = vmatpush1.msra.mxu0 %v4203
        %5519 = vmatprep.subr.mxu0 %v4212
        %5520 = vmatpush1.msra.mxu0 %v4211
        %5521 = vmatprep.subr.mxu0 %v4220
        %5522 = vmatpush1.msra.mxu0 %v4219
        %5523 = vmatprep.subr.mxu0 %v4228
        %5524 = vmatpush1.msra.mxu0 %v4227
        %5525 = vmatprep.subr.mxu0 %v4236
        %5526 = vmatpush1.msra.mxu0 %v4235
        %5527 = vmatprep.subr.mxu0 %v4244
        %5528 = vmatpush1.msra.mxu0 %v4243
        %5529 = vmatprep.subr.mxu0 %v4252
        %5530 = vmatpush1.msra.mxu0 %v4251
        %5531 = vmatprep.subr.mxu0 %v4260
        %5532 = vmatpush1.msra.mxu0 %v4259
        %5533 = vmatprep.subr.mxu0 %v4268
        %5534 = vmatpush1.msra.mxu0 %v4267
        %5535 = vmatprep.subr.mxu0 %v4276
        %5536 = vmatpush1.msra.mxu0 %v4275
        %5537 = vmatprep.subr.mxu0 %v4284
        %5538 = vmatpush1.msra.mxu0 %v4283
        %5539 = vmatprep.subr.mxu0 %v4292
        %5540 = vmatpush1.msra.mxu0 %v4291
        %5541 = vmatprep.subr.mxu0 %v4300
        %5542 = vmatpush1.msra.mxu0 %v4299
        %5543 = vmatprep.subr.mxu0 %v4308
        %5544 = vmatpush1.msra.mxu0 %v4307
        %5545 = vmatprep.subr.mxu0 %v4316
        %5546 = vmatpush1.msra.mxu0 %v4315
        %5547 = vmatprep.subr.mxu0 %v4324
        %5548 = vmatpush1.msra.mxu0 %v4323
        %5549 = vmatprep.subr.mxu0 %v4332
        %5550 = vmatpush1.msra.mxu0 %v4331
        %5551 = vmatprep.subr.mxu0 %v4340
        %5552 = vmatpush1.msra.mxu0 %v4339
        %5553 = vmatprep.mubr.f32.mxu0 %v3516
        %5554 = vmatmul.mubr.f32.gmra.mrb[0].mxu0 %v3515
        %v5555 = vpop.f32.mrb[0].mxu0
        %v5556 = vadd.f32 %v5467, %v5555
        %v5557 = vpop.f32.mrb[0].mxu0
        %v5558 = vadd.f32 %v5469, %v5557
        %5559 = vmatprep.mubr.f32.mxu0 %v3524
        %5560 = vmatmul.mubr.f32.gmra.mrb[0].mxu0 %v3523
        %v5561 = vpop.f32.mrb[0].mxu0
        %v5562 = vadd.f32 %v5473, %v5561
        %v5563 = vpop.f32.mrb[0].mxu0
        %v5564 = vadd.f32 %v5475, %v5563
        %5565 = vmatprep.mubr.f32.mxu0 %v3532
        %5566 = vmatmul.mubr.f32.gmra.mrb[0].mxu0 %v3531
        %v5567 = vpop.f32.mrb[0].mxu0
        %v5568 = vadd.f32 %v5479, %v5567
        %v5569 = vpop.f32.mrb[0].mxu0
        %v5570 = vadd.f32 %v5481, %v5569
        %5571 = vmatprep.mubr.f32.mxu0 %v3540
        %5572 = vmatmul.mubr.f32.gmra.mrb[0].mxu0 %v3539
        %v5573 = vpop.f32.mrb[0].mxu0
        %v5574 = vadd.f32 %v5485, %v5573
        %v5575 = vpop.f32.mrb[0].mxu0
        %v5576 = vadd.f32 %v5487, %v5575
        %5577 = vdwg.mxu0
        %5578 = vmatprep.subr.mxu0 %v4348
        %5579 = vmatpush1.msra.mxu0 %v4347
        %5580 = vmatprep.subr.mxu0 %v4356
        %5581 = vmatpush1.msra.mxu0 %v4355
        %5582 = vmatprep.subr.mxu0 %v4364
        %5583 = vmatpush1.msra.mxu0 %v4363
        %5584 = vmatprep.subr.mxu0 %v4372
        %5585 = vmatpush1.msra.mxu0 %v4371
        %5586 = vmatprep.subr.mxu0 %v4380
        %5587 = vmatpush1.msra.mxu0 %v4379
        %5588 = vmatprep.subr.mxu0 %v4388
        %5589 = vmatpush1.msra.mxu0 %v4387
        %5590 = vmatprep.subr.mxu0 %v4396
        %5591 = vmatpush1.msra.mxu0 %v4395
        %5592 = vmatprep.subr.mxu0 %v4404
        %5593 = vmatpush1.msra.mxu0 %v4403
        %5594 = vmatprep.subr.mxu0 %v4412
        %5595 = vmatpush1.msra.mxu0 %v4411
        %5596 = vmatprep.subr.mxu0 %v4420
        %5597 = vmatpush1.msra.mxu0 %v4419
        %5598 = vmatprep.subr.mxu0 %v4428
        %5599 = vmatpush1.msra.mxu0 %v4427
        %5600 = vmatprep.subr.mxu0 %v4436
        %5601 = vmatpush1.msra.mxu0 %v4435
        %5602 = vmatprep.subr.mxu0 %v4444
        %5603 = vmatpush1.msra.mxu0 %v4443
        %5604 = vmatprep.subr.mxu0 %v4452
        %5605 = vmatpush1.msra.mxu0 %v4451
        %5606 = vmatprep.subr.mxu0 %v4460
        %5607 = vmatpush1.msra.mxu0 %v4459
        %5608 = vmatprep.subr.mxu0 %v4468
        %5609 = vmatpush1.msra.mxu0 %v4467
        %5610 = vmatprep.subr.mxu0 %v4476
        %5611 = vmatpush1.msra.mxu0 %v4475
        %5612 = vmatprep.subr.mxu0 %v4484
        %5613 = vmatpush1.msra.mxu0 %v4483
        %5614 = vmatprep.subr.mxu0 %v4492
        %5615 = vmatpush1.msra.mxu0 %v4491
        %5616 = vmatprep.subr.mxu0 %v4500
        %5617 = vmatpush1.msra.mxu0 %v4499
        %5618 = vmatprep.subr.mxu0 %v4508
        %5619 = vmatpush1.msra.mxu0 %v4507
        %5620 = vmatprep.subr.mxu0 %v4516
        %5621 = vmatpush1.msra.mxu0 %v4515
        %5622 = vmatprep.subr.mxu0 %v4524
        %5623 = vmatpush1.msra.mxu0 %v4523
        %5624 = vmatprep.subr.mxu0 %v4532
        %5625 = vmatpush1.msra.mxu0 %v4531
        %5626 = vmatprep.subr.mxu0 %v4540
        %5627 = vmatpush1.msra.mxu0 %v4539
        %5628 = vmatprep.subr.mxu0 %v4548
        %5629 = vmatpush1.msra.mxu0 %v4547
        %5630 = vmatprep.subr.mxu0 %v4556
        %5631 = vmatpush1.msra.mxu0 %v4555
        %5632 = vmatprep.subr.mxu0 %v4564
        %5633 = vmatpush1.msra.mxu0 %v4563
        %5634 = vmatprep.subr.mxu0 %v4572
        %5635 = vmatpush1.msra.mxu0 %v4571
        %5636 = vmatprep.subr.mxu0 %v4580
        %5637 = vmatpush1.msra.mxu0 %v4579
        %5638 = vmatprep.subr.mxu0 %v4588
        %5639 = vmatpush1.msra.mxu0 %v4587
        %5640 = vmatprep.subr.mxu0 %v4596
        %5641 = vmatpush1.msra.mxu0 %v4595
        %5642 = vmatprep.mubr.f32.mxu0 %v3518
        %5643 = vmatmul.mubr.f32.gmra.mrb[0].mxu0 %v3517
        %v5644 = vpop.f32.mrb[0].mxu0
        %v5645 = vadd.f32 %v5556, %v5644
        %v5646 = vpop.f32.mrb[0].mxu0
        %v5647 = vadd.f32 %v5558, %v5646
        %5648 = vmatprep.mubr.f32.mxu0 %v3526
        %5649 = vmatmul.mubr.f32.gmra.mrb[0].mxu0 %v3525
        %v5650 = vpop.f32.mrb[0].mxu0
        %v5651 = vadd.f32 %v5562, %v5650
        %v5652 = vpop.f32.mrb[0].mxu0
        %v5653 = vadd.f32 %v5564, %v5652
        %5654 = vmatprep.mubr.f32.mxu0 %v3534
        %5655 = vmatmul.mubr.f32.gmra.mrb[0].mxu0 %v3533
        %v5656 = vpop.f32.mrb[0].mxu0
        %v5657 = vadd.f32 %v5568, %v5656
        %v5658 = vpop.f32.mrb[0].mxu0
        %v5659 = vadd.f32 %v5570, %v5658
        %5660 = vmatprep.mubr.f32.mxu0 %v3542
        %5661 = vmatmul.mubr.f32.gmra.mrb[0].mxu0 %v3541
        %v5662 = vpop.f32.mrb[0].mxu0
        %v5663 = vadd.f32 %v5574, %v5662
        %v5664 = vpop.f32.mrb[0].mxu0
        %v5665 = vadd.f32 %v5576, %v5664
        %5666 = vdwg.mxu0
        %5667 = vmatprep.subr.mxu0 %v3582
        %5668 = vmatpush1.msra.mxu0 %v3581
        %5669 = vmatprep.subr.mxu0 %v3590
        %5670 = vmatpush1.msra.mxu0 %v3589
        %5671 = vmatprep.subr.mxu0 %v3598
        %5672 = vmatpush1.msra.mxu0 %v3597
        %5673 = vmatprep.subr.mxu0 %v3606
        %5674 = vmatpush1.msra.mxu0 %v3605
        %5675 = vmatprep.subr.mxu0 %v3614
        %5676 = vmatpush1.msra.mxu0 %v3613
        %5677 = vmatprep.subr.mxu0 %v3622
        %5678 = vmatpush1.msra.mxu0 %v3621
        %5679 = vmatprep.subr.mxu0 %v3630
        %5680 = vmatpush1.msra.mxu0 %v3629
        %5681 = vmatprep.subr.mxu0 %v3638
        %5682 = vmatpush1.msra.mxu0 %v3637
        %5683 = vmatprep.subr.mxu0 %v3646
        %5684 = vmatpush1.msra.mxu0 %v3645
        %5685 = vmatprep.subr.mxu0 %v3654
        %5686 = vmatpush1.msra.mxu0 %v3653
        %5687 = vmatprep.subr.mxu0 %v3662
        %5688 = vmatpush1.msra.mxu0 %v3661
        %5689 = vmatprep.subr.mxu0 %v3670
        %5690 = vmatpush1.msra.mxu0 %v3669
        %5691 = vmatprep.subr.mxu0 %v3678
        %5692 = vmatpush1.msra.mxu0 %v3677
        %5693 = vmatprep.subr.mxu0 %v3686
        %5694 = vmatpush1.msra.mxu0 %v3685
        %5695 = vmatprep.subr.mxu0 %v3694
        %5696 = vmatpush1.msra.mxu0 %v3693
        %5697 = vmatprep.subr.mxu0 %v3702
        %5698 = vmatpush1.msra.mxu0 %v3701
        %5699 = vmatprep.subr.mxu0 %v3710
        %5700 = vmatpush1.msra.mxu0 %v3709
        %5701 = vmatprep.subr.mxu0 %v3718
        %5702 = vmatpush1.msra.mxu0 %v3717
        %5703 = vmatprep.subr.mxu0 %v3726
        %5704 = vmatpush1.msra.mxu0 %v3725
        %5705 = vmatprep.subr.mxu0 %v3734
        %5706 = vmatpush1.msra.mxu0 %v3733
        %5707 = vmatprep.subr.mxu0 %v3742
        %5708 = vmatpush1.msra.mxu0 %v3741
        %5709 = vmatprep.subr.mxu0 %v3750
        %5710 = vmatpush1.msra.mxu0 %v3749
        %5711 = vmatprep.subr.mxu0 %v3758
        %5712 = vmatpush1.msra.mxu0 %v3757
        %5713 = vmatprep.subr.mxu0 %v3766
        %5714 = vmatpush1.msra.mxu0 %v3765
        %5715 = vmatprep.subr.mxu0 %v3774
        %5716 = vmatpush1.msra.mxu0 %v3773
        %5717 = vmatprep.subr.mxu0 %v3782
        %5718 = vmatpush1.msra.mxu0 %v3781
        %5719 = vmatprep.subr.mxu0 %v3790
        %5720 = vmatpush1.msra.mxu0 %v3789
        %5721 = vmatprep.subr.mxu0 %v3798
        %5722 = vmatpush1.msra.mxu0 %v3797
        %5723 = vmatprep.subr.mxu0 %v3806
        %5724 = vmatpush1.msra.mxu0 %v3805
        %5725 = vmatprep.subr.mxu0 %v3814
        %5726 = vmatpush1.msra.mxu0 %v3813
        %5727 = vmatprep.subr.mxu0 %v3822
        %5728 = vmatpush1.msra.mxu0 %v3821
        %5729 = vmatprep.subr.mxu0 %v3830
        %5730 = vmatpush1.msra.mxu0 %v3829
        %5731 = vmatprep.mubr.f32.mxu0 %v3512
        %5732 = vmatmul.mubr.f32.gmra.mrb[0].mxu0 %v3511
        %v5733 = vpop.f32.mrb[0].mxu0
        %v5734 = vadd.f32 0.0, %v5733
        %v5735 = vpop.f32.mrb[0].mxu0
        %v5736 = vadd.f32 0.0, %v5735
        %5737 = vmatprep.mubr.f32.mxu0 %v3520
        %5738 = vmatmul.mubr.f32.gmra.mrb[0].mxu0 %v3519
        %v5739 = vpop.f32.mrb[0].mxu0
        %v5740 = vadd.f32 0.0, %v5739
        %v5741 = vpop.f32.mrb[0].mxu0
        %v5742 = vadd.f32 0.0, %v5741
        %5743 = vmatprep.mubr.f32.mxu0 %v3528
        %5744 = vmatmul.mubr.f32.gmra.mrb[0].mxu0 %v3527
        %v5745 = vpop.f32.mrb[0].mxu0
        %v5746 = vadd.f32 0.0, %v5745
        %v5747 = vpop.f32.mrb[0].mxu0
        %v5748 = vadd.f32 0.0, %v5747
        %5749 = vmatprep.mubr.f32.mxu0 %v3536
        %5750 = vmatmul.mubr.f32.gmra.mrb[0].mxu0 %v3535
        %v5751 = vpop.f32.mrb[0].mxu0
        %v5752 = vadd.f32 0.0, %v5751
        %v5753 = vpop.f32.mrb[0].mxu0
        %v5754 = vadd.f32 0.0, %v5753
        %5755 = vdwg.mxu0
        %5756 = vmatprep.subr.mxu0 %v3838
        %5757 = vmatpush1.msra.mxu0 %v3837
        %5758 = vmatprep.subr.mxu0 %v3846
        %5759 = vmatpush1.msra.mxu0 %v3845
        %5760 = vmatprep.subr.mxu0 %v3854
        %5761 = vmatpush1.msra.mxu0 %v3853
        %5762 = vmatprep.subr.mxu0 %v3862
        %5763 = vmatpush1.msra.mxu0 %v3861
        %5764 = vmatprep.subr.mxu0 %v3870
        %5765 = vmatpush1.msra.mxu0 %v3869
        %5766 = vmatprep.subr.mxu0 %v3878
        %5767 = vmatpush1.msra.mxu0 %v3877
        %5768 = vmatprep.subr.mxu0 %v3886
        %5769 = vmatpush1.msra.mxu0 %v3885
        %5770 = vmatprep.subr.mxu0 %v3894
        %5771 = vmatpush1.msra.mxu0 %v3893
        %5772 = vmatprep.subr.mxu0 %v3902
        %5773 = vmatpush1.msra.mxu0 %v3901
        %5774 = vmatprep.subr.mxu0 %v3910
        %5775 = vmatpush1.msra.mxu0 %v3909
        %5776 = vmatprep.subr.mxu0 %v3918
        %5777 = vmatpush1.msra.mxu0 %v3917
        %5778 = vmatprep.subr.mxu0 %v3926
        %5779 = vmatpush1.msra.mxu0 %v3925
        %5780 = vmatprep.subr.mxu0 %v3934
        %5781 = vmatpush1.msra.mxu0 %v3933
        %5782 = vmatprep.subr.mxu0 %v3942
        %5783 = vmatpush1.msra.mxu0 %v3941
        %5784 = vmatprep.subr.mxu0 %v3950
        %5785 = vmatpush1.msra.mxu0 %v3949
        %5786 = vmatprep.subr.mxu0 %v3958
        %5787 = vmatpush1.msra.mxu0 %v3957
        %5788 = vmatprep.subr.mxu0 %v3966
        %5789 = vmatpush1.msra.mxu0 %v3965
        %5790 = vmatprep.subr.mxu0 %v3974
        %5791 = vmatpush1.msra.mxu0 %v3973
        %5792 = vmatprep.subr.mxu0 %v3982
        %5793 = vmatpush1.msra.mxu0 %v3981
        %5794 = vmatprep.subr.mxu0 %v3990
        %5795 = vmatpush1.msra.mxu0 %v3989
        %5796 = vmatprep.subr.mxu0 %v3998
        %5797 = vmatpush1.msra.mxu0 %v3997
        %5798 = vmatprep.subr.mxu0 %v4006
        %5799 = vmatpush1.msra.mxu0 %v4005
        %5800 = vmatprep.subr.mxu0 %v4014
        %5801 = vmatpush1.msra.mxu0 %v4013
        %5802 = vmatprep.subr.mxu0 %v4022
        %5803 = vmatpush1.msra.mxu0 %v4021
        %5804 = vmatprep.subr.mxu0 %v4030
        %5805 = vmatpush1.msra.mxu0 %v4029
        %5806 = vmatprep.subr.mxu0 %v4038
        %5807 = vmatpush1.msra.mxu0 %v4037
        %5808 = vmatprep.subr.mxu0 %v4046
        %5809 = vmatpush1.msra.mxu0 %v4045
        %5810 = vmatprep.subr.mxu0 %v4054
        %5811 = vmatpush1.msra.mxu0 %v4053
        %5812 = vmatprep.subr.mxu0 %v4062
        %5813 = vmatpush1.msra.mxu0 %v4061
        %5814 = vmatprep.subr.mxu0 %v4070
        %5815 = vmatpush1.msra.mxu0 %v4069
        %5816 = vmatprep.subr.mxu0 %v4078
        %5817 = vmatpush1.msra.mxu0 %v4077
        %5818 = vmatprep.subr.mxu0 %v4086
        %5819 = vmatpush1.msra.mxu0 %v4085
        %5820 = vmatprep.mubr.f32.mxu0 %v3514
        %5821 = vmatmul.mubr.f32.gmra.mrb[0].mxu0 %v3513
        %v5822 = vpop.f32.mrb[0].mxu0
        %v5823 = vadd.f32 %v5734, %v5822
        %v5824 = vpop.f32.mrb[0].mxu0
        %v5825 = vadd.f32 %v5736, %v5824
        %5826 = vmatprep.mubr.f32.mxu0 %v3522
        %5827 = vmatmul.mubr.f32.gmra.mrb[0].mxu0 %v3521
        %v5828 = vpop.f32.mrb[0].mxu0
        %v5829 = vadd.f32 %v5740, %v5828
        %v5830 = vpop.f32.mrb[0].mxu0
        %v5831 = vadd.f32 %v5742, %v5830
        %5832 = vmatprep.mubr.f32.mxu0 %v3530
        %5833 = vmatmul.mubr.f32.gmra.mrb[0].mxu0 %v3529
        %v5834 = vpop.f32.mrb[0].mxu0
        %v5835 = vadd.f32 %v5746, %v5834
        %v5836 = vpop.f32.mrb[0].mxu0
        %v5837 = vadd.f32 %v5748, %v5836
        %5838 = vmatprep.mubr.f32.mxu0 %v3538
        %5839 = vmatmul.mubr.f32.gmra.mrb[0].mxu0 %v3537
        %v5840 = vpop.f32.mrb[0].mxu0
        %v5841 = vadd.f32 %v5752, %v5840
        %v5842 = vpop.f32.mrb[0].mxu0
        %v5843 = vadd.f32 %v5754, %v5842
        %5844 = vdwg.mxu0
        %5845 = vmatprep.subr.mxu0 %v4094
        %5846 = vmatpush1.msra.mxu0 %v4093
        %5847 = vmatprep.subr.mxu0 %v4102
        %5848 = vmatpush1.msra.mxu0 %v4101
        %5849 = vmatprep.subr.mxu0 %v4110
        %5850 = vmatpush1.msra.mxu0 %v4109
        %5851 = vmatprep.subr.mxu0 %v4118
        %5852 = vmatpush1.msra.mxu0 %v4117
        %5853 = vmatprep.subr.mxu0 %v4126
        %5854 = vmatpush1.msra.mxu0 %v4125
        %5855 = vmatprep.subr.mxu0 %v4134
        %5856 = vmatpush1.msra.mxu0 %v4133
        %5857 = vmatprep.subr.mxu0 %v4142
        %5858 = vmatpush1.msra.mxu0 %v4141
        %5859 = vmatprep.subr.mxu0 %v4150
        %5860 = vmatpush1.msra.mxu0 %v4149
        %5861 = vmatprep.subr.mxu0 %v4158
        %5862 = vmatpush1.msra.mxu0 %v4157
        %5863 = vmatprep.subr.mxu0 %v4166
        %5864 = vmatpush1.msra.mxu0 %v4165
        %5865 = vmatprep.subr.mxu0 %v4174
        %5866 = vmatpush1.msra.mxu0 %v4173
        %5867 = vmatprep.subr.mxu0 %v4182
        %5868 = vmatpush1.msra.mxu0 %v4181
        %5869 = vmatprep.subr.mxu0 %v4190
        %5870 = vmatpush1.msra.mxu0 %v4189
        %5871 = vmatprep.subr.mxu0 %v4198
        %5872 = vmatpush1.msra.mxu0 %v4197
        %5873 = vmatprep.subr.mxu0 %v4206
        %5874 = vmatpush1.msra.mxu0 %v4205
        %5875 = vmatprep.subr.mxu0 %v4214
        %5876 = vmatpush1.msra.mxu0 %v4213
        %5877 = vmatprep.subr.mxu0 %v4222
        %5878 = vmatpush1.msra.mxu0 %v4221
        %5879 = vmatprep.subr.mxu0 %v4230
        %5880 = vmatpush1.msra.mxu0 %v4229
        %5881 = vmatprep.subr.mxu0 %v4238
        %5882 = vmatpush1.msra.mxu0 %v4237
        %5883 = vmatprep.subr.mxu0 %v4246
        %5884 = vmatpush1.msra.mxu0 %v4245
        %5885 = vmatprep.subr.mxu0 %v4254
        %5886 = vmatpush1.msra.mxu0 %v4253
        %5887 = vmatprep.subr.mxu0 %v4262
        %5888 = vmatpush1.msra.mxu0 %v4261
        %5889 = vmatprep.subr.mxu0 %v4270
        %5890 = vmatpush1.msra.mxu0 %v4269
        %5891 = vmatprep.subr.mxu0 %v4278
        %5892 = vmatpush1.msra.mxu0 %v4277
        %5893 = vmatprep.subr.mxu0 %v4286
        %5894 = vmatpush1.msra.mxu0 %v4285
        %5895 = vmatprep.subr.mxu0 %v4294
        %5896 = vmatpush1.msra.mxu0 %v4293
        %5897 = vmatprep.subr.mxu0 %v4302
        %5898 = vmatpush1.msra.mxu0 %v4301
        %5899 = vmatprep.subr.mxu0 %v4310
        %5900 = vmatpush1.msra.mxu0 %v4309
        %5901 = vmatprep.subr.mxu0 %v4318
        %5902 = vmatpush1.msra.mxu0 %v4317
        %5903 = vmatprep.subr.mxu0 %v4326
        %5904 = vmatpush1.msra.mxu0 %v4325
        %5905 = vmatprep.subr.mxu0 %v4334
        %5906 = vmatpush1.msra.mxu0 %v4333
        %5907 = vmatprep.subr.mxu0 %v4342
        %5908 = vmatpush1.msra.mxu0 %v4341
        %5909 = vmatprep.mubr.f32.mxu0 %v3516
        %5910 = vmatmul.mubr.f32.gmra.mrb[0].mxu0 %v3515
        %v5911 = vpop.f32.mrb[0].mxu0
        %v5912 = vadd.f32 %v5823, %v5911
        %v5913 = vpop.f32.mrb[0].mxu0
        %v5914 = vadd.f32 %v5825, %v5913
        %5915 = vmatprep.mubr.f32.mxu0 %v3524
        %5916 = vmatmul.mubr.f32.gmra.mrb[0].mxu0 %v3523
        %v5917 = vpop.f32.mrb[0].mxu0
        %v5918 = vadd.f32 %v5829, %v5917
        %v5919 = vpop.f32.mrb[0].mxu0
        %v5920 = vadd.f32 %v5831, %v5919
        %5921 = vmatprep.mubr.f32.mxu0 %v3532
        %5922 = vmatmul.mubr.f32.gmra.mrb[0].mxu0 %v3531
        %v5923 = vpop.f32.mrb[0].mxu0
        %v5924 = vadd.f32 %v5835, %v5923
        %v5925 = vpop.f32.mrb[0].mxu0
        %v5926 = vadd.f32 %v5837, %v5925
        %5927 = vmatprep.mubr.f32.mxu0 %v3540
        %5928 = vmatmul.mubr.f32.gmra.mrb[0].mxu0 %v3539
        %v5929 = vpop.f32.mrb[0].mxu0
        %v5930 = vadd.f32 %v5841, %v5929
        %v5931 = vpop.f32.mrb[0].mxu0
        %v5932 = vadd.f32 %v5843, %v5931
        %5933 = vdwg.mxu0
        %5934 = vmatprep.subr.mxu0 %v4350
        %5935 = vmatpush1.msra.mxu0 %v4349
        %5936 = vmatprep.subr.mxu0 %v4358
        %5937 = vmatpush1.msra.mxu0 %v4357
        %5938 = vmatprep.subr.mxu0 %v4366
        %5939 = vmatpush1.msra.mxu0 %v4365
        %5940 = vmatprep.subr.mxu0 %v4374
        %5941 = vmatpush1.msra.mxu0 %v4373
        %5942 = vmatprep.subr.mxu0 %v4382
        %5943 = vmatpush1.msra.mxu0 %v4381
        %5944 = vmatprep.subr.mxu0 %v4390
        %5945 = vmatpush1.msra.mxu0 %v4389
        %5946 = vmatprep.subr.mxu0 %v4398
        %5947 = vmatpush1.msra.mxu0 %v4397
        %5948 = vmatprep.subr.mxu0 %v4406
        %5949 = vmatpush1.msra.mxu0 %v4405
        %5950 = vmatprep.subr.mxu0 %v4414
        %5951 = vmatpush1.msra.mxu0 %v4413
        %5952 = vmatprep.subr.mxu0 %v4422
        %5953 = vmatpush1.msra.mxu0 %v4421
        %5954 = vmatprep.subr.mxu0 %v4430
        %5955 = vmatpush1.msra.mxu0 %v4429
        %5956 = vmatprep.subr.mxu0 %v4438
        %5957 = vmatpush1.msra.mxu0 %v4437
        %5958 = vmatprep.subr.mxu0 %v4446
        %5959 = vmatpush1.msra.mxu0 %v4445
        %5960 = vmatprep.subr.mxu0 %v4454
        %5961 = vmatpush1.msra.mxu0 %v4453
        %5962 = vmatprep.subr.mxu0 %v4462
        %5963 = vmatpush1.msra.mxu0 %v4461
        %5964 = vmatprep.subr.mxu0 %v4470
        %5965 = vmatpush1.msra.mxu0 %v4469
        %5966 = vmatprep.subr.mxu0 %v4478
        %5967 = vmatpush1.msra.mxu0 %v4477
        %5968 = vmatprep.subr.mxu0 %v4486
        %5969 = vmatpush1.msra.mxu0 %v4485
        %5970 = vmatprep.subr.mxu0 %v4494
        %5971 = vmatpush1.msra.mxu0 %v4493
        %5972 = vmatprep.subr.mxu0 %v4502
        %5973 = vmatpush1.msra.mxu0 %v4501
        %5974 = vmatprep.subr.mxu0 %v4510
        %5975 = vmatpush1.msra.mxu0 %v4509
        %5976 = vmatprep.subr.mxu0 %v4518
        %5977 = vmatpush1.msra.mxu0 %v4517
        %5978 = vmatprep.subr.mxu0 %v4526
        %5979 = vmatpush1.msra.mxu0 %v4525
        %5980 = vmatprep.subr.mxu0 %v4534
        %5981 = vmatpush1.msra.mxu0 %v4533
        %5982 = vmatprep.subr.mxu0 %v4542
        %5983 = vmatpush1.msra.mxu0 %v4541
        %5984 = vmatprep.subr.mxu0 %v4550
        %5985 = vmatpush1.msra.mxu0 %v4549
        %5986 = vmatprep.subr.mxu0 %v4558
        %5987 = vmatpush1.msra.mxu0 %v4557
        %5988 = vmatprep.subr.mxu0 %v4566
        %5989 = vmatpush1.msra.mxu0 %v4565
        %5990 = vmatprep.subr.mxu0 %v4574
        %5991 = vmatpush1.msra.mxu0 %v4573
        %5992 = vmatprep.subr.mxu0 %v4582
        %5993 = vmatpush1.msra.mxu0 %v4581
        %5994 = vmatprep.subr.mxu0 %v4590
        %5995 = vmatpush1.msra.mxu0 %v4589
        %5996 = vmatprep.subr.mxu0 %v4598
        %5997 = vmatpush1.msra.mxu0 %v4597
        %5998 = vmatprep.mubr.f32.mxu0 %v3518
        %5999 = vmatmul.mubr.f32.gmra.mrb[0].mxu0 %v3517
        %v6000 = vpop.f32.mrb[0].mxu0
        %v6001 = vadd.f32 %v5912, %v6000
        %v6002 = vpop.f32.mrb[0].mxu0
        %v6003 = vadd.f32 %v5914, %v6002
        %6004 = vmatprep.mubr.f32.mxu0 %v3526
        %6005 = vmatmul.mubr.f32.gmra.mrb[0].mxu0 %v3525
        %v6006 = vpop.f32.mrb[0].mxu0
        %v6007 = vadd.f32 %v5918, %v6006
        %v6008 = vpop.f32.mrb[0].mxu0
        %v6009 = vadd.f32 %v5920, %v6008
        %6010 = vmatprep.mubr.f32.mxu0 %v3534
        %6011 = vmatmul.mubr.f32.gmra.mrb[0].mxu0 %v3533
        %v6012 = vpop.f32.mrb[0].mxu0
        %v6013 = vadd.f32 %v5924, %v6012
        %v6014 = vpop.f32.mrb[0].mxu0
        %v6015 = vadd.f32 %v5926, %v6014
        %6016 = vmatprep.mubr.f32.mxu0 %v3542
        %6017 = vmatmul.mubr.f32.gmra.mrb[0].mxu0 %v3541
        %v6018 = vpop.f32.mrb[0].mxu0
        %v6019 = vadd.f32 %v5930, %v6018
        %v6020 = vpop.f32.mrb[0].mxu0
        %v6021 = vadd.f32 %v5932, %v6020
        %6022 = vdwg.mxu0
        %v6023 = vadd.f32 %v3543, %v4933
        %v6024 = vadd.f32 %v3544, %v4935
        %v6025 = vadd.f32 %v3545, %v5289
        %v6026 = vadd.f32 %v3546, %v5291
        %v6027 = vadd.f32 %v3547, %v5645
        %v6028 = vadd.f32 %v3548, %v5647
        %v6029 = vadd.f32 %v3549, %v6001
        %v6030 = vadd.f32 %v3550, %v6003
        %v6031 = vadd.f32 %v3551, %v4939
        %v6032 = vadd.f32 %v3552, %v4941
        %v6033 = vadd.f32 %v3553, %v5295
        %v6034 = vadd.f32 %v3554, %v5297
        %v6035 = vadd.f32 %v3555, %v5651
        %v6036 = vadd.f32 %v3556, %v5653
        %v6037 = vadd.f32 %v3557, %v6007
        %v6038 = vadd.f32 %v3558, %v6009
        %v6039 = vadd.f32 %v3559, %v4945
        %v6040 = vadd.f32 %v3560, %v4947
        %v6041 = vadd.f32 %v3561, %v5301
        %v6042 = vadd.f32 %v3562, %v5303
        %v6043 = vadd.f32 %v3563, %v5657
        %v6044 = vadd.f32 %v3564, %v5659
        %v6045 = vadd.f32 %v3565, %v6013
        %v6046 = vadd.f32 %v3566, %v6015
        %v6047 = vadd.f32 %v3567, %v4951
        %v6048 = vadd.f32 %v3568, %v4953
        %v6049 = vadd.f32 %v3569, %v5307
        %v6050 = vadd.f32 %v3570, %v5309
        %v6051 = vadd.f32 %v3571, %v5663
        %v6052 = vadd.f32 %v3572, %v5665
        %v6053 = vadd.f32 %v3573, %v6019
        %v6054 = vadd.f32 %v3574, %v6021
        %6055 = vst [vmem:[%s445] sm:$0xff] %v6023
        %6056 = vst [vmem:[%s445 + $0x8] sm:$0xff] %v6024
        %6057 = vst [vmem:[%s445 + $0x10] sm:$0xff] %v6025
        %6058 = vst [vmem:[%s445 + $0x18] sm:$0xff] %v6026
        %6059 = vst [vmem:[%s445 + $0x20] sm:$0xff] %v6027
        %6060 = vst [vmem:[%s445 + $0x28] sm:$0xff] %v6028
        %6061 = vst [vmem:[%s445 + $0x30] sm:$0xff] %v6029
        %6062 = vst [vmem:[%s445 + $0x38] sm:$0xff] %v6030
        %6063 = vst [vmem:[%s445 + $0x40] sm:$0xff] %v6031
        %6064 = vst [vmem:[%s445 + $0x48] sm:$0xff] %v6032
        %6065 = vst [vmem:[%s445 + $0x50] sm:$0xff] %v6033
        %6066 = vst [vmem:[%s445 + $0x58] sm:$0xff] %v6034
        %6067 = vst [vmem:[%s445 + $0x60] sm:$0xff] %v6035
        %6068 = vst [vmem:[%s445 + $0x68] sm:$0xff] %v6036
        %6069 = vst [vmem:[%s445 + $0x70] sm:$0xff] %v6037
        %6070 = vst [vmem:[%s445 + $0x78] sm:$0xff] %v6038
        %6071 = vst [vmem:[%s445 + $0x80] sm:$0xff] %v6039
        %6072 = vst [vmem:[%s445 + $0x88] sm:$0xff] %v6040
        %6073 = vst [vmem:[%s445 + $0x90] sm:$0xff] %v6041
        %6074 = vst [vmem:[%s445 + $0x98] sm:$0xff] %v6042
        %6075 = vst [vmem:[%s445 + $0xa0] sm:$0xff] %v6043
        %6076 = vst [vmem:[%s445 + $0xa8] sm:$0xff] %v6044
        %6077 = vst [vmem:[%s445 + $0xb0] sm:$0xff] %v6045
        %6078 = vst [vmem:[%s445 + $0xb8] sm:$0xff] %v6046
        %6079 = vst [vmem:[%s445 + $0xc0] sm:$0xff] %v6047
        %6080 = vst [vmem:[%s445 + $0xc8] sm:$0xff] %v6048
        %6081 = vst [vmem:[%s445 + $0xd0] sm:$0xff] %v6049
        %6082 = vst [vmem:[%s445 + $0xd8] sm:$0xff] %v6050
        %6083 = vst [vmem:[%s445 + $0xe0] sm:$0xff] %v6051
        %6084 = vst [vmem:[%s445 + $0xe8] sm:$0xff] %v6052
        %6085 = vst [vmem:[%s445 + $0xf0] sm:$0xff] %v6053
        %6086 = vst [vmem:[%s445 + $0xf8] sm:$0xff] %v6054
        %p6087 = scmp.lt.s32.totalorder %s24, 1
        %s6088 = scalar_select %p6087, %s24, 1
        %s6089 = smul.addr %s6088, 32
        %s6090 = smul.addr %s6089, 8
        %s6091 = scalar_lea.vmem %s7, %s6090
        // Predicated region
        $region77: #{block_forward.3} parent=47 // pred_check
          %p6092 = pneg %p224
        $region78: #{block_forward.3} parent=47 // pred_check_branch
          %6094 = sbr.rel (%p6092) target = $region80
        $region79: #{block_forward.3} parent=47 // pred_region
          _
        $region80: #{block_forward.3} parent=47 // pred_fallthru
          _
      $region48: #{block_forward.3} parent=5 // pred_fallthru
        _
      %p6095 = scmp.le.s32.totalorder 2, %s15
      // Predicated region
      $region81: #{block_forward.3} parent=5 // pred_check
        %p6096 = pneg %p6095
      $region82: #{block_forward.3} parent=5 // pred_check_branch
        %6098 = sbr.rel (%p6096) target = $region84
      $region83: #{block_forward.3} parent=5 // pred_region
        %s6099 = ssub.s32 %s15, 2
        // Predicated region
        $region85: #{block_forward.3} parent=83 // pred_check
          %p6100 = pneg %p230
        $region86: #{block_forward.3} parent=83 // pred_check_branch
          %6102 = sbr.rel (%p6100) target = $region88
        $region87: #{block_forward.3} parent=83 // pred_region
          %p6103 = scmp.lt.s32.totalorder %s26, 1
          %s6104 = scalar_select %p6103, %s26, 1
          %s6105 = smul.addr %s6104, 32
          %s6106 = smul.addr %s6105, 8
          %s6107 = scalar_lea.vmem %s7, %s6106
        $region88: #{block_forward.3} parent=83 // pred_fallthru
          _
      $region84: #{block_forward.3} parent=5 // pred_fallthru
        _
    $region6: #{block_forward.3} parent=1 // loop_footer
      %s19 = sadd.s32 1, %s15
    $region7: #{block_forward.3} parent=1 // loop_footer_branch
      %14 = sbr.rel target = $region3
    $region8: #{block_forward.3} parent=1 // loop_exit
      _
    %6108 = vsyncpa [#allocation4], 1
    %s6109 = scalar_lea.sflag [#allocation4], 1
    %6110 = vsyncpa %s6109, 1
    %6111 = vsyncpa [#allocation6], 1

</llo_original>
